<compile_context>
chip_gen: v7x
topology: tpu7x:2x2x1
jax: 0.10.0
libtpu: 0.0.40
codegen_flags: <defaults>
</compile_context>

<pallas_src>
import functools
import math

import jax
import jax.numpy as jnp
from jax import lax
from jax.experimental import pallas as pl
from jax.experimental.pallas import tpu as pltpu

F32 = jnp.float32
BF16 = jnp.bfloat16
VMEM_LIMIT = 32 * 1024 * 1024        # above v5e's 16 MiB default, safe everywhere
ROW_TILE = 512                       # ~512-row tiles -> good HBM-roofline fraction


def _round_up(n, m):
    return ((n + m - 1) // m) * m


# --------------------------------------------------------------------------
# Generic row-tiled pallas_call helper (grid over the M/row dimension,
# weights & biases as whole-array blocks, "parallel" semantics for megacore).
# --------------------------------------------------------------------------
def _row_tiled_call(kernel, row_args, const_args, out_cols, *, tile=ROW_TILE):
    M = row_args[0].shape[0]
    tile_m = min(tile, _round_up(M, 8))
    Mp = _round_up(M, tile_m)
    pad = Mp - M
    padded = [jnp.pad(a, ((0, pad), (0, 0))) if pad else a for a in row_args]

    in_specs = []
    for a in padded:
        in_specs.append(pl.BlockSpec((tile_m, a.shape[1]), lambda i: (i, 0)))
    for c in const_args:
        in_specs.append(pl.BlockSpec(c.shape, lambda i, _n=c.ndim: (0,) * _n))

    out = pl.pallas_call(
        kernel,
        out_shape=jax.ShapeDtypeStruct((Mp, out_cols), F32),
        grid=(Mp // tile_m,),
        in_specs=in_specs,
        out_specs=pl.BlockSpec((tile_m, out_cols), lambda i: (i, 0)),
        compiler_params=pltpu.CompilerParams(
            dimension_semantics=("parallel",),
            vmem_limit_bytes=VMEM_LIMIT),
    )(*padded, *const_args)
    return out[:M] if pad else out


# --------------------------------------------------------------------------
# Fused kernels
# --------------------------------------------------------------------------
def _ln(x, g, b, eps):
    mu = jnp.mean(x, axis=-1, keepdims=True)
    xc = x - mu
    var = jnp.mean(xc * xc, axis=-1, keepdims=True)
    return xc * lax.rsqrt(var + eps) * g + b


def _matmul_ln_kernel(x_ref, w_ref, b_ref, g_ref, bb_ref, o_ref, *, eps):
    # stem: patchified pixels @ W + b, then LayerNorm (eps=1e-6)
    y = jnp.dot(x_ref[...].astype(BF16), w_ref[...],
                preferred_element_type=jnp.float32) + b_ref[...]
    o_ref[...] = _ln(y, g_ref[...], bb_ref[...], eps)


def _ln_linear_kernel(x_ref, g_ref, b_ref, w_ref, wb_ref, o_ref, *, eps):
    # LayerNorm followed by a linear projection (head / final projection)
    xn = _ln(x_ref[...], g_ref[...], b_ref[...], eps)
    o_ref[...] = jnp.dot(xn.astype(BF16), w_ref[...],
                         preferred_element_type=jnp.float32) + wb_ref[...]


def _cnx_block_kernel(xp_ref, dww_ref, dwb_ref, g_ref, b_ref, w1_ref, wb1_ref,
                      w2_ref, wb2_ref, gm_ref, o_ref, *, H, W, K, eps):
    # Whole ConvNeXt block, one frame per grid step:
    #   dwconv7x7 -> LN -> pw1+GELU -> pw2 -> residual + gamma*y
    # Residual is the interior of the already-resident padded input block.
    # TODO(synk): at 224x224 / v7x, tile H into row strips with a 6-row halo.
    xp = xp_ref[0]                       # (H+K-1, W+K-1, C)
    w = dww_ref[...]                     # (K, K, C) -- loaded once (hoisted)
    C = xp.shape[-1]
    pad = (K - 1) // 2

    # depthwise conv: 4 accumulators for VPU ILP
    accs = [jnp.zeros((H, W, C), jnp.float32) for _ in range(4)]
    t = 0
    for i in range(K):
        for j in range(K):
            accs[t & 3] = accs[t & 3] + xp[i:i + H, j:j + W, :] * w[i, j]
            t += 1
    y = ((accs[0] + accs[1]) + (accs[2] + accs[3])).reshape(H * W, C) + dwb_ref[...]

    yn = _ln(y, g_ref[...], b_ref[...], eps)
    h = jnp.dot(yn.astype(BF16), w1_ref[...],
                preferred_element_type=jnp.float32) + wb1_ref[...]
    # TODO(synk): torch nn.GELU default is erf-exact; tanh approx used in-kernel.
    h = jax.nn.gelu(h, approximate=True)
    z = jnp.dot(h.astype(BF16), w2_ref[...],
                preferred_element_type=jnp.float32) + wb2_ref[...]

    resid = xp[pad:pad + H, pad:pad + W, :].reshape(H * W, C)
    o_ref[0] = (resid + gm_ref[...] * z).reshape(H, W, C)


def _embed_kernel(xc_ref, mk_ref, pos_ref, tw_ref, mw_ref, mb_ref, o_ref):
    # DataEmbedding: token conv1d (as unrolled matmul) + temporal linear + pos
    val = jnp.dot(xc_ref[...].astype(BF16), tw_ref[...],
                  preferred_element_type=jnp.float32)
    tmp = jnp.dot(mk_ref[...].astype(BF16), mw_ref[...],
                  preferred_element_type=jnp.float32) + mb_ref[...]
    o_ref[...] = val + tmp + pos_ref[...]          # dropout == identity (eval)


def _ffn_block_kernel(z_ref, g1_ref, b1_ref, w1_ref, wb1_ref,
                      w2_ref, wb2_ref, g2_ref, b2_ref, g3_ref, b3_ref,
                      o_ref, *, eps, final_ln):
    # Transformer tail: x1 = LN_a(z); y = GELU(x1 W1 + b1) W2 + b2; LN_b(x1+y)
    # Optionally fuse the encoder's trailing LayerNorm (final_ln=True).
    x1 = _ln(z_ref[...], g1_ref[...], b1_ref[...], eps)
    h = jnp.dot(x1.astype(BF16), w1_ref[...],
                preferred_element_type=jnp.float32) + wb1_ref[...]
    h = jax.nn.gelu(h, approximate=True)   # TODO(synk): erf-exact in torch
    y = jnp.dot(h.astype(BF16), w2_ref[...],
                preferred_element_type=jnp.float32) + wb2_ref[...]
    out = _ln(x1 + y, g2_ref[...], b2_ref[...], eps)
    if final_ln:
        out = _ln(out, g3_ref[...], b3_ref[...], eps)
    o_ref[...] = out


def _attn_block_kernel(q_ref, kv_ref, g_ref, gb_ref, wq_ref, bq_ref,
                       wkv_ref, bkv_ref, wo_ref, bo_ref, o_ref,
                       *, n_heads, causal, pre_ln, scale, eps):
    # Fused: [optional pre-LN] -> Q/KV projections -> per-head SDPA ->
    #        output projection (accumulated per head) -> + residual.
    xq = q_ref[0]                                   # (L, D)
    if pre_ln:
        xq = _ln(xq, g_ref[...], gb_ref[...], eps)
    xkv = kv_ref[0]                                 # (S, D)
    L, D = xq.shape
    S = xkv.shape[0]
    E = D // n_heads

    q = jnp.dot(xq.astype(BF16), wq_ref[...],
                preferred_element_type=jnp.float32) + bq_ref[...]     # (L, D)
    kv = jnp.dot(xkv.astype(BF16), wkv_ref[...],
                 preferred_element_type=jnp.float32) + bkv_ref[...]   # (S, 2D)
    k = kv[:, :D]
    v = kv[:, D:]

    if causal:
        row = lax.broadcasted_iota(jnp.int32, (L, S), 0)
        col = lax.broadcasted_iota(jnp.int32, (L, S), 1)
        neg = jnp.where(col > row, -1e30, 0.0).astype(jnp.float32)

    wo = wo_ref[...]                                # (D, D) f32, loaded once
    acc = jnp.zeros((L, D), jnp.float32)
    for h in range(n_heads):                        # static unroll over heads
        qh = q[:, h * E:(h + 1) * E].astype(BF16)   # (L, E)
        kh = k[:, h * E:(h + 1) * E].astype(BF16)   # (S, E)
        vh = v[:, h * E:(h + 1) * E].astype(BF16)   # (S, E)
        # q . k^T via dot_general contracting the last dims (no transpose)
        s = lax.dot_general(qh, kh, (((1,), (1,)), ((), ())),
                            preferred_element_type=jnp.float32) * scale
        if causal:
            s = s + neg
        m = jnp.max(s, axis=-1, keepdims=True)
        p = jnp.exp(s - m)
        denom = jnp.sum(p, axis=-1, keepdims=True)
        p = p * pl.reciprocal(denom, approx=True)
        oh = jnp.dot(p.astype(BF16), vh,
                     preferred_element_type=jnp.float32)              # (L, E)
        acc = acc + jnp.dot(oh.astype(BF16),
                            wo[h * E:(h + 1) * E, :].astype(BF16),
                            preferred_element_type=jnp.float32)       # (L, D)
    o_ref[0] = xq + acc + bo_ref[...]               # residual fused in epilogue


# --------------------------------------------------------------------------
# Kernel wrappers
# --------------------------------------------------------------------------
def pallas_convnext_block(x, blk):
    """Fused ConvNeXt block.  x: (N, H, W, C) NHWC, one frame per grid step."""
    N, H, W, C = x.shape
    K, pad = 7, 3
    xp = jnp.pad(x, ((0, 0), (pad, pad), (pad, pad), (0, 0)))
    kernel = functools.partial(_cnx_block_kernel, H=H, W=W, K=K, eps=1e-6)
    return pl.pallas_call(
        kernel,
        out_shape=jax.ShapeDtypeStruct((N, H, W, C), F32),
        grid=(N,),
        in_specs=[
            pl.BlockSpec((1, H + 2 * pad, W + 2 * pad, C), lambda i: (i, 0, 0, 0)),
            pl.BlockSpec((K, K, C), lambda i: (0, 0, 0)),
            pl.BlockSpec((1, C), lambda i: (0, 0)),
            pl.BlockSpec((1, C), lambda i: (0, 0)),
            pl.BlockSpec((1, C), lambda i: (0, 0)),
            pl.BlockSpec((C, 4 * C), lambda i: (0, 0)),
            pl.BlockSpec((1, 4 * C), lambda i: (0, 0)),
            pl.BlockSpec((4 * C, C), lambda i: (0, 0)),
            pl.BlockSpec((1, C), lambda i: (0, 0)),
            pl.BlockSpec((1, C), lambda i: (0, 0)),
        ],
        out_specs=pl.BlockSpec((1, H, W, C), lambda i: (i, 0, 0, 0)),
        compiler_params=pltpu.CompilerParams(
            dimension_semantics=("parallel",), vmem_limit_bytes=VMEM_LIMIT),
    )(xp, blk["dw_w"], blk["dw_b"].reshape(1, C),
      blk["ln_g"].reshape(1, C), blk["ln_b"].reshape(1, C),
      blk["pw1_w"].astype(BF16), blk["pw1_b"].reshape(1, -1),
      blk["pw2_w"].astype(BF16), blk["pw2_b"].reshape(1, -1),
      blk["gamma"].reshape(1, C))


def pallas_attn_block(q_in, kv_in, ap, n_heads, causal,
                      pre_ln=False, ln_g=None, ln_b=None, eps=1e-5):
    """Returns [preLN(q_in)] + MHA(q_in, kv_in) with fused QKV / SDPA / proj."""
    B, L, D = q_in.shape
    S = kv_in.shape[1]
    E = D // n_heads
    wq = ap["wq"].astype(BF16)
    wkv = jnp.concatenate([ap["wk"], ap["wv"]], axis=1).astype(BF16)   # (D, 2D)
    bq = ap["bq"].reshape(1, D)
    bkv = jnp.concatenate([ap["bk"], ap["bv"]]).reshape(1, 2 * D)
    wo = ap["wo"]                                   # f32 (sliced per head in-kernel)
    bo = ap["bo"].reshape(1, D)
    if ln_g is None:
        ln_g = jnp.ones((D,), F32)
        ln_b = jnp.zeros((D,), F32)
    kernel = functools.partial(
        _attn_block_kernel, n_heads=n_heads, causal=causal,
        pre_ln=pre_ln, scale=1.0 / math.sqrt(E), eps=eps)
    return pl.pallas_call(
        kernel,
        out_shape=jax.ShapeDtypeStruct((B, L, D), F32),
        grid=(B,),
        in_specs=[
            pl.BlockSpec((1, L, D), lambda b: (b, 0, 0)),
            pl.BlockSpec((1, S, D), lambda b: (b, 0, 0)),
            pl.BlockSpec((1, D), lambda b: (0, 0)),
            pl.BlockSpec((1, D), lambda b: (0, 0)),
            pl.BlockSpec((D, D), lambda b: (0, 0)),
            pl.BlockSpec((1, D), lambda b: (0, 0)),
            pl.BlockSpec((D, 2 * D), lambda b: (0, 0)),
            pl.BlockSpec((1, 2 * D), lambda b: (0, 0)),
            pl.BlockSpec((D, D), lambda b: (0, 0)),
            pl.BlockSpec((1, D), lambda b: (0, 0)),
        ],
        out_specs=pl.BlockSpec((1, L, D), lambda b: (b, 0, 0)),
        compiler_params=pltpu.CompilerParams(
            dimension_semantics=("parallel",), vmem_limit_bytes=VMEM_LIMIT),
    )(q_in, kv_in, ln_g.reshape(1, D), ln_b.reshape(1, D),
      wq, bq, wkv, bkv, wo, bo)


# --------------------------------------------------------------------------
# Parameters (deterministic, small-scale stand-ins for pretrained weights).
# Widths are lane-dense multiples of 128 (c0 matches convnext_base stage-0).
# --------------------------------------------------------------------------
def init_params(key, *, cin=3, c0=128, n_blocks=2, d_model=128,
                d_ff=256, e_layers=1, d_layers=1, patch=4):
    keys = iter(jax.random.split(key, 256))

    def nrm(shape, scale=0.02):
        return scale * jax.random.normal(next(keys), shape, F32)

    p = {}
    p["stem_w"] = nrm((patch * patch * cin, c0))
    p["stem_b"] = nrm((c0,))
    p["stem_ln_g"] = jnp.ones((c0,), F32)
    p["stem_ln_b"] = jnp.zeros((c0,), F32)
    # TODO(synk): full convnext_base has 4 stages with downsampling; this
    # stand-in keeps one resolution (pretrained weights not reproducible here).
    p["blocks"] = [
        dict(
            dw_w=nrm((7, 7, c0)), dw_b=nrm((c0,)),
            ln_g=jnp.ones((c0,), F32), ln_b=jnp.zeros((c0,), F32),
            pw1_w=nrm((c0, 4 * c0)), pw1_b=nrm((4 * c0,)),
            pw2_w=nrm((4 * c0, c0)), pw2_b=nrm((c0,)),
            gamma=1e-6 * jnp.ones((c0,), F32),
        )
        for _ in range(n_blocks)
    ]
    p["head_ln_g"] = jnp.ones((c0,), F32)
    p["head_ln_b"] = jnp.zeros((c0,), F32)
    p["head_w"] = nrm((c0, d_model))
    p["head_b"] = nrm((d_model,))

    for name in ("enc", "dec"):
        p[f"{name}_tok_w"] = nrm((3 * d_model, d_model))
        p[f"{name}_tmp_w"] = nrm((d_model, d_model))
        p[f"{name}_tmp_b"] = nrm((d_model,))

    def attn_params():
        return dict(
            wq=nrm((d_model, d_model)), bq=nrm((d_model,)),
            wk=nrm((d_model, d_model)), bk=nrm((d_model,)),
            wv=nrm((d_model, d_model)), bv=nrm((d_model,)),
            wo=nrm((d_model, d_model)), bo=nrm((d_model,)),
        )

    p["enc_layers"] = [
        dict(
            attn=attn_params(),
            ff1_w=nrm((d_model, d_ff)), ff1_b=nrm((d_ff,)),
            ff2_w=nrm((d_ff, d_model)), ff2_b=nrm((d_model,)),
            ln1_g=jnp.ones((d_model,), F32), ln1_b=jnp.zeros((d_model,), F32),
            ln2_g=jnp.ones((d_model,), F32), ln2_b=jnp.zeros((d_model,), F32),
        )
        for _ in range(e_layers)
    ]
    p["enc_norm_g"] = jnp.ones((d_model,), F32)
    p["enc_norm_b"] = jnp.zeros((d_model,), F32)

    p["dec_layers"] = [
        dict(
            self_attn=attn_params(), cross_attn=attn_params(),
            ff1_w=nrm((d_model, d_ff)), ff1_b=nrm((d_ff,)),
            ff2_w=nrm((d_ff, d_model)), ff2_b=nrm((d_model,)),
            ln1_g=jnp.ones((d_model,), F32), ln1_b=jnp.zeros((d_model,), F32),
            ln2_g=jnp.ones((d_model,), F32), ln2_b=jnp.zeros((d_model,), F32),
            ln3_g=jnp.ones((d_model,), F32), ln3_b=jnp.zeros((d_model,), F32),
        )
        for _ in range(d_layers)
    ]
    p["dec_norm_g"] = jnp.ones((d_model,), F32)
    p["dec_norm_b"] = jnp.zeros((d_model,), F32)
    p["proj_w"] = nrm((d_model, d_model))   # c_out == d_model
    p["proj_b"] = nrm((d_model,))
    return p


# --------------------------------------------------------------------------
# Model pieces
# --------------------------------------------------------------------------
def convnext_forward(p, x_nchw, patch=4):
    """Per-frame spatial model.  x: (N, C, H, W) -> (N, d_model)."""
    N, C, H, W = x_nchw.shape
    x = jnp.transpose(x_nchw, (0, 2, 3, 1))                 # NHWC
    Hp, Wp = H // patch, W // patch
    # Stem: 4x4 stride-4 conv == patchify + fused matmul+LayerNorm kernel.
    # TODO(synk): fold the 4x4 patch gather into the kernel DMA (index_map) to
    # avoid this HBM-materializing transpose at 224x224 scale.
    xpat = x.reshape(N, Hp, patch, Wp, patch, C).transpose(0, 1, 3, 2, 4, 5)
    xpat = xpat.reshape(N * Hp * Wp, patch * patch * C)
    c0 = p["stem_w"].shape[1]
    x = _row_tiled_call(
        functools.partial(_matmul_ln_kernel, eps=1e-6),
        [xpat],
        [p["stem_w"].astype(BF16), p["stem_b"].reshape(1, c0),
         p["stem_ln_g"].reshape(1, c0), p["stem_ln_b"].reshape(1, c0)],
        c0).reshape(N, Hp, Wp, c0)

    # ConvNeXt blocks: fully fused per-frame kernel (dwconv + LN + MLP + residual).
    for blk in p["blocks"]:
        x = pallas_convnext_block(x, blk)

    # Global average pool + fused LayerNorm + head projection.
    x = jnp.mean(x, axis=(1, 2))
    d_model = p["head_w"].shape[1]
    return _row_tiled_call(
        functools.partial(_ln_linear_kernel, eps=1e-6),
        [x],
        [p["head_ln_g"].reshape(1, -1), p["head_ln_b"].reshape(1, -1),
         p["head_w"].astype(BF16), p["head_b"].reshape(1, -1)],
        d_model)


def positional_embedding(L, d_model):
    pos = jnp.arange(L, dtype=F32)[:, None]
    i = jnp.arange(0, d_model, 2, dtype=F32)[None, :]
    div = jnp.exp(-math.log(10000.0) * i / d_model)
    pe = jnp.zeros((L, d_model), F32)
    pe = pe.at[:, 0::2].set(jnp.sin(pos * div))
    pe = pe.at[:, 1::2].set(jnp.cos(pos * div))
    return pe[None]


def data_embedding(x, x_mark, tok_w, tmp_w, tmp_b):
    # TokenEmbedding: Conv1d(c_in->d_model, k=3, circular pad, no bias) as
    # roll-unroll + one fused Pallas kernel (token matmul + temporal matmul + pos).
    B, T, D = x.shape
    x_cat = jnp.concatenate(
        [jnp.roll(x, 1, axis=1), x, jnp.roll(x, -1, axis=1)], axis=-1)
    pos = jnp.broadcast_to(positional_embedding(T, D), (B, T, D)).reshape(B * T, D)
    out = _row_tiled_call(
        _embed_kernel,
        [x_cat.reshape(B * T, 3 * D), x_mark.reshape(B * T, D), pos],
        [tok_w.astype(BF16), tmp_w.astype(BF16), tmp_b.reshape(1, D)],
        D)
    return out.reshape(B, T, D)


def ffn_block(lp, z, pre, post, final_g=None, final_b=None, eps=1e-5):
    B, L, D = z.shape
    final_ln = final_g is not None
    fg = final_g if final_ln else jnp.ones((D,), F32)
    fb = final_b if final_ln else jnp.zeros((D,), F32)
    out = _row_tiled_call(
        functools.partial(_ffn_block_kernel, eps=eps, final_ln=final_ln),
        [z.reshape(B * L, D)],
        [lp[f"{pre}_g"].reshape(1, D), lp[f"{pre}_b"].reshape(1, D),
         lp["ff1_w"].astype(BF16), lp["ff1_b"].reshape(1, -1),
         lp["ff2_w"].astype(BF16), lp["ff2_b"].reshape(1, -1),
         lp[f"{post}_g"].reshape(1, D), lp[f"{post}_b"].reshape(1, D),
         fg.reshape(1, D), fb.reshape(1, D)],
        D)
    return out.reshape(B, L, D)


def encoder_layer(lp, x, n_heads, final_g=None, final_b=None):
    z = pallas_attn_block(x, x, lp["attn"], n_heads, causal=False)     # x + attn
    # LN1 -> FFN -> LN2 (+ fused Encoder trailing LayerNorm on the last layer)
    return ffn_block(lp, z, "ln1", "ln2", final_g, final_b)


def decoder_layer(lp, x, cross, n_heads):
    z = pallas_attn_block(x, x, lp["self_attn"], n_heads, causal=True)         # x + self_attn
    z = pallas_attn_block(z, cross, lp["cross_attn"], n_heads, causal=False,   # LN1 fused as pre-LN
                          pre_ln=True, ln_g=lp["ln1_g"], ln_b=lp["ln1_b"])
    return ffn_block(lp, z, "ln2", "ln3")                                      # LN2->FFN->LN3


def model_forward(params, x, n_heads=4, pred_len=1):
    # x: (B, T, C, H, W) video clip (PyTorch layout)
    B, T = x.shape[0], x.shape[1]
    xf = x.reshape(-1, *x.shape[-3:])                 # (B*T, C, H, W)
    feat = convnext_forward(params, xf)               # (B*T, d_model)
    feat = feat.reshape(B, T, -1)
    x_mark = jnp.ones_like(feat)                      # ones_like marks

    enc = data_embedding(feat, x_mark, params["enc_tok_w"],
                         params["enc_tmp_w"], params["enc_tmp_b"])
    n_enc = len(params["enc_layers"])
    for idx, lp in enumerate(params["enc_layers"]):
        last = idx == n_enc - 1
        enc = encoder_layer(lp, enc, n_heads,
                            params["enc_norm_g"] if last else None,
                            params["enc_norm_b"] if last else None)

    dec = data_embedding(feat, x_mark, params["dec_tok_w"],
                         params["dec_tmp_w"], params["dec_tmp_b"])
    for lp in params["dec_layers"]:
        dec = decoder_layer(lp, dec, enc, n_heads)

    # Fused final LayerNorm + output projection.
    Bd, Td, D = dec.shape
    out = _row_tiled_call(
        functools.partial(_ln_linear_kernel, eps=1e-5),
        [dec.reshape(Bd * Td, D)],
        [params["dec_norm_g"].reshape(1, D), params["dec_norm_b"].reshape(1, D),
         params["proj_w"].astype(BF16), params["proj_b"].reshape(1, -1)],
        params["proj_w"].shape[1]).reshape(Bd, Td, -1)
    return out[:, -pred_len:, :]                      # (B, 1, d_model)


# --------------------------------------------------------------------------
if __name__ == "__main__":
    key = jax.random.PRNGKey(0)
    kx, kp = jax.random.split(key)
    B, T, C, H, W = 2, 4, 3, 16, 16                   # small stand-in for (B, 30, 3, 224, 224)
    x = jax.random.normal(kx, (B, T, C, H, W), F32)
    params = init_params(kp)

    fwd = jax.jit(model_forward)
    out = fwd(params, x)
    out = jax.block_until_ready(out)
    assert out.shape == (B, 1, 128), out.shape
    assert jnp.all(jnp.isfinite(out))
    print("KERNEL_OK")
</pallas_src>

<mosaic_0001>
module attributes {stable_mosaic.version = 11 : i64} {
  func.func @_matmul_ln_kernel(%arg0: i32, %arg1: memref<128x48xf32, #tpu.memory_space<vmem>>, %arg2: memref<48x128xbf16, #tpu.memory_space<vmem>>, %arg3: memref<1x128xf32, #tpu.memory_space<vmem>>, %arg4: memref<1x128xf32, #tpu.memory_space<vmem>>, %arg5: memref<1x128xf32, #tpu.memory_space<vmem>>, %arg6: memref<128x128xf32, #tpu.memory_space<vmem>>) attributes {dimension_semantics = [#tpu.dimension_semantics<parallel>], iteration_bounds = array<i64: 1>, scalar_prefetch = 0 : i64, scratch_operands = 0 : i64, tpu.core_type = #tpu.core_type<tc>, window_params = [{transform_indices = @transform_0, window_bounds = array<i64: 128, 48>}, {pipeline_mode = #tpu.pipeline_mode<synchronous>, transform_indices = @transform_1, window_bounds = array<i64: 48, 128>}, {pipeline_mode = #tpu.pipeline_mode<synchronous>, transform_indices = @transform_2, window_bounds = array<i64: 1, 128>}, {pipeline_mode = #tpu.pipeline_mode<synchronous>, transform_indices = @transform_3, window_bounds = array<i64: 1, 128>}, {pipeline_mode = #tpu.pipeline_mode<synchronous>, transform_indices = @transform_4, window_bounds = array<i64: 1, 128>}, {transform_indices = @transform_5, window_bounds = array<i64: 128, 128>}]} {
    %c0 = arith.constant 0 : index
    %c0_0 = arith.constant 0 : index
    %0 = vector.load %arg1[%c0, %c0_0] : memref<128x48xf32, #tpu.memory_space<vmem>>, vector<128x48xf32>
    %1 = arith.truncf %0 : vector<128x48xf32> to vector<128x48xbf16>
    %c0_1 = arith.constant 0 : index
    %c0_2 = arith.constant 0 : index
    %2 = vector.load %arg2[%c0_1, %c0_2] : memref<48x128xbf16, #tpu.memory_space<vmem>>, vector<48x128xbf16>
    %cst = arith.constant dense<0.000000e+00> : vector<128x128xf32>
    %3 = tpu.matmul %1, %2, %cst {dimension_numbers = #tpu.dot_dimension_numbers<[1], [0], [0], [1], [0, 0, 1, 1], [], []>} : vector<128x48xbf16>, vector<48x128xbf16>, vector<128x128xf32> -> vector<128x128xf32>
    %c0_3 = arith.constant 0 : index
    %c0_4 = arith.constant 0 : index
    %4 = vector.load %arg3[%c0_3, %c0_4] : memref<1x128xf32, #tpu.memory_space<vmem>>, vector<1x128xf32>
    %5 = vector.broadcast %4 : vector<1x128xf32> to vector<128x128xf32>
    %6 = arith.addf %3, %5 : vector<128x128xf32>
    %c0_5 = arith.constant 0 : index
    %c0_6 = arith.constant 0 : index
    %7 = vector.load %arg4[%c0_5, %c0_6] : memref<1x128xf32, #tpu.memory_space<vmem>>, vector<1x128xf32>
    %c0_7 = arith.constant 0 : index
    %c0_8 = arith.constant 0 : index
    %8 = vector.load %arg5[%c0_7, %c0_8] : memref<1x128xf32, #tpu.memory_space<vmem>>, vector<1x128xf32>
    %cst_9 = arith.constant dense<0.000000e+00> : vector<128xf32>
    %9 = vector.multi_reduction <add>, %6, %cst_9 [1] : vector<128x128xf32> to vector<128xf32>
    %10 = vector.shape_cast %9 : vector<128xf32> to vector<128x1xf32>
    %cst_10 = arith.constant 1.280000e+02 : f32
    %11 = vector.broadcast %cst_10 : f32 to vector<128x1xf32>
    %12 = arith.divf %10, %11 : vector<128x1xf32>
    %13 = vector.broadcast %12 : vector<128x1xf32> to vector<128x128xf32>
    %14 = arith.subf %6, %13 : vector<128x128xf32>
    %15 = arith.mulf %14, %14 : vector<128x128xf32>
    %cst_11 = arith.constant dense<0.000000e+00> : vector<128xf32>
    %16 = vector.multi_reduction <add>, %15, %cst_11 [1] : vector<128x128xf32> to vector<128xf32>
    %17 = vector.shape_cast %16 : vector<128xf32> to vector<128x1xf32>
    %cst_12 = arith.constant 1.280000e+02 : f32
    %18 = vector.broadcast %cst_12 : f32 to vector<128x1xf32>
    %19 = arith.divf %17, %18 : vector<128x1xf32>
    %cst_13 = arith.constant 9.99999997E-7 : f32
    %20 = vector.broadcast %cst_13 : f32 to vector<128x1xf32>
    %21 = arith.addf %19, %20 : vector<128x1xf32>
    %22 = math.rsqrt %21 : vector<128x1xf32>
    %23 = vector.broadcast %22 : vector<128x1xf32> to vector<128x128xf32>
    %24 = arith.mulf %14, %23 : vector<128x128xf32>
    %25 = vector.broadcast %7 : vector<1x128xf32> to vector<128x128xf32>
    %26 = arith.mulf %24, %25 : vector<128x128xf32>
    %27 = vector.broadcast %8 : vector<1x128xf32> to vector<128x128xf32>
    %28 = arith.addf %26, %27 : vector<128x128xf32>
    %c0_14 = arith.constant 0 : index
    %c0_15 = arith.constant 0 : index
    %29 = vector.load %arg6[%c0_14, %c0_15] : memref<128x128xf32, #tpu.memory_space<vmem>>, vector<128x128xf32>
    tpu.vector_store %arg6[%c0_14, %c0_15], %28 {strides = array<i32>} : memref<128x128xf32, #tpu.memory_space<vmem>>, vector<128x128xf32>,
    return
  }
  func.func @transform_0(%arg0: i32) -> (i32, i32) {
    %c0_i32 = arith.constant 0 : i32
    %c0_i32_0 = arith.constant 0 : i32
    return %arg0, %c0_i32 : i32, i32
  }
  func.func @transform_1(%arg0: i32) -> (i32, i32) {
    %c0_i32 = arith.constant 0 : i32
    %c0_i32_0 = arith.constant 0 : i32
    %c0_i32_1 = arith.constant 0 : i32
    return %c0_i32, %c0_i32_0 : i32, i32
  }
  func.func @transform_2(%arg0: i32) -> (i32, i32) {
    %c0_i32 = arith.constant 0 : i32
    %c0_i32_0 = arith.constant 0 : i32
    %c0_i32_1 = arith.constant 0 : i32
    return %c0_i32, %c0_i32_0 : i32, i32
  }
  func.func @transform_3(%arg0: i32) -> (i32, i32) {
    %c0_i32 = arith.constant 0 : i32
    %c0_i32_0 = arith.constant 0 : i32
    %c0_i32_1 = arith.constant 0 : i32
    return %c0_i32, %c0_i32_0 : i32, i32
  }
  func.func @transform_4(%arg0: i32) -> (i32, i32) {
    %c0_i32 = arith.constant 0 : i32
    %c0_i32_0 = arith.constant 0 : i32
    %c0_i32_1 = arith.constant 0 : i32
    return %c0_i32, %c0_i32_0 : i32, i32
  }
  func.func @transform_5(%arg0: i32) -> (i32, i32) {
    %c0_i32 = arith.constant 0 : i32
    %c0_i32_0 = arith.constant 0 : i32
    return %arg0, %c0_i32 : i32, i32
  }
}

module attributes {stable_mosaic.version = 11 : i64} {
  func.func @_cnx_block_kernel(%arg0: i32, %arg1: memref<1x10x10x128xf32, #tpu.memory_space<vmem>>, %arg2: memref<7x7x128xf32, #tpu.memory_space<vmem>>, %arg3: memref<1x128xf32, #tpu.memory_space<vmem>>, %arg4: memref<1x128xf32, #tpu.memory_space<vmem>>, %arg5: memref<1x128xf32, #tpu.memory_space<vmem>>, %arg6: memref<128x512xbf16, #tpu.memory_space<vmem>>, %arg7: memref<1x512xf32, #tpu.memory_space<vmem>>, %arg8: memref<512x128xbf16, #tpu.memory_space<vmem>>, %arg9: memref<1x128xf32, #tpu.memory_space<vmem>>, %arg10: memref<1x128xf32, #tpu.memory_space<vmem>>, %arg11: memref<1x4x4x128xf32, #tpu.memory_space<vmem>>) attributes {dimension_semantics = [#tpu.dimension_semantics<parallel>], iteration_bounds = array<i64: 8>, scalar_prefetch = 0 : i64, scratch_operands = 0 : i64, tpu.core_type = #tpu.core_type<tc>, window_params = [{transform_indices = @transform_0, window_bounds = array<i64: 1, 10, 10, 128>}, {pipeline_mode = #tpu.pipeline_mode<synchronous>, transform_indices = @transform_1, window_bounds = array<i64: 7, 7, 128>}, {pipeline_mode = #tpu.pipeline_mode<synchronous>, transform_indices = @transform_2, window_bounds = array<i64: 1, 128>}, {pipeline_mode = #tpu.pipeline_mode<synchronous>, transform_indices = @transform_3, window_bounds = array<i64: 1, 128>}, {pipeline_mode = #tpu.pipeline_mode<synchronous>, transform_indices = @transform_4, window_bounds = array<i64: 1, 128>}, {pipeline_mode = #tpu.pipeline_mode<synchronous>, transform_indices = @transform_5, window_bounds = array<i64: 128, 512>}, {pipeline_mode = #tpu.pipeline_mode<synchronous>, transform_indices = @transform_6, window_bounds = array<i64: 1, 512>}, {pipeline_mode = #tpu.pipeline_mode<synchronous>, transform_indices = @transform_7, window_bounds = array<i64: 512, 128>}, {pipeline_mode = #tpu.pipeline_mode<synchronous>, transform_indices = @transform_8, window_bounds = array<i64: 1, 128>}, {pipeline_mode = #tpu.pipeline_mode<synchronous>, transform_indices = @transform_9, window_bounds = array<i64: 1, 128>}, {transform_indices = @transform_10, window_bounds = array<i64: 1, 4, 4, 128>}]} {
    %c0 = arith.constant 0 : index
    %c0_0 = arith.constant 0 : index
    %c0_1 = arith.constant 0 : index
    %c0_2 = arith.constant 0 : index
    %0 = vector.load %arg1[%c0, %c0_0, %c0_1, %c0_2] : memref<1x10x10x128xf32, #tpu.memory_space<vmem>>, vector<1x10x10x128xf32>
    %1 = vector.shape_cast %0 : vector<1x10x10x128xf32> to vector<10x10x128xf32>
    %c0_3 = arith.constant 0 : index
    %c0_4 = arith.constant 0 : index
    %c0_5 = arith.constant 0 : index
    %2 = vector.load %arg2[%c0_3, %c0_4, %c0_5] : memref<7x7x128xf32, #tpu.memory_space<vmem>>, vector<7x7x128xf32>
    %cst = arith.constant 0.000000e+00 : f32
    %3 = vector.broadcast %cst : f32 to vector<4x4x128xf32>
    %cst_6 = arith.constant 0.000000e+00 : f32
    %4 = vector.broadcast %cst_6 : f32 to vector<4x4x128xf32>
    %cst_7 = arith.constant 0.000000e+00 : f32
    %5 = vector.broadcast %cst_7 : f32 to vector<4x4x128xf32>
    %cst_8 = arith.constant 0.000000e+00 : f32
    %6 = vector.broadcast %cst_8 : f32 to vector<4x4x128xf32>
    %7 = vector.extract_strided_slice %1 {offsets = [0, 0, 0], sizes = [4, 4, 128], strides = [1, 1, 1]} : vector<10x10x128xf32> to vector<4x4x128xf32>
    %8 = vector.extract_strided_slice %2 {offsets = [0, 0, 0], sizes = [1, 1, 128], strides = [1, 1, 1]} : vector<7x7x128xf32> to vector<1x1x128xf32>
    %9 = vector.shape_cast %8 : vector<1x1x128xf32> to vector<128xf32>
    %10 = vector.shape_cast %9 : vector<128xf32> to vector<1x1x128xf32>
    %11 = vector.broadcast %10 : vector<1x1x128xf32> to vector<4x4x128xf32>
    %12 = arith.mulf %7, %11 : vector<4x4x128xf32>
    %13 = arith.addf %3, %12 : vector<4x4x128xf32>
    %14 = vector.extract_strided_slice %1 {offsets = [0, 1, 0], sizes = [4, 4, 128], strides = [1, 1, 1]} : vector<10x10x128xf32> to vector<4x4x128xf32>
    %15 = vector.extract_strided_slice %2 {offsets = [0, 1, 0], sizes = [1, 1, 128], strides = [1, 1, 1]} : vector<7x7x128xf32> to vector<1x1x128xf32>
    %16 = vector.shape_cast %15 : vector<1x1x128xf32> to vector<128xf32>
    %17 = vector.shape_cast %16 : vector<128xf32> to vector<1x1x128xf32>
    %18 = vector.broadcast %17 : vector<1x1x128xf32> to vector<4x4x128xf32>
    %19 = arith.mulf %14, %18 : vector<4x4x128xf32>
    %20 = arith.addf %4, %19 : vector<4x4x128xf32>
    %21 = vector.extract_strided_slice %1 {offsets = [0, 2, 0], sizes = [4, 4, 128], strides = [1, 1, 1]} : vector<10x10x128xf32> to vector<4x4x128xf32>
    %22 = vector.extract_strided_slice %2 {offsets = [0, 2, 0], sizes = [1, 1, 128], strides = [1, 1, 1]} : vector<7x7x128xf32> to vector<1x1x128xf32>
    %23 = vector.shape_cast %22 : vector<1x1x128xf32> to vector<128xf32>
    %24 = vector.shape_cast %23 : vector<128xf32> to vector<1x1x128xf32>
    %25 = vector.broadcast %24 : vector<1x1x128xf32> to vector<4x4x128xf32>
    %26 = arith.mulf %21, %25 : vector<4x4x128xf32>
    %27 = arith.addf %5, %26 : vector<4x4x128xf32>
    %28 = vector.extract_strided_slice %1 {offsets = [0, 3, 0], sizes = [4, 4, 128], strides = [1, 1, 1]} : vector<10x10x128xf32> to vector<4x4x128xf32>
    %29 = vector.extract_strided_slice %2 {offsets = [0, 3, 0], sizes = [1, 1, 128], strides = [1, 1, 1]} : vector<7x7x128xf32> to vector<1x1x128xf32>
    %30 = vector.shape_cast %29 : vector<1x1x128xf32> to vector<128xf32>
    %31 = vector.shape_cast %30 : vector<128xf32> to vector<1x1x128xf32>
    %32 = vector.broadcast %31 : vector<1x1x128xf32> to vector<4x4x128xf32>
    %33 = arith.mulf %28, %32 : vector<4x4x128xf32>
    %34 = arith.addf %6, %33 : vector<4x4x128xf32>
    %35 = vector.extract_strided_slice %1 {offsets = [0, 4, 0], sizes = [4, 4, 128], strides = [1, 1, 1]} : vector<10x10x128xf32> to vector<4x4x128xf32>
    %36 = vector.extract_strided_slice %2 {offsets = [0, 4, 0], sizes = [1, 1, 128], strides = [1, 1, 1]} : vector<7x7x128xf32> to vector<1x1x128xf32>
    %37 = vector.shape_cast %36 : vector<1x1x128xf32> to vector<128xf32>
    %38 = vector.shape_cast %37 : vector<128xf32> to vector<1x1x128xf32>
    %39 = vector.broadcast %38 : vector<1x1x128xf32> to vector<4x4x128xf32>
    %40 = arith.mulf %35, %39 : vector<4x4x128xf32>
    %41 = arith.addf %13, %40 : vector<4x4x128xf32>
    %42 = vector.extract_strided_slice %1 {offsets = [0, 5, 0], sizes = [4, 4, 128], strides = [1, 1, 1]} : vector<10x10x128xf32> to vector<4x4x128xf32>
    %43 = vector.extract_strided_slice %2 {offsets = [0, 5, 0], sizes = [1, 1, 128], strides = [1, 1, 1]} : vector<7x7x128xf32> to vector<1x1x128xf32>
    %44 = vector.shape_cast %43 : vector<1x1x128xf32> to vector<128xf32>
    %45 = vector.shape_cast %44 : vector<128xf32> to vector<1x1x128xf32>
    %46 = vector.broadcast %45 : vector<1x1x128xf32> to vector<4x4x128xf32>
    %47 = arith.mulf %42, %46 : vector<4x4x128xf32>
    %48 = arith.addf %20, %47 : vector<4x4x128xf32>
    %49 = vector.extract_strided_slice %1 {offsets = [0, 6, 0], sizes = [4, 4, 128], strides = [1, 1, 1]} : vector<10x10x128xf32> to vector<4x4x128xf32>
    %50 = vector.extract_strided_slice %2 {offsets = [0, 6, 0], sizes = [1, 1, 128], strides = [1, 1, 1]} : vector<7x7x128xf32> to vector<1x1x128xf32>
    %51 = vector.shape_cast %50 : vector<1x1x128xf32> to vector<128xf32>
    %52 = vector.shape_cast %51 : vector<128xf32> to vector<1x1x128xf32>
    %53 = vector.broadcast %52 : vector<1x1x128xf32> to vector<4x4x128xf32>
    %54 = arith.mulf %49, %53 : vector<4x4x128xf32>
    %55 = arith.addf %27, %54 : vector<4x4x128xf32>
    %56 = vector.extract_strided_slice %1 {offsets = [1, 0, 0], sizes = [4, 4, 128], strides = [1, 1, 1]} : vector<10x10x128xf32> to vector<4x4x128xf32>
    %57 = vector.extract_strided_slice %2 {offsets = [1, 0, 0], sizes = [1, 1, 128], strides = [1, 1, 1]} : vector<7x7x128xf32> to vector<1x1x128xf32>
    %58 = vector.shape_cast %57 : vector<1x1x128xf32> to vector<128xf32>
    %59 = vector.shape_cast %58 : vector<128xf32> to vector<1x1x128xf32>
    %60 = vector.broadcast %59 : vector<1x1x128xf32> to vector<4x4x128xf32>
    %61 = arith.mulf %56, %60 : vector<4x4x128xf32>
    %62 = arith.addf %34, %61 : vector<4x4x128xf32>
    %63 = vector.extract_strided_slice %1 {offsets = [1, 1, 0], sizes = [4, 4, 128], strides = [1, 1, 1]} : vector<10x10x128xf32> to vector<4x4x128xf32>
    %64 = vector.extract_strided_slice %2 {offsets = [1, 1, 0], sizes = [1, 1, 128], strides = [1, 1, 1]} : vector<7x7x128xf32> to vector<1x1x128xf32>
    %65 = vector.shape_cast %64 : vector<1x1x128xf32> to vector<128xf32>
    %66 = vector.shape_cast %65 : vector<128xf32> to vector<1x1x128xf32>
    %67 = vector.broadcast %66 : vector<1x1x128xf32> to vector<4x4x128xf32>
    %68 = arith.mulf %63, %67 : vector<4x4x128xf32>
    %69 = arith.addf %41, %68 : vector<4x4x128xf32>
    %70 = vector.extract_strided_slice %1 {offsets = [1, 2, 0], sizes = [4, 4, 128], strides = [1, 1, 1]} : vector<10x10x128xf32> to vector<4x4x128xf32>
    %71 = vector.extract_strided_slice %2 {offsets = [1, 2, 0], sizes = [1, 1, 128], strides = [1, 1, 1]} : vector<7x7x128xf32> to vector<1x1x128xf32>
    %72 = vector.shape_cast %71 : vector<1x1x128xf32> to vector<128xf32>
    %73 = vector.shape_cast %72 : vector<128xf32> to vector<1x1x128xf32>
    %74 = vector.broadcast %73 : vector<1x1x128xf32> to vector<4x4x128xf32>
    %75 = arith.mulf %70, %74 : vector<4x4x128xf32>
    %76 = arith.addf %48, %75 : vector<4x4x128xf32>
    %77 = vector.extract_strided_slice %1 {offsets = [1, 3, 0], sizes = [4, 4, 128], strides = [1, 1, 1]} : vector<10x10x128xf32> to vector<4x4x128xf32>
    %78 = vector.extract_strided_slice %2 {offsets = [1, 3, 0], sizes = [1, 1, 128], strides = [1, 1, 1]} : vector<7x7x128xf32> to vector<1x1x128xf32>
    %79 = vector.shape_cast %78 : vector<1x1x128xf32> to vector<128xf32>
    %80 = vector.shape_cast %79 : vector<128xf32> to vector<1x1x128xf32>
    %81 = vector.broadcast %80 : vector<1x1x128xf32> to vector<4x4x128xf32>
    %82 = arith.mulf %77, %81 : vector<4x4x128xf32>
    %83 = arith.addf %55, %82 : vector<4x4x128xf32>
    %84 = vector.extract_strided_slice %1 {offsets = [1, 4, 0], sizes = [4, 4, 128], strides = [1, 1, 1]} : vector<10x10x128xf32> to vector<4x4x128xf32>
    %85 = vector.extract_strided_slice %2 {offsets = [1, 4, 0], sizes = [1, 1, 128], strides = [1, 1, 1]} : vector<7x7x128xf32> to vector<1x1x128xf32>
    %86 = vector.shape_cast %85 : vector<1x1x128xf32> to vector<128xf32>
    %87 = vector.shape_cast %86 : vector<128xf32> to vector<1x1x128xf32>
    %88 = vector.broadcast %87 : vector<1x1x128xf32> to vector<4x4x128xf32>
    %89 = arith.mulf %84, %88 : vector<4x4x128xf32>
    %90 = arith.addf %62, %89 : vector<4x4x128xf32>
    %91 = vector.extract_strided_slice %1 {offsets = [1, 5, 0], sizes = [4, 4, 128], strides = [1, 1, 1]} : vector<10x10x128xf32> to vector<4x4x128xf32>
    %92 = vector.extract_strided_slice %2 {offsets = [1, 5, 0], sizes = [1, 1, 128], strides = [1, 1, 1]} : vector<7x7x128xf32> to vector<1x1x128xf32>
    %93 = vector.shape_cast %92 : vector<1x1x128xf32> to vector<128xf32>
    %94 = vector.shape_cast %93 : vector<128xf32> to vector<1x1x128xf32>
    %95 = vector.broadcast %94 : vector<1x1x128xf32> to vector<4x4x128xf32>
    %96 = arith.mulf %91, %95 : vector<4x4x128xf32>
    %97 = arith.addf %69, %96 : vector<4x4x128xf32>
    %98 = vector.extract_strided_slice %1 {offsets = [1, 6, 0], sizes = [4, 4, 128], strides = [1, 1, 1]} : vector<10x10x128xf32> to vector<4x4x128xf32>
    %99 = vector.extract_strided_slice %2 {offsets = [1, 6, 0], sizes = [1, 1, 128], strides = [1, 1, 1]} : vector<7x7x128xf32> to vector<1x1x128xf32>
    %100 = vector.shape_cast %99 : vector<1x1x128xf32> to vector<128xf32>
    %101 = vector.shape_cast %100 : vector<128xf32> to vector<1x1x128xf32>
    %102 = vector.broadcast %101 : vector<1x1x128xf32> to vector<4x4x128xf32>
    %103 = arith.mulf %98, %102 : vector<4x4x128xf32>
    %104 = arith.addf %76, %103 : vector<4x4x128xf32>
    %105 = vector.extract_strided_slice %1 {offsets = [2, 0, 0], sizes = [4, 4, 128], strides = [1, 1, 1]} : vector<10x10x128xf32> to vector<4x4x128xf32>
    %106 = vector.extract_strided_slice %2 {offsets = [2, 0, 0], sizes = [1, 1, 128], strides = [1, 1, 1]} : vector<7x7x128xf32> to vector<1x1x128xf32>
    %107 = vector.shape_cast %106 : vector<1x1x128xf32> to vector<128xf32>
    %108 = vector.shape_cast %107 : vector<128xf32> to vector<1x1x128xf32>
    %109 = vector.broadcast %108 : vector<1x1x128xf32> to vector<4x4x128xf32>
    %110 = arith.mulf %105, %109 : vector<4x4x128xf32>
    %111 = arith.addf %83, %110 : vector<4x4x128xf32>
    %112 = vector.extract_strided_slice %1 {offsets = [2, 1, 0], sizes = [4, 4, 128], strides = [1, 1, 1]} : vector<10x10x128xf32> to vector<4x4x128xf32>
    %113 = vector.extract_strided_slice %2 {offsets = [2, 1, 0], sizes = [1, 1, 128], strides = [1, 1, 1]} : vector<7x7x128xf32> to vector<1x1x128xf32>
    %114 = vector.shape_cast %113 : vector<1x1x128xf32> to vector<128xf32>
    %115 = vector.shape_cast %114 : vector<128xf32> to vector<1x1x128xf32>
    %116 = vector.broadcast %115 : vector<1x1x128xf32> to vector<4x4x128xf32>
    %117 = arith.mulf %112, %116 : vector<4x4x128xf32>
    %118 = arith.addf %90, %117 : vector<4x4x128xf32>
    %119 = vector.extract_strided_slice %1 {offsets = [2, 2, 0], sizes = [4, 4, 128], strides = [1, 1, 1]} : vector<10x10x128xf32> to vector<4x4x128xf32>
    %120 = vector.extract_strided_slice %2 {offsets = [2, 2, 0], sizes = [1, 1, 128], strides = [1, 1, 1]} : vector<7x7x128xf32> to vector<1x1x128xf32>
    %121 = vector.shape_cast %120 : vector<1x1x128xf32> to vector<128xf32>
    %122 = vector.shape_cast %121 : vector<128xf32> to vector<1x1x128xf32>
    %123 = vector.broadcast %122 : vector<1x1x128xf32> to vector<4x4x128xf32>
    %124 = arith.mulf %119, %123 : vector<4x4x128xf32>
    %125 = arith.addf %97, %124 : vector<4x4x128xf32>
    %126 = vector.extract_strided_slice %1 {offsets = [2, 3, 0], sizes = [4, 4, 128], strides = [1, 1, 1]} : vector<10x10x128xf32> to vector<4x4x128xf32>
    %127 = vector.extract_strided_slice %2 {offsets = [2, 3, 0], sizes = [1, 1, 128], strides = [1, 1, 1]} : vector<7x7x128xf32> to vector<1x1x128xf32>
    %128 = vector.shape_cast %127 : vector<1x1x128xf32> to vector<128xf32>
    %129 = vector.shape_cast %128 : vector<128xf32> to vector<1x1x128xf32>
    %130 = vector.broadcast %129 : vector<1x1x128xf32> to vector<4x4x128xf32>
    %131 = arith.mulf %126, %130 : vector<4x4x128xf32>
    %132 = arith.addf %104, %131 : vector<4x4x128xf32>
    %133 = vector.extract_strided_slice %1 {offsets = [2, 4, 0], sizes = [4, 4, 128], strides = [1, 1, 1]} : vector<10x10x128xf32> to vector<4x4x128xf32>
    %134 = vector.extract_strided_slice %2 {offsets = [2, 4, 0], sizes = [1, 1, 128], strides = [1, 1, 1]} : vector<7x7x128xf32> to vector<1x1x128xf32>
    %135 = vector.shape_cast %134 : vector<1x1x128xf32> to vector<128xf32>
    %136 = vector.shape_cast %135 : vector<128xf32> to vector<1x1x128xf32>
    %137 = vector.broadcast %136 : vector<1x1x128xf32> to vector<4x4x128xf32>
    %138 = arith.mulf %133, %137 : vector<4x4x128xf32>
    %139 = arith.addf %111, %138 : vector<4x4x128xf32>
    %140 = vector.extract_strided_slice %1 {offsets = [2, 5, 0], sizes = [4, 4, 128], strides = [1, 1, 1]} : vector<10x10x128xf32> to vector<4x4x128xf32>
    %141 = vector.extract_strided_slice %2 {offsets = [2, 5, 0], sizes = [1, 1, 128], strides = [1, 1, 1]} : vector<7x7x128xf32> to vector<1x1x128xf32>
    %142 = vector.shape_cast %141 : vector<1x1x128xf32> to vector<128xf32>
    %143 = vector.shape_cast %142 : vector<128xf32> to vector<1x1x128xf32>
    %144 = vector.broadcast %143 : vector<1x1x128xf32> to vector<4x4x128xf32>
    %145 = arith.mulf %140, %144 : vector<4x4x128xf32>
    %146 = arith.addf %118, %145 : vector<4x4x128xf32>
    %147 = vector.extract_strided_slice %1 {offsets = [2, 6, 0], sizes = [4, 4, 128], strides = [1, 1, 1]} : vector<10x10x128xf32> to vector<4x4x128xf32>
    %148 = vector.extract_strided_slice %2 {offsets = [2, 6, 0], sizes = [1, 1, 128], strides = [1, 1, 1]} : vector<7x7x128xf32> to vector<1x1x128xf32>
    %149 = vector.shape_cast %148 : vector<1x1x128xf32> to vector<128xf32>
    %150 = vector.shape_cast %149 : vector<128xf32> to vector<1x1x128xf32>
    %151 = vector.broadcast %150 : vector<1x1x128xf32> to vector<4x4x128xf32>
    %152 = arith.mulf %147, %151 : vector<4x4x128xf32>
    %153 = arith.addf %125, %152 : vector<4x4x128xf32>
    %154 = vector.extract_strided_slice %1 {offsets = [3, 0, 0], sizes = [4, 4, 128], strides = [1, 1, 1]} : vector<10x10x128xf32> to vector<4x4x128xf32>
    %155 = vector.extract_strided_slice %2 {offsets = [3, 0, 0], sizes = [1, 1, 128], strides = [1, 1, 1]} : vector<7x7x128xf32> to vector<1x1x128xf32>
    %156 = vector.shape_cast %155 : vector<1x1x128xf32> to vector<128xf32>
    %157 = vector.shape_cast %156 : vector<128xf32> to vector<1x1x128xf32>
    %158 = vector.broadcast %157 : vector<1x1x128xf32> to vector<4x4x128xf32>
    %159 = arith.mulf %154, %158 : vector<4x4x128xf32>
    %160 = arith.addf %132, %159 : vector<4x4x128xf32>
    %161 = vector.extract_strided_slice %1 {offsets = [3, 1, 0], sizes = [4, 4, 128], strides = [1, 1, 1]} : vector<10x10x128xf32> to vector<4x4x128xf32>
    %162 = vector.extract_strided_slice %2 {offsets = [3, 1, 0], sizes = [1, 1, 128], strides = [1, 1, 1]} : vector<7x7x128xf32> to vector<1x1x128xf32>
    %163 = vector.shape_cast %162 : vector<1x1x128xf32> to vector<128xf32>
    %164 = vector.shape_cast %163 : vector<128xf32> to vector<1x1x128xf32>
    %165 = vector.broadcast %164 : vector<1x1x128xf32> to vector<4x4x128xf32>
    %166 = arith.mulf %161, %165 : vector<4x4x128xf32>
    %167 = arith.addf %139, %166 : vector<4x4x128xf32>
    %168 = vector.extract_strided_slice %1 {offsets = [3, 2, 0], sizes = [4, 4, 128], strides = [1, 1, 1]} : vector<10x10x128xf32> to vector<4x4x128xf32>
    %169 = vector.extract_strided_slice %2 {offsets = [3, 2, 0], sizes = [1, 1, 128], strides = [1, 1, 1]} : vector<7x7x128xf32> to vector<1x1x128xf32>
    %170 = vector.shape_cast %169 : vector<1x1x128xf32> to vector<128xf32>
    %171 = vector.shape_cast %170 : vector<128xf32> to vector<1x1x128xf32>
    %172 = vector.broadcast %171 : vector<1x1x128xf32> to vector<4x4x128xf32>
    %173 = arith.mulf %168, %172 : vector<4x4x128xf32>
    %174 = arith.addf %146, %173 : vector<4x4x128xf32>
    %175 = vector.extract_strided_slice %1 {offsets = [3, 3, 0], sizes = [4, 4, 128], strides = [1, 1, 1]} : vector<10x10x128xf32> to vector<4x4x128xf32>
    %176 = vector.extract_strided_slice %2 {offsets = [3, 3, 0], sizes = [1, 1, 128], strides = [1, 1, 1]} : vector<7x7x128xf32> to vector<1x1x128xf32>
    %177 = vector.shape_cast %176 : vector<1x1x128xf32> to vector<128xf32>
    %178 = vector.shape_cast %177 : vector<128xf32> to vector<1x1x128xf32>
    %179 = vector.broadcast %178 : vector<1x1x128xf32> to vector<4x4x128xf32>
    %180 = arith.mulf %175, %179 : vector<4x4x128xf32>
    %181 = arith.addf %153, %180 : vector<4x4x128xf32>
    %182 = vector.extract_strided_slice %1 {offsets = [3, 4, 0], sizes = [4, 4, 128], strides = [1, 1, 1]} : vector<10x10x128xf32> to vector<4x4x128xf32>
    %183 = vector.extract_strided_slice %2 {offsets = [3, 4, 0], sizes = [1, 1, 128], strides = [1, 1, 1]} : vector<7x7x128xf32> to vector<1x1x128xf32>
    %184 = vector.shape_cast %183 : vector<1x1x128xf32> to vector<128xf32>
    %185 = vector.shape_cast %184 : vector<128xf32> to vector<1x1x128xf32>
    %186 = vector.broadcast %185 : vector<1x1x128xf32> to vector<4x4x128xf32>
    %187 = arith.mulf %182, %186 : vector<4x4x128xf32>
    %188 = arith.addf %160, %187 : vector<4x4x128xf32>
    %189 = vector.extract_strided_slice %1 {offsets = [3, 5, 0], sizes = [4, 4, 128], strides = [1, 1, 1]} : vector<10x10x128xf32> to vector<4x4x128xf32>
    %190 = vector.extract_strided_slice %2 {offsets = [3, 5, 0], sizes = [1, 1, 128], strides = [1, 1, 1]} : vector<7x7x128xf32> to vector<1x1x128xf32>
    %191 = vector.shape_cast %190 : vector<1x1x128xf32> to vector<128xf32>
    %192 = vector.shape_cast %191 : vector<128xf32> to vector<1x1x128xf32>
    %193 = vector.broadcast %192 : vector<1x1x128xf32> to vector<4x4x128xf32>
    %194 = arith.mulf %189, %193 : vector<4x4x128xf32>
    %195 = arith.addf %167, %194 : vector<4x4x128xf32>
    %196 = vector.extract_strided_slice %1 {offsets = [3, 6, 0], sizes = [4, 4, 128], strides = [1, 1, 1]} : vector<10x10x128xf32> to vector<4x4x128xf32>
    %197 = vector.extract_strided_slice %2 {offsets = [3, 6, 0], sizes = [1, 1, 128], strides = [1, 1, 1]} : vector<7x7x128xf32> to vector<1x1x128xf32>
    %198 = vector.shape_cast %197 : vector<1x1x128xf32> to vector<128xf32>
    %199 = vector.shape_cast %198 : vector<128xf32> to vector<1x1x128xf32>
    %200 = vector.broadcast %199 : vector<1x1x128xf32> to vector<4x4x128xf32>
    %201 = arith.mulf %196, %200 : vector<4x4x128xf32>
    %202 = arith.addf %174, %201 : vector<4x4x128xf32>
    %203 = vector.extract_strided_slice %1 {offsets = [4, 0, 0], sizes = [4, 4, 128], strides = [1, 1, 1]} : vector<10x10x128xf32> to vector<4x4x128xf32>
    %204 = vector.extract_strided_slice %2 {offsets = [4, 0, 0], sizes = [1, 1, 128], strides = [1, 1, 1]} : vector<7x7x128xf32> to vector<1x1x128xf32>
    %205 = vector.shape_cast %204 : vector<1x1x128xf32> to vector<128xf32>
    %206 = vector.shape_cast %205 : vector<128xf32> to vector<1x1x128xf32>
    %207 = vector.broadcast %206 : vector<1x1x128xf32> to vector<4x4x128xf32>
    %208 = arith.mulf %203, %207 : vector<4x4x128xf32>
    %209 = arith.addf %181, %208 : vector<4x4x128xf32>
    %210 = vector.extract_strided_slice %1 {offsets = [4, 1, 0], sizes = [4, 4, 128], strides = [1, 1, 1]} : vector<10x10x128xf32> to vector<4x4x128xf32>
    %211 = vector.extract_strided_slice %2 {offsets = [4, 1, 0], sizes = [1, 1, 128], strides = [1, 1, 1]} : vector<7x7x128xf32> to vector<1x1x128xf32>
    %212 = vector.shape_cast %211 : vector<1x1x128xf32> to vector<128xf32>
    %213 = vector.shape_cast %212 : vector<128xf32> to vector<1x1x128xf32>
    %214 = vector.broadcast %213 : vector<1x1x128xf32> to vector<4x4x128xf32>
    %215 = arith.mulf %210, %214 : vector<4x4x128xf32>
    %216 = arith.addf %188, %215 : vector<4x4x128xf32>
    %217 = vector.extract_strided_slice %1 {offsets = [4, 2, 0], sizes = [4, 4, 128], strides = [1, 1, 1]} : vector<10x10x128xf32> to vector<4x4x128xf32>
    %218 = vector.extract_strided_slice %2 {offsets = [4, 2, 0], sizes = [1, 1, 128], strides = [1, 1, 1]} : vector<7x7x128xf32> to vector<1x1x128xf32>
    %219 = vector.shape_cast %218 : vector<1x1x128xf32> to vector<128xf32>
    %220 = vector.shape_cast %219 : vector<128xf32> to vector<1x1x128xf32>
    %221 = vector.broadcast %220 : vector<1x1x128xf32> to vector<4x4x128xf32>
    %222 = arith.mulf %217, %221 : vector<4x4x128xf32>
    %223 = arith.addf %195, %222 : vector<4x4x128xf32>
    %224 = vector.extract_strided_slice %1 {offsets = [4, 3, 0], sizes = [4, 4, 128], strides = [1, 1, 1]} : vector<10x10x128xf32> to vector<4x4x128xf32>
    %225 = vector.extract_strided_slice %2 {offsets = [4, 3, 0], sizes = [1, 1, 128], strides = [1, 1, 1]} : vector<7x7x128xf32> to vector<1x1x128xf32>
    %226 = vector.shape_cast %225 : vector<1x1x128xf32> to vector<128xf32>
    %227 = vector.shape_cast %226 : vector<128xf32> to vector<1x1x128xf32>
    %228 = vector.broadcast %227 : vector<1x1x128xf32> to vector<4x4x128xf32>
    %229 = arith.mulf %224, %228 : vector<4x4x128xf32>
    %230 = arith.addf %202, %229 : vector<4x4x128xf32>
    %231 = vector.extract_strided_slice %1 {offsets = [4, 4, 0], sizes = [4, 4, 128], strides = [1, 1, 1]} : vector<10x10x128xf32> to vector<4x4x128xf32>
    %232 = vector.extract_strided_slice %2 {offsets = [4, 4, 0], sizes = [1, 1, 128], strides = [1, 1, 1]} : vector<7x7x128xf32> to vector<1x1x128xf32>
    %233 = vector.shape_cast %232 : vector<1x1x128xf32> to vector<128xf32>
    %234 = vector.shape_cast %233 : vector<128xf32> to vector<1x1x128xf32>
    %235 = vector.broadcast %234 : vector<1x1x128xf32> to vector<4x4x128xf32>
    %236 = arith.mulf %231, %235 : vector<4x4x128xf32>
    %237 = arith.addf %209, %236 : vector<4x4x128xf32>
    %238 = vector.extract_strided_slice %1 {offsets = [4, 5, 0], sizes = [4, 4, 128], strides = [1, 1, 1]} : vector<10x10x128xf32> to vector<4x4x128xf32>
    %239 = vector.extract_strided_slice %2 {offsets = [4, 5, 0], sizes = [1, 1, 128], strides = [1, 1, 1]} : vector<7x7x128xf32> to vector<1x1x128xf32>
    %240 = vector.shape_cast %239 : vector<1x1x128xf32> to vector<128xf32>
    %241 = vector.shape_cast %240 : vector<128xf32> to vector<1x1x128xf32>
    %242 = vector.broadcast %241 : vector<1x1x128xf32> to vector<4x4x128xf32>
    %243 = arith.mulf %238, %242 : vector<4x4x128xf32>
    %244 = arith.addf %216, %243 : vector<4x4x128xf32>
    %245 = vector.extract_strided_slice %1 {offsets = [4, 6, 0], sizes = [4, 4, 128], strides = [1, 1, 1]} : vector<10x10x128xf32> to vector<4x4x128xf32>
    %246 = vector.extract_strided_slice %2 {offsets = [4, 6, 0], sizes = [1, 1, 128], strides = [1, 1, 1]} : vector<7x7x128xf32> to vector<1x1x128xf32>
    %247 = vector.shape_cast %246 : vector<1x1x128xf32> to vector<128xf32>
    %248 = vector.shape_cast %247 : vector<128xf32> to vector<1x1x128xf32>
    %249 = vector.broadcast %248 : vector<1x1x128xf32> to vector<4x4x128xf32>
    %250 = arith.mulf %245, %249 : vector<4x4x128xf32>
    %251 = arith.addf %223, %250 : vector<4x4x128xf32>
    %252 = vector.extract_strided_slice %1 {offsets = [5, 0, 0], sizes = [4, 4, 128], strides = [1, 1, 1]} : vector<10x10x128xf32> to vector<4x4x128xf32>
    %253 = vector.extract_strided_slice %2 {offsets = [5, 0, 0], sizes = [1, 1, 128], strides = [1, 1, 1]} : vector<7x7x128xf32> to vector<1x1x128xf32>
    %254 = vector.shape_cast %253 : vector<1x1x128xf32> to vector<128xf32>
    %255 = vector.shape_cast %254 : vector<128xf32> to vector<1x1x128xf32>
    %256 = vector.broadcast %255 : vector<1x1x128xf32> to vector<4x4x128xf32>
    %257 = arith.mulf %252, %256 : vector<4x4x128xf32>
    %258 = arith.addf %230, %257 : vector<4x4x128xf32>
    %259 = vector.extract_strided_slice %1 {offsets = [5, 1, 0], sizes = [4, 4, 128], strides = [1, 1, 1]} : vector<10x10x128xf32> to vector<4x4x128xf32>
    %260 = vector.extract_strided_slice %2 {offsets = [5, 1, 0], sizes = [1, 1, 128], strides = [1, 1, 1]} : vector<7x7x128xf32> to vector<1x1x128xf32>
    %261 = vector.shape_cast %260 : vector<1x1x128xf32> to vector<128xf32>
    %262 = vector.shape_cast %261 : vector<128xf32> to vector<1x1x128xf32>
    %263 = vector.broadcast %262 : vector<1x1x128xf32> to vector<4x4x128xf32>
    %264 = arith.mulf %259, %263 : vector<4x4x128xf32>
    %265 = arith.addf %237, %264 : vector<4x4x128xf32>
    %266 = vector.extract_strided_slice %1 {offsets = [5, 2, 0], sizes = [4, 4, 128], strides = [1, 1, 1]} : vector<10x10x128xf32> to vector<4x4x128xf32>
    %267 = vector.extract_strided_slice %2 {offsets = [5, 2, 0], sizes = [1, 1, 128], strides = [1, 1, 1]} : vector<7x7x128xf32> to vector<1x1x128xf32>
    %268 = vector.shape_cast %267 : vector<1x1x128xf32> to vector<128xf32>
    %269 = vector.shape_cast %268 : vector<128xf32> to vector<1x1x128xf32>
    %270 = vector.broadcast %269 : vector<1x1x128xf32> to vector<4x4x128xf32>
    %271 = arith.mulf %266, %270 : vector<4x4x128xf32>
    %272 = arith.addf %244, %271 : vector<4x4x128xf32>
    %273 = vector.extract_strided_slice %1 {offsets = [5, 3, 0], sizes = [4, 4, 128], strides = [1, 1, 1]} : vector<10x10x128xf32> to vector<4x4x128xf32>
    %274 = vector.extract_strided_slice %2 {offsets = [5, 3, 0], sizes = [1, 1, 128], strides = [1, 1, 1]} : vector<7x7x128xf32> to vector<1x1x128xf32>
    %275 = vector.shape_cast %274 : vector<1x1x128xf32> to vector<128xf32>
    %276 = vector.shape_cast %275 : vector<128xf32> to vector<1x1x128xf32>
    %277 = vector.broadcast %276 : vector<1x1x128xf32> to vector<4x4x128xf32>
    %278 = arith.mulf %273, %277 : vector<4x4x128xf32>
    %279 = arith.addf %251, %278 : vector<4x4x128xf32>
    %280 = vector.extract_strided_slice %1 {offsets = [5, 4, 0], sizes = [4, 4, 128], strides = [1, 1, 1]} : vector<10x10x128xf32> to vector<4x4x128xf32>
    %281 = vector.extract_strided_slice %2 {offsets = [5, 4, 0], sizes = [1, 1, 128], strides = [1, 1, 1]} : vector<7x7x128xf32> to vector<1x1x128xf32>
    %282 = vector.shape_cast %281 : vector<1x1x128xf32> to vector<128xf32>
    %283 = vector.shape_cast %282 : vector<128xf32> to vector<1x1x128xf32>
    %284 = vector.broadcast %283 : vector<1x1x128xf32> to vector<4x4x128xf32>
    %285 = arith.mulf %280, %284 : vector<4x4x128xf32>
    %286 = arith.addf %258, %285 : vector<4x4x128xf32>
    %287 = vector.extract_strided_slice %1 {offsets = [5, 5, 0], sizes = [4, 4, 128], strides = [1, 1, 1]} : vector<10x10x128xf32> to vector<4x4x128xf32>
    %288 = vector.extract_strided_slice %2 {offsets = [5, 5, 0], sizes = [1, 1, 128], strides = [1, 1, 1]} : vector<7x7x128xf32> to vector<1x1x128xf32>
    %289 = vector.shape_cast %288 : vector<1x1x128xf32> to vector<128xf32>
    %290 = vector.shape_cast %289 : vector<128xf32> to vector<1x1x128xf32>
    %291 = vector.broadcast %290 : vector<1x1x128xf32> to vector<4x4x128xf32>
    %292 = arith.mulf %287, %291 : vector<4x4x128xf32>
    %293 = arith.addf %265, %292 : vector<4x4x128xf32>
    %294 = vector.extract_strided_slice %1 {offsets = [5, 6, 0], sizes = [4, 4, 128], strides = [1, 1, 1]} : vector<10x10x128xf32> to vector<4x4x128xf32>
    %295 = vector.extract_strided_slice %2 {offsets = [5, 6, 0], sizes = [1, 1, 128], strides = [1, 1, 1]} : vector<7x7x128xf32> to vector<1x1x128xf32>
    %296 = vector.shape_cast %295 : vector<1x1x128xf32> to vector<128xf32>
    %297 = vector.shape_cast %296 : vector<128xf32> to vector<1x1x128xf32>
    %298 = vector.broadcast %297 : vector<1x1x128xf32> to vector<4x4x128xf32>
    %299 = arith.mulf %294, %298 : vector<4x4x128xf32>
    %300 = arith.addf %272, %299 : vector<4x4x128xf32>
    %301 = vector.extract_strided_slice %1 {offsets = [6, 0, 0], sizes = [4, 4, 128], strides = [1, 1, 1]} : vector<10x10x128xf32> to vector<4x4x128xf32>
    %302 = vector.extract_strided_slice %2 {offsets = [6, 0, 0], sizes = [1, 1, 128], strides = [1, 1, 1]} : vector<7x7x128xf32> to vector<1x1x128xf32>
    %303 = vector.shape_cast %302 : vector<1x1x128xf32> to vector<128xf32>
    %304 = vector.shape_cast %303 : vector<128xf32> to vector<1x1x128xf32>
    %305 = vector.broadcast %304 : vector<1x1x128xf32> to vector<4x4x128xf32>
    %306 = arith.mulf %301, %305 : vector<4x4x128xf32>
    %307 = arith.addf %279, %306 : vector<4x4x128xf32>
    %308 = vector.extract_strided_slice %1 {offsets = [6, 1, 0], sizes = [4, 4, 128], strides = [1, 1, 1]} : vector<10x10x128xf32> to vector<4x4x128xf32>
    %309 = vector.extract_strided_slice %2 {offsets = [6, 1, 0], sizes = [1, 1, 128], strides = [1, 1, 1]} : vector<7x7x128xf32> to vector<1x1x128xf32>
    %310 = vector.shape_cast %309 : vector<1x1x128xf32> to vector<128xf32>
    %311 = vector.shape_cast %310 : vector<128xf32> to vector<1x1x128xf32>
    %312 = vector.broadcast %311 : vector<1x1x128xf32> to vector<4x4x128xf32>
    %313 = arith.mulf %308, %312 : vector<4x4x128xf32>
    %314 = arith.addf %286, %313 : vector<4x4x128xf32>
    %315 = vector.extract_strided_slice %1 {offsets = [6, 2, 0], sizes = [4, 4, 128], strides = [1, 1, 1]} : vector<10x10x128xf32> to vector<4x4x128xf32>
    %316 = vector.extract_strided_slice %2 {offsets = [6, 2, 0], sizes = [1, 1, 128], strides = [1, 1, 1]} : vector<7x7x128xf32> to vector<1x1x128xf32>
    %317 = vector.shape_cast %316 : vector<1x1x128xf32> to vector<128xf32>
    %318 = vector.shape_cast %317 : vector<128xf32> to vector<1x1x128xf32>
    %319 = vector.broadcast %318 : vector<1x1x128xf32> to vector<4x4x128xf32>
    %320 = arith.mulf %315, %319 : vector<4x4x128xf32>
    %321 = arith.addf %293, %320 : vector<4x4x128xf32>
    %322 = vector.extract_strided_slice %1 {offsets = [6, 3, 0], sizes = [4, 4, 128], strides = [1, 1, 1]} : vector<10x10x128xf32> to vector<4x4x128xf32>
    %323 = vector.extract_strided_slice %2 {offsets = [6, 3, 0], sizes = [1, 1, 128], strides = [1, 1, 1]} : vector<7x7x128xf32> to vector<1x1x128xf32>
    %324 = vector.shape_cast %323 : vector<1x1x128xf32> to vector<128xf32>
    %325 = vector.shape_cast %324 : vector<128xf32> to vector<1x1x128xf32>
    %326 = vector.broadcast %325 : vector<1x1x128xf32> to vector<4x4x128xf32>
    %327 = arith.mulf %322, %326 : vector<4x4x128xf32>
    %328 = arith.addf %300, %327 : vector<4x4x128xf32>
    %329 = vector.extract_strided_slice %1 {offsets = [6, 4, 0], sizes = [4, 4, 128], strides = [1, 1, 1]} : vector<10x10x128xf32> to vector<4x4x128xf32>
    %330 = vector.extract_strided_slice %2 {offsets = [6, 4, 0], sizes = [1, 1, 128], strides = [1, 1, 1]} : vector<7x7x128xf32> to vector<1x1x128xf32>
    %331 = vector.shape_cast %330 : vector<1x1x128xf32> to vector<128xf32>
    %332 = vector.shape_cast %331 : vector<128xf32> to vector<1x1x128xf32>
    %333 = vector.broadcast %332 : vector<1x1x128xf32> to vector<4x4x128xf32>
    %334 = arith.mulf %329, %333 : vector<4x4x128xf32>
    %335 = arith.addf %307, %334 : vector<4x4x128xf32>
    %336 = vector.extract_strided_slice %1 {offsets = [6, 5, 0], sizes = [4, 4, 128], strides = [1, 1, 1]} : vector<10x10x128xf32> to vector<4x4x128xf32>
    %337 = vector.extract_strided_slice %2 {offsets = [6, 5, 0], sizes = [1, 1, 128], strides = [1, 1, 1]} : vector<7x7x128xf32> to vector<1x1x128xf32>
    %338 = vector.shape_cast %337 : vector<1x1x128xf32> to vector<128xf32>
    %339 = vector.shape_cast %338 : vector<128xf32> to vector<1x1x128xf32>
    %340 = vector.broadcast %339 : vector<1x1x128xf32> to vector<4x4x128xf32>
    %341 = arith.mulf %336, %340 : vector<4x4x128xf32>
    %342 = arith.addf %314, %341 : vector<4x4x128xf32>
    %343 = vector.extract_strided_slice %1 {offsets = [6, 6, 0], sizes = [4, 4, 128], strides = [1, 1, 1]} : vector<10x10x128xf32> to vector<4x4x128xf32>
    %344 = vector.extract_strided_slice %2 {offsets = [6, 6, 0], sizes = [1, 1, 128], strides = [1, 1, 1]} : vector<7x7x128xf32> to vector<1x1x128xf32>
    %345 = vector.shape_cast %344 : vector<1x1x128xf32> to vector<128xf32>
    %346 = vector.shape_cast %345 : vector<128xf32> to vector<1x1x128xf32>
    %347 = vector.broadcast %346 : vector<1x1x128xf32> to vector<4x4x128xf32>
    %348 = arith.mulf %343, %347 : vector<4x4x128xf32>
    %349 = arith.addf %321, %348 : vector<4x4x128xf32>
    %350 = arith.addf %349, %328 : vector<4x4x128xf32>
    %351 = arith.addf %335, %342 : vector<4x4x128xf32>
    %352 = arith.addf %350, %351 : vector<4x4x128xf32>
    %353 = vector.shape_cast %352 : vector<4x4x128xf32> to vector<16x128xf32>
    %c0_9 = arith.constant 0 : index
    %c0_10 = arith.constant 0 : index
    %354 = vector.load %arg3[%c0_9, %c0_10] : memref<1x128xf32, #tpu.memory_space<vmem>>, vector<1x128xf32>
    %355 = vector.broadcast %354 : vector<1x128xf32> to vector<16x128xf32>
    %356 = arith.addf %353, %355 : vector<16x128xf32>
    %c0_11 = arith.constant 0 : index
    %c0_12 = arith.constant 0 : index
    %357 = vector.load %arg4[%c0_11, %c0_12] : memref<1x128xf32, #tpu.memory_space<vmem>>, vector<1x128xf32>
    %c0_13 = arith.constant 0 : index
    %c0_14 = arith.constant 0 : index
    %358 = vector.load %arg5[%c0_13, %c0_14] : memref<1x128xf32, #tpu.memory_space<vmem>>, vector<1x128xf32>
    %cst_15 = arith.constant dense<0.000000e+00> : vector<16xf32>
    %359 = vector.multi_reduction <add>, %356, %cst_15 [1] : vector<16x128xf32> to vector<16xf32>
    %360 = vector.shape_cast %359 : vector<16xf32> to vector<16x1xf32>
    %cst_16 = arith.constant 1.280000e+02 : f32
    %361 = vector.broadcast %cst_16 : f32 to vector<16x1xf32>
    %362 = arith.divf %360, %361 : vector<16x1xf32>
    %363 = vector.broadcast %362 : vector<16x1xf32> to vector<16x128xf32>
    %364 = arith.subf %356, %363 : vector<16x128xf32>
    %365 = arith.mulf %364, %364 : vector<16x128xf32>
    %cst_17 = arith.constant dense<0.000000e+00> : vector<16xf32>
    %366 = vector.multi_reduction <add>, %365, %cst_17 [1] : vector<16x128xf32> to vector<16xf32>
    %367 = vector.shape_cast %366 : vector<16xf32> to vector<16x1xf32>
    %cst_18 = arith.constant 1.280000e+02 : f32
    %368 = vector.broadcast %cst_18 : f32 to vector<16x1xf32>
    %369 = arith.divf %367, %368 : vector<16x1xf32>
    %cst_19 = arith.constant 9.99999997E-7 : f32
    %370 = vector.broadcast %cst_19 : f32 to vector<16x1xf32>
    %371 = arith.addf %369, %370 : vector<16x1xf32>
    %372 = math.rsqrt %371 : vector<16x1xf32>
    %373 = vector.broadcast %372 : vector<16x1xf32> to vector<16x128xf32>
    %374 = arith.mulf %364, %373 : vector<16x128xf32>
    %375 = vector.broadcast %357 : vector<1x128xf32> to vector<16x128xf32>
    %376 = arith.mulf %374, %375 : vector<16x128xf32>
    %377 = vector.broadcast %358 : vector<1x128xf32> to vector<16x128xf32>
    %378 = arith.addf %376, %377 : vector<16x128xf32>
    %379 = arith.truncf %378 : vector<16x128xf32> to vector<16x128xbf16>
    %c0_20 = arith.constant 0 : index
    %c0_21 = arith.constant 0 : index
    %380 = vector.load %arg6[%c0_20, %c0_21] : memref<128x512xbf16, #tpu.memory_space<vmem>>, vector<128x512xbf16>
    %cst_22 = arith.constant dense<0.000000e+00> : vector<16x512xf32>
    %381 = tpu.matmul %379, %380, %cst_22 {dimension_numbers = #tpu.dot_dimension_numbers<[1], [0], [0], [1], [0, 0, 1, 1], [], []>} : vector<16x128xbf16>, vector<128x512xbf16>, vector<16x512xf32> -> vector<16x512xf32>
    %c0_23 = arith.constant 0 : index
    %c0_24 = arith.constant 0 : index
    %382 = vector.load %arg7[%c0_23, %c0_24] : memref<1x512xf32, #tpu.memory_space<vmem>>, vector<1x512xf32>
    %383 = vector.broadcast %382 : vector<1x512xf32> to vector<16x512xf32>
    %384 = arith.addf %381, %383 : vector<16x512xf32>
    %385 = arith.mulf %384, %384 : vector<16x512xf32>
    %386 = arith.mulf %384, %385 : vector<16x512xf32>
    %cst_25 = arith.constant 4.471500e-02 : f32
    %387 = vector.broadcast %cst_25 : f32 to vector<16x512xf32>
    %388 = arith.mulf %387, %386 : vector<16x512xf32>
    %389 = arith.addf %384, %388 : vector<16x512xf32>
    %cst_26 = arith.constant 0.797884583 : f32
    %390 = vector.broadcast %cst_26 : f32 to vector<16x512xf32>
    %391 = arith.mulf %390, %389 : vector<16x512xf32>
    %392 = math.tanh %391 : vector<16x512xf32>
    %cst_27 = arith.constant 1.000000e+00 : f32
    %393 = vector.broadcast %cst_27 : f32 to vector<16x512xf32>
    %394 = arith.addf %393, %392 : vector<16x512xf32>
    %cst_28 = arith.constant 5.000000e-01 : f32
    %395 = vector.broadcast %cst_28 : f32 to vector<16x512xf32>
    %396 = arith.mulf %395, %394 : vector<16x512xf32>
    %397 = arith.mulf %384, %396 : vector<16x512xf32>
    %398 = arith.truncf %397 : vector<16x512xf32> to vector<16x512xbf16>
    %c0_29 = arith.constant 0 : index
    %c0_30 = arith.constant 0 : index
    %399 = vector.load %arg8[%c0_29, %c0_30] : memref<512x128xbf16, #tpu.memory_space<vmem>>, vector<512x128xbf16>
    %cst_31 = arith.constant dense<0.000000e+00> : vector<16x128xf32>
    %400 = tpu.matmul %398, %399, %cst_31 {dimension_numbers = #tpu.dot_dimension_numbers<[1], [0], [0], [1], [0, 0, 1, 1], [], []>} : vector<16x512xbf16>, vector<512x128xbf16>, vector<16x128xf32> -> vector<16x128xf32>
    %c0_32 = arith.constant 0 : index
    %c0_33 = arith.constant 0 : index
    %401 = vector.load %arg9[%c0_32, %c0_33] : memref<1x128xf32, #tpu.memory_space<vmem>>, vector<1x128xf32>
    %402 = vector.broadcast %401 : vector<1x128xf32> to vector<16x128xf32>
    %403 = arith.addf %400, %402 : vector<16x128xf32>
    %404 = vector.extract_strided_slice %1 {offsets = [3, 3, 0], sizes = [4, 4, 128], strides = [1, 1, 1]} : vector<10x10x128xf32> to vector<4x4x128xf32>
    %405 = vector.shape_cast %404 : vector<4x4x128xf32> to vector<16x128xf32>
    %c0_34 = arith.constant 0 : index
    %c0_35 = arith.constant 0 : index
    %406 = vector.load %arg10[%c0_34, %c0_35] : memref<1x128xf32, #tpu.memory_space<vmem>>, vector<1x128xf32>
    %407 = vector.broadcast %406 : vector<1x128xf32> to vector<16x128xf32>
    %408 = arith.mulf %407, %403 : vector<16x128xf32>
    %409 = arith.addf %405, %408 : vector<16x128xf32>
    %410 = vector.shape_cast %409 : vector<16x128xf32> to vector<4x4x128xf32>
    %c0_36 = arith.constant 0 : index
    %c0_37 = arith.constant 0 : index
    %c0_38 = arith.constant 0 : index
    %c0_39 = arith.constant 0 : index
    %411 = vector.load %arg11[%c0_36, %c0_37, %c0_38, %c0_39] : memref<1x4x4x128xf32, #tpu.memory_space<vmem>>, vector<1x4x4x128xf32>
    %412 = vector.shape_cast %411 : vector<1x4x4x128xf32> to vector<4x4x128xf32>
    %413 = vector.shape_cast %410 : vector<4x4x128xf32> to vector<1x4x4x128xf32>
    tpu.vector_store %arg11[%c0_36, %c0_37, %c0_38, %c0_39], %413 {strides = array<i32>} : memref<1x4x4x128xf32, #tpu.memory_space<vmem>>, vector<1x4x4x128xf32>,
    return
  }
  func.func @transform_0(%arg0: i32) -> (i32, i32, i32, i32) {
    %c0_i32 = arith.constant 0 : i32
    %c0_i32_0 = arith.constant 0 : i32
    %c0_i32_1 = arith.constant 0 : i32
    %c0_i32_2 = arith.constant 0 : i32
    return %arg0, %c0_i32, %c0_i32_0, %c0_i32_1 : i32, i32, i32, i32
  }
  func.func @transform_1(%arg0: i32) -> (i32, i32, i32) {
    %c0_i32 = arith.constant 0 : i32
    %c0_i32_0 = arith.constant 0 : i32
    %c0_i32_1 = arith.constant 0 : i32
    %c0_i32_2 = arith.constant 0 : i32
    return %c0_i32, %c0_i32_0, %c0_i32_1 : i32, i32, i32
  }
  func.func @transform_2(%arg0: i32) -> (i32, i32) {
    %c0_i32 = arith.constant 0 : i32
    %c0_i32_0 = arith.constant 0 : i32
    %c0_i32_1 = arith.constant 0 : i32
    return %c0_i32, %c0_i32_0 : i32, i32
  }
  func.func @transform_3(%arg0: i32) -> (i32, i32) {
    %c0_i32 = arith.constant 0 : i32
    %c0_i32_0 = arith.constant 0 : i32
    %c0_i32_1 = arith.constant 0 : i32
    return %c0_i32, %c0_i32_0 : i32, i32
  }
  func.func @transform_4(%arg0: i32) -> (i32, i32) {
    %c0_i32 = arith.constant 0 : i32
    %c0_i32_0 = arith.constant 0 : i32
    %c0_i32_1 = arith.constant 0 : i32
    return %c0_i32, %c0_i32_0 : i32, i32
  }
  func.func @transform_5(%arg0: i32) -> (i32, i32) {
    %c0_i32 = arith.constant 0 : i32
    %c0_i32_0 = arith.constant 0 : i32
    %c0_i32_1 = arith.constant 0 : i32
    return %c0_i32, %c0_i32_0 : i32, i32
  }
  func.func @transform_6(%arg0: i32) -> (i32, i32) {
    %c0_i32 = arith.constant 0 : i32
    %c0_i32_0 = arith.constant 0 : i32
    %c0_i32_1 = arith.constant 0 : i32
    return %c0_i32, %c0_i32_0 : i32, i32
  }
  func.func @transform_7(%arg0: i32) -> (i32, i32) {
    %c0_i32 = arith.constant 0 : i32
    %c0_i32_0 = arith.constant 0 : i32
    %c0_i32_1 = arith.constant 0 : i32
    return %c0_i32, %c0_i32_0 : i32, i32
  }
  func.func @transform_8(%arg0: i32) -> (i32, i32) {
    %c0_i32 = arith.constant 0 : i32
    %c0_i32_0 = arith.constant 0 : i32
    %c0_i32_1 = arith.constant 0 : i32
    return %c0_i32, %c0_i32_0 : i32, i32
  }
  func.func @transform_9(%arg0: i32) -> (i32, i32) {
    %c0_i32 = arith.constant 0 : i32
    %c0_i32_0 = arith.constant 0 : i32
    %c0_i32_1 = arith.constant 0 : i32
    return %c0_i32, %c0_i32_0 : i32, i32
  }
  func.func @transform_10(%arg0: i32) -> (i32, i32, i32, i32) {
    %c0_i32 = arith.constant 0 : i32
    %c0_i32_0 = arith.constant 0 : i32
    %c0_i32_1 = arith.constant 0 : i32
    %c0_i32_2 = arith.constant 0 : i32
    return %arg0, %c0_i32, %c0_i32_0, %c0_i32_1 : i32, i32, i32, i32
  }
}

module attributes {stable_mosaic.version = 11 : i64} {
  func.func @_ln_linear_kernel(%arg0: i32, %arg1: memref<8x128xf32, #tpu.memory_space<vmem>>, %arg2: memref<1x128xf32, #tpu.memory_space<vmem>>, %arg3: memref<1x128xf32, #tpu.memory_space<vmem>>, %arg4: memref<128x128xbf16, #tpu.memory_space<vmem>>, %arg5: memref<1x128xf32, #tpu.memory_space<vmem>>, %arg6: memref<8x128xf32, #tpu.memory_space<vmem>>) attributes {dimension_semantics = [#tpu.dimension_semantics<parallel>], iteration_bounds = array<i64: 1>, scalar_prefetch = 0 : i64, scratch_operands = 0 : i64, tpu.core_type = #tpu.core_type<tc>, window_params = [{transform_indices = @transform_0, window_bounds = array<i64: 8, 128>}, {pipeline_mode = #tpu.pipeline_mode<synchronous>, transform_indices = @transform_1, window_bounds = array<i64: 1, 128>}, {pipeline_mode = #tpu.pipeline_mode<synchronous>, transform_indices = @transform_2, window_bounds = array<i64: 1, 128>}, {pipeline_mode = #tpu.pipeline_mode<synchronous>, transform_indices = @transform_3, window_bounds = array<i64: 128, 128>}, {pipeline_mode = #tpu.pipeline_mode<synchronous>, transform_indices = @transform_4, window_bounds = array<i64: 1, 128>}, {transform_indices = @transform_5, window_bounds = array<i64: 8, 128>}]} {
    %c0 = arith.constant 0 : index
    %c0_0 = arith.constant 0 : index
    %0 = vector.load %arg1[%c0, %c0_0] : memref<8x128xf32, #tpu.memory_space<vmem>>, vector<8x128xf32>
    %c0_1 = arith.constant 0 : index
    %c0_2 = arith.constant 0 : index
    %1 = vector.load %arg2[%c0_1, %c0_2] : memref<1x128xf32, #tpu.memory_space<vmem>>, vector<1x128xf32>
    %c0_3 = arith.constant 0 : index
    %c0_4 = arith.constant 0 : index
    %2 = vector.load %arg3[%c0_3, %c0_4] : memref<1x128xf32, #tpu.memory_space<vmem>>, vector<1x128xf32>
    %cst = arith.constant dense<0.000000e+00> : vector<8xf32>
    %3 = vector.multi_reduction <add>, %0, %cst [1] : vector<8x128xf32> to vector<8xf32>
    %4 = vector.shape_cast %3 : vector<8xf32> to vector<8x1xf32>
    %cst_5 = arith.constant 1.280000e+02 : f32
    %5 = vector.broadcast %cst_5 : f32 to vector<8x1xf32>
    %6 = arith.divf %4, %5 : vector<8x1xf32>
    %7 = vector.broadcast %6 : vector<8x1xf32> to vector<8x128xf32>
    %8 = arith.subf %0, %7 : vector<8x128xf32>
    %9 = arith.mulf %8, %8 : vector<8x128xf32>
    %cst_6 = arith.constant dense<0.000000e+00> : vector<8xf32>
    %10 = vector.multi_reduction <add>, %9, %cst_6 [1] : vector<8x128xf32> to vector<8xf32>
    %11 = vector.shape_cast %10 : vector<8xf32> to vector<8x1xf32>
    %cst_7 = arith.constant 1.280000e+02 : f32
    %12 = vector.broadcast %cst_7 : f32 to vector<8x1xf32>
    %13 = arith.divf %11, %12 : vector<8x1xf32>
    %cst_8 = arith.constant 9.99999997E-7 : f32
    %14 = vector.broadcast %cst_8 : f32 to vector<8x1xf32>
    %15 = arith.addf %13, %14 : vector<8x1xf32>
    %16 = math.rsqrt %15 : vector<8x1xf32>
    %17 = vector.broadcast %16 : vector<8x1xf32> to vector<8x128xf32>
    %18 = arith.mulf %8, %17 : vector<8x128xf32>
    %19 = vector.broadcast %1 : vector<1x128xf32> to vector<8x128xf32>
    %20 = arith.mulf %18, %19 : vector<8x128xf32>
    %21 = vector.broadcast %2 : vector<1x128xf32> to vector<8x128xf32>
    %22 = arith.addf %20, %21 : vector<8x128xf32>
    %23 = arith.truncf %22 : vector<8x128xf32> to vector<8x128xbf16>
    %c0_9 = arith.constant 0 : index
    %c0_10 = arith.constant 0 : index
    %24 = vector.load %arg4[%c0_9, %c0_10] : memref<128x128xbf16, #tpu.memory_space<vmem>>, vector<128x128xbf16>
    %cst_11 = arith.constant dense<0.000000e+00> : vector<8x128xf32>
    %25 = tpu.matmul %23, %24, %cst_11 {dimension_numbers = #tpu.dot_dimension_numbers<[1], [0], [0], [1], [0, 0, 1, 1], [], []>} : vector<8x128xbf16>, vector<128x128xbf16>, vector<8x128xf32> -> vector<8x128xf32>
    %c0_12 = arith.constant 0 : index
    %c0_13 = arith.constant 0 : index
    %26 = vector.load %arg5[%c0_12, %c0_13] : memref<1x128xf32, #tpu.memory_space<vmem>>, vector<1x128xf32>
    %27 = vector.broadcast %26 : vector<1x128xf32> to vector<8x128xf32>
    %28 = arith.addf %25, %27 : vector<8x128xf32>
    %c0_14 = arith.constant 0 : index
    %c0_15 = arith.constant 0 : index
    %29 = vector.load %arg6[%c0_14, %c0_15] : memref<8x128xf32, #tpu.memory_space<vmem>>, vector<8x128xf32>
    tpu.vector_store %arg6[%c0_14, %c0_15], %28 {strides = array<i32>} : memref<8x128xf32, #tpu.memory_space<vmem>>, vector<8x128xf32>,
    return
  }
  func.func @transform_0(%arg0: i32) -> (i32, i32) {
    %c0_i32 = arith.constant 0 : i32
    %c0_i32_0 = arith.constant 0 : i32
    return %arg0, %c0_i32 : i32, i32
  }
  func.func @transform_1(%arg0: i32) -> (i32, i32) {
    %c0_i32 = arith.constant 0 : i32
    %c0_i32_0 = arith.constant 0 : i32
    %c0_i32_1 = arith.constant 0 : i32
    return %c0_i32, %c0_i32_0 : i32, i32
  }
  func.func @transform_2(%arg0: i32) -> (i32, i32) {
    %c0_i32 = arith.constant 0 : i32
    %c0_i32_0 = arith.constant 0 : i32
    %c0_i32_1 = arith.constant 0 : i32
    return %c0_i32, %c0_i32_0 : i32, i32
  }
  func.func @transform_3(%arg0: i32) -> (i32, i32) {
    %c0_i32 = arith.constant 0 : i32
    %c0_i32_0 = arith.constant 0 : i32
    %c0_i32_1 = arith.constant 0 : i32
    return %c0_i32, %c0_i32_0 : i32, i32
  }
  func.func @transform_4(%arg0: i32) -> (i32, i32) {
    %c0_i32 = arith.constant 0 : i32
    %c0_i32_0 = arith.constant 0 : i32
    %c0_i32_1 = arith.constant 0 : i32
    return %c0_i32, %c0_i32_0 : i32, i32
  }
  func.func @transform_5(%arg0: i32) -> (i32, i32) {
    %c0_i32 = arith.constant 0 : i32
    %c0_i32_0 = arith.constant 0 : i32
    return %arg0, %c0_i32 : i32, i32
  }
}

module attributes {stable_mosaic.version = 11 : i64} {
  func.func @_embed_kernel(%arg0: i32, %arg1: memref<8x384xf32, #tpu.memory_space<vmem>>, %arg2: memref<8x128xf32, #tpu.memory_space<vmem>>, %arg3: memref<8x128xf32, #tpu.memory_space<vmem>>, %arg4: memref<384x128xbf16, #tpu.memory_space<vmem>>, %arg5: memref<128x128xbf16, #tpu.memory_space<vmem>>, %arg6: memref<1x128xf32, #tpu.memory_space<vmem>>, %arg7: memref<8x128xf32, #tpu.memory_space<vmem>>) attributes {dimension_semantics = [#tpu.dimension_semantics<parallel>], iteration_bounds = array<i64: 1>, scalar_prefetch = 0 : i64, scratch_operands = 0 : i64, tpu.core_type = #tpu.core_type<tc>, window_params = [{transform_indices = @transform_0, window_bounds = array<i64: 8, 384>}, {transform_indices = @transform_1, window_bounds = array<i64: 8, 128>}, {transform_indices = @transform_2, window_bounds = array<i64: 8, 128>}, {pipeline_mode = #tpu.pipeline_mode<synchronous>, transform_indices = @transform_3, window_bounds = array<i64: 384, 128>}, {pipeline_mode = #tpu.pipeline_mode<synchronous>, transform_indices = @transform_4, window_bounds = array<i64: 128, 128>}, {pipeline_mode = #tpu.pipeline_mode<synchronous>, transform_indices = @transform_5, window_bounds = array<i64: 1, 128>}, {transform_indices = @transform_6, window_bounds = array<i64: 8, 128>}]} {
    %c0 = arith.constant 0 : index
    %c0_0 = arith.constant 0 : index
    %0 = vector.load %arg1[%c0, %c0_0] : memref<8x384xf32, #tpu.memory_space<vmem>>, vector<8x384xf32>
    %1 = arith.truncf %0 : vector<8x384xf32> to vector<8x384xbf16>
    %c0_1 = arith.constant 0 : index
    %c0_2 = arith.constant 0 : index
    %2 = vector.load %arg4[%c0_1, %c0_2] : memref<384x128xbf16, #tpu.memory_space<vmem>>, vector<384x128xbf16>
    %cst = arith.constant dense<0.000000e+00> : vector<8x128xf32>
    %3 = tpu.matmul %1, %2, %cst {dimension_numbers = #tpu.dot_dimension_numbers<[1], [0], [0], [1], [0, 0, 1, 1], [], []>} : vector<8x384xbf16>, vector<384x128xbf16>, vector<8x128xf32> -> vector<8x128xf32>
    %c0_3 = arith.constant 0 : index
    %c0_4 = arith.constant 0 : index
    %4 = vector.load %arg2[%c0_3, %c0_4] : memref<8x128xf32, #tpu.memory_space<vmem>>, vector<8x128xf32>
    %5 = arith.truncf %4 : vector<8x128xf32> to vector<8x128xbf16>
    %c0_5 = arith.constant 0 : index
    %c0_6 = arith.constant 0 : index
    %6 = vector.load %arg5[%c0_5, %c0_6] : memref<128x128xbf16, #tpu.memory_space<vmem>>, vector<128x128xbf16>
    %cst_7 = arith.constant dense<0.000000e+00> : vector<8x128xf32>
    %7 = tpu.matmul %5, %6, %cst_7 {dimension_numbers = #tpu.dot_dimension_numbers<[1], [0], [0], [1], [0, 0, 1, 1], [], []>} : vector<8x128xbf16>, vector<128x128xbf16>, vector<8x128xf32> -> vector<8x128xf32>
    %c0_8 = arith.constant 0 : index
    %c0_9 = arith.constant 0 : index
    %8 = vector.load %arg6[%c0_8, %c0_9] : memref<1x128xf32, #tpu.memory_space<vmem>>, vector<1x128xf32>
    %9 = vector.broadcast %8 : vector<1x128xf32> to vector<8x128xf32>
    %10 = arith.addf %7, %9 : vector<8x128xf32>
    %11 = arith.addf %3, %10 : vector<8x128xf32>
    %c0_10 = arith.constant 0 : index
    %c0_11 = arith.constant 0 : index
    %12 = vector.load %arg3[%c0_10, %c0_11] : memref<8x128xf32, #tpu.memory_space<vmem>>, vector<8x128xf32>
    %13 = arith.addf %11, %12 : vector<8x128xf32>
    %c0_12 = arith.constant 0 : index
    %c0_13 = arith.constant 0 : index
    %14 = vector.load %arg7[%c0_12, %c0_13] : memref<8x128xf32, #tpu.memory_space<vmem>>, vector<8x128xf32>
    tpu.vector_store %arg7[%c0_12, %c0_13], %13 {strides = array<i32>} : memref<8x128xf32, #tpu.memory_space<vmem>>, vector<8x128xf32>,
    return
  }
  func.func @transform_0(%arg0: i32) -> (i32, i32) {
    %c0_i32 = arith.constant 0 : i32
    %c0_i32_0 = arith.constant 0 : i32
    return %arg0, %c0_i32 : i32, i32
  }
  func.func @transform_1(%arg0: i32) -> (i32, i32) {
    %c0_i32 = arith.constant 0 : i32
    %c0_i32_0 = arith.constant 0 : i32
    return %arg0, %c0_i32 : i32, i32
  }
  func.func @transform_2(%arg0: i32) -> (i32, i32) {
    %c0_i32 = arith.constant 0 : i32
    %c0_i32_0 = arith.constant 0 : i32
    return %arg0, %c0_i32 : i32, i32
  }
  func.func @transform_3(%arg0: i32) -> (i32, i32) {
    %c0_i32 = arith.constant 0 : i32
    %c0_i32_0 = arith.constant 0 : i32
    %c0_i32_1 = arith.constant 0 : i32
    return %c0_i32, %c0_i32_0 : i32, i32
  }
  func.func @transform_4(%arg0: i32) -> (i32, i32) {
    %c0_i32 = arith.constant 0 : i32
    %c0_i32_0 = arith.constant 0 : i32
    %c0_i32_1 = arith.constant 0 : i32
    return %c0_i32, %c0_i32_0 : i32, i32
  }
  func.func @transform_5(%arg0: i32) -> (i32, i32) {
    %c0_i32 = arith.constant 0 : i32
    %c0_i32_0 = arith.constant 0 : i32
    %c0_i32_1 = arith.constant 0 : i32
    return %c0_i32, %c0_i32_0 : i32, i32
  }
  func.func @transform_6(%arg0: i32) -> (i32, i32) {
    %c0_i32 = arith.constant 0 : i32
    %c0_i32_0 = arith.constant 0 : i32
    return %arg0, %c0_i32 : i32, i32
  }
}

module attributes {stable_mosaic.version = 11 : i64} {
  func.func @_attn_block_kernel(%arg0: i32, %arg1: memref<1x4x128xf32, #tpu.memory_space<vmem>>, %arg2: memref<1x4x128xf32, #tpu.memory_space<vmem>>, %arg3: memref<1x128xf32, #tpu.memory_space<vmem>>, %arg4: memref<1x128xf32, #tpu.memory_space<vmem>>, %arg5: memref<128x128xbf16, #tpu.memory_space<vmem>>, %arg6: memref<1x128xf32, #tpu.memory_space<vmem>>, %arg7: memref<128x256xbf16, #tpu.memory_space<vmem>>, %arg8: memref<1x256xf32, #tpu.memory_space<vmem>>, %arg9: memref<128x128xf32, #tpu.memory_space<vmem>>, %arg10: memref<1x128xf32, #tpu.memory_space<vmem>>, %arg11: memref<1x4x128xf32, #tpu.memory_space<vmem>>) attributes {dimension_semantics = [#tpu.dimension_semantics<parallel>], iteration_bounds = array<i64: 2>, scalar_prefetch = 0 : i64, scratch_operands = 0 : i64, tpu.core_type = #tpu.core_type<tc>, window_params = [{transform_indices = @transform_0, window_bounds = array<i64: 1, 4, 128>}, {transform_indices = @transform_1, window_bounds = array<i64: 1, 4, 128>}, {pipeline_mode = #tpu.pipeline_mode<synchronous>, transform_indices = @transform_2, window_bounds = array<i64: 1, 128>}, {pipeline_mode = #tpu.pipeline_mode<synchronous>, transform_indices = @transform_3, window_bounds = array<i64: 1, 128>}, {pipeline_mode = #tpu.pipeline_mode<synchronous>, transform_indices = @transform_4, window_bounds = array<i64: 128, 128>}, {pipeline_mode = #tpu.pipeline_mode<synchronous>, transform_indices = @transform_5, window_bounds = array<i64: 1, 128>}, {pipeline_mode = #tpu.pipeline_mode<synchronous>, transform_indices = @transform_6, window_bounds = array<i64: 128, 256>}, {pipeline_mode = #tpu.pipeline_mode<synchronous>, transform_indices = @transform_7, window_bounds = array<i64: 1, 256>}, {pipeline_mode = #tpu.pipeline_mode<synchronous>, transform_indices = @transform_8, window_bounds = array<i64: 128, 128>}, {pipeline_mode = #tpu.pipeline_mode<synchronous>, transform_indices = @transform_9, window_bounds = array<i64: 1, 128>}, {transform_indices = @transform_10, window_bounds = array<i64: 1, 4, 128>}]} {
    %c0 = arith.constant 0 : index
    %c0_0 = arith.constant 0 : index
    %c0_1 = arith.constant 0 : index
    %0 = vector.load %arg1[%c0, %c0_0, %c0_1] : memref<1x4x128xf32, #tpu.memory_space<vmem>>, vector<1x4x128xf32>
    %1 = vector.shape_cast %0 : vector<1x4x128xf32> to vector<4x128xf32>
    %c0_2 = arith.constant 0 : index
    %c0_3 = arith.constant 0 : index
    %c0_4 = arith.constant 0 : index
    %2 = vector.load %arg2[%c0_2, %c0_3, %c0_4] : memref<1x4x128xf32, #tpu.memory_space<vmem>>, vector<1x4x128xf32>
    %3 = vector.shape_cast %2 : vector<1x4x128xf32> to vector<4x128xf32>
    %4 = arith.truncf %1 : vector<4x128xf32> to vector<4x128xbf16>
    %c0_5 = arith.constant 0 : index
    %c0_6 = arith.constant 0 : index
    %5 = vector.load %arg5[%c0_5, %c0_6] : memref<128x128xbf16, #tpu.memory_space<vmem>>, vector<128x128xbf16>
    %cst = arith.constant dense<0.000000e+00> : vector<4x128xf32>
    %6 = tpu.matmul %4, %5, %cst {dimension_numbers = #tpu.dot_dimension_numbers<[1], [0], [0], [1], [0, 0, 1, 1], [], []>} : vector<4x128xbf16>, vector<128x128xbf16>, vector<4x128xf32> -> vector<4x128xf32>
    %c0_7 = arith.constant 0 : index
    %c0_8 = arith.constant 0 : index
    %7 = vector.load %arg6[%c0_7, %c0_8] : memref<1x128xf32, #tpu.memory_space<vmem>>, vector<1x128xf32>
    %8 = vector.broadcast %7 : vector<1x128xf32> to vector<4x128xf32>
    %9 = arith.addf %6, %8 : vector<4x128xf32>
    %10 = arith.truncf %3 : vector<4x128xf32> to vector<4x128xbf16>
    %c0_9 = arith.constant 0 : index
    %c0_10 = arith.constant 0 : index
    %11 = vector.load %arg7[%c0_9, %c0_10] : memref<128x256xbf16, #tpu.memory_space<vmem>>, vector<128x256xbf16>
    %cst_11 = arith.constant dense<0.000000e+00> : vector<4x256xf32>
    %12 = tpu.matmul %10, %11, %cst_11 {dimension_numbers = #tpu.dot_dimension_numbers<[1], [0], [0], [1], [0, 0, 1, 1], [], []>} : vector<4x128xbf16>, vector<128x256xbf16>, vector<4x256xf32> -> vector<4x256xf32>
    %c0_12 = arith.constant 0 : index
    %c0_13 = arith.constant 0 : index
    %13 = vector.load %arg8[%c0_12, %c0_13] : memref<1x256xf32, #tpu.memory_space<vmem>>, vector<1x256xf32>
    %14 = vector.broadcast %13 : vector<1x256xf32> to vector<4x256xf32>
    %15 = arith.addf %12, %14 : vector<4x256xf32>
    %16 = vector.extract_strided_slice %15 {offsets = [0, 0], sizes = [4, 128], strides = [1, 1]} : vector<4x256xf32> to vector<4x128xf32>
    %17 = vector.extract_strided_slice %15 {offsets = [0, 128], sizes = [4, 128], strides = [1, 1]} : vector<4x256xf32> to vector<4x128xf32>
    %c0_14 = arith.constant 0 : index
    %c0_15 = arith.constant 0 : index
    %18 = vector.load %arg9[%c0_14, %c0_15] : memref<128x128xf32, #tpu.memory_space<vmem>>, vector<128x128xf32>
    %cst_16 = arith.constant 0.000000e+00 : f32
    %19 = vector.broadcast %cst_16 : f32 to vector<4x128xf32>
    %20 = vector.extract_strided_slice %9 {offsets = [0, 0], sizes = [4, 32], strides = [1, 1]} : vector<4x128xf32> to vector<4x32xf32>
    %21 = arith.truncf %20 : vector<4x32xf32> to vector<4x32xbf16>
    %22 = vector.extract_strided_slice %16 {offsets = [0, 0], sizes = [4, 32], strides = [1, 1]} : vector<4x128xf32> to vector<4x32xf32>
    %23 = arith.truncf %22 : vector<4x32xf32> to vector<4x32xbf16>
    %24 = vector.extract_strided_slice %17 {offsets = [0, 0], sizes = [4, 32], strides = [1, 1]} : vector<4x128xf32> to vector<4x32xf32>
    %25 = arith.truncf %24 : vector<4x32xf32> to vector<4x32xbf16>
    %cst_17 = arith.constant dense<0.000000e+00> : vector<4x4xf32>
    %26 = tpu.matmul %21, %23, %cst_17 {dimension_numbers = #tpu.dot_dimension_numbers<[1], [1], [0], [0], [0, 0, 1, 0], [], []>} : vector<4x32xbf16>, vector<4x32xbf16>, vector<4x4xf32> -> vector<4x4xf32>
    %cst_18 = arith.constant 0.176776692 : f32
    %27 = vector.broadcast %cst_18 : f32 to vector<4x4xf32>
    %28 = arith.mulf %26, %27 : vector<4x4xf32>
    %cst_19 = arith.constant dense<0xFF800000> : vector<4xf32>
    %29 = vector.multi_reduction <maximumf>, %28, %cst_19 [1] : vector<4x4xf32> to vector<4xf32>
    %30 = vector.shape_cast %29 : vector<4xf32> to vector<4x1xf32>
    %31 = vector.broadcast %30 : vector<4x1xf32> to vector<4x4xf32>
    %32 = arith.subf %28, %31 : vector<4x4xf32>
    %33 = math.exp %32 : vector<4x4xf32>
    %cst_20 = arith.constant dense<0.000000e+00> : vector<4xf32>
    %34 = vector.multi_reduction <add>, %33, %cst_20 [1] : vector<4x4xf32> to vector<4xf32>
    %35 = vector.shape_cast %34 : vector<4xf32> to vector<4x1xf32>
    %36 = tpu.reciprocal %35 {approx = true} : vector<4x1xf32> -> vector<4x1xf32>
    %37 = vector.broadcast %36 : vector<4x1xf32> to vector<4x4xf32>
    %38 = arith.mulf %33, %37 : vector<4x4xf32>
    %39 = arith.truncf %38 : vector<4x4xf32> to vector<4x4xbf16>
    %cst_21 = arith.constant dense<0.000000e+00> : vector<4x32xf32>
    %40 = tpu.matmul %39, %25, %cst_21 {dimension_numbers = #tpu.dot_dimension_numbers<[1], [0], [0], [1], [0, 0, 1, 1], [], []>} : vector<4x4xbf16>, vector<4x32xbf16>, vector<4x32xf32> -> vector<4x32xf32>
    %41 = arith.truncf %40 : vector<4x32xf32> to vector<4x32xbf16>
    %42 = vector.extract_strided_slice %18 {offsets = [0, 0], sizes = [32, 128], strides = [1, 1]} : vector<128x128xf32> to vector<32x128xf32>
    %43 = arith.truncf %42 : vector<32x128xf32> to vector<32x128xbf16>
    %cst_22 = arith.constant dense<0.000000e+00> : vector<4x128xf32>
    %44 = tpu.matmul %41, %43, %cst_22 {dimension_numbers = #tpu.dot_dimension_numbers<[1], [0], [0], [1], [0, 0, 1, 1], [], []>} : vector<4x32xbf16>, vector<32x128xbf16>, vector<4x128xf32> -> vector<4x128xf32>
    %45 = arith.addf %19, %44 : vector<4x128xf32>
    %46 = vector.extract_strided_slice %9 {offsets = [0, 32], sizes = [4, 32], strides = [1, 1]} : vector<4x128xf32> to vector<4x32xf32>
    %47 = arith.truncf %46 : vector<4x32xf32> to vector<4x32xbf16>
    %48 = vector.extract_strided_slice %16 {offsets = [0, 32], sizes = [4, 32], strides = [1, 1]} : vector<4x128xf32> to vector<4x32xf32>
    %49 = arith.truncf %48 : vector<4x32xf32> to vector<4x32xbf16>
    %50 = vector.extract_strided_slice %17 {offsets = [0, 32], sizes = [4, 32], strides = [1, 1]} : vector<4x128xf32> to vector<4x32xf32>
    %51 = arith.truncf %50 : vector<4x32xf32> to vector<4x32xbf16>
    %cst_23 = arith.constant dense<0.000000e+00> : vector<4x4xf32>
    %52 = tpu.matmul %47, %49, %cst_23 {dimension_numbers = #tpu.dot_dimension_numbers<[1], [1], [0], [0], [0, 0, 1, 0], [], []>} : vector<4x32xbf16>, vector<4x32xbf16>, vector<4x4xf32> -> vector<4x4xf32>
    %cst_24 = arith.constant 0.176776692 : f32
    %53 = vector.broadcast %cst_24 : f32 to vector<4x4xf32>
    %54 = arith.mulf %52, %53 : vector<4x4xf32>
    %cst_25 = arith.constant dense<0xFF800000> : vector<4xf32>
    %55 = vector.multi_reduction <maximumf>, %54, %cst_25 [1] : vector<4x4xf32> to vector<4xf32>
    %56 = vector.shape_cast %55 : vector<4xf32> to vector<4x1xf32>
    %57 = vector.broadcast %56 : vector<4x1xf32> to vector<4x4xf32>
    %58 = arith.subf %54, %57 : vector<4x4xf32>
    %59 = math.exp %58 : vector<4x4xf32>
    %cst_26 = arith.constant dense<0.000000e+00> : vector<4xf32>
    %60 = vector.multi_reduction <add>, %59, %cst_26 [1] : vector<4x4xf32> to vector<4xf32>
    %61 = vector.shape_cast %60 : vector<4xf32> to vector<4x1xf32>
    %62 = tpu.reciprocal %61 {approx = true} : vector<4x1xf32> -> vector<4x1xf32>
    %63 = vector.broadcast %62 : vector<4x1xf32> to vector<4x4xf32>
    %64 = arith.mulf %59, %63 : vector<4x4xf32>
    %65 = arith.truncf %64 : vector<4x4xf32> to vector<4x4xbf16>
    %cst_27 = arith.constant dense<0.000000e+00> : vector<4x32xf32>
    %66 = tpu.matmul %65, %51, %cst_27 {dimension_numbers = #tpu.dot_dimension_numbers<[1], [0], [0], [1], [0, 0, 1, 1], [], []>} : vector<4x4xbf16>, vector<4x32xbf16>, vector<4x32xf32> -> vector<4x32xf32>
    %67 = arith.truncf %66 : vector<4x32xf32> to vector<4x32xbf16>
    %68 = vector.extract_strided_slice %18 {offsets = [32, 0], sizes = [32, 128], strides = [1, 1]} : vector<128x128xf32> to vector<32x128xf32>
    %69 = arith.truncf %68 : vector<32x128xf32> to vector<32x128xbf16>
    %cst_28 = arith.constant dense<0.000000e+00> : vector<4x128xf32>
    %70 = tpu.matmul %67, %69, %cst_28 {dimension_numbers = #tpu.dot_dimension_numbers<[1], [0], [0], [1], [0, 0, 1, 1], [], []>} : vector<4x32xbf16>, vector<32x128xbf16>, vector<4x128xf32> -> vector<4x128xf32>
    %71 = arith.addf %45, %70 : vector<4x128xf32>
    %72 = vector.extract_strided_slice %9 {offsets = [0, 64], sizes = [4, 32], strides = [1, 1]} : vector<4x128xf32> to vector<4x32xf32>
    %73 = arith.truncf %72 : vector<4x32xf32> to vector<4x32xbf16>
    %74 = vector.extract_strided_slice %16 {offsets = [0, 64], sizes = [4, 32], strides = [1, 1]} : vector<4x128xf32> to vector<4x32xf32>
    %75 = arith.truncf %74 : vector<4x32xf32> to vector<4x32xbf16>
    %76 = vector.extract_strided_slice %17 {offsets = [0, 64], sizes = [4, 32], strides = [1, 1]} : vector<4x128xf32> to vector<4x32xf32>
    %77 = arith.truncf %76 : vector<4x32xf32> to vector<4x32xbf16>
    %cst_29 = arith.constant dense<0.000000e+00> : vector<4x4xf32>
    %78 = tpu.matmul %73, %75, %cst_29 {dimension_numbers = #tpu.dot_dimension_numbers<[1], [1], [0], [0], [0, 0, 1, 0], [], []>} : vector<4x32xbf16>, vector<4x32xbf16>, vector<4x4xf32> -> vector<4x4xf32>
    %cst_30 = arith.constant 0.176776692 : f32
    %79 = vector.broadcast %cst_30 : f32 to vector<4x4xf32>
    %80 = arith.mulf %78, %79 : vector<4x4xf32>
    %cst_31 = arith.constant dense<0xFF800000> : vector<4xf32>
    %81 = vector.multi_reduction <maximumf>, %80, %cst_31 [1] : vector<4x4xf32> to vector<4xf32>
    %82 = vector.shape_cast %81 : vector<4xf32> to vector<4x1xf32>
    %83 = vector.broadcast %82 : vector<4x1xf32> to vector<4x4xf32>
    %84 = arith.subf %80, %83 : vector<4x4xf32>
    %85 = math.exp %84 : vector<4x4xf32>
    %cst_32 = arith.constant dense<0.000000e+00> : vector<4xf32>
    %86 = vector.multi_reduction <add>, %85, %cst_32 [1] : vector<4x4xf32> to vector<4xf32>
    %87 = vector.shape_cast %86 : vector<4xf32> to vector<4x1xf32>
    %88 = tpu.reciprocal %87 {approx = true} : vector<4x1xf32> -> vector<4x1xf32>
    %89 = vector.broadcast %88 : vector<4x1xf32> to vector<4x4xf32>
    %90 = arith.mulf %85, %89 : vector<4x4xf32>
    %91 = arith.truncf %90 : vector<4x4xf32> to vector<4x4xbf16>
    %cst_33 = arith.constant dense<0.000000e+00> : vector<4x32xf32>
    %92 = tpu.matmul %91, %77, %cst_33 {dimension_numbers = #tpu.dot_dimension_numbers<[1], [0], [0], [1], [0, 0, 1, 1], [], []>} : vector<4x4xbf16>, vector<4x32xbf16>, vector<4x32xf32> -> vector<4x32xf32>
    %93 = arith.truncf %92 : vector<4x32xf32> to vector<4x32xbf16>
    %94 = vector.extract_strided_slice %18 {offsets = [64, 0], sizes = [32, 128], strides = [1, 1]} : vector<128x128xf32> to vector<32x128xf32>
    %95 = arith.truncf %94 : vector<32x128xf32> to vector<32x128xbf16>
    %cst_34 = arith.constant dense<0.000000e+00> : vector<4x128xf32>
    %96 = tpu.matmul %93, %95, %cst_34 {dimension_numbers = #tpu.dot_dimension_numbers<[1], [0], [0], [1], [0, 0, 1, 1], [], []>} : vector<4x32xbf16>, vector<32x128xbf16>, vector<4x128xf32> -> vector<4x128xf32>
    %97 = arith.addf %71, %96 : vector<4x128xf32>
    %98 = vector.extract_strided_slice %9 {offsets = [0, 96], sizes = [4, 32], strides = [1, 1]} : vector<4x128xf32> to vector<4x32xf32>
    %99 = arith.truncf %98 : vector<4x32xf32> to vector<4x32xbf16>
    %100 = vector.extract_strided_slice %16 {offsets = [0, 96], sizes = [4, 32], strides = [1, 1]} : vector<4x128xf32> to vector<4x32xf32>
    %101 = arith.truncf %100 : vector<4x32xf32> to vector<4x32xbf16>
    %102 = vector.extract_strided_slice %17 {offsets = [0, 96], sizes = [4, 32], strides = [1, 1]} : vector<4x128xf32> to vector<4x32xf32>
    %103 = arith.truncf %102 : vector<4x32xf32> to vector<4x32xbf16>
    %cst_35 = arith.constant dense<0.000000e+00> : vector<4x4xf32>
    %104 = tpu.matmul %99, %101, %cst_35 {dimension_numbers = #tpu.dot_dimension_numbers<[1], [1], [0], [0], [0, 0, 1, 0], [], []>} : vector<4x32xbf16>, vector<4x32xbf16>, vector<4x4xf32> -> vector<4x4xf32>
    %cst_36 = arith.constant 0.176776692 : f32
    %105 = vector.broadcast %cst_36 : f32 to vector<4x4xf32>
    %106 = arith.mulf %104, %105 : vector<4x4xf32>
    %cst_37 = arith.constant dense<0xFF800000> : vector<4xf32>
    %107 = vector.multi_reduction <maximumf>, %106, %cst_37 [1] : vector<4x4xf32> to vector<4xf32>
    %108 = vector.shape_cast %107 : vector<4xf32> to vector<4x1xf32>
    %109 = vector.broadcast %108 : vector<4x1xf32> to vector<4x4xf32>
    %110 = arith.subf %106, %109 : vector<4x4xf32>
    %111 = math.exp %110 : vector<4x4xf32>
    %cst_38 = arith.constant dense<0.000000e+00> : vector<4xf32>
    %112 = vector.multi_reduction <add>, %111, %cst_38 [1] : vector<4x4xf32> to vector<4xf32>
    %113 = vector.shape_cast %112 : vector<4xf32> to vector<4x1xf32>
    %114 = tpu.reciprocal %113 {approx = true} : vector<4x1xf32> -> vector<4x1xf32>
    %115 = vector.broadcast %114 : vector<4x1xf32> to vector<4x4xf32>
    %116 = arith.mulf %111, %115 : vector<4x4xf32>
    %117 = arith.truncf %116 : vector<4x4xf32> to vector<4x4xbf16>
    %cst_39 = arith.constant dense<0.000000e+00> : vector<4x32xf32>
    %118 = tpu.matmul %117, %103, %cst_39 {dimension_numbers = #tpu.dot_dimension_numbers<[1], [0], [0], [1], [0, 0, 1, 1], [], []>} : vector<4x4xbf16>, vector<4x32xbf16>, vector<4x32xf32> -> vector<4x32xf32>
    %119 = arith.truncf %118 : vector<4x32xf32> to vector<4x32xbf16>
    %120 = vector.extract_strided_slice %18 {offsets = [96, 0], sizes = [32, 128], strides = [1, 1]} : vector<128x128xf32> to vector<32x128xf32>
    %121 = arith.truncf %120 : vector<32x128xf32> to vector<32x128xbf16>
    %cst_40 = arith.constant dense<0.000000e+00> : vector<4x128xf32>
    %122 = tpu.matmul %119, %121, %cst_40 {dimension_numbers = #tpu.dot_dimension_numbers<[1], [0], [0], [1], [0, 0, 1, 1], [], []>} : vector<4x32xbf16>, vector<32x128xbf16>, vector<4x128xf32> -> vector<4x128xf32>
    %123 = arith.addf %97, %122 : vector<4x128xf32>
    %124 = arith.addf %1, %123 : vector<4x128xf32>
    %c0_41 = arith.constant 0 : index
    %c0_42 = arith.constant 0 : index
    %125 = vector.load %arg10[%c0_41, %c0_42] : memref<1x128xf32, #tpu.memory_space<vmem>>, vector<1x128xf32>
    %126 = vector.broadcast %125 : vector<1x128xf32> to vector<4x128xf32>
    %127 = arith.addf %124, %126 : vector<4x128xf32>
    %c0_43 = arith.constant 0 : index
    %c0_44 = arith.constant 0 : index
    %c0_45 = arith.constant 0 : index
    %128 = vector.load %arg11[%c0_43, %c0_44, %c0_45] : memref<1x4x128xf32, #tpu.memory_space<vmem>>, vector<1x4x128xf32>
    %129 = vector.shape_cast %128 : vector<1x4x128xf32> to vector<4x128xf32>
    %130 = vector.shape_cast %127 : vector<4x128xf32> to vector<1x4x128xf32>
    tpu.vector_store %arg11[%c0_43, %c0_44, %c0_45], %130 {strides = array<i32>} : memref<1x4x128xf32, #tpu.memory_space<vmem>>, vector<1x4x128xf32>,
    return
  }
  func.func @transform_0(%arg0: i32) -> (i32, i32, i32) {
    %c0_i32 = arith.constant 0 : i32
    %c0_i32_0 = arith.constant 0 : i32
    %c0_i32_1 = arith.constant 0 : i32
    return %arg0, %c0_i32, %c0_i32_0 : i32, i32, i32
  }
  func.func @transform_1(%arg0: i32) -> (i32, i32, i32) {
    %c0_i32 = arith.constant 0 : i32
    %c0_i32_0 = arith.constant 0 : i32
    %c0_i32_1 = arith.constant 0 : i32
    return %arg0, %c0_i32, %c0_i32_0 : i32, i32, i32
  }
  func.func @transform_2(%arg0: i32) -> (i32, i32) {
    %c0_i32 = arith.constant 0 : i32
    %c0_i32_0 = arith.constant 0 : i32
    %c0_i32_1 = arith.constant 0 : i32
    return %c0_i32, %c0_i32_0 : i32, i32
  }
  func.func @transform_3(%arg0: i32) -> (i32, i32) {
    %c0_i32 = arith.constant 0 : i32
    %c0_i32_0 = arith.constant 0 : i32
    %c0_i32_1 = arith.constant 0 : i32
    return %c0_i32, %c0_i32_0 : i32, i32
  }
  func.func @transform_4(%arg0: i32) -> (i32, i32) {
    %c0_i32 = arith.constant 0 : i32
    %c0_i32_0 = arith.constant 0 : i32
    %c0_i32_1 = arith.constant 0 : i32
    return %c0_i32, %c0_i32_0 : i32, i32
  }
  func.func @transform_5(%arg0: i32) -> (i32, i32) {
    %c0_i32 = arith.constant 0 : i32
    %c0_i32_0 = arith.constant 0 : i32
    %c0_i32_1 = arith.constant 0 : i32
    return %c0_i32, %c0_i32_0 : i32, i32
  }
  func.func @transform_6(%arg0: i32) -> (i32, i32) {
    %c0_i32 = arith.constant 0 : i32
    %c0_i32_0 = arith.constant 0 : i32
    %c0_i32_1 = arith.constant 0 : i32
    return %c0_i32, %c0_i32_0 : i32, i32
  }
  func.func @transform_7(%arg0: i32) -> (i32, i32) {
    %c0_i32 = arith.constant 0 : i32
    %c0_i32_0 = arith.constant 0 : i32
    %c0_i32_1 = arith.constant 0 : i32
    return %c0_i32, %c0_i32_0 : i32, i32
  }
  func.func @transform_8(%arg0: i32) -> (i32, i32) {
    %c0_i32 = arith.constant 0 : i32
    %c0_i32_0 = arith.constant 0 : i32
    %c0_i32_1 = arith.constant 0 : i32
    return %c0_i32, %c0_i32_0 : i32, i32
  }
  func.func @transform_9(%arg0: i32) -> (i32, i32) {
    %c0_i32 = arith.constant 0 : i32
    %c0_i32_0 = arith.constant 0 : i32
    %c0_i32_1 = arith.constant 0 : i32
    return %c0_i32, %c0_i32_0 : i32, i32
  }
  func.func @transform_10(%arg0: i32) -> (i32, i32, i32) {
    %c0_i32 = arith.constant 0 : i32
    %c0_i32_0 = arith.constant 0 : i32
    %c0_i32_1 = arith.constant 0 : i32
    return %arg0, %c0_i32, %c0_i32_0 : i32, i32, i32
  }
}

module attributes {stable_mosaic.version = 11 : i64} {
  func.func @_ffn_block_kernel(%arg0: i32, %arg1: memref<8x128xf32, #tpu.memory_space<vmem>>, %arg2: memref<1x128xf32, #tpu.memory_space<vmem>>, %arg3: memref<1x128xf32, #tpu.memory_space<vmem>>, %arg4: memref<128x256xbf16, #tpu.memory_space<vmem>>, %arg5: memref<1x256xf32, #tpu.memory_space<vmem>>, %arg6: memref<256x128xbf16, #tpu.memory_space<vmem>>, %arg7: memref<1x128xf32, #tpu.memory_space<vmem>>, %arg8: memref<1x128xf32, #tpu.memory_space<vmem>>, %arg9: memref<1x128xf32, #tpu.memory_space<vmem>>, %arg10: memref<1x128xf32, #tpu.memory_space<vmem>>, %arg11: memref<1x128xf32, #tpu.memory_space<vmem>>, %arg12: memref<8x128xf32, #tpu.memory_space<vmem>>) attributes {dimension_semantics = [#tpu.dimension_semantics<parallel>], iteration_bounds = array<i64: 1>, scalar_prefetch = 0 : i64, scratch_operands = 0 : i64, tpu.core_type = #tpu.core_type<tc>, window_params = [{transform_indices = @transform_0, window_bounds = array<i64: 8, 128>}, {pipeline_mode = #tpu.pipeline_mode<synchronous>, transform_indices = @transform_1, window_bounds = array<i64: 1, 128>}, {pipeline_mode = #tpu.pipeline_mode<synchronous>, transform_indices = @transform_2, window_bounds = array<i64: 1, 128>}, {pipeline_mode = #tpu.pipeline_mode<synchronous>, transform_indices = @transform_3, window_bounds = array<i64: 128, 256>}, {pipeline_mode = #tpu.pipeline_mode<synchronous>, transform_indices = @transform_4, window_bounds = array<i64: 1, 256>}, {pipeline_mode = #tpu.pipeline_mode<synchronous>, transform_indices = @transform_5, window_bounds = array<i64: 256, 128>}, {pipeline_mode = #tpu.pipeline_mode<synchronous>, transform_indices = @transform_6, window_bounds = array<i64: 1, 128>}, {pipeline_mode = #tpu.pipeline_mode<synchronous>, transform_indices = @transform_7, window_bounds = array<i64: 1, 128>}, {pipeline_mode = #tpu.pipeline_mode<synchronous>, transform_indices = @transform_8, window_bounds = array<i64: 1, 128>}, {pipeline_mode = #tpu.pipeline_mode<synchronous>, transform_indices = @transform_9, window_bounds = array<i64: 1, 128>}, {pipeline_mode = #tpu.pipeline_mode<synchronous>, transform_indices = @transform_10, window_bounds = array<i64: 1, 128>}, {transform_indices = @transform_11, window_bounds = array<i64: 8, 128>}]} {
    %c0 = arith.constant 0 : index
    %c0_0 = arith.constant 0 : index
    %0 = vector.load %arg1[%c0, %c0_0] : memref<8x128xf32, #tpu.memory_space<vmem>>, vector<8x128xf32>
    %c0_1 = arith.constant 0 : index
    %c0_2 = arith.constant 0 : index
    %1 = vector.load %arg2[%c0_1, %c0_2] : memref<1x128xf32, #tpu.memory_space<vmem>>, vector<1x128xf32>
    %c0_3 = arith.constant 0 : index
    %c0_4 = arith.constant 0 : index
    %2 = vector.load %arg3[%c0_3, %c0_4] : memref<1x128xf32, #tpu.memory_space<vmem>>, vector<1x128xf32>
    %cst = arith.constant dense<0.000000e+00> : vector<8xf32>
    %3 = vector.multi_reduction <add>, %0, %cst [1] : vector<8x128xf32> to vector<8xf32>
    %4 = vector.shape_cast %3 : vector<8xf32> to vector<8x1xf32>
    %cst_5 = arith.constant 1.280000e+02 : f32
    %5 = vector.broadcast %cst_5 : f32 to vector<8x1xf32>
    %6 = arith.divf %4, %5 : vector<8x1xf32>
    %7 = vector.broadcast %6 : vector<8x1xf32> to vector<8x128xf32>
    %8 = arith.subf %0, %7 : vector<8x128xf32>
    %9 = arith.mulf %8, %8 : vector<8x128xf32>
    %cst_6 = arith.constant dense<0.000000e+00> : vector<8xf32>
    %10 = vector.multi_reduction <add>, %9, %cst_6 [1] : vector<8x128xf32> to vector<8xf32>
    %11 = vector.shape_cast %10 : vector<8xf32> to vector<8x1xf32>
    %cst_7 = arith.constant 1.280000e+02 : f32
    %12 = vector.broadcast %cst_7 : f32 to vector<8x1xf32>
    %13 = arith.divf %11, %12 : vector<8x1xf32>
    %cst_8 = arith.constant 9.99999974E-6 : f32
    %14 = vector.broadcast %cst_8 : f32 to vector<8x1xf32>
    %15 = arith.addf %13, %14 : vector<8x1xf32>
    %16 = math.rsqrt %15 : vector<8x1xf32>
    %17 = vector.broadcast %16 : vector<8x1xf32> to vector<8x128xf32>
    %18 = arith.mulf %8, %17 : vector<8x128xf32>
    %19 = vector.broadcast %1 : vector<1x128xf32> to vector<8x128xf32>
    %20 = arith.mulf %18, %19 : vector<8x128xf32>
    %21 = vector.broadcast %2 : vector<1x128xf32> to vector<8x128xf32>
    %22 = arith.addf %20, %21 : vector<8x128xf32>
    %23 = arith.truncf %22 : vector<8x128xf32> to vector<8x128xbf16>
    %c0_9 = arith.constant 0 : index
    %c0_10 = arith.constant 0 : index
    %24 = vector.load %arg4[%c0_9, %c0_10] : memref<128x256xbf16, #tpu.memory_space<vmem>>, vector<128x256xbf16>
    %cst_11 = arith.constant dense<0.000000e+00> : vector<8x256xf32>
    %25 = tpu.matmul %23, %24, %cst_11 {dimension_numbers = #tpu.dot_dimension_numbers<[1], [0], [0], [1], [0, 0, 1, 1], [], []>} : vector<8x128xbf16>, vector<128x256xbf16>, vector<8x256xf32> -> vector<8x256xf32>
    %c0_12 = arith.constant 0 : index
    %c0_13 = arith.constant 0 : index
    %26 = vector.load %arg5[%c0_12, %c0_13] : memref<1x256xf32, #tpu.memory_space<vmem>>, vector<1x256xf32>
    %27 = vector.broadcast %26 : vector<1x256xf32> to vector<8x256xf32>
    %28 = arith.addf %25, %27 : vector<8x256xf32>
    %29 = arith.mulf %28, %28 : vector<8x256xf32>
    %30 = arith.mulf %28, %29 : vector<8x256xf32>
    %cst_14 = arith.constant 4.471500e-02 : f32
    %31 = vector.broadcast %cst_14 : f32 to vector<8x256xf32>
    %32 = arith.mulf %31, %30 : vector<8x256xf32>
    %33 = arith.addf %28, %32 : vector<8x256xf32>
    %cst_15 = arith.constant 0.797884583 : f32
    %34 = vector.broadcast %cst_15 : f32 to vector<8x256xf32>
    %35 = arith.mulf %34, %33 : vector<8x256xf32>
    %36 = math.tanh %35 : vector<8x256xf32>
    %cst_16 = arith.constant 1.000000e+00 : f32
    %37 = vector.broadcast %cst_16 : f32 to vector<8x256xf32>
    %38 = arith.addf %37, %36 : vector<8x256xf32>
    %cst_17 = arith.constant 5.000000e-01 : f32
    %39 = vector.broadcast %cst_17 : f32 to vector<8x256xf32>
    %40 = arith.mulf %39, %38 : vector<8x256xf32>
    %41 = arith.mulf %28, %40 : vector<8x256xf32>
    %42 = arith.truncf %41 : vector<8x256xf32> to vector<8x256xbf16>
    %c0_18 = arith.constant 0 : index
    %c0_19 = arith.constant 0 : index
    %43 = vector.load %arg6[%c0_18, %c0_19] : memref<256x128xbf16, #tpu.memory_space<vmem>>, vector<256x128xbf16>
    %cst_20 = arith.constant dense<0.000000e+00> : vector<8x128xf32>
    %44 = tpu.matmul %42, %43, %cst_20 {dimension_numbers = #tpu.dot_dimension_numbers<[1], [0], [0], [1], [0, 0, 1, 1], [], []>} : vector<8x256xbf16>, vector<256x128xbf16>, vector<8x128xf32> -> vector<8x128xf32>
    %c0_21 = arith.constant 0 : index
    %c0_22 = arith.constant 0 : index
    %45 = vector.load %arg7[%c0_21, %c0_22] : memref<1x128xf32, #tpu.memory_space<vmem>>, vector<1x128xf32>
    %46 = vector.broadcast %45 : vector<1x128xf32> to vector<8x128xf32>
    %47 = arith.addf %44, %46 : vector<8x128xf32>
    %48 = arith.addf %22, %47 : vector<8x128xf32>
    %c0_23 = arith.constant 0 : index
    %c0_24 = arith.constant 0 : index
    %49 = vector.load %arg8[%c0_23, %c0_24] : memref<1x128xf32, #tpu.memory_space<vmem>>, vector<1x128xf32>
    %c0_25 = arith.constant 0 : index
    %c0_26 = arith.constant 0 : index
    %50 = vector.load %arg9[%c0_25, %c0_26] : memref<1x128xf32, #tpu.memory_space<vmem>>, vector<1x128xf32>
    %cst_27 = arith.constant dense<0.000000e+00> : vector<8xf32>
    %51 = vector.multi_reduction <add>, %48, %cst_27 [1] : vector<8x128xf32> to vector<8xf32>
    %52 = vector.shape_cast %51 : vector<8xf32> to vector<8x1xf32>
    %cst_28 = arith.constant 1.280000e+02 : f32
    %53 = vector.broadcast %cst_28 : f32 to vector<8x1xf32>
    %54 = arith.divf %52, %53 : vector<8x1xf32>
    %55 = vector.broadcast %54 : vector<8x1xf32> to vector<8x128xf32>
    %56 = arith.subf %48, %55 : vector<8x128xf32>
    %57 = arith.mulf %56, %56 : vector<8x128xf32>
    %cst_29 = arith.constant dense<0.000000e+00> : vector<8xf32>
    %58 = vector.multi_reduction <add>, %57, %cst_29 [1] : vector<8x128xf32> to vector<8xf32>
    %59 = vector.shape_cast %58 : vector<8xf32> to vector<8x1xf32>
    %cst_30 = arith.constant 1.280000e+02 : f32
    %60 = vector.broadcast %cst_30 : f32 to vector<8x1xf32>
    %61 = arith.divf %59, %60 : vector<8x1xf32>
    %cst_31 = arith.constant 9.99999974E-6 : f32
    %62 = vector.broadcast %cst_31 : f32 to vector<8x1xf32>
    %63 = arith.addf %61, %62 : vector<8x1xf32>
    %64 = math.rsqrt %63 : vector<8x1xf32>
    %65 = vector.broadcast %64 : vector<8x1xf32> to vector<8x128xf32>
    %66 = arith.mulf %56, %65 : vector<8x128xf32>
    %67 = vector.broadcast %49 : vector<1x128xf32> to vector<8x128xf32>
    %68 = arith.mulf %66, %67 : vector<8x128xf32>
    %69 = vector.broadcast %50 : vector<1x128xf32> to vector<8x128xf32>
    %70 = arith.addf %68, %69 : vector<8x128xf32>
    %c0_32 = arith.constant 0 : index
    %c0_33 = arith.constant 0 : index
    %71 = vector.load %arg10[%c0_32, %c0_33] : memref<1x128xf32, #tpu.memory_space<vmem>>, vector<1x128xf32>
    %c0_34 = arith.constant 0 : index
    %c0_35 = arith.constant 0 : index
    %72 = vector.load %arg11[%c0_34, %c0_35] : memref<1x128xf32, #tpu.memory_space<vmem>>, vector<1x128xf32>
    %cst_36 = arith.constant dense<0.000000e+00> : vector<8xf32>
    %73 = vector.multi_reduction <add>, %70, %cst_36 [1] : vector<8x128xf32> to vector<8xf32>
    %74 = vector.shape_cast %73 : vector<8xf32> to vector<8x1xf32>
    %cst_37 = arith.constant 1.280000e+02 : f32
    %75 = vector.broadcast %cst_37 : f32 to vector<8x1xf32>
    %76 = arith.divf %74, %75 : vector<8x1xf32>
    %77 = vector.broadcast %76 : vector<8x1xf32> to vector<8x128xf32>
    %78 = arith.subf %70, %77 : vector<8x128xf32>
    %79 = arith.mulf %78, %78 : vector<8x128xf32>
    %cst_38 = arith.constant dense<0.000000e+00> : vector<8xf32>
    %80 = vector.multi_reduction <add>, %79, %cst_38 [1] : vector<8x128xf32> to vector<8xf32>
    %81 = vector.shape_cast %80 : vector<8xf32> to vector<8x1xf32>
    %cst_39 = arith.constant 1.280000e+02 : f32
    %82 = vector.broadcast %cst_39 : f32 to vector<8x1xf32>
    %83 = arith.divf %81, %82 : vector<8x1xf32>
    %cst_40 = arith.constant 9.99999974E-6 : f32
    %84 = vector.broadcast %cst_40 : f32 to vector<8x1xf32>
    %85 = arith.addf %83, %84 : vector<8x1xf32>
    %86 = math.rsqrt %85 : vector<8x1xf32>
    %87 = vector.broadcast %86 : vector<8x1xf32> to vector<8x128xf32>
    %88 = arith.mulf %78, %87 : vector<8x128xf32>
    %89 = vector.broadcast %71 : vector<1x128xf32> to vector<8x128xf32>
    %90 = arith.mulf %88, %89 : vector<8x128xf32>
    %91 = vector.broadcast %72 : vector<1x128xf32> to vector<8x128xf32>
    %92 = arith.addf %90, %91 : vector<8x128xf32>
    %c0_41 = arith.constant 0 : index
    %c0_42 = arith.constant 0 : index
    %93 = vector.load %arg12[%c0_41, %c0_42] : memref<8x128xf32, #tpu.memory_space<vmem>>, vector<8x128xf32>
    tpu.vector_store %arg12[%c0_41, %c0_42], %92 {strides = array<i32>} : memref<8x128xf32, #tpu.memory_space<vmem>>, vector<8x128xf32>,
    return
  }
  func.func @transform_0(%arg0: i32) -> (i32, i32) {
    %c0_i32 = arith.constant 0 : i32
    %c0_i32_0 = arith.constant 0 : i32
    return %arg0, %c0_i32 : i32, i32
  }
  func.func @transform_1(%arg0: i32) -> (i32, i32) {
    %c0_i32 = arith.constant 0 : i32
    %c0_i32_0 = arith.constant 0 : i32
    %c0_i32_1 = arith.constant 0 : i32
    return %c0_i32, %c0_i32_0 : i32, i32
  }
  func.func @transform_2(%arg0: i32) -> (i32, i32) {
    %c0_i32 = arith.constant 0 : i32
    %c0_i32_0 = arith.constant 0 : i32
    %c0_i32_1 = arith.constant 0 : i32
    return %c0_i32, %c0_i32_0 : i32, i32
  }
  func.func @transform_3(%arg0: i32) -> (i32, i32) {
    %c0_i32 = arith.constant 0 : i32
    %c0_i32_0 = arith.constant 0 : i32
    %c0_i32_1 = arith.constant 0 : i32
    return %c0_i32, %c0_i32_0 : i32, i32
  }
  func.func @transform_4(%arg0: i32) -> (i32, i32) {
    %c0_i32 = arith.constant 0 : i32
    %c0_i32_0 = arith.constant 0 : i32
    %c0_i32_1 = arith.constant 0 : i32
    return %c0_i32, %c0_i32_0 : i32, i32
  }
  func.func @transform_5(%arg0: i32) -> (i32, i32) {
    %c0_i32 = arith.constant 0 : i32
    %c0_i32_0 = arith.constant 0 : i32
    %c0_i32_1 = arith.constant 0 : i32
    return %c0_i32, %c0_i32_0 : i32, i32
  }
  func.func @transform_6(%arg0: i32) -> (i32, i32) {
    %c0_i32 = arith.constant 0 : i32
    %c0_i32_0 = arith.constant 0 : i32
    %c0_i32_1 = arith.constant 0 : i32
    return %c0_i32, %c0_i32_0 : i32, i32
  }
  func.func @transform_7(%arg0: i32) -> (i32, i32) {
    %c0_i32 = arith.constant 0 : i32
    %c0_i32_0 = arith.constant 0 : i32
    %c0_i32_1 = arith.constant 0 : i32
    return %c0_i32, %c0_i32_0 : i32, i32
  }
  func.func @transform_8(%arg0: i32) -> (i32, i32) {
    %c0_i32 = arith.constant 0 : i32
    %c0_i32_0 = arith.constant 0 : i32
    %c0_i32_1 = arith.constant 0 : i32
    return %c0_i32, %c0_i32_0 : i32, i32
  }
  func.func @transform_9(%arg0: i32) -> (i32, i32) {
    %c0_i32 = arith.constant 0 : i32
    %c0_i32_0 = arith.constant 0 : i32
    %c0_i32_1 = arith.constant 0 : i32
    return %c0_i32, %c0_i32_0 : i32, i32
  }
  func.func @transform_10(%arg0: i32) -> (i32, i32) {
    %c0_i32 = arith.constant 0 : i32
    %c0_i32_0 = arith.constant 0 : i32
    %c0_i32_1 = arith.constant 0 : i32
    return %c0_i32, %c0_i32_0 : i32, i32
  }
  func.func @transform_11(%arg0: i32) -> (i32, i32) {
    %c0_i32 = arith.constant 0 : i32
    %c0_i32_0 = arith.constant 0 : i32
    return %arg0, %c0_i32 : i32, i32
  }
}

module attributes {stable_mosaic.version = 11 : i64} {
  func.func @_attn_block_kernel(%arg0: i32, %arg1: memref<1x4x128xf32, #tpu.memory_space<vmem>>, %arg2: memref<1x4x128xf32, #tpu.memory_space<vmem>>, %arg3: memref<1x128xf32, #tpu.memory_space<vmem>>, %arg4: memref<1x128xf32, #tpu.memory_space<vmem>>, %arg5: memref<128x128xbf16, #tpu.memory_space<vmem>>, %arg6: memref<1x128xf32, #tpu.memory_space<vmem>>, %arg7: memref<128x256xbf16, #tpu.memory_space<vmem>>, %arg8: memref<1x256xf32, #tpu.memory_space<vmem>>, %arg9: memref<128x128xf32, #tpu.memory_space<vmem>>, %arg10: memref<1x128xf32, #tpu.memory_space<vmem>>, %arg11: memref<1x4x128xf32, #tpu.memory_space<vmem>>) attributes {dimension_semantics = [#tpu.dimension_semantics<parallel>], iteration_bounds = array<i64: 2>, scalar_prefetch = 0 : i64, scratch_operands = 0 : i64, tpu.core_type = #tpu.core_type<tc>, window_params = [{transform_indices = @transform_0, window_bounds = array<i64: 1, 4, 128>}, {transform_indices = @transform_1, window_bounds = array<i64: 1, 4, 128>}, {pipeline_mode = #tpu.pipeline_mode<synchronous>, transform_indices = @transform_2, window_bounds = array<i64: 1, 128>}, {pipeline_mode = #tpu.pipeline_mode<synchronous>, transform_indices = @transform_3, window_bounds = array<i64: 1, 128>}, {pipeline_mode = #tpu.pipeline_mode<synchronous>, transform_indices = @transform_4, window_bounds = array<i64: 128, 128>}, {pipeline_mode = #tpu.pipeline_mode<synchronous>, transform_indices = @transform_5, window_bounds = array<i64: 1, 128>}, {pipeline_mode = #tpu.pipeline_mode<synchronous>, transform_indices = @transform_6, window_bounds = array<i64: 128, 256>}, {pipeline_mode = #tpu.pipeline_mode<synchronous>, transform_indices = @transform_7, window_bounds = array<i64: 1, 256>}, {pipeline_mode = #tpu.pipeline_mode<synchronous>, transform_indices = @transform_8, window_bounds = array<i64: 128, 128>}, {pipeline_mode = #tpu.pipeline_mode<synchronous>, transform_indices = @transform_9, window_bounds = array<i64: 1, 128>}, {transform_indices = @transform_10, window_bounds = array<i64: 1, 4, 128>}]} {
    %c0 = arith.constant 0 : index
    %c0_0 = arith.constant 0 : index
    %c0_1 = arith.constant 0 : index
    %0 = vector.load %arg1[%c0, %c0_0, %c0_1] : memref<1x4x128xf32, #tpu.memory_space<vmem>>, vector<1x4x128xf32>
    %1 = vector.shape_cast %0 : vector<1x4x128xf32> to vector<4x128xf32>
    %c0_2 = arith.constant 0 : index
    %c0_3 = arith.constant 0 : index
    %c0_4 = arith.constant 0 : index
    %2 = vector.load %arg2[%c0_2, %c0_3, %c0_4] : memref<1x4x128xf32, #tpu.memory_space<vmem>>, vector<1x4x128xf32>
    %3 = vector.shape_cast %2 : vector<1x4x128xf32> to vector<4x128xf32>
    %4 = arith.truncf %1 : vector<4x128xf32> to vector<4x128xbf16>
    %c0_5 = arith.constant 0 : index
    %c0_6 = arith.constant 0 : index
    %5 = vector.load %arg5[%c0_5, %c0_6] : memref<128x128xbf16, #tpu.memory_space<vmem>>, vector<128x128xbf16>
    %cst = arith.constant dense<0.000000e+00> : vector<4x128xf32>
    %6 = tpu.matmul %4, %5, %cst {dimension_numbers = #tpu.dot_dimension_numbers<[1], [0], [0], [1], [0, 0, 1, 1], [], []>} : vector<4x128xbf16>, vector<128x128xbf16>, vector<4x128xf32> -> vector<4x128xf32>
    %c0_7 = arith.constant 0 : index
    %c0_8 = arith.constant 0 : index
    %7 = vector.load %arg6[%c0_7, %c0_8] : memref<1x128xf32, #tpu.memory_space<vmem>>, vector<1x128xf32>
    %8 = vector.broadcast %7 : vector<1x128xf32> to vector<4x128xf32>
    %9 = arith.addf %6, %8 : vector<4x128xf32>
    %10 = arith.truncf %3 : vector<4x128xf32> to vector<4x128xbf16>
    %c0_9 = arith.constant 0 : index
    %c0_10 = arith.constant 0 : index
    %11 = vector.load %arg7[%c0_9, %c0_10] : memref<128x256xbf16, #tpu.memory_space<vmem>>, vector<128x256xbf16>
    %cst_11 = arith.constant dense<0.000000e+00> : vector<4x256xf32>
    %12 = tpu.matmul %10, %11, %cst_11 {dimension_numbers = #tpu.dot_dimension_numbers<[1], [0], [0], [1], [0, 0, 1, 1], [], []>} : vector<4x128xbf16>, vector<128x256xbf16>, vector<4x256xf32> -> vector<4x256xf32>
    %c0_12 = arith.constant 0 : index
    %c0_13 = arith.constant 0 : index
    %13 = vector.load %arg8[%c0_12, %c0_13] : memref<1x256xf32, #tpu.memory_space<vmem>>, vector<1x256xf32>
    %14 = vector.broadcast %13 : vector<1x256xf32> to vector<4x256xf32>
    %15 = arith.addf %12, %14 : vector<4x256xf32>
    %16 = vector.extract_strided_slice %15 {offsets = [0, 0], sizes = [4, 128], strides = [1, 1]} : vector<4x256xf32> to vector<4x128xf32>
    %17 = vector.extract_strided_slice %15 {offsets = [0, 128], sizes = [4, 128], strides = [1, 1]} : vector<4x256xf32> to vector<4x128xf32>
    %18 = tpu.iota {dimensions = array<i32: 0>} : vector<4x4xi32>
    %19 = tpu.iota {dimensions = array<i32: 1>} : vector<4x4xi32>
    %20 = arith.cmpi sgt, %19, %18 : vector<4x4xi32>
    %cst_14 = arith.constant -1.000000e+30 : f32
    %cst_15 = arith.constant 0.000000e+00 : f32
    %21 = vector.broadcast %cst_14 : f32 to vector<4x4xf32>
    %22 = vector.broadcast %cst_15 : f32 to vector<4x4xf32>
    %23 = arith.select %20, %21, %22 : vector<4x4xi1>, vector<4x4xf32>
    %c0_16 = arith.constant 0 : index
    %c0_17 = arith.constant 0 : index
    %24 = vector.load %arg9[%c0_16, %c0_17] : memref<128x128xf32, #tpu.memory_space<vmem>>, vector<128x128xf32>
    %cst_18 = arith.constant 0.000000e+00 : f32
    %25 = vector.broadcast %cst_18 : f32 to vector<4x128xf32>
    %26 = vector.extract_strided_slice %9 {offsets = [0, 0], sizes = [4, 32], strides = [1, 1]} : vector<4x128xf32> to vector<4x32xf32>
    %27 = arith.truncf %26 : vector<4x32xf32> to vector<4x32xbf16>
    %28 = vector.extract_strided_slice %16 {offsets = [0, 0], sizes = [4, 32], strides = [1, 1]} : vector<4x128xf32> to vector<4x32xf32>
    %29 = arith.truncf %28 : vector<4x32xf32> to vector<4x32xbf16>
    %30 = vector.extract_strided_slice %17 {offsets = [0, 0], sizes = [4, 32], strides = [1, 1]} : vector<4x128xf32> to vector<4x32xf32>
    %31 = arith.truncf %30 : vector<4x32xf32> to vector<4x32xbf16>
    %cst_19 = arith.constant dense<0.000000e+00> : vector<4x4xf32>
    %32 = tpu.matmul %27, %29, %cst_19 {dimension_numbers = #tpu.dot_dimension_numbers<[1], [1], [0], [0], [0, 0, 1, 0], [], []>} : vector<4x32xbf16>, vector<4x32xbf16>, vector<4x4xf32> -> vector<4x4xf32>
    %cst_20 = arith.constant 0.176776692 : f32
    %33 = vector.broadcast %cst_20 : f32 to vector<4x4xf32>
    %34 = arith.mulf %32, %33 : vector<4x4xf32>
    %35 = arith.addf %34, %23 : vector<4x4xf32>
    %cst_21 = arith.constant dense<0xFF800000> : vector<4xf32>
    %36 = vector.multi_reduction <maximumf>, %35, %cst_21 [1] : vector<4x4xf32> to vector<4xf32>
    %37 = vector.shape_cast %36 : vector<4xf32> to vector<4x1xf32>
    %38 = vector.broadcast %37 : vector<4x1xf32> to vector<4x4xf32>
    %39 = arith.subf %35, %38 : vector<4x4xf32>
    %40 = math.exp %39 : vector<4x4xf32>
    %cst_22 = arith.constant dense<0.000000e+00> : vector<4xf32>
    %41 = vector.multi_reduction <add>, %40, %cst_22 [1] : vector<4x4xf32> to vector<4xf32>
    %42 = vector.shape_cast %41 : vector<4xf32> to vector<4x1xf32>
    %43 = tpu.reciprocal %42 {approx = true} : vector<4x1xf32> -> vector<4x1xf32>
    %44 = vector.broadcast %43 : vector<4x1xf32> to vector<4x4xf32>
    %45 = arith.mulf %40, %44 : vector<4x4xf32>
    %46 = arith.truncf %45 : vector<4x4xf32> to vector<4x4xbf16>
    %cst_23 = arith.constant dense<0.000000e+00> : vector<4x32xf32>
    %47 = tpu.matmul %46, %31, %cst_23 {dimension_numbers = #tpu.dot_dimension_numbers<[1], [0], [0], [1], [0, 0, 1, 1], [], []>} : vector<4x4xbf16>, vector<4x32xbf16>, vector<4x32xf32> -> vector<4x32xf32>
    %48 = arith.truncf %47 : vector<4x32xf32> to vector<4x32xbf16>
    %49 = vector.extract_strided_slice %24 {offsets = [0, 0], sizes = [32, 128], strides = [1, 1]} : vector<128x128xf32> to vector<32x128xf32>
    %50 = arith.truncf %49 : vector<32x128xf32> to vector<32x128xbf16>
    %cst_24 = arith.constant dense<0.000000e+00> : vector<4x128xf32>
    %51 = tpu.matmul %48, %50, %cst_24 {dimension_numbers = #tpu.dot_dimension_numbers<[1], [0], [0], [1], [0, 0, 1, 1], [], []>} : vector<4x32xbf16>, vector<32x128xbf16>, vector<4x128xf32> -> vector<4x128xf32>
    %52 = arith.addf %25, %51 : vector<4x128xf32>
    %53 = vector.extract_strided_slice %9 {offsets = [0, 32], sizes = [4, 32], strides = [1, 1]} : vector<4x128xf32> to vector<4x32xf32>
    %54 = arith.truncf %53 : vector<4x32xf32> to vector<4x32xbf16>
    %55 = vector.extract_strided_slice %16 {offsets = [0, 32], sizes = [4, 32], strides = [1, 1]} : vector<4x128xf32> to vector<4x32xf32>
    %56 = arith.truncf %55 : vector<4x32xf32> to vector<4x32xbf16>
    %57 = vector.extract_strided_slice %17 {offsets = [0, 32], sizes = [4, 32], strides = [1, 1]} : vector<4x128xf32> to vector<4x32xf32>
    %58 = arith.truncf %57 : vector<4x32xf32> to vector<4x32xbf16>
    %cst_25 = arith.constant dense<0.000000e+00> : vector<4x4xf32>
    %59 = tpu.matmul %54, %56, %cst_25 {dimension_numbers = #tpu.dot_dimension_numbers<[1], [1], [0], [0], [0, 0, 1, 0], [], []>} : vector<4x32xbf16>, vector<4x32xbf16>, vector<4x4xf32> -> vector<4x4xf32>
    %cst_26 = arith.constant 0.176776692 : f32
    %60 = vector.broadcast %cst_26 : f32 to vector<4x4xf32>
    %61 = arith.mulf %59, %60 : vector<4x4xf32>
    %62 = arith.addf %61, %23 : vector<4x4xf32>
    %cst_27 = arith.constant dense<0xFF800000> : vector<4xf32>
    %63 = vector.multi_reduction <maximumf>, %62, %cst_27 [1] : vector<4x4xf32> to vector<4xf32>
    %64 = vector.shape_cast %63 : vector<4xf32> to vector<4x1xf32>
    %65 = vector.broadcast %64 : vector<4x1xf32> to vector<4x4xf32>
    %66 = arith.subf %62, %65 : vector<4x4xf32>
    %67 = math.exp %66 : vector<4x4xf32>
    %cst_28 = arith.constant dense<0.000000e+00> : vector<4xf32>
    %68 = vector.multi_reduction <add>, %67, %cst_28 [1] : vector<4x4xf32> to vector<4xf32>
    %69 = vector.shape_cast %68 : vector<4xf32> to vector<4x1xf32>
    %70 = tpu.reciprocal %69 {approx = true} : vector<4x1xf32> -> vector<4x1xf32>
    %71 = vector.broadcast %70 : vector<4x1xf32> to vector<4x4xf32>
    %72 = arith.mulf %67, %71 : vector<4x4xf32>
    %73 = arith.truncf %72 : vector<4x4xf32> to vector<4x4xbf16>
    %cst_29 = arith.constant dense<0.000000e+00> : vector<4x32xf32>
    %74 = tpu.matmul %73, %58, %cst_29 {dimension_numbers = #tpu.dot_dimension_numbers<[1], [0], [0], [1], [0, 0, 1, 1], [], []>} : vector<4x4xbf16>, vector<4x32xbf16>, vector<4x32xf32> -> vector<4x32xf32>
    %75 = arith.truncf %74 : vector<4x32xf32> to vector<4x32xbf16>
    %76 = vector.extract_strided_slice %24 {offsets = [32, 0], sizes = [32, 128], strides = [1, 1]} : vector<128x128xf32> to vector<32x128xf32>
    %77 = arith.truncf %76 : vector<32x128xf32> to vector<32x128xbf16>
    %cst_30 = arith.constant dense<0.000000e+00> : vector<4x128xf32>
    %78 = tpu.matmul %75, %77, %cst_30 {dimension_numbers = #tpu.dot_dimension_numbers<[1], [0], [0], [1], [0, 0, 1, 1], [], []>} : vector<4x32xbf16>, vector<32x128xbf16>, vector<4x128xf32> -> vector<4x128xf32>
    %79 = arith.addf %52, %78 : vector<4x128xf32>
    %80 = vector.extract_strided_slice %9 {offsets = [0, 64], sizes = [4, 32], strides = [1, 1]} : vector<4x128xf32> to vector<4x32xf32>
    %81 = arith.truncf %80 : vector<4x32xf32> to vector<4x32xbf16>
    %82 = vector.extract_strided_slice %16 {offsets = [0, 64], sizes = [4, 32], strides = [1, 1]} : vector<4x128xf32> to vector<4x32xf32>
    %83 = arith.truncf %82 : vector<4x32xf32> to vector<4x32xbf16>
    %84 = vector.extract_strided_slice %17 {offsets = [0, 64], sizes = [4, 32], strides = [1, 1]} : vector<4x128xf32> to vector<4x32xf32>
    %85 = arith.truncf %84 : vector<4x32xf32> to vector<4x32xbf16>
    %cst_31 = arith.constant dense<0.000000e+00> : vector<4x4xf32>
    %86 = tpu.matmul %81, %83, %cst_31 {dimension_numbers = #tpu.dot_dimension_numbers<[1], [1], [0], [0], [0, 0, 1, 0], [], []>} : vector<4x32xbf16>, vector<4x32xbf16>, vector<4x4xf32> -> vector<4x4xf32>
    %cst_32 = arith.constant 0.176776692 : f32
    %87 = vector.broadcast %cst_32 : f32 to vector<4x4xf32>
    %88 = arith.mulf %86, %87 : vector<4x4xf32>
    %89 = arith.addf %88, %23 : vector<4x4xf32>
    %cst_33 = arith.constant dense<0xFF800000> : vector<4xf32>
    %90 = vector.multi_reduction <maximumf>, %89, %cst_33 [1] : vector<4x4xf32> to vector<4xf32>
    %91 = vector.shape_cast %90 : vector<4xf32> to vector<4x1xf32>
    %92 = vector.broadcast %91 : vector<4x1xf32> to vector<4x4xf32>
    %93 = arith.subf %89, %92 : vector<4x4xf32>
    %94 = math.exp %93 : vector<4x4xf32>
    %cst_34 = arith.constant dense<0.000000e+00> : vector<4xf32>
    %95 = vector.multi_reduction <add>, %94, %cst_34 [1] : vector<4x4xf32> to vector<4xf32>
    %96 = vector.shape_cast %95 : vector<4xf32> to vector<4x1xf32>
    %97 = tpu.reciprocal %96 {approx = true} : vector<4x1xf32> -> vector<4x1xf32>
    %98 = vector.broadcast %97 : vector<4x1xf32> to vector<4x4xf32>
    %99 = arith.mulf %94, %98 : vector<4x4xf32>
    %100 = arith.truncf %99 : vector<4x4xf32> to vector<4x4xbf16>
    %cst_35 = arith.constant dense<0.000000e+00> : vector<4x32xf32>
    %101 = tpu.matmul %100, %85, %cst_35 {dimension_numbers = #tpu.dot_dimension_numbers<[1], [0], [0], [1], [0, 0, 1, 1], [], []>} : vector<4x4xbf16>, vector<4x32xbf16>, vector<4x32xf32> -> vector<4x32xf32>
    %102 = arith.truncf %101 : vector<4x32xf32> to vector<4x32xbf16>
    %103 = vector.extract_strided_slice %24 {offsets = [64, 0], sizes = [32, 128], strides = [1, 1]} : vector<128x128xf32> to vector<32x128xf32>
    %104 = arith.truncf %103 : vector<32x128xf32> to vector<32x128xbf16>
    %cst_36 = arith.constant dense<0.000000e+00> : vector<4x128xf32>
    %105 = tpu.matmul %102, %104, %cst_36 {dimension_numbers = #tpu.dot_dimension_numbers<[1], [0], [0], [1], [0, 0, 1, 1], [], []>} : vector<4x32xbf16>, vector<32x128xbf16>, vector<4x128xf32> -> vector<4x128xf32>
    %106 = arith.addf %79, %105 : vector<4x128xf32>
    %107 = vector.extract_strided_slice %9 {offsets = [0, 96], sizes = [4, 32], strides = [1, 1]} : vector<4x128xf32> to vector<4x32xf32>
    %108 = arith.truncf %107 : vector<4x32xf32> to vector<4x32xbf16>
    %109 = vector.extract_strided_slice %16 {offsets = [0, 96], sizes = [4, 32], strides = [1, 1]} : vector<4x128xf32> to vector<4x32xf32>
    %110 = arith.truncf %109 : vector<4x32xf32> to vector<4x32xbf16>
    %111 = vector.extract_strided_slice %17 {offsets = [0, 96], sizes = [4, 32], strides = [1, 1]} : vector<4x128xf32> to vector<4x32xf32>
    %112 = arith.truncf %111 : vector<4x32xf32> to vector<4x32xbf16>
    %cst_37 = arith.constant dense<0.000000e+00> : vector<4x4xf32>
    %113 = tpu.matmul %108, %110, %cst_37 {dimension_numbers = #tpu.dot_dimension_numbers<[1], [1], [0], [0], [0, 0, 1, 0], [], []>} : vector<4x32xbf16>, vector<4x32xbf16>, vector<4x4xf32> -> vector<4x4xf32>
    %cst_38 = arith.constant 0.176776692 : f32
    %114 = vector.broadcast %cst_38 : f32 to vector<4x4xf32>
    %115 = arith.mulf %113, %114 : vector<4x4xf32>
    %116 = arith.addf %115, %23 : vector<4x4xf32>
    %cst_39 = arith.constant dense<0xFF800000> : vector<4xf32>
    %117 = vector.multi_reduction <maximumf>, %116, %cst_39 [1] : vector<4x4xf32> to vector<4xf32>
    %118 = vector.shape_cast %117 : vector<4xf32> to vector<4x1xf32>
    %119 = vector.broadcast %118 : vector<4x1xf32> to vector<4x4xf32>
    %120 = arith.subf %116, %119 : vector<4x4xf32>
    %121 = math.exp %120 : vector<4x4xf32>
    %cst_40 = arith.constant dense<0.000000e+00> : vector<4xf32>
    %122 = vector.multi_reduction <add>, %121, %cst_40 [1] : vector<4x4xf32> to vector<4xf32>
    %123 = vector.shape_cast %122 : vector<4xf32> to vector<4x1xf32>
    %124 = tpu.reciprocal %123 {approx = true} : vector<4x1xf32> -> vector<4x1xf32>
    %125 = vector.broadcast %124 : vector<4x1xf32> to vector<4x4xf32>
    %126 = arith.mulf %121, %125 : vector<4x4xf32>
    %127 = arith.truncf %126 : vector<4x4xf32> to vector<4x4xbf16>
    %cst_41 = arith.constant dense<0.000000e+00> : vector<4x32xf32>
    %128 = tpu.matmul %127, %112, %cst_41 {dimension_numbers = #tpu.dot_dimension_numbers<[1], [0], [0], [1], [0, 0, 1, 1], [], []>} : vector<4x4xbf16>, vector<4x32xbf16>, vector<4x32xf32> -> vector<4x32xf32>
    %129 = arith.truncf %128 : vector<4x32xf32> to vector<4x32xbf16>
    %130 = vector.extract_strided_slice %24 {offsets = [96, 0], sizes = [32, 128], strides = [1, 1]} : vector<128x128xf32> to vector<32x128xf32>
    %131 = arith.truncf %130 : vector<32x128xf32> to vector<32x128xbf16>
    %cst_42 = arith.constant dense<0.000000e+00> : vector<4x128xf32>
    %132 = tpu.matmul %129, %131, %cst_42 {dimension_numbers = #tpu.dot_dimension_numbers<[1], [0], [0], [1], [0, 0, 1, 1], [], []>} : vector<4x32xbf16>, vector<32x128xbf16>, vector<4x128xf32> -> vector<4x128xf32>
    %133 = arith.addf %106, %132 : vector<4x128xf32>
    %134 = arith.addf %1, %133 : vector<4x128xf32>
    %c0_43 = arith.constant 0 : index
    %c0_44 = arith.constant 0 : index
    %135 = vector.load %arg10[%c0_43, %c0_44] : memref<1x128xf32, #tpu.memory_space<vmem>>, vector<1x128xf32>
    %136 = vector.broadcast %135 : vector<1x128xf32> to vector<4x128xf32>
    %137 = arith.addf %134, %136 : vector<4x128xf32>
    %c0_45 = arith.constant 0 : index
    %c0_46 = arith.constant 0 : index
    %c0_47 = arith.constant 0 : index
    %138 = vector.load %arg11[%c0_45, %c0_46, %c0_47] : memref<1x4x128xf32, #tpu.memory_space<vmem>>, vector<1x4x128xf32>
    %139 = vector.shape_cast %138 : vector<1x4x128xf32> to vector<4x128xf32>
    %140 = vector.shape_cast %137 : vector<4x128xf32> to vector<1x4x128xf32>
    tpu.vector_store %arg11[%c0_45, %c0_46, %c0_47], %140 {strides = array<i32>} : memref<1x4x128xf32, #tpu.memory_space<vmem>>, vector<1x4x128xf32>,
    return
  }
  func.func @transform_0(%arg0: i32) -> (i32, i32, i32) {
    %c0_i32 = arith.constant 0 : i32
    %c0_i32_0 = arith.constant 0 : i32
    %c0_i32_1 = arith.constant 0 : i32
    return %arg0, %c0_i32, %c0_i32_0 : i32, i32, i32
  }
  func.func @transform_1(%arg0: i32) -> (i32, i32, i32) {
    %c0_i32 = arith.constant 0 : i32
    %c0_i32_0 = arith.constant 0 : i32
    %c0_i32_1 = arith.constant 0 : i32
    return %arg0, %c0_i32, %c0_i32_0 : i32, i32, i32
  }
  func.func @transform_2(%arg0: i32) -> (i32, i32) {
    %c0_i32 = arith.constant 0 : i32
    %c0_i32_0 = arith.constant 0 : i32
    %c0_i32_1 = arith.constant 0 : i32
    return %c0_i32, %c0_i32_0 : i32, i32
  }
  func.func @transform_3(%arg0: i32) -> (i32, i32) {
    %c0_i32 = arith.constant 0 : i32
    %c0_i32_0 = arith.constant 0 : i32
    %c0_i32_1 = arith.constant 0 : i32
    return %c0_i32, %c0_i32_0 : i32, i32
  }
  func.func @transform_4(%arg0: i32) -> (i32, i32) {
    %c0_i32 = arith.constant 0 : i32
    %c0_i32_0 = arith.constant 0 : i32
    %c0_i32_1 = arith.constant 0 : i32
    return %c0_i32, %c0_i32_0 : i32, i32
  }
  func.func @transform_5(%arg0: i32) -> (i32, i32) {
    %c0_i32 = arith.constant 0 : i32
    %c0_i32_0 = arith.constant 0 : i32
    %c0_i32_1 = arith.constant 0 : i32
    return %c0_i32, %c0_i32_0 : i32, i32
  }
  func.func @transform_6(%arg0: i32) -> (i32, i32) {
    %c0_i32 = arith.constant 0 : i32
    %c0_i32_0 = arith.constant 0 : i32
    %c0_i32_1 = arith.constant 0 : i32
    return %c0_i32, %c0_i32_0 : i32, i32
  }
  func.func @transform_7(%arg0: i32) -> (i32, i32) {
    %c0_i32 = arith.constant 0 : i32
    %c0_i32_0 = arith.constant 0 : i32
    %c0_i32_1 = arith.constant 0 : i32
    return %c0_i32, %c0_i32_0 : i32, i32
  }
  func.func @transform_8(%arg0: i32) -> (i32, i32) {
    %c0_i32 = arith.constant 0 : i32
    %c0_i32_0 = arith.constant 0 : i32
    %c0_i32_1 = arith.constant 0 : i32
    return %c0_i32, %c0_i32_0 : i32, i32
  }
  func.func @transform_9(%arg0: i32) -> (i32, i32) {
    %c0_i32 = arith.constant 0 : i32
    %c0_i32_0 = arith.constant 0 : i32
    %c0_i32_1 = arith.constant 0 : i32
    return %c0_i32, %c0_i32_0 : i32, i32
  }
  func.func @transform_10(%arg0: i32) -> (i32, i32, i32) {
    %c0_i32 = arith.constant 0 : i32
    %c0_i32_0 = arith.constant 0 : i32
    %c0_i32_1 = arith.constant 0 : i32
    return %arg0, %c0_i32, %c0_i32_0 : i32, i32, i32
  }
}

module attributes {stable_mosaic.version = 11 : i64} {
  func.func @_ffn_block_kernel(%arg0: i32, %arg1: memref<8x128xf32, #tpu.memory_space<vmem>>, %arg2: memref<1x128xf32, #tpu.memory_space<vmem>>, %arg3: memref<1x128xf32, #tpu.memory_space<vmem>>, %arg4: memref<128x256xbf16, #tpu.memory_space<vmem>>, %arg5: memref<1x256xf32, #tpu.memory_space<vmem>>, %arg6: memref<256x128xbf16, #tpu.memory_space<vmem>>, %arg7: memref<1x128xf32, #tpu.memory_space<vmem>>, %arg8: memref<1x128xf32, #tpu.memory_space<vmem>>, %arg9: memref<1x128xf32, #tpu.memory_space<vmem>>, %arg10: memref<1x128xf32, #tpu.memory_space<vmem>>, %arg11: memref<1x128xf32, #tpu.memory_space<vmem>>, %arg12: memref<8x128xf32, #tpu.memory_space<vmem>>) attributes {dimension_semantics = [#tpu.dimension_semantics<parallel>], iteration_bounds = array<i64: 1>, scalar_prefetch = 0 : i64, scratch_operands = 0 : i64, tpu.core_type = #tpu.core_type<tc>, window_params = [{transform_indices = @transform_0, window_bounds = array<i64: 8, 128>}, {pipeline_mode = #tpu.pipeline_mode<synchronous>, transform_indices = @transform_1, window_bounds = array<i64: 1, 128>}, {pipeline_mode = #tpu.pipeline_mode<synchronous>, transform_indices = @transform_2, window_bounds = array<i64: 1, 128>}, {pipeline_mode = #tpu.pipeline_mode<synchronous>, transform_indices = @transform_3, window_bounds = array<i64: 128, 256>}, {pipeline_mode = #tpu.pipeline_mode<synchronous>, transform_indices = @transform_4, window_bounds = array<i64: 1, 256>}, {pipeline_mode = #tpu.pipeline_mode<synchronous>, transform_indices = @transform_5, window_bounds = array<i64: 256, 128>}, {pipeline_mode = #tpu.pipeline_mode<synchronous>, transform_indices = @transform_6, window_bounds = array<i64: 1, 128>}, {pipeline_mode = #tpu.pipeline_mode<synchronous>, transform_indices = @transform_7, window_bounds = array<i64: 1, 128>}, {pipeline_mode = #tpu.pipeline_mode<synchronous>, transform_indices = @transform_8, window_bounds = array<i64: 1, 128>}, {pipeline_mode = #tpu.pipeline_mode<synchronous>, transform_indices = @transform_9, window_bounds = array<i64: 1, 128>}, {pipeline_mode = #tpu.pipeline_mode<synchronous>, transform_indices = @transform_10, window_bounds = array<i64: 1, 128>}, {transform_indices = @transform_11, window_bounds = array<i64: 8, 128>}]} {
    %c0 = arith.constant 0 : index
    %c0_0 = arith.constant 0 : index
    %0 = vector.load %arg1[%c0, %c0_0] : memref<8x128xf32, #tpu.memory_space<vmem>>, vector<8x128xf32>
    %c0_1 = arith.constant 0 : index
    %c0_2 = arith.constant 0 : index
    %1 = vector.load %arg2[%c0_1, %c0_2] : memref<1x128xf32, #tpu.memory_space<vmem>>, vector<1x128xf32>
    %c0_3 = arith.constant 0 : index
    %c0_4 = arith.constant 0 : index
    %2 = vector.load %arg3[%c0_3, %c0_4] : memref<1x128xf32, #tpu.memory_space<vmem>>, vector<1x128xf32>
    %cst = arith.constant dense<0.000000e+00> : vector<8xf32>
    %3 = vector.multi_reduction <add>, %0, %cst [1] : vector<8x128xf32> to vector<8xf32>
    %4 = vector.shape_cast %3 : vector<8xf32> to vector<8x1xf32>
    %cst_5 = arith.constant 1.280000e+02 : f32
    %5 = vector.broadcast %cst_5 : f32 to vector<8x1xf32>
    %6 = arith.divf %4, %5 : vector<8x1xf32>
    %7 = vector.broadcast %6 : vector<8x1xf32> to vector<8x128xf32>
    %8 = arith.subf %0, %7 : vector<8x128xf32>
    %9 = arith.mulf %8, %8 : vector<8x128xf32>
    %cst_6 = arith.constant dense<0.000000e+00> : vector<8xf32>
    %10 = vector.multi_reduction <add>, %9, %cst_6 [1] : vector<8x128xf32> to vector<8xf32>
    %11 = vector.shape_cast %10 : vector<8xf32> to vector<8x1xf32>
    %cst_7 = arith.constant 1.280000e+02 : f32
    %12 = vector.broadcast %cst_7 : f32 to vector<8x1xf32>
    %13 = arith.divf %11, %12 : vector<8x1xf32>
    %cst_8 = arith.constant 9.99999974E-6 : f32
    %14 = vector.broadcast %cst_8 : f32 to vector<8x1xf32>
    %15 = arith.addf %13, %14 : vector<8x1xf32>
    %16 = math.rsqrt %15 : vector<8x1xf32>
    %17 = vector.broadcast %16 : vector<8x1xf32> to vector<8x128xf32>
    %18 = arith.mulf %8, %17 : vector<8x128xf32>
    %19 = vector.broadcast %1 : vector<1x128xf32> to vector<8x128xf32>
    %20 = arith.mulf %18, %19 : vector<8x128xf32>
    %21 = vector.broadcast %2 : vector<1x128xf32> to vector<8x128xf32>
    %22 = arith.addf %20, %21 : vector<8x128xf32>
    %23 = arith.truncf %22 : vector<8x128xf32> to vector<8x128xbf16>
    %c0_9 = arith.constant 0 : index
    %c0_10 = arith.constant 0 : index
    %24 = vector.load %arg4[%c0_9, %c0_10] : memref<128x256xbf16, #tpu.memory_space<vmem>>, vector<128x256xbf16>
    %cst_11 = arith.constant dense<0.000000e+00> : vector<8x256xf32>
    %25 = tpu.matmul %23, %24, %cst_11 {dimension_numbers = #tpu.dot_dimension_numbers<[1], [0], [0], [1], [0, 0, 1, 1], [], []>} : vector<8x128xbf16>, vector<128x256xbf16>, vector<8x256xf32> -> vector<8x256xf32>
    %c0_12 = arith.constant 0 : index
    %c0_13 = arith.constant 0 : index
    %26 = vector.load %arg5[%c0_12, %c0_13] : memref<1x256xf32, #tpu.memory_space<vmem>>, vector<1x256xf32>
    %27 = vector.broadcast %26 : vector<1x256xf32> to vector<8x256xf32>
    %28 = arith.addf %25, %27 : vector<8x256xf32>
    %29 = arith.mulf %28, %28 : vector<8x256xf32>
    %30 = arith.mulf %28, %29 : vector<8x256xf32>
    %cst_14 = arith.constant 4.471500e-02 : f32
    %31 = vector.broadcast %cst_14 : f32 to vector<8x256xf32>
    %32 = arith.mulf %31, %30 : vector<8x256xf32>
    %33 = arith.addf %28, %32 : vector<8x256xf32>
    %cst_15 = arith.constant 0.797884583 : f32
    %34 = vector.broadcast %cst_15 : f32 to vector<8x256xf32>
    %35 = arith.mulf %34, %33 : vector<8x256xf32>
    %36 = math.tanh %35 : vector<8x256xf32>
    %cst_16 = arith.constant 1.000000e+00 : f32
    %37 = vector.broadcast %cst_16 : f32 to vector<8x256xf32>
    %38 = arith.addf %37, %36 : vector<8x256xf32>
    %cst_17 = arith.constant 5.000000e-01 : f32
    %39 = vector.broadcast %cst_17 : f32 to vector<8x256xf32>
    %40 = arith.mulf %39, %38 : vector<8x256xf32>
    %41 = arith.mulf %28, %40 : vector<8x256xf32>
    %42 = arith.truncf %41 : vector<8x256xf32> to vector<8x256xbf16>
    %c0_18 = arith.constant 0 : index
    %c0_19 = arith.constant 0 : index
    %43 = vector.load %arg6[%c0_18, %c0_19] : memref<256x128xbf16, #tpu.memory_space<vmem>>, vector<256x128xbf16>
    %cst_20 = arith.constant dense<0.000000e+00> : vector<8x128xf32>
    %44 = tpu.matmul %42, %43, %cst_20 {dimension_numbers = #tpu.dot_dimension_numbers<[1], [0], [0], [1], [0, 0, 1, 1], [], []>} : vector<8x256xbf16>, vector<256x128xbf16>, vector<8x128xf32> -> vector<8x128xf32>
    %c0_21 = arith.constant 0 : index
    %c0_22 = arith.constant 0 : index
    %45 = vector.load %arg7[%c0_21, %c0_22] : memref<1x128xf32, #tpu.memory_space<vmem>>, vector<1x128xf32>
    %46 = vector.broadcast %45 : vector<1x128xf32> to vector<8x128xf32>
    %47 = arith.addf %44, %46 : vector<8x128xf32>
    %48 = arith.addf %22, %47 : vector<8x128xf32>
    %c0_23 = arith.constant 0 : index
    %c0_24 = arith.constant 0 : index
    %49 = vector.load %arg8[%c0_23, %c0_24] : memref<1x128xf32, #tpu.memory_space<vmem>>, vector<1x128xf32>
    %c0_25 = arith.constant 0 : index
    %c0_26 = arith.constant 0 : index
    %50 = vector.load %arg9[%c0_25, %c0_26] : memref<1x128xf32, #tpu.memory_space<vmem>>, vector<1x128xf32>
    %cst_27 = arith.constant dense<0.000000e+00> : vector<8xf32>
    %51 = vector.multi_reduction <add>, %48, %cst_27 [1] : vector<8x128xf32> to vector<8xf32>
    %52 = vector.shape_cast %51 : vector<8xf32> to vector<8x1xf32>
    %cst_28 = arith.constant 1.280000e+02 : f32
    %53 = vector.broadcast %cst_28 : f32 to vector<8x1xf32>
    %54 = arith.divf %52, %53 : vector<8x1xf32>
    %55 = vector.broadcast %54 : vector<8x1xf32> to vector<8x128xf32>
    %56 = arith.subf %48, %55 : vector<8x128xf32>
    %57 = arith.mulf %56, %56 : vector<8x128xf32>
    %cst_29 = arith.constant dense<0.000000e+00> : vector<8xf32>
    %58 = vector.multi_reduction <add>, %57, %cst_29 [1] : vector<8x128xf32> to vector<8xf32>
    %59 = vector.shape_cast %58 : vector<8xf32> to vector<8x1xf32>
    %cst_30 = arith.constant 1.280000e+02 : f32
    %60 = vector.broadcast %cst_30 : f32 to vector<8x1xf32>
    %61 = arith.divf %59, %60 : vector<8x1xf32>
    %cst_31 = arith.constant 9.99999974E-6 : f32
    %62 = vector.broadcast %cst_31 : f32 to vector<8x1xf32>
    %63 = arith.addf %61, %62 : vector<8x1xf32>
    %64 = math.rsqrt %63 : vector<8x1xf32>
    %65 = vector.broadcast %64 : vector<8x1xf32> to vector<8x128xf32>
    %66 = arith.mulf %56, %65 : vector<8x128xf32>
    %67 = vector.broadcast %49 : vector<1x128xf32> to vector<8x128xf32>
    %68 = arith.mulf %66, %67 : vector<8x128xf32>
    %69 = vector.broadcast %50 : vector<1x128xf32> to vector<8x128xf32>
    %70 = arith.addf %68, %69 : vector<8x128xf32>
    %c0_32 = arith.constant 0 : index
    %c0_33 = arith.constant 0 : index
    %71 = vector.load %arg12[%c0_32, %c0_33] : memref<8x128xf32, #tpu.memory_space<vmem>>, vector<8x128xf32>
    tpu.vector_store %arg12[%c0_32, %c0_33], %70 {strides = array<i32>} : memref<8x128xf32, #tpu.memory_space<vmem>>, vector<8x128xf32>,
    return
  }
  func.func @transform_0(%arg0: i32) -> (i32, i32) {
    %c0_i32 = arith.constant 0 : i32
    %c0_i32_0 = arith.constant 0 : i32
    return %arg0, %c0_i32 : i32, i32
  }
  func.func @transform_1(%arg0: i32) -> (i32, i32) {
    %c0_i32 = arith.constant 0 : i32
    %c0_i32_0 = arith.constant 0 : i32
    %c0_i32_1 = arith.constant 0 : i32
    return %c0_i32, %c0_i32_0 : i32, i32
  }
  func.func @transform_2(%arg0: i32) -> (i32, i32) {
    %c0_i32 = arith.constant 0 : i32
    %c0_i32_0 = arith.constant 0 : i32
    %c0_i32_1 = arith.constant 0 : i32
    return %c0_i32, %c0_i32_0 : i32, i32
  }
  func.func @transform_3(%arg0: i32) -> (i32, i32) {
    %c0_i32 = arith.constant 0 : i32
    %c0_i32_0 = arith.constant 0 : i32
    %c0_i32_1 = arith.constant 0 : i32
    return %c0_i32, %c0_i32_0 : i32, i32
  }
  func.func @transform_4(%arg0: i32) -> (i32, i32) {
    %c0_i32 = arith.constant 0 : i32
    %c0_i32_0 = arith.constant 0 : i32
    %c0_i32_1 = arith.constant 0 : i32
    return %c0_i32, %c0_i32_0 : i32, i32
  }
  func.func @transform_5(%arg0: i32) -> (i32, i32) {
    %c0_i32 = arith.constant 0 : i32
    %c0_i32_0 = arith.constant 0 : i32
    %c0_i32_1 = arith.constant 0 : i32
    return %c0_i32, %c0_i32_0 : i32, i32
  }
  func.func @transform_6(%arg0: i32) -> (i32, i32) {
    %c0_i32 = arith.constant 0 : i32
    %c0_i32_0 = arith.constant 0 : i32
    %c0_i32_1 = arith.constant 0 : i32
    return %c0_i32, %c0_i32_0 : i32, i32
  }
  func.func @transform_7(%arg0: i32) -> (i32, i32) {
    %c0_i32 = arith.constant 0 : i32
    %c0_i32_0 = arith.constant 0 : i32
    %c0_i32_1 = arith.constant 0 : i32
    return %c0_i32, %c0_i32_0 : i32, i32
  }
  func.func @transform_8(%arg0: i32) -> (i32, i32) {
    %c0_i32 = arith.constant 0 : i32
    %c0_i32_0 = arith.constant 0 : i32
    %c0_i32_1 = arith.constant 0 : i32
    return %c0_i32, %c0_i32_0 : i32, i32
  }
  func.func @transform_9(%arg0: i32) -> (i32, i32) {
    %c0_i32 = arith.constant 0 : i32
    %c0_i32_0 = arith.constant 0 : i32
    %c0_i32_1 = arith.constant 0 : i32
    return %c0_i32, %c0_i32_0 : i32, i32
  }
  func.func @transform_10(%arg0: i32) -> (i32, i32) {
    %c0_i32 = arith.constant 0 : i32
    %c0_i32_0 = arith.constant 0 : i32
    %c0_i32_1 = arith.constant 0 : i32
    return %c0_i32, %c0_i32_0 : i32, i32
  }
  func.func @transform_11(%arg0: i32) -> (i32, i32) {
    %c0_i32 = arith.constant 0 : i32
    %c0_i32_0 = arith.constant 0 : i32
    return %arg0, %c0_i32 : i32, i32
  }
}

module attributes {stable_mosaic.version = 11 : i64} {
  func.func @_attn_block_kernel(%arg0: i32, %arg1: memref<1x4x128xf32, #tpu.memory_space<vmem>>, %arg2: memref<1x4x128xf32, #tpu.memory_space<vmem>>, %arg3: memref<1x128xf32, #tpu.memory_space<vmem>>, %arg4: memref<1x128xf32, #tpu.memory_space<vmem>>, %arg5: memref<128x128xbf16, #tpu.memory_space<vmem>>, %arg6: memref<1x128xf32, #tpu.memory_space<vmem>>, %arg7: memref<128x256xbf16, #tpu.memory_space<vmem>>, %arg8: memref<1x256xf32, #tpu.memory_space<vmem>>, %arg9: memref<128x128xf32, #tpu.memory_space<vmem>>, %arg10: memref<1x128xf32, #tpu.memory_space<vmem>>, %arg11: memref<1x4x128xf32, #tpu.memory_space<vmem>>) attributes {dimension_semantics = [#tpu.dimension_semantics<parallel>], iteration_bounds = array<i64: 2>, scalar_prefetch = 0 : i64, scratch_operands = 0 : i64, tpu.core_type = #tpu.core_type<tc>, window_params = [{transform_indices = @transform_0, window_bounds = array<i64: 1, 4, 128>}, {transform_indices = @transform_1, window_bounds = array<i64: 1, 4, 128>}, {pipeline_mode = #tpu.pipeline_mode<synchronous>, transform_indices = @transform_2, window_bounds = array<i64: 1, 128>}, {pipeline_mode = #tpu.pipeline_mode<synchronous>, transform_indices = @transform_3, window_bounds = array<i64: 1, 128>}, {pipeline_mode = #tpu.pipeline_mode<synchronous>, transform_indices = @transform_4, window_bounds = array<i64: 128, 128>}, {pipeline_mode = #tpu.pipeline_mode<synchronous>, transform_indices = @transform_5, window_bounds = array<i64: 1, 128>}, {pipeline_mode = #tpu.pipeline_mode<synchronous>, transform_indices = @transform_6, window_bounds = array<i64: 128, 256>}, {pipeline_mode = #tpu.pipeline_mode<synchronous>, transform_indices = @transform_7, window_bounds = array<i64: 1, 256>}, {pipeline_mode = #tpu.pipeline_mode<synchronous>, transform_indices = @transform_8, window_bounds = array<i64: 128, 128>}, {pipeline_mode = #tpu.pipeline_mode<synchronous>, transform_indices = @transform_9, window_bounds = array<i64: 1, 128>}, {transform_indices = @transform_10, window_bounds = array<i64: 1, 4, 128>}]} {
    %c0 = arith.constant 0 : index
    %c0_0 = arith.constant 0 : index
    %c0_1 = arith.constant 0 : index
    %0 = vector.load %arg1[%c0, %c0_0, %c0_1] : memref<1x4x128xf32, #tpu.memory_space<vmem>>, vector<1x4x128xf32>
    %1 = vector.shape_cast %0 : vector<1x4x128xf32> to vector<4x128xf32>
    %c0_2 = arith.constant 0 : index
    %c0_3 = arith.constant 0 : index
    %2 = vector.load %arg3[%c0_2, %c0_3] : memref<1x128xf32, #tpu.memory_space<vmem>>, vector<1x128xf32>
    %c0_4 = arith.constant 0 : index
    %c0_5 = arith.constant 0 : index
    %3 = vector.load %arg4[%c0_4, %c0_5] : memref<1x128xf32, #tpu.memory_space<vmem>>, vector<1x128xf32>
    %cst = arith.constant dense<0.000000e+00> : vector<4xf32>
    %4 = vector.multi_reduction <add>, %1, %cst [1] : vector<4x128xf32> to vector<4xf32>
    %5 = vector.shape_cast %4 : vector<4xf32> to vector<4x1xf32>
    %cst_6 = arith.constant 1.280000e+02 : f32
    %6 = vector.broadcast %cst_6 : f32 to vector<4x1xf32>
    %7 = arith.divf %5, %6 : vector<4x1xf32>
    %8 = vector.broadcast %7 : vector<4x1xf32> to vector<4x128xf32>
    %9 = arith.subf %1, %8 : vector<4x128xf32>
    %10 = arith.mulf %9, %9 : vector<4x128xf32>
    %cst_7 = arith.constant dense<0.000000e+00> : vector<4xf32>
    %11 = vector.multi_reduction <add>, %10, %cst_7 [1] : vector<4x128xf32> to vector<4xf32>
    %12 = vector.shape_cast %11 : vector<4xf32> to vector<4x1xf32>
    %cst_8 = arith.constant 1.280000e+02 : f32
    %13 = vector.broadcast %cst_8 : f32 to vector<4x1xf32>
    %14 = arith.divf %12, %13 : vector<4x1xf32>
    %cst_9 = arith.constant 9.99999974E-6 : f32
    %15 = vector.broadcast %cst_9 : f32 to vector<4x1xf32>
    %16 = arith.addf %14, %15 : vector<4x1xf32>
    %17 = math.rsqrt %16 : vector<4x1xf32>
    %18 = vector.broadcast %17 : vector<4x1xf32> to vector<4x128xf32>
    %19 = arith.mulf %9, %18 : vector<4x128xf32>
    %20 = vector.broadcast %2 : vector<1x128xf32> to vector<4x128xf32>
    %21 = arith.mulf %19, %20 : vector<4x128xf32>
    %22 = vector.broadcast %3 : vector<1x128xf32> to vector<4x128xf32>
    %23 = arith.addf %21, %22 : vector<4x128xf32>
    %c0_10 = arith.constant 0 : index
    %c0_11 = arith.constant 0 : index
    %c0_12 = arith.constant 0 : index
    %24 = vector.load %arg2[%c0_10, %c0_11, %c0_12] : memref<1x4x128xf32, #tpu.memory_space<vmem>>, vector<1x4x128xf32>
    %25 = vector.shape_cast %24 : vector<1x4x128xf32> to vector<4x128xf32>
    %26 = arith.truncf %23 : vector<4x128xf32> to vector<4x128xbf16>
    %c0_13 = arith.constant 0 : index
    %c0_14 = arith.constant 0 : index
    %27 = vector.load %arg5[%c0_13, %c0_14] : memref<128x128xbf16, #tpu.memory_space<vmem>>, vector<128x128xbf16>
    %cst_15 = arith.constant dense<0.000000e+00> : vector<4x128xf32>
    %28 = tpu.matmul %26, %27, %cst_15 {dimension_numbers = #tpu.dot_dimension_numbers<[1], [0], [0], [1], [0, 0, 1, 1], [], []>} : vector<4x128xbf16>, vector<128x128xbf16>, vector<4x128xf32> -> vector<4x128xf32>
    %c0_16 = arith.constant 0 : index
    %c0_17 = arith.constant 0 : index
    %29 = vector.load %arg6[%c0_16, %c0_17] : memref<1x128xf32, #tpu.memory_space<vmem>>, vector<1x128xf32>
    %30 = vector.broadcast %29 : vector<1x128xf32> to vector<4x128xf32>
    %31 = arith.addf %28, %30 : vector<4x128xf32>
    %32 = arith.truncf %25 : vector<4x128xf32> to vector<4x128xbf16>
    %c0_18 = arith.constant 0 : index
    %c0_19 = arith.constant 0 : index
    %33 = vector.load %arg7[%c0_18, %c0_19] : memref<128x256xbf16, #tpu.memory_space<vmem>>, vector<128x256xbf16>
    %cst_20 = arith.constant dense<0.000000e+00> : vector<4x256xf32>
    %34 = tpu.matmul %32, %33, %cst_20 {dimension_numbers = #tpu.dot_dimension_numbers<[1], [0], [0], [1], [0, 0, 1, 1], [], []>} : vector<4x128xbf16>, vector<128x256xbf16>, vector<4x256xf32> -> vector<4x256xf32>
    %c0_21 = arith.constant 0 : index
    %c0_22 = arith.constant 0 : index
    %35 = vector.load %arg8[%c0_21, %c0_22] : memref<1x256xf32, #tpu.memory_space<vmem>>, vector<1x256xf32>
    %36 = vector.broadcast %35 : vector<1x256xf32> to vector<4x256xf32>
    %37 = arith.addf %34, %36 : vector<4x256xf32>
    %38 = vector.extract_strided_slice %37 {offsets = [0, 0], sizes = [4, 128], strides = [1, 1]} : vector<4x256xf32> to vector<4x128xf32>
    %39 = vector.extract_strided_slice %37 {offsets = [0, 128], sizes = [4, 128], strides = [1, 1]} : vector<4x256xf32> to vector<4x128xf32>
    %c0_23 = arith.constant 0 : index
    %c0_24 = arith.constant 0 : index
    %40 = vector.load %arg9[%c0_23, %c0_24] : memref<128x128xf32, #tpu.memory_space<vmem>>, vector<128x128xf32>
    %cst_25 = arith.constant 0.000000e+00 : f32
    %41 = vector.broadcast %cst_25 : f32 to vector<4x128xf32>
    %42 = vector.extract_strided_slice %31 {offsets = [0, 0], sizes = [4, 32], strides = [1, 1]} : vector<4x128xf32> to vector<4x32xf32>
    %43 = arith.truncf %42 : vector<4x32xf32> to vector<4x32xbf16>
    %44 = vector.extract_strided_slice %38 {offsets = [0, 0], sizes = [4, 32], strides = [1, 1]} : vector<4x128xf32> to vector<4x32xf32>
    %45 = arith.truncf %44 : vector<4x32xf32> to vector<4x32xbf16>
    %46 = vector.extract_strided_slice %39 {offsets = [0, 0], sizes = [4, 32], strides = [1, 1]} : vector<4x128xf32> to vector<4x32xf32>
    %47 = arith.truncf %46 : vector<4x32xf32> to vector<4x32xbf16>
    %cst_26 = arith.constant dense<0.000000e+00> : vector<4x4xf32>
    %48 = tpu.matmul %43, %45, %cst_26 {dimension_numbers = #tpu.dot_dimension_numbers<[1], [1], [0], [0], [0, 0, 1, 0], [], []>} : vector<4x32xbf16>, vector<4x32xbf16>, vector<4x4xf32> -> vector<4x4xf32>
    %cst_27 = arith.constant 0.176776692 : f32
    %49 = vector.broadcast %cst_27 : f32 to vector<4x4xf32>
    %50 = arith.mulf %48, %49 : vector<4x4xf32>
    %cst_28 = arith.constant dense<0xFF800000> : vector<4xf32>
    %51 = vector.multi_reduction <maximumf>, %50, %cst_28 [1] : vector<4x4xf32> to vector<4xf32>
    %52 = vector.shape_cast %51 : vector<4xf32> to vector<4x1xf32>
    %53 = vector.broadcast %52 : vector<4x1xf32> to vector<4x4xf32>
    %54 = arith.subf %50, %53 : vector<4x4xf32>
    %55 = math.exp %54 : vector<4x4xf32>
    %cst_29 = arith.constant dense<0.000000e+00> : vector<4xf32>
    %56 = vector.multi_reduction <add>, %55, %cst_29 [1] : vector<4x4xf32> to vector<4xf32>
    %57 = vector.shape_cast %56 : vector<4xf32> to vector<4x1xf32>
    %58 = tpu.reciprocal %57 {approx = true} : vector<4x1xf32> -> vector<4x1xf32>
    %59 = vector.broadcast %58 : vector<4x1xf32> to vector<4x4xf32>
    %60 = arith.mulf %55, %59 : vector<4x4xf32>
    %61 = arith.truncf %60 : vector<4x4xf32> to vector<4x4xbf16>
    %cst_30 = arith.constant dense<0.000000e+00> : vector<4x32xf32>
    %62 = tpu.matmul %61, %47, %cst_30 {dimension_numbers = #tpu.dot_dimension_numbers<[1], [0], [0], [1], [0, 0, 1, 1], [], []>} : vector<4x4xbf16>, vector<4x32xbf16>, vector<4x32xf32> -> vector<4x32xf32>
    %63 = arith.truncf %62 : vector<4x32xf32> to vector<4x32xbf16>
    %64 = vector.extract_strided_slice %40 {offsets = [0, 0], sizes = [32, 128], strides = [1, 1]} : vector<128x128xf32> to vector<32x128xf32>
    %65 = arith.truncf %64 : vector<32x128xf32> to vector<32x128xbf16>
    %cst_31 = arith.constant dense<0.000000e+00> : vector<4x128xf32>
    %66 = tpu.matmul %63, %65, %cst_31 {dimension_numbers = #tpu.dot_dimension_numbers<[1], [0], [0], [1], [0, 0, 1, 1], [], []>} : vector<4x32xbf16>, vector<32x128xbf16>, vector<4x128xf32> -> vector<4x128xf32>
    %67 = arith.addf %41, %66 : vector<4x128xf32>
    %68 = vector.extract_strided_slice %31 {offsets = [0, 32], sizes = [4, 32], strides = [1, 1]} : vector<4x128xf32> to vector<4x32xf32>
    %69 = arith.truncf %68 : vector<4x32xf32> to vector<4x32xbf16>
    %70 = vector.extract_strided_slice %38 {offsets = [0, 32], sizes = [4, 32], strides = [1, 1]} : vector<4x128xf32> to vector<4x32xf32>
    %71 = arith.truncf %70 : vector<4x32xf32> to vector<4x32xbf16>
    %72 = vector.extract_strided_slice %39 {offsets = [0, 32], sizes = [4, 32], strides = [1, 1]} : vector<4x128xf32> to vector<4x32xf32>
    %73 = arith.truncf %72 : vector<4x32xf32> to vector<4x32xbf16>
    %cst_32 = arith.constant dense<0.000000e+00> : vector<4x4xf32>
    %74 = tpu.matmul %69, %71, %cst_32 {dimension_numbers = #tpu.dot_dimension_numbers<[1], [1], [0], [0], [0, 0, 1, 0], [], []>} : vector<4x32xbf16>, vector<4x32xbf16>, vector<4x4xf32> -> vector<4x4xf32>
    %cst_33 = arith.constant 0.176776692 : f32
    %75 = vector.broadcast %cst_33 : f32 to vector<4x4xf32>
    %76 = arith.mulf %74, %75 : vector<4x4xf32>
    %cst_34 = arith.constant dense<0xFF800000> : vector<4xf32>
    %77 = vector.multi_reduction <maximumf>, %76, %cst_34 [1] : vector<4x4xf32> to vector<4xf32>
    %78 = vector.shape_cast %77 : vector<4xf32> to vector<4x1xf32>
    %79 = vector.broadcast %78 : vector<4x1xf32> to vector<4x4xf32>
    %80 = arith.subf %76, %79 : vector<4x4xf32>
    %81 = math.exp %80 : vector<4x4xf32>
    %cst_35 = arith.constant dense<0.000000e+00> : vector<4xf32>
    %82 = vector.multi_reduction <add>, %81, %cst_35 [1] : vector<4x4xf32> to vector<4xf32>
    %83 = vector.shape_cast %82 : vector<4xf32> to vector<4x1xf32>
    %84 = tpu.reciprocal %83 {approx = true} : vector<4x1xf32> -> vector<4x1xf32>
    %85 = vector.broadcast %84 : vector<4x1xf32> to vector<4x4xf32>
    %86 = arith.mulf %81, %85 : vector<4x4xf32>
    %87 = arith.truncf %86 : vector<4x4xf32> to vector<4x4xbf16>
    %cst_36 = arith.constant dense<0.000000e+00> : vector<4x32xf32>
    %88 = tpu.matmul %87, %73, %cst_36 {dimension_numbers = #tpu.dot_dimension_numbers<[1], [0], [0], [1], [0, 0, 1, 1], [], []>} : vector<4x4xbf16>, vector<4x32xbf16>, vector<4x32xf32> -> vector<4x32xf32>
    %89 = arith.truncf %88 : vector<4x32xf32> to vector<4x32xbf16>
    %90 = vector.extract_strided_slice %40 {offsets = [32, 0], sizes = [32, 128], strides = [1, 1]} : vector<128x128xf32> to vector<32x128xf32>
    %91 = arith.truncf %90 : vector<32x128xf32> to vector<32x128xbf16>
    %cst_37 = arith.constant dense<0.000000e+00> : vector<4x128xf32>
    %92 = tpu.matmul %89, %91, %cst_37 {dimension_numbers = #tpu.dot_dimension_numbers<[1], [0], [0], [1], [0, 0, 1, 1], [], []>} : vector<4x32xbf16>, vector<32x128xbf16>, vector<4x128xf32> -> vector<4x128xf32>
    %93 = arith.addf %67, %92 : vector<4x128xf32>
    %94 = vector.extract_strided_slice %31 {offsets = [0, 64], sizes = [4, 32], strides = [1, 1]} : vector<4x128xf32> to vector<4x32xf32>
    %95 = arith.truncf %94 : vector<4x32xf32> to vector<4x32xbf16>
    %96 = vector.extract_strided_slice %38 {offsets = [0, 64], sizes = [4, 32], strides = [1, 1]} : vector<4x128xf32> to vector<4x32xf32>
    %97 = arith.truncf %96 : vector<4x32xf32> to vector<4x32xbf16>
    %98 = vector.extract_strided_slice %39 {offsets = [0, 64], sizes = [4, 32], strides = [1, 1]} : vector<4x128xf32> to vector<4x32xf32>
    %99 = arith.truncf %98 : vector<4x32xf32> to vector<4x32xbf16>
    %cst_38 = arith.constant dense<0.000000e+00> : vector<4x4xf32>
    %100 = tpu.matmul %95, %97, %cst_38 {dimension_numbers = #tpu.dot_dimension_numbers<[1], [1], [0], [0], [0, 0, 1, 0], [], []>} : vector<4x32xbf16>, vector<4x32xbf16>, vector<4x4xf32> -> vector<4x4xf32>
    %cst_39 = arith.constant 0.176776692 : f32
    %101 = vector.broadcast %cst_39 : f32 to vector<4x4xf32>
    %102 = arith.mulf %100, %101 : vector<4x4xf32>
    %cst_40 = arith.constant dense<0xFF800000> : vector<4xf32>
    %103 = vector.multi_reduction <maximumf>, %102, %cst_40 [1] : vector<4x4xf32> to vector<4xf32>
    %104 = vector.shape_cast %103 : vector<4xf32> to vector<4x1xf32>
    %105 = vector.broadcast %104 : vector<4x1xf32> to vector<4x4xf32>
    %106 = arith.subf %102, %105 : vector<4x4xf32>
    %107 = math.exp %106 : vector<4x4xf32>
    %cst_41 = arith.constant dense<0.000000e+00> : vector<4xf32>
    %108 = vector.multi_reduction <add>, %107, %cst_41 [1] : vector<4x4xf32> to vector<4xf32>
    %109 = vector.shape_cast %108 : vector<4xf32> to vector<4x1xf32>
    %110 = tpu.reciprocal %109 {approx = true} : vector<4x1xf32> -> vector<4x1xf32>
    %111 = vector.broadcast %110 : vector<4x1xf32> to vector<4x4xf32>
    %112 = arith.mulf %107, %111 : vector<4x4xf32>
    %113 = arith.truncf %112 : vector<4x4xf32> to vector<4x4xbf16>
    %cst_42 = arith.constant dense<0.000000e+00> : vector<4x32xf32>
    %114 = tpu.matmul %113, %99, %cst_42 {dimension_numbers = #tpu.dot_dimension_numbers<[1], [0], [0], [1], [0, 0, 1, 1], [], []>} : vector<4x4xbf16>, vector<4x32xbf16>, vector<4x32xf32> -> vector<4x32xf32>
    %115 = arith.truncf %114 : vector<4x32xf32> to vector<4x32xbf16>
    %116 = vector.extract_strided_slice %40 {offsets = [64, 0], sizes = [32, 128], strides = [1, 1]} : vector<128x128xf32> to vector<32x128xf32>
    %117 = arith.truncf %116 : vector<32x128xf32> to vector<32x128xbf16>
    %cst_43 = arith.constant dense<0.000000e+00> : vector<4x128xf32>
    %118 = tpu.matmul %115, %117, %cst_43 {dimension_numbers = #tpu.dot_dimension_numbers<[1], [0], [0], [1], [0, 0, 1, 1], [], []>} : vector<4x32xbf16>, vector<32x128xbf16>, vector<4x128xf32> -> vector<4x128xf32>
    %119 = arith.addf %93, %118 : vector<4x128xf32>
    %120 = vector.extract_strided_slice %31 {offsets = [0, 96], sizes = [4, 32], strides = [1, 1]} : vector<4x128xf32> to vector<4x32xf32>
    %121 = arith.truncf %120 : vector<4x32xf32> to vector<4x32xbf16>
    %122 = vector.extract_strided_slice %38 {offsets = [0, 96], sizes = [4, 32], strides = [1, 1]} : vector<4x128xf32> to vector<4x32xf32>
    %123 = arith.truncf %122 : vector<4x32xf32> to vector<4x32xbf16>
    %124 = vector.extract_strided_slice %39 {offsets = [0, 96], sizes = [4, 32], strides = [1, 1]} : vector<4x128xf32> to vector<4x32xf32>
    %125 = arith.truncf %124 : vector<4x32xf32> to vector<4x32xbf16>
    %cst_44 = arith.constant dense<0.000000e+00> : vector<4x4xf32>
    %126 = tpu.matmul %121, %123, %cst_44 {dimension_numbers = #tpu.dot_dimension_numbers<[1], [1], [0], [0], [0, 0, 1, 0], [], []>} : vector<4x32xbf16>, vector<4x32xbf16>, vector<4x4xf32> -> vector<4x4xf32>
    %cst_45 = arith.constant 0.176776692 : f32
    %127 = vector.broadcast %cst_45 : f32 to vector<4x4xf32>
    %128 = arith.mulf %126, %127 : vector<4x4xf32>
    %cst_46 = arith.constant dense<0xFF800000> : vector<4xf32>
    %129 = vector.multi_reduction <maximumf>, %128, %cst_46 [1] : vector<4x4xf32> to vector<4xf32>
    %130 = vector.shape_cast %129 : vector<4xf32> to vector<4x1xf32>
    %131 = vector.broadcast %130 : vector<4x1xf32> to vector<4x4xf32>
    %132 = arith.subf %128, %131 : vector<4x4xf32>
    %133 = math.exp %132 : vector<4x4xf32>
    %cst_47 = arith.constant dense<0.000000e+00> : vector<4xf32>
    %134 = vector.multi_reduction <add>, %133, %cst_47 [1] : vector<4x4xf32> to vector<4xf32>
    %135 = vector.shape_cast %134 : vector<4xf32> to vector<4x1xf32>
    %136 = tpu.reciprocal %135 {approx = true} : vector<4x1xf32> -> vector<4x1xf32>
    %137 = vector.broadcast %136 : vector<4x1xf32> to vector<4x4xf32>
    %138 = arith.mulf %133, %137 : vector<4x4xf32>
    %139 = arith.truncf %138 : vector<4x4xf32> to vector<4x4xbf16>
    %cst_48 = arith.constant dense<0.000000e+00> : vector<4x32xf32>
    %140 = tpu.matmul %139, %125, %cst_48 {dimension_numbers = #tpu.dot_dimension_numbers<[1], [0], [0], [1], [0, 0, 1, 1], [], []>} : vector<4x4xbf16>, vector<4x32xbf16>, vector<4x32xf32> -> vector<4x32xf32>
    %141 = arith.truncf %140 : vector<4x32xf32> to vector<4x32xbf16>
    %142 = vector.extract_strided_slice %40 {offsets = [96, 0], sizes = [32, 128], strides = [1, 1]} : vector<128x128xf32> to vector<32x128xf32>
    %143 = arith.truncf %142 : vector<32x128xf32> to vector<32x128xbf16>
    %cst_49 = arith.constant dense<0.000000e+00> : vector<4x128xf32>
    %144 = tpu.matmul %141, %143, %cst_49 {dimension_numbers = #tpu.dot_dimension_numbers<[1], [0], [0], [1], [0, 0, 1, 1], [], []>} : vector<4x32xbf16>, vector<32x128xbf16>, vector<4x128xf32> -> vector<4x128xf32>
    %145 = arith.addf %119, %144 : vector<4x128xf32>
    %146 = arith.addf %23, %145 : vector<4x128xf32>
    %c0_50 = arith.constant 0 : index
    %c0_51 = arith.constant 0 : index
    %147 = vector.load %arg10[%c0_50, %c0_51] : memref<1x128xf32, #tpu.memory_space<vmem>>, vector<1x128xf32>
    %148 = vector.broadcast %147 : vector<1x128xf32> to vector<4x128xf32>
    %149 = arith.addf %146, %148 : vector<4x128xf32>
    %c0_52 = arith.constant 0 : index
    %c0_53 = arith.constant 0 : index
    %c0_54 = arith.constant 0 : index
    %150 = vector.load %arg11[%c0_52, %c0_53, %c0_54] : memref<1x4x128xf32, #tpu.memory_space<vmem>>, vector<1x4x128xf32>
    %151 = vector.shape_cast %150 : vector<1x4x128xf32> to vector<4x128xf32>
    %152 = vector.shape_cast %149 : vector<4x128xf32> to vector<1x4x128xf32>
    tpu.vector_store %arg11[%c0_52, %c0_53, %c0_54], %152 {strides = array<i32>} : memref<1x4x128xf32, #tpu.memory_space<vmem>>, vector<1x4x128xf32>,
    return
  }
  func.func @transform_0(%arg0: i32) -> (i32, i32, i32) {
    %c0_i32 = arith.constant 0 : i32
    %c0_i32_0 = arith.constant 0 : i32
    %c0_i32_1 = arith.constant 0 : i32
    return %arg0, %c0_i32, %c0_i32_0 : i32, i32, i32
  }
  func.func @transform_1(%arg0: i32) -> (i32, i32, i32) {
    %c0_i32 = arith.constant 0 : i32
    %c0_i32_0 = arith.constant 0 : i32
    %c0_i32_1 = arith.constant 0 : i32
    return %arg0, %c0_i32, %c0_i32_0 : i32, i32, i32
  }
  func.func @transform_2(%arg0: i32) -> (i32, i32) {
    %c0_i32 = arith.constant 0 : i32
    %c0_i32_0 = arith.constant 0 : i32
    %c0_i32_1 = arith.constant 0 : i32
    return %c0_i32, %c0_i32_0 : i32, i32
  }
  func.func @transform_3(%arg0: i32) -> (i32, i32) {
    %c0_i32 = arith.constant 0 : i32
    %c0_i32_0 = arith.constant 0 : i32
    %c0_i32_1 = arith.constant 0 : i32
    return %c0_i32, %c0_i32_0 : i32, i32
  }
  func.func @transform_4(%arg0: i32) -> (i32, i32) {
    %c0_i32 = arith.constant 0 : i32
    %c0_i32_0 = arith.constant 0 : i32
    %c0_i32_1 = arith.constant 0 : i32
    return %c0_i32, %c0_i32_0 : i32, i32
  }
  func.func @transform_5(%arg0: i32) -> (i32, i32) {
    %c0_i32 = arith.constant 0 : i32
    %c0_i32_0 = arith.constant 0 : i32
    %c0_i32_1 = arith.constant 0 : i32
    return %c0_i32, %c0_i32_0 : i32, i32
  }
  func.func @transform_6(%arg0: i32) -> (i32, i32) {
    %c0_i32 = arith.constant 0 : i32
    %c0_i32_0 = arith.constant 0 : i32
    %c0_i32_1 = arith.constant 0 : i32
    return %c0_i32, %c0_i32_0 : i32, i32
  }
  func.func @transform_7(%arg0: i32) -> (i32, i32) {
    %c0_i32 = arith.constant 0 : i32
    %c0_i32_0 = arith.constant 0 : i32
    %c0_i32_1 = arith.constant 0 : i32
    return %c0_i32, %c0_i32_0 : i32, i32
  }
  func.func @transform_8(%arg0: i32) -> (i32, i32) {
    %c0_i32 = arith.constant 0 : i32
    %c0_i32_0 = arith.constant 0 : i32
    %c0_i32_1 = arith.constant 0 : i32
    return %c0_i32, %c0_i32_0 : i32, i32
  }
  func.func @transform_9(%arg0: i32) -> (i32, i32) {
    %c0_i32 = arith.constant 0 : i32
    %c0_i32_0 = arith.constant 0 : i32
    %c0_i32_1 = arith.constant 0 : i32
    return %c0_i32, %c0_i32_0 : i32, i32
  }
  func.func @transform_10(%arg0: i32) -> (i32, i32, i32) {
    %c0_i32 = arith.constant 0 : i32
    %c0_i32_0 = arith.constant 0 : i32
    %c0_i32_1 = arith.constant 0 : i32
    return %arg0, %c0_i32, %c0_i32_0 : i32, i32, i32
  }
}

module attributes {stable_mosaic.version = 11 : i64} {
  func.func @_ln_linear_kernel(%arg0: i32, %arg1: memref<8x128xf32, #tpu.memory_space<vmem>>, %arg2: memref<1x128xf32, #tpu.memory_space<vmem>>, %arg3: memref<1x128xf32, #tpu.memory_space<vmem>>, %arg4: memref<128x128xbf16, #tpu.memory_space<vmem>>, %arg5: memref<1x128xf32, #tpu.memory_space<vmem>>, %arg6: memref<8x128xf32, #tpu.memory_space<vmem>>) attributes {dimension_semantics = [#tpu.dimension_semantics<parallel>], iteration_bounds = array<i64: 1>, scalar_prefetch = 0 : i64, scratch_operands = 0 : i64, tpu.core_type = #tpu.core_type<tc>, window_params = [{transform_indices = @transform_0, window_bounds = array<i64: 8, 128>}, {pipeline_mode = #tpu.pipeline_mode<synchronous>, transform_indices = @transform_1, window_bounds = array<i64: 1, 128>}, {pipeline_mode = #tpu.pipeline_mode<synchronous>, transform_indices = @transform_2, window_bounds = array<i64: 1, 128>}, {pipeline_mode = #tpu.pipeline_mode<synchronous>, transform_indices = @transform_3, window_bounds = array<i64: 128, 128>}, {pipeline_mode = #tpu.pipeline_mode<synchronous>, transform_indices = @transform_4, window_bounds = array<i64: 1, 128>}, {transform_indices = @transform_5, window_bounds = array<i64: 8, 128>}]} {
    %c0 = arith.constant 0 : index
    %c0_0 = arith.constant 0 : index
    %0 = vector.load %arg1[%c0, %c0_0] : memref<8x128xf32, #tpu.memory_space<vmem>>, vector<8x128xf32>
    %c0_1 = arith.constant 0 : index
    %c0_2 = arith.constant 0 : index
    %1 = vector.load %arg2[%c0_1, %c0_2] : memref<1x128xf32, #tpu.memory_space<vmem>>, vector<1x128xf32>
    %c0_3 = arith.constant 0 : index
    %c0_4 = arith.constant 0 : index
    %2 = vector.load %arg3[%c0_3, %c0_4] : memref<1x128xf32, #tpu.memory_space<vmem>>, vector<1x128xf32>
    %cst = arith.constant dense<0.000000e+00> : vector<8xf32>
    %3 = vector.multi_reduction <add>, %0, %cst [1] : vector<8x128xf32> to vector<8xf32>
    %4 = vector.shape_cast %3 : vector<8xf32> to vector<8x1xf32>
    %cst_5 = arith.constant 1.280000e+02 : f32
    %5 = vector.broadcast %cst_5 : f32 to vector<8x1xf32>
    %6 = arith.divf %4, %5 : vector<8x1xf32>
    %7 = vector.broadcast %6 : vector<8x1xf32> to vector<8x128xf32>
    %8 = arith.subf %0, %7 : vector<8x128xf32>
    %9 = arith.mulf %8, %8 : vector<8x128xf32>
    %cst_6 = arith.constant dense<0.000000e+00> : vector<8xf32>
    %10 = vector.multi_reduction <add>, %9, %cst_6 [1] : vector<8x128xf32> to vector<8xf32>
    %11 = vector.shape_cast %10 : vector<8xf32> to vector<8x1xf32>
    %cst_7 = arith.constant 1.280000e+02 : f32
    %12 = vector.broadcast %cst_7 : f32 to vector<8x1xf32>
    %13 = arith.divf %11, %12 : vector<8x1xf32>
    %cst_8 = arith.constant 9.99999974E-6 : f32
    %14 = vector.broadcast %cst_8 : f32 to vector<8x1xf32>
    %15 = arith.addf %13, %14 : vector<8x1xf32>
    %16 = math.rsqrt %15 : vector<8x1xf32>
    %17 = vector.broadcast %16 : vector<8x1xf32> to vector<8x128xf32>
    %18 = arith.mulf %8, %17 : vector<8x128xf32>
    %19 = vector.broadcast %1 : vector<1x128xf32> to vector<8x128xf32>
    %20 = arith.mulf %18, %19 : vector<8x128xf32>
    %21 = vector.broadcast %2 : vector<1x128xf32> to vector<8x128xf32>
    %22 = arith.addf %20, %21 : vector<8x128xf32>
    %23 = arith.truncf %22 : vector<8x128xf32> to vector<8x128xbf16>
    %c0_9 = arith.constant 0 : index
    %c0_10 = arith.constant 0 : index
    %24 = vector.load %arg4[%c0_9, %c0_10] : memref<128x128xbf16, #tpu.memory_space<vmem>>, vector<128x128xbf16>
    %cst_11 = arith.constant dense<0.000000e+00> : vector<8x128xf32>
    %25 = tpu.matmul %23, %24, %cst_11 {dimension_numbers = #tpu.dot_dimension_numbers<[1], [0], [0], [1], [0, 0, 1, 1], [], []>} : vector<8x128xbf16>, vector<128x128xbf16>, vector<8x128xf32> -> vector<8x128xf32>
    %c0_12 = arith.constant 0 : index
    %c0_13 = arith.constant 0 : index
    %26 = vector.load %arg5[%c0_12, %c0_13] : memref<1x128xf32, #tpu.memory_space<vmem>>, vector<1x128xf32>
    %27 = vector.broadcast %26 : vector<1x128xf32> to vector<8x128xf32>
    %28 = arith.addf %25, %27 : vector<8x128xf32>
    %c0_14 = arith.constant 0 : index
    %c0_15 = arith.constant 0 : index
    %29 = vector.load %arg6[%c0_14, %c0_15] : memref<8x128xf32, #tpu.memory_space<vmem>>, vector<8x128xf32>
    tpu.vector_store %arg6[%c0_14, %c0_15], %28 {strides = array<i32>} : memref<8x128xf32, #tpu.memory_space<vmem>>, vector<8x128xf32>,
    return
  }
  func.func @transform_0(%arg0: i32) -> (i32, i32) {
    %c0_i32 = arith.constant 0 : i32
    %c0_i32_0 = arith.constant 0 : i32
    return %arg0, %c0_i32 : i32, i32
  }
  func.func @transform_1(%arg0: i32) -> (i32, i32) {
    %c0_i32 = arith.constant 0 : i32
    %c0_i32_0 = arith.constant 0 : i32
    %c0_i32_1 = arith.constant 0 : i32
    return %c0_i32, %c0_i32_0 : i32, i32
  }
  func.func @transform_2(%arg0: i32) -> (i32, i32) {
    %c0_i32 = arith.constant 0 : i32
    %c0_i32_0 = arith.constant 0 : i32
    %c0_i32_1 = arith.constant 0 : i32
    return %c0_i32, %c0_i32_0 : i32, i32
  }
  func.func @transform_3(%arg0: i32) -> (i32, i32) {
    %c0_i32 = arith.constant 0 : i32
    %c0_i32_0 = arith.constant 0 : i32
    %c0_i32_1 = arith.constant 0 : i32
    return %c0_i32, %c0_i32_0 : i32, i32
  }
  func.func @transform_4(%arg0: i32) -> (i32, i32) {
    %c0_i32 = arith.constant 0 : i32
    %c0_i32_0 = arith.constant 0 : i32
    %c0_i32_1 = arith.constant 0 : i32
    return %c0_i32, %c0_i32_0 : i32, i32
  }
  func.func @transform_5(%arg0: i32) -> (i32, i32) {
    %c0_i32 = arith.constant 0 : i32
    %c0_i32_0 = arith.constant 0 : i32
    return %arg0, %c0_i32 : i32, i32
  }
}

</mosaic_0001>

<llo_original>
// kernel: model_forward.12
$region0: #{model_forward.12}
  #allocation0 [shape = 'u32[]', space=smem, size = 0x4, offset = 0x4, fixed_abs, tag = 'smem constant byte address 0x4 - core index']
  #allocation1 [shape = 'u32[144,128]{1,0:T(1,128)}', space=vmem, size = 0x12000, scoped, tag = 'internal scratch']
  %s0 = inlined_call_operand.vmem [shape: f32[128,48], index: 0, kind: input, shape index: {}]
  %s1 = inlined_call_operand.vmem [shape: bf16[48,128], index: 1, kind: input, shape index: {}]
  %s2 = inlined_call_operand.vmem [shape: f32[1,128], index: 2, kind: input, shape index: {}]
  %s3 = inlined_call_operand.vmem [shape: f32[1,128], index: 3, kind: input, shape index: {}]
  %s4 = inlined_call_operand.vmem [shape: f32[1,128], index: 4, kind: input, shape index: {}]
  %s5 = inlined_call_operand.vmem [shape: f32[128,128], index: 5, kind: output, shape index: {}]
  %s6 = sld [smem:[#allocation0]]
  $region30: #{model_forward.12} parent=0
    _
  %s8 = ssub.s32 1, %s6
  %s9 = scalar_select 0, %s8, %s6
  // Predicated region
  $region2: #{model_forward.12} parent=0 // pred_check
    _
  $region3: #{model_forward.12} parent=0 // pred_check_branch
    %11 = sbr.rel (0) target = $region5
  $region4: #{model_forward.12} parent=0 // pred_region
    _
  $region5: #{model_forward.12} parent=0 // pred_fallthru
    _
  // Predicated region
  $region6: #{model_forward.12} parent=0 // pred_check
    _
  $region7: #{model_forward.12} parent=0 // pred_check_branch
    %13 = sbr.rel (0) target = $region9
  $region8: #{model_forward.12} parent=0 // pred_region
    _
  $region9: #{model_forward.12} parent=0 // pred_fallthru
    _
  // Predicated region
  $region10: #{model_forward.12} parent=0 // pred_check
    _
  $region11: #{model_forward.12} parent=0 // pred_check_branch
    %15 = sbr.rel (0) target = $region13
  $region12: #{model_forward.12} parent=0 // pred_region
    _
  $region13: #{model_forward.12} parent=0 // pred_fallthru
    _
  // Predicated region
  $region14: #{model_forward.12} parent=0 // pred_check
    _
  $region15: #{model_forward.12} parent=0 // pred_check_branch
    %17 = sbr.rel (0) target = $region17
  $region16: #{model_forward.12} parent=0 // pred_region
    _
  $region17: #{model_forward.12} parent=0 // pred_fallthru
    _
  // Predicated region
  $region18: #{model_forward.12} parent=0 // pred_check
    _
  $region19: #{model_forward.12} parent=0 // pred_check_branch
    %19 = sbr.rel (0) target = $region21
  $region20: #{model_forward.12} parent=0 // pred_region
    _
  $region21: #{model_forward.12} parent=0 // pred_fallthru
    _
  %v21 = vld [vmem:[%s0] sm:$0xff]
  %v22 = vld [vmem:[%s0 + $0x8] sm:$0xff]
  %v23 = vld [vmem:[%s0 + $0x10] sm:$0xff]
  %v24 = vld [vmem:[%s0 + $0x18] sm:$0xff]
  %v25 = vld [vmem:[%s0 + $0x20] sm:$0xff]
  %v26 = vld [vmem:[%s0 + $0x28] sm:$0xff]
  %v27 = vld [vmem:[%s0 + $0x30] sm:$0xff]
  %v28 = vld [vmem:[%s0 + $0x38] sm:$0xff]
  %v29 = vld [vmem:[%s0 + $0x40] sm:$0xff]
  %v30 = vld [vmem:[%s0 + $0x48] sm:$0xff]
  %v31 = vld [vmem:[%s0 + $0x50] sm:$0xff]
  %v32 = vld [vmem:[%s0 + $0x58] sm:$0xff]
  %v33 = vld [vmem:[%s0 + $0x60] sm:$0xff]
  %v34 = vld [vmem:[%s0 + $0x68] sm:$0xff]
  %v35 = vld [vmem:[%s0 + $0x70] sm:$0xff]
  %v36 = vld [vmem:[%s0 + $0x78] sm:$0xff]
  %v37 = vpack.c.bf16 %v22, %v21
  %v38 = vpack.c.bf16 %v24, %v23
  %v39 = vpack.c.bf16 %v26, %v25
  %v40 = vpack.c.bf16 %v28, %v27
  %v41 = vpack.c.bf16 %v30, %v29
  %v42 = vpack.c.bf16 %v32, %v31
  %v43 = vpack.c.bf16 %v34, %v33
  %v44 = vpack.c.bf16 %v36, %v35
  %v45 = vld [vmem:[%s1] sm:$0xf]
  %v46 = vld [vmem:[%s1 + $0x4] sm:$0xf]
  %v47 = vld [vmem:[%s1 + $0x8] sm:$0xf]
  %v48 = vld [vmem:[%s1 + $0xc] sm:$0xf]
  %v49 = vld [vmem:[%s1 + $0x10] sm:$0xf]
  %v50 = vld [vmem:[%s1 + $0x14] sm:$0xf]
  %v51 = vld [vmem:[%s2] sm:$0x1]
  %v53 = vlaneseq
  %v54 = vshrl.u32 %v53, 7
  %v55 = vsub.s32 0, %v54
  %v56 = vrot.slane %v51, %v55
  %v64 = vunpack.c.l.b16 %v45
  %v65 = vunpack.c.l.b16 %v46
  %v66 = vunpack.c.l.b16 %v47
  %v67 = vunpack.c.l.b16 %v48
  %v68 = vunpack.c.l.b16 %v49
  %v69 = vunpack.c.l.b16 %v50
  %v70 = vpack.c.b16 %v65, %v64
  %v71 = vpack.c.b16 %v67, %v66
  %v72 = vpack.c.b16 %v69, %v68
  %vm76 = vcmask 392192
  %v78 = vsel %vm76, %v37, 0
  %v81 = vsel %vm76, %v38, 0
  %v84 = vsel %vm76, %v39, 0
  %v87 = vsel %vm76, %v40, 0
  %v90 = vsel %vm76, %v41, 0
  %v93 = vsel %vm76, %v42, 0
  %v96 = vsel %vm76, %v43, 0
  %v99 = vsel %vm76, %v44, 0
  %101 = vmatprep.subr.bf16.mxu0 0
  %102 = vmatpush1.bf16.msra.mxu0 %v70
  %103 = vmatprep.subr.bf16.mxu0 0
  %104 = vmatpush1.bf16.msra.mxu0 %v71
  %105 = vmatprep.subr.bf16.mxu0 0
  %106 = vmatpush1.bf16.msra.mxu0 %v72
  %107 = vmatprep.subr.bf16.mxu0 0
  %108 = vmatpush1.bf16.msra.mxu0 0
  %109 = vmatprep.subr.bf16.mxu0 0
  %110 = vmatpush1.bf16.msra.mxu0 0
  %111 = vmatprep.subr.bf16.mxu0 0
  %112 = vmatpush1.bf16.msra.mxu0 0
  %113 = vmatprep.subr.bf16.mxu0 0
  %114 = vmatpush1.bf16.msra.mxu0 0
  %115 = vmatprep.subr.bf16.mxu0 0
  %116 = vmatpush1.bf16.msra.mxu0 0
  %117 = vmatprep.subr.bf16.mxu0 0
  %118 = vmatpush1.bf16.msra.mxu0 0
  %119 = vmatprep.subr.bf16.mxu0 0
  %120 = vmatpush1.bf16.msra.mxu0 0
  %121 = vmatprep.subr.bf16.mxu0 0
  %122 = vmatpush1.bf16.msra.mxu0 0
  %123 = vmatprep.subr.bf16.mxu0 0
  %124 = vmatpush1.bf16.msra.mxu0 0
  %125 = vmatprep.subr.bf16.mxu0 0
  %126 = vmatpush1.bf16.msra.mxu0 0
  %127 = vmatprep.subr.bf16.mxu0 0
  %128 = vmatpush1.bf16.msra.mxu0 0
  %129 = vmatprep.subr.bf16.mxu0 0
  %130 = vmatpush1.bf16.msra.mxu0 0
  %131 = vmatprep.subr.bf16.mxu0 0
  %132 = vmatpush1.bf16.msra.mxu0 0
  %133 = vmatprep.mubr.bf16.mxu0 0
  %134 = vmatmul.mubr.bf16.gmra.mrb[0].mxu0 %v78
  %v135 = vpop.f32.mrb[0].mxu0
  %v136 = vadd.f32 %v56, %v135
  %v137 = vpop.f32.mrb[0].mxu0
  %v138 = vpop.f32.mrb[0].mxu0
  %v139 = vadd.f32 %v56, %v138
  %v140 = vpop.f32.mrb[0].mxu0
  %141 = vmatprep.mubr.bf16.mxu0 0
  %142 = vmatmul.mubr.bf16.gmra.mrb[0].mxu0 %v81
  %v143 = vpop.f32.mrb[0].mxu0
  %v144 = vadd.f32 %v56, %v143
  %v145 = vpop.f32.mrb[0].mxu0
  %v146 = vpop.f32.mrb[0].mxu0
  %v147 = vadd.f32 %v56, %v146
  %v148 = vpop.f32.mrb[0].mxu0
  %149 = vmatprep.mubr.bf16.mxu0 0
  %150 = vmatmul.mubr.bf16.gmra.mrb[0].mxu0 %v84
  %v151 = vpop.f32.mrb[0].mxu0
  %v152 = vadd.f32 %v56, %v151
  %v153 = vpop.f32.mrb[0].mxu0
  %v154 = vpop.f32.mrb[0].mxu0
  %v155 = vadd.f32 %v56, %v154
  %v156 = vpop.f32.mrb[0].mxu0
  %157 = vmatprep.mubr.bf16.mxu0 0
  %158 = vmatmul.mubr.bf16.gmra.mrb[0].mxu0 %v87
  %v159 = vpop.f32.mrb[0].mxu0
  %v160 = vadd.f32 %v56, %v159
  %v161 = vpop.f32.mrb[0].mxu0
  %v162 = vpop.f32.mrb[0].mxu0
  %v163 = vadd.f32 %v56, %v162
  %v164 = vpop.f32.mrb[0].mxu0
  %165 = vmatprep.mubr.bf16.mxu0 0
  %166 = vmatmul.mubr.bf16.gmra.mrb[0].mxu0 %v90
  %v167 = vpop.f32.mrb[0].mxu0
  %v168 = vadd.f32 %v56, %v167
  %v169 = vpop.f32.mrb[0].mxu0
  %v170 = vpop.f32.mrb[0].mxu0
  %v171 = vadd.f32 %v56, %v170
  %v172 = vpop.f32.mrb[0].mxu0
  %173 = vmatprep.mubr.bf16.mxu0 0
  %174 = vmatmul.mubr.bf16.gmra.mrb[0].mxu0 %v93
  %v175 = vpop.f32.mrb[0].mxu0
  %v176 = vadd.f32 %v56, %v175
  %v177 = vpop.f32.mrb[0].mxu0
  %v178 = vpop.f32.mrb[0].mxu0
  %v179 = vadd.f32 %v56, %v178
  %v180 = vpop.f32.mrb[0].mxu0
  %181 = vmatprep.mubr.bf16.mxu0 0
  %182 = vmatmul.mubr.bf16.gmra.mrb[0].mxu0 %v96
  %v183 = vpop.f32.mrb[0].mxu0
  %v184 = vadd.f32 %v56, %v183
  %v185 = vpop.f32.mrb[0].mxu0
  %v186 = vpop.f32.mrb[0].mxu0
  %v187 = vadd.f32 %v56, %v186
  %v188 = vpop.f32.mrb[0].mxu0
  %189 = vmatprep.mubr.bf16.mxu0 0
  %190 = vmatmul.mubr.bf16.gmra.mrb[0].mxu0 %v99
  %v191 = vpop.f32.mrb[0].mxu0
  %v192 = vadd.f32 %v56, %v191
  %v193 = vpop.f32.mrb[0].mxu0
  %v194 = vpop.f32.mrb[0].mxu0
  %v195 = vadd.f32 %v56, %v194
  %v196 = vpop.f32.mrb[0].mxu0
  %197 = vdwg.mxu0
  %v198 = vld [vmem:[%s3] sm:$0x1]
  %v199 = vld [vmem:[%s4] sm:$0x1]
  %200 = vadd.xlane.f32.xlu0 %v136
  %v201 = vpop.xlane.xlu0 %200
  %202 = vadd.xlane.f32.xlu0 %v139
  %v203 = vpop.xlane.xlu0 %202
  %204 = vadd.xlane.f32.xlu0 %v144
  %v205 = vpop.xlane.xlu0 %204
  %206 = vadd.xlane.f32.xlu0 %v147
  %v207 = vpop.xlane.xlu0 %206
  %208 = vadd.xlane.f32.xlu0 %v152
  %v209 = vpop.xlane.xlu0 %208
  %210 = vadd.xlane.f32.xlu0 %v155
  %v211 = vpop.xlane.xlu0 %210
  %212 = vadd.xlane.f32.xlu0 %v160
  %v213 = vpop.xlane.xlu0 %212
  %214 = vadd.xlane.f32.xlu0 %v163
  %v215 = vpop.xlane.xlu0 %214
  %216 = vadd.xlane.f32.xlu0 %v168
  %v217 = vpop.xlane.xlu0 %216
  %218 = vadd.xlane.f32.xlu0 %v171
  %v219 = vpop.xlane.xlu0 %218
  %220 = vadd.xlane.f32.xlu0 %v176
  %v221 = vpop.xlane.xlu0 %220
  %222 = vadd.xlane.f32.xlu0 %v179
  %v223 = vpop.xlane.xlu0 %222
  %224 = vadd.xlane.f32.xlu0 %v184
  %v225 = vpop.xlane.xlu0 %224
  %226 = vadd.xlane.f32.xlu0 %v187
  %v227 = vpop.xlane.xlu0 %226
  %228 = vadd.xlane.f32.xlu0 %v192
  %v229 = vpop.xlane.xlu0 %228
  %230 = vadd.xlane.f32.xlu0 %v195
  %v231 = vpop.xlane.xlu0 %230
  %v232 = vrcp.pop 128.0
  %v233 = vmul.f32 %v201, %v232
  %v234 = vmul.f32 %v203, %v232
  %v235 = vmul.f32 %v205, %v232
  %v236 = vmul.f32 %v207, %v232
  %v237 = vmul.f32 %v209, %v232
  %v238 = vmul.f32 %v211, %v232
  %v239 = vmul.f32 %v213, %v232
  %v240 = vmul.f32 %v215, %v232
  %v241 = vmul.f32 %v217, %v232
  %v242 = vmul.f32 %v219, %v232
  %v243 = vmul.f32 %v221, %v232
  %v244 = vmul.f32 %v223, %v232
  %v245 = vmul.f32 %v225, %v232
  %v246 = vmul.f32 %v227, %v232
  %v247 = vmul.f32 %v229, %v232
  %v248 = vmul.f32 %v231, %v232
  %v249 = vsub.f32 %v136, %v233
  %v250 = vsub.f32 %v139, %v234
  %v251 = vsub.f32 %v144, %v235
  %v252 = vsub.f32 %v147, %v236
  %v253 = vsub.f32 %v152, %v237
  %v254 = vsub.f32 %v155, %v238
  %v255 = vsub.f32 %v160, %v239
  %v256 = vsub.f32 %v163, %v240
  %v257 = vsub.f32 %v168, %v241
  %v258 = vsub.f32 %v171, %v242
  %v259 = vsub.f32 %v176, %v243
  %v260 = vsub.f32 %v179, %v244
  %v261 = vsub.f32 %v184, %v245
  %v262 = vsub.f32 %v187, %v246
  %v263 = vsub.f32 %v192, %v247
  %v264 = vsub.f32 %v195, %v248
  %v265 = vmul.f32 %v249, %v249
  %v266 = vmul.f32 %v250, %v250
  %v267 = vmul.f32 %v251, %v251
  %v268 = vmul.f32 %v252, %v252
  %v269 = vmul.f32 %v253, %v253
  %v270 = vmul.f32 %v254, %v254
  %v271 = vmul.f32 %v255, %v255
  %v272 = vmul.f32 %v256, %v256
  %v273 = vmul.f32 %v257, %v257
  %v274 = vmul.f32 %v258, %v258
  %v275 = vmul.f32 %v259, %v259
  %v276 = vmul.f32 %v260, %v260
  %v277 = vmul.f32 %v261, %v261
  %v278 = vmul.f32 %v262, %v262
  %v279 = vmul.f32 %v263, %v263
  %v280 = vmul.f32 %v264, %v264
  %281 = vadd.xlane.f32.xlu0 %v265
  %v282 = vpop.xlane.xlu0 %281
  %283 = vadd.xlane.f32.xlu0 %v266
  %v284 = vpop.xlane.xlu0 %283
  %285 = vadd.xlane.f32.xlu0 %v267
  %v286 = vpop.xlane.xlu0 %285
  %287 = vadd.xlane.f32.xlu0 %v268
  %v288 = vpop.xlane.xlu0 %287
  %289 = vadd.xlane.f32.xlu0 %v269
  %v290 = vpop.xlane.xlu0 %289
  %291 = vadd.xlane.f32.xlu0 %v270
  %v292 = vpop.xlane.xlu0 %291
  %293 = vadd.xlane.f32.xlu0 %v271
  %v294 = vpop.xlane.xlu0 %293
  %295 = vadd.xlane.f32.xlu0 %v272
  %v296 = vpop.xlane.xlu0 %295
  %297 = vadd.xlane.f32.xlu0 %v273
  %v298 = vpop.xlane.xlu0 %297
  %299 = vadd.xlane.f32.xlu0 %v274
  %v300 = vpop.xlane.xlu0 %299
  %301 = vadd.xlane.f32.xlu0 %v275
  %v302 = vpop.xlane.xlu0 %301
  %303 = vadd.xlane.f32.xlu0 %v276
  %v304 = vpop.xlane.xlu0 %303
  %305 = vadd.xlane.f32.xlu0 %v277
  %v306 = vpop.xlane.xlu0 %305
  %307 = vadd.xlane.f32.xlu0 %v278
  %v308 = vpop.xlane.xlu0 %307
  %309 = vadd.xlane.f32.xlu0 %v279
  %v310 = vpop.xlane.xlu0 %309
  %311 = vadd.xlane.f32.xlu0 %v280
  %v312 = vpop.xlane.xlu0 %311
  %v313 = vmul.f32 %v282, %v232
  %v314 = vmul.f32 %v284, %v232
  %v315 = vmul.f32 %v286, %v232
  %v316 = vmul.f32 %v288, %v232
  %v317 = vmul.f32 %v290, %v232
  %v318 = vmul.f32 %v292, %v232
  %v319 = vmul.f32 %v294, %v232
  %v320 = vmul.f32 %v296, %v232
  %v321 = vmul.f32 %v298, %v232
  %v322 = vmul.f32 %v300, %v232
  %v323 = vmul.f32 %v302, %v232
  %v324 = vmul.f32 %v304, %v232
  %v325 = vmul.f32 %v306, %v232
  %v326 = vmul.f32 %v308, %v232
  %v327 = vmul.f32 %v310, %v232
  %v328 = vmul.f32 %v312, %v232
  %v329 = vadd.f32 %v313, 1e-06
  %v330 = vadd.f32 %v314, 1e-06
  %v331 = vadd.f32 %v315, 1e-06
  %v332 = vadd.f32 %v316, 1e-06
  %v333 = vadd.f32 %v317, 1e-06
  %v334 = vadd.f32 %v318, 1e-06
  %v335 = vadd.f32 %v319, 1e-06
  %v336 = vadd.f32 %v320, 1e-06
  %v337 = vadd.f32 %v321, 1e-06
  %v338 = vadd.f32 %v322, 1e-06
  %v339 = vadd.f32 %v323, 1e-06
  %v340 = vadd.f32 %v324, 1e-06
  %v341 = vadd.f32 %v325, 1e-06
  %v342 = vadd.f32 %v326, 1e-06
  %v343 = vadd.f32 %v327, 1e-06
  %v344 = vadd.f32 %v328, 1e-06
  %v345 = vrsqrt.pop %v329
  %v346 = vrsqrt.pop %v330
  %v347 = vrsqrt.pop %v331
  %v348 = vrsqrt.pop %v332
  %v349 = vrsqrt.pop %v333
  %v350 = vrsqrt.pop %v334
  %v351 = vrsqrt.pop %v335
  %v352 = vrsqrt.pop %v336
  %v353 = vrsqrt.pop %v337
  %v354 = vrsqrt.pop %v338
  %v355 = vrsqrt.pop %v339
  %v356 = vrsqrt.pop %v340
  %v357 = vrsqrt.pop %v341
  %v358 = vrsqrt.pop %v342
  %v359 = vrsqrt.pop %v343
  %v360 = vrsqrt.pop %v344
  %v361 = vmul.f32 %v249, %v345
  %v362 = vmul.f32 %v250, %v346
  %v363 = vmul.f32 %v251, %v347
  %v364 = vmul.f32 %v252, %v348
  %v365 = vmul.f32 %v253, %v349
  %v366 = vmul.f32 %v254, %v350
  %v367 = vmul.f32 %v255, %v351
  %v368 = vmul.f32 %v256, %v352
  %v369 = vmul.f32 %v257, %v353
  %v370 = vmul.f32 %v258, %v354
  %v371 = vmul.f32 %v259, %v355
  %v372 = vmul.f32 %v260, %v356
  %v373 = vmul.f32 %v261, %v357
  %v374 = vmul.f32 %v262, %v358
  %v375 = vmul.f32 %v263, %v359
  %v376 = vmul.f32 %v264, %v360
  %v378 = vlaneseq
  %v379 = vshrl.u32 %v378, 7
  %v380 = vsub.s32 0, %v379
  %v381 = vrot.slane %v198, %v380
  %v383 = vmul.f32 %v361, %v381
  %v384 = vmul.f32 %v362, %v381
  %v385 = vmul.f32 %v363, %v381
  %v386 = vmul.f32 %v364, %v381
  %v387 = vmul.f32 %v365, %v381
  %v388 = vmul.f32 %v366, %v381
  %v389 = vmul.f32 %v367, %v381
  %v390 = vmul.f32 %v368, %v381
  %v391 = vmul.f32 %v369, %v381
  %v392 = vmul.f32 %v370, %v381
  %v393 = vmul.f32 %v371, %v381
  %v394 = vmul.f32 %v372, %v381
  %v395 = vmul.f32 %v373, %v381
  %v396 = vmul.f32 %v374, %v381
  %v397 = vmul.f32 %v375, %v381
  %v398 = vmul.f32 %v376, %v381
  %v400 = vlaneseq
  %v401 = vshrl.u32 %v400, 7
  %v402 = vsub.s32 0, %v401
  %v403 = vrot.slane %v199, %v402
  %v405 = vadd.f32 %v383, %v403
  %v406 = vadd.f32 %v384, %v403
  %v407 = vadd.f32 %v385, %v403
  %v408 = vadd.f32 %v386, %v403
  %v409 = vadd.f32 %v387, %v403
  %v410 = vadd.f32 %v388, %v403
  %v411 = vadd.f32 %v389, %v403
  %v412 = vadd.f32 %v390, %v403
  %v413 = vadd.f32 %v391, %v403
  %v414 = vadd.f32 %v392, %v403
  %v415 = vadd.f32 %v393, %v403
  %v416 = vadd.f32 %v394, %v403
  %v417 = vadd.f32 %v395, %v403
  %v418 = vadd.f32 %v396, %v403
  %v419 = vadd.f32 %v397, %v403
  %v420 = vadd.f32 %v398, %v403
  %421 = vst [vmem:[%s5] sm:$0xff] %v405
  %422 = vst [vmem:[%s5 + $0x8] sm:$0xff] %v406
  %423 = vst [vmem:[%s5 + $0x10] sm:$0xff] %v407
  %424 = vst [vmem:[%s5 + $0x18] sm:$0xff] %v408
  %425 = vst [vmem:[%s5 + $0x20] sm:$0xff] %v409
  %426 = vst [vmem:[%s5 + $0x28] sm:$0xff] %v410
  %427 = vst [vmem:[%s5 + $0x30] sm:$0xff] %v411
  %428 = vst [vmem:[%s5 + $0x38] sm:$0xff] %v412
  %429 = vst [vmem:[%s5 + $0x40] sm:$0xff] %v413
  %430 = vst [vmem:[%s5 + $0x48] sm:$0xff] %v414
  %431 = vst [vmem:[%s5 + $0x50] sm:$0xff] %v415
  %432 = vst [vmem:[%s5 + $0x58] sm:$0xff] %v416
  %433 = vst [vmem:[%s5 + $0x60] sm:$0xff] %v417
  %434 = vst [vmem:[%s5 + $0x68] sm:$0xff] %v418
  %435 = vst [vmem:[%s5 + $0x70] sm:$0xff] %v419
  %436 = vst [vmem:[%s5 + $0x78] sm:$0xff] %v420
  // Predicated region
  $region22: #{model_forward.12} parent=0 // pred_check
    _
  $region23: #{model_forward.12} parent=0 // pred_check_branch
    %438 = sbr.rel (0) target = $region25
  $region24: #{model_forward.12} parent=0 // pred_region
    _
  $region25: #{model_forward.12} parent=0 // pred_fallthru
    _
  // Predicated region
  $region26: #{model_forward.12} parent=0 // pred_check
    _
  $region27: #{model_forward.12} parent=0 // pred_check_branch
    %440 = sbr.rel (0) target = $region29
  $region28: #{model_forward.12} parent=0 // pred_region
    _
  $region29: #{model_forward.12} parent=0 // pred_fallthru
    _

// kernel: model_forward.15
$region0: #{model_forward.15}
  #allocation0 [shape = 'u32[]', space=smem, size = 0x4, offset = 0x4, fixed_abs, tag = 'smem constant byte address 0x4 - core index']
  #allocation1 [shape = 'u32[144,128]{1,0:T(1,128)}', space=vmem, size = 0x12000, scoped, tag = 'internal scratch']
  %s0 = inlined_call_operand.vmem [shape: f32[8,128], index: 0, kind: input, shape index: {}]
  %s1 = inlined_call_operand.vmem [shape: f32[1,128], index: 1, kind: input, shape index: {}]
  %s2 = inlined_call_operand.vmem [shape: f32[1,128], index: 2, kind: input, shape index: {}]
  %s3 = inlined_call_operand.vmem [shape: bf16[128,128], index: 3, kind: input, shape index: {}]
  %s4 = inlined_call_operand.vmem [shape: f32[1,128], index: 4, kind: input, shape index: {}]
  %s5 = inlined_call_operand.vmem [shape: f32[8,128], index: 5, kind: output, shape index: {}]
  %s6 = sld [smem:[#allocation0]]
  $region30: #{model_forward.15} parent=0
    _
  %s8 = ssub.s32 1, %s6
  %s9 = scalar_select 0, %s8, %s6
  // Predicated region
  $region2: #{model_forward.15} parent=0 // pred_check
    _
  $region3: #{model_forward.15} parent=0 // pred_check_branch
    %11 = sbr.rel (0) target = $region5
  $region4: #{model_forward.15} parent=0 // pred_region
    _
  $region5: #{model_forward.15} parent=0 // pred_fallthru
    _
  // Predicated region
  $region6: #{model_forward.15} parent=0 // pred_check
    _
  $region7: #{model_forward.15} parent=0 // pred_check_branch
    %13 = sbr.rel (0) target = $region9
  $region8: #{model_forward.15} parent=0 // pred_region
    _
  $region9: #{model_forward.15} parent=0 // pred_fallthru
    _
  // Predicated region
  $region10: #{model_forward.15} parent=0 // pred_check
    _
  $region11: #{model_forward.15} parent=0 // pred_check_branch
    %15 = sbr.rel (0) target = $region13
  $region12: #{model_forward.15} parent=0 // pred_region
    _
  $region13: #{model_forward.15} parent=0 // pred_fallthru
    _
  // Predicated region
  $region14: #{model_forward.15} parent=0 // pred_check
    _
  $region15: #{model_forward.15} parent=0 // pred_check_branch
    %17 = sbr.rel (0) target = $region17
  $region16: #{model_forward.15} parent=0 // pred_region
    _
  $region17: #{model_forward.15} parent=0 // pred_fallthru
    _
  // Predicated region
  $region18: #{model_forward.15} parent=0 // pred_check
    _
  $region19: #{model_forward.15} parent=0 // pred_check_branch
    %19 = sbr.rel (0) target = $region21
  $region20: #{model_forward.15} parent=0 // pred_region
    _
  $region21: #{model_forward.15} parent=0 // pred_fallthru
    _
  %v21 = vld [vmem:[%s0] sm:$0xff]
  %v22 = vld [vmem:[%s1] sm:$0x1]
  %v23 = vld [vmem:[%s2] sm:$0x1]
  %24 = vadd.xlane.f32.xlu0 %v21
  %v25 = vpop.xlane.xlu0 %24
  %v26 = vrcp.pop 128.0
  %v27 = vmul.f32 %v25, %v26
  %v28 = vsub.f32 %v21, %v27
  %v29 = vmul.f32 %v28, %v28
  %30 = vadd.xlane.f32.xlu0 %v29
  %v31 = vpop.xlane.xlu0 %30
  %v32 = vmul.f32 %v31, %v26
  %v33 = vadd.f32 %v32, 1e-06
  %v34 = vrsqrt.pop %v33
  %v35 = vmul.f32 %v28, %v34
  %v37 = vlaneseq
  %v38 = vshrl.u32 %v37, 7
  %v39 = vsub.s32 0, %v38
  %v40 = vrot.slane %v22, %v39
  %v42 = vmul.f32 %v35, %v40
  %v44 = vlaneseq
  %v45 = vshrl.u32 %v44, 7
  %v46 = vsub.s32 0, %v45
  %v47 = vrot.slane %v23, %v46
  %v49 = vadd.f32 %v42, %v47
  %v50 = vpack.c.bf16 %v49, %v49
  %v51 = vld [vmem:[%s3] sm:$0xf]
  %v52 = vld [vmem:[%s3 + $0x4] sm:$0xf]
  %v53 = vld [vmem:[%s3 + $0x8] sm:$0xf]
  %v54 = vld [vmem:[%s3 + $0xc] sm:$0xf]
  %v55 = vld [vmem:[%s3 + $0x10] sm:$0xf]
  %v56 = vld [vmem:[%s3 + $0x14] sm:$0xf]
  %v57 = vld [vmem:[%s3 + $0x18] sm:$0xf]
  %v58 = vld [vmem:[%s3 + $0x1c] sm:$0xf]
  %v59 = vld [vmem:[%s3 + $0x20] sm:$0xf]
  %v60 = vld [vmem:[%s3 + $0x24] sm:$0xf]
  %v61 = vld [vmem:[%s3 + $0x28] sm:$0xf]
  %v62 = vld [vmem:[%s3 + $0x2c] sm:$0xf]
  %v63 = vld [vmem:[%s3 + $0x30] sm:$0xf]
  %v64 = vld [vmem:[%s3 + $0x34] sm:$0xf]
  %v65 = vld [vmem:[%s3 + $0x38] sm:$0xf]
  %v66 = vld [vmem:[%s3 + $0x3c] sm:$0xf]
  %v67 = vld [vmem:[%s4] sm:$0x1]
  %v69 = vlaneseq
  %v70 = vshrl.u32 %v69, 7
  %v71 = vsub.s32 0, %v70
  %v72 = vrot.slane %v67, %v71
  %v90 = vunpack.c.l.b16 %v51
  %v91 = vunpack.c.l.b16 %v52
  %v92 = vunpack.c.l.b16 %v53
  %v93 = vunpack.c.l.b16 %v54
  %v94 = vunpack.c.l.b16 %v55
  %v95 = vunpack.c.l.b16 %v56
  %v96 = vunpack.c.l.b16 %v57
  %v97 = vunpack.c.l.b16 %v58
  %v98 = vunpack.c.l.b16 %v59
  %v99 = vunpack.c.l.b16 %v60
  %v100 = vunpack.c.l.b16 %v61
  %v101 = vunpack.c.l.b16 %v62
  %v102 = vunpack.c.l.b16 %v63
  %v103 = vunpack.c.l.b16 %v64
  %v104 = vunpack.c.l.b16 %v65
  %v105 = vunpack.c.l.b16 %v66
  %v106 = vpack.c.b16 %v91, %v90
  %v107 = vpack.c.b16 %v93, %v92
  %v108 = vpack.c.b16 %v95, %v94
  %v109 = vpack.c.b16 %v97, %v96
  %v110 = vpack.c.b16 %v99, %v98
  %v111 = vpack.c.b16 %v101, %v100
  %v112 = vpack.c.b16 %v103, %v102
  %v113 = vpack.c.b16 %v105, %v104
  %122 = vmatprep.subr.bf16.mxu0 0
  %123 = vmatpush1.bf16.msra.mxu0 %v106
  %124 = vmatprep.subr.bf16.mxu0 0
  %125 = vmatpush1.bf16.msra.mxu0 %v107
  %126 = vmatprep.subr.bf16.mxu0 0
  %127 = vmatpush1.bf16.msra.mxu0 %v108
  %128 = vmatprep.subr.bf16.mxu0 0
  %129 = vmatpush1.bf16.msra.mxu0 %v109
  %130 = vmatprep.subr.bf16.mxu0 0
  %131 = vmatpush1.bf16.msra.mxu0 %v110
  %132 = vmatprep.subr.bf16.mxu0 0
  %133 = vmatpush1.bf16.msra.mxu0 %v111
  %134 = vmatprep.subr.bf16.mxu0 0
  %135 = vmatpush1.bf16.msra.mxu0 %v112
  %136 = vmatprep.subr.bf16.mxu0 0
  %137 = vmatpush1.bf16.msra.mxu0 %v113
  %138 = vmatprep.subr.bf16.mxu0 0
  %139 = vmatpush1.bf16.msra.mxu0 0
  %140 = vmatprep.subr.bf16.mxu0 0
  %141 = vmatpush1.bf16.msra.mxu0 0
  %142 = vmatprep.subr.bf16.mxu0 0
  %143 = vmatpush1.bf16.msra.mxu0 0
  %144 = vmatprep.subr.bf16.mxu0 0
  %145 = vmatpush1.bf16.msra.mxu0 0
  %146 = vmatprep.subr.bf16.mxu0 0
  %147 = vmatpush1.bf16.msra.mxu0 0
  %148 = vmatprep.subr.bf16.mxu0 0
  %149 = vmatpush1.bf16.msra.mxu0 0
  %150 = vmatprep.subr.bf16.mxu0 0
  %151 = vmatpush1.bf16.msra.mxu0 0
  %152 = vmatprep.subr.bf16.mxu0 0
  %153 = vmatpush1.bf16.msra.mxu0 0
  %154 = vmatprep.mubr.bf16.mxu0 0
  %155 = vmatmul.mubr.bf16.gmra.mrb[0].mxu0 %v50
  %v156 = vpop.f32.mrb[0].mxu0
  %v157 = vadd.f32 %v72, %v156
  %v158 = vpop.f32.mrb[0].mxu0
  %v159 = vpop.f32.mrb[0].mxu0
  %v160 = vpop.f32.mrb[0].mxu0
  %161 = vdwg.mxu0
  %162 = vst [vmem:[%s5] sm:$0xff] %v157
  // Predicated region
  $region22: #{model_forward.15} parent=0 // pred_check
    _
  $region23: #{model_forward.15} parent=0 // pred_check_branch
    %164 = sbr.rel (0) target = $region25
  $region24: #{model_forward.15} parent=0 // pred_region
    _
  $region25: #{model_forward.15} parent=0 // pred_fallthru
    _
  // Predicated region
  $region26: #{model_forward.15} parent=0 // pred_check
    _
  $region27: #{model_forward.15} parent=0 // pred_check_branch
    %166 = sbr.rel (0) target = $region29
  $region28: #{model_forward.15} parent=0 // pred_region
    _
  $region29: #{model_forward.15} parent=0 // pred_fallthru
    _

// kernel: model_forward.13
$region0: #{model_forward.13}
  #allocation0 [shape = 'u32[]', space=smem, size = 0x4, offset = 0x4, fixed_abs, tag = 'smem constant byte address 0x4 - core index']
  #allocation1 [shape = 'u32[144,128]{1,0:T(1,128)}', space=vmem, size = 0x12000, scoped, tag = 'internal scratch']
  %s0 = inlined_call_operand.vmem [shape: f32[8,10,10,128], index: 0, kind: input, shape index: {}]
  %s1 = inlined_call_operand.vmem [shape: f32[7,7,128], index: 1, kind: input, shape index: {}]
  %s2 = inlined_call_operand.vmem [shape: f32[1,128], index: 2, kind: input, shape index: {}]
  %s3 = inlined_call_operand.vmem [shape: f32[1,128], index: 3, kind: input, shape index: {}]
  %s4 = inlined_call_operand.vmem [shape: f32[1,128], index: 4, kind: input, shape index: {}]
  %s5 = inlined_call_operand.vmem [shape: bf16[128,512], index: 5, kind: input, shape index: {}]
  %s6 = inlined_call_operand.vmem [shape: f32[1,512], index: 6, kind: input, shape index: {}]
  %s7 = inlined_call_operand.vmem [shape: bf16[512,128], index: 7, kind: input, shape index: {}]
  %s8 = inlined_call_operand.vmem [shape: f32[1,128], index: 8, kind: input, shape index: {}]
  %s9 = inlined_call_operand.vmem [shape: f32[1,128], index: 9, kind: input, shape index: {}]
  %s10 = inlined_call_operand.vmem [shape: f32[8,4,4,128], index: 10, kind: output, shape index: {}]
  %s11 = sld [smem:[#allocation0]]
  $region73: #{model_forward.13} parent=0
    _
  %s13 = ssub.s32 1, %s11
  %s14 = scalar_select 0, %s13, %s11
  loop: start=0, step=1, limit=10
  $region2: #{model_forward.13} parent=0 // loop_pre_header
    _
  $region3: #{model_forward.13} parent=0 // loop_header
    %s16 = sphi 0, %s20
    %p17 = scmp.ge.s32.totalorder %s16, 10
    %s26 = sphi 0, %s28
    %s29 = sphi 0, %s26
    %s30 = sphi 0, %s29
    %s46 = sphi 0, %s30
    %s50 = sphi 0, %s50
    %s52 = sphi 0, %s50
    %s53 = sphi 0, %s52
    %s67 = sphi 0, %s53
    %s71 = sphi 0, %s71
    %s73 = sphi 0, %s71
    %s74 = sphi 0, %s73
    %s88 = sphi 0, %s74
    %s92 = sphi 0, %s92
    %s94 = sphi 0, %s92
    %s95 = sphi 0, %s94
    %s109 = sphi 0, %s95
    %s113 = sphi 0, %s113
    %s115 = sphi 0, %s113
    %s116 = sphi 0, %s115
    %s130 = sphi 0, %s116
    %s134 = sphi 0, %s134
    %s136 = sphi 0, %s134
    %s137 = sphi 0, %s136
    %s151 = sphi 0, %s137
    %s155 = sphi 0, %s155
    %s157 = sphi 0, %s155
    %s158 = sphi 0, %s157
    %s172 = sphi 0, %s158
    %s176 = sphi 0, %s176
    %s178 = sphi 0, %s176
    %s179 = sphi 0, %s178
    %s193 = sphi 0, %s179
    %s197 = sphi 0, %s197
    %s199 = sphi 0, %s197
    %s200 = sphi 0, %s199
    %s214 = sphi 0, %s200
    %s218 = sphi 0, %s218
    %s220 = sphi 0, %s218
    %s221 = sphi 0, %s220
    %s235 = sphi 0, %s221
    %s241 = sphi 0, %s243
    %s244 = sphi 0, %s241
    %s245 = sphi 0, %s244
    %s261 = sphi 0, %s245
  $region4: #{model_forward.13} parent=0 // loop_header_branch
    %19 = sbr.rel (%p17) target = $region8
  $region5: #{model_forward.13} parent=0 // loop_body
    %s21 = ssub.s32 %s16, 1
    %s22 = ssub.s32 %s16, 2
    %s23 = sadd.s32 %s16, 1
    %s24 = ssub.s32 %s16, %s23
    %p25 = scmp.eq.s32.totalorder %s24, 0
    %s27 = sadd.s32 %s26, 1
    %s28 = scalar_select %p25, %s26, %s27
    %p31 = pneg %p25
    %p32 = scmp.eq.s32.totalorder %s16, 7
    %p33 = por %p31, %p32
    %p34 = scmp.ne.s32.totalorder %s26, %s29
    %p35 = scmp.eq.s32.totalorder %s16, 0
    %p36 = por %p34, %p35
    %p37 = scmp.ne.s32.totalorder %s26, %s29
    %p38 = scmp.eq.s32.totalorder %s21, 7
    %p39 = por %p37, %p38
    %p40 = scmp.ne.s32.totalorder %s29, %s30
    %p41 = scmp.eq.s32.totalorder %s21, 0
    %p42 = por %p40, %p41
    %p43 = scmp.ne.s32.totalorder %s29, %s30
    %p44 = scmp.eq.s32.totalorder %s22, 7
    %p45 = por %p43, %p44
    %p47 = scmp.ne.s32.totalorder %s30, %s46
    %p48 = scmp.eq.s32.totalorder %s22, 0
    %p49 = por %p47, %p48
    %s51 = sadd.s32 %s50, 1
    %p54 = scmp.eq.s32.totalorder %s16, 7
    %p55 = scmp.ne.s32.totalorder %s50, %s52
    %p56 = scmp.eq.s32.totalorder %s16, 0
    %p57 = por %p55, %p56
    %p58 = scmp.ne.s32.totalorder %s50, %s52
    %p59 = scmp.eq.s32.totalorder %s21, 7
    %p60 = por %p58, %p59
    %p61 = scmp.ne.s32.totalorder %s52, %s53
    %p62 = scmp.eq.s32.totalorder %s21, 0
    %p63 = por %p61, %p62
    %p64 = scmp.ne.s32.totalorder %s52, %s53
    %p65 = scmp.eq.s32.totalorder %s22, 7
    %p66 = por %p64, %p65
    %p68 = scmp.ne.s32.totalorder %s53, %s67
    %p69 = scmp.eq.s32.totalorder %s22, 0
    %p70 = por %p68, %p69
    %s72 = sadd.s32 %s71, 1
    %p75 = scmp.eq.s32.totalorder %s16, 7
    %p76 = scmp.ne.s32.totalorder %s71, %s73
    %p77 = scmp.eq.s32.totalorder %s16, 0
    %p78 = por %p76, %p77
    %p79 = scmp.ne.s32.totalorder %s71, %s73
    %p80 = scmp.eq.s32.totalorder %s21, 7
    %p81 = por %p79, %p80
    %p82 = scmp.ne.s32.totalorder %s73, %s74
    %p83 = scmp.eq.s32.totalorder %s21, 0
    %p84 = por %p82, %p83
    %p85 = scmp.ne.s32.totalorder %s73, %s74
    %p86 = scmp.eq.s32.totalorder %s22, 7
    %p87 = por %p85, %p86
    %p89 = scmp.ne.s32.totalorder %s74, %s88
    %p90 = scmp.eq.s32.totalorder %s22, 0
    %p91 = por %p89, %p90
    %s93 = sadd.s32 %s92, 1
    %p96 = scmp.eq.s32.totalorder %s16, 7
    %p97 = scmp.ne.s32.totalorder %s92, %s94
    %p98 = scmp.eq.s32.totalorder %s16, 0
    %p99 = por %p97, %p98
    %p100 = scmp.ne.s32.totalorder %s92, %s94
    %p101 = scmp.eq.s32.totalorder %s21, 7
    %p102 = por %p100, %p101
    %p103 = scmp.ne.s32.totalorder %s94, %s95
    %p104 = scmp.eq.s32.totalorder %s21, 0
    %p105 = por %p103, %p104
    %p106 = scmp.ne.s32.totalorder %s94, %s95
    %p107 = scmp.eq.s32.totalorder %s22, 7
    %p108 = por %p106, %p107
    %p110 = scmp.ne.s32.totalorder %s95, %s109
    %p111 = scmp.eq.s32.totalorder %s22, 0
    %p112 = por %p110, %p111
    %s114 = sadd.s32 %s113, 1
    %p117 = scmp.eq.s32.totalorder %s16, 7
    %p118 = scmp.ne.s32.totalorder %s113, %s115
    %p119 = scmp.eq.s32.totalorder %s16, 0
    %p120 = por %p118, %p119
    %p121 = scmp.ne.s32.totalorder %s113, %s115
    %p122 = scmp.eq.s32.totalorder %s21, 7
    %p123 = por %p121, %p122
    %p124 = scmp.ne.s32.totalorder %s115, %s116
    %p125 = scmp.eq.s32.totalorder %s21, 0
    %p126 = por %p124, %p125
    %p127 = scmp.ne.s32.totalorder %s115, %s116
    %p128 = scmp.eq.s32.totalorder %s22, 7
    %p129 = por %p127, %p128
    %p131 = scmp.ne.s32.totalorder %s116, %s130
    %p132 = scmp.eq.s32.totalorder %s22, 0
    %p133 = por %p131, %p132
    %s135 = sadd.s32 %s134, 1
    %p138 = scmp.eq.s32.totalorder %s16, 7
    %p139 = scmp.ne.s32.totalorder %s134, %s136
    %p140 = scmp.eq.s32.totalorder %s16, 0
    %p141 = por %p139, %p140
    %p142 = scmp.ne.s32.totalorder %s134, %s136
    %p143 = scmp.eq.s32.totalorder %s21, 7
    %p144 = por %p142, %p143
    %p145 = scmp.ne.s32.totalorder %s136, %s137
    %p146 = scmp.eq.s32.totalorder %s21, 0
    %p147 = por %p145, %p146
    %p148 = scmp.ne.s32.totalorder %s136, %s137
    %p149 = scmp.eq.s32.totalorder %s22, 7
    %p150 = por %p148, %p149
    %p152 = scmp.ne.s32.totalorder %s137, %s151
    %p153 = scmp.eq.s32.totalorder %s22, 0
    %p154 = por %p152, %p153
    %s156 = sadd.s32 %s155, 1
    %p159 = scmp.eq.s32.totalorder %s16, 7
    %p160 = scmp.ne.s32.totalorder %s155, %s157
    %p161 = scmp.eq.s32.totalorder %s16, 0
    %p162 = por %p160, %p161
    %p163 = scmp.ne.s32.totalorder %s155, %s157
    %p164 = scmp.eq.s32.totalorder %s21, 7
    %p165 = por %p163, %p164
    %p166 = scmp.ne.s32.totalorder %s157, %s158
    %p167 = scmp.eq.s32.totalorder %s21, 0
    %p168 = por %p166, %p167
    %p169 = scmp.ne.s32.totalorder %s157, %s158
    %p170 = scmp.eq.s32.totalorder %s22, 7
    %p171 = por %p169, %p170
    %p173 = scmp.ne.s32.totalorder %s158, %s172
    %p174 = scmp.eq.s32.totalorder %s22, 0
    %p175 = por %p173, %p174
    %s177 = sadd.s32 %s176, 1
    %p180 = scmp.eq.s32.totalorder %s16, 7
    %p181 = scmp.ne.s32.totalorder %s176, %s178
    %p182 = scmp.eq.s32.totalorder %s16, 0
    %p183 = por %p181, %p182
    %p184 = scmp.ne.s32.totalorder %s176, %s178
    %p185 = scmp.eq.s32.totalorder %s21, 7
    %p186 = por %p184, %p185
    %p187 = scmp.ne.s32.totalorder %s178, %s179
    %p188 = scmp.eq.s32.totalorder %s21, 0
    %p189 = por %p187, %p188
    %p190 = scmp.ne.s32.totalorder %s178, %s179
    %p191 = scmp.eq.s32.totalorder %s22, 7
    %p192 = por %p190, %p191
    %p194 = scmp.ne.s32.totalorder %s179, %s193
    %p195 = scmp.eq.s32.totalorder %s22, 0
    %p196 = por %p194, %p195
    %s198 = sadd.s32 %s197, 1
    %p201 = scmp.eq.s32.totalorder %s16, 7
    %p202 = scmp.ne.s32.totalorder %s197, %s199
    %p203 = scmp.eq.s32.totalorder %s16, 0
    %p204 = por %p202, %p203
    %p205 = scmp.ne.s32.totalorder %s197, %s199
    %p206 = scmp.eq.s32.totalorder %s21, 7
    %p207 = por %p205, %p206
    %p208 = scmp.ne.s32.totalorder %s199, %s200
    %p209 = scmp.eq.s32.totalorder %s21, 0
    %p210 = por %p208, %p209
    %p211 = scmp.ne.s32.totalorder %s199, %s200
    %p212 = scmp.eq.s32.totalorder %s22, 7
    %p213 = por %p211, %p212
    %p215 = scmp.ne.s32.totalorder %s200, %s214
    %p216 = scmp.eq.s32.totalorder %s22, 0
    %p217 = por %p215, %p216
    %s219 = sadd.s32 %s218, 1
    %p222 = scmp.eq.s32.totalorder %s16, 7
    %p223 = scmp.ne.s32.totalorder %s218, %s220
    %p224 = scmp.eq.s32.totalorder %s16, 0
    %p225 = por %p223, %p224
    %p226 = scmp.ne.s32.totalorder %s218, %s220
    %p227 = scmp.eq.s32.totalorder %s21, 7
    %p228 = por %p226, %p227
    %p229 = scmp.ne.s32.totalorder %s220, %s221
    %p230 = scmp.eq.s32.totalorder %s21, 0
    %p231 = por %p229, %p230
    %p232 = scmp.ne.s32.totalorder %s220, %s221
    %p233 = scmp.eq.s32.totalorder %s22, 7
    %p234 = por %p232, %p233
    %p236 = scmp.ne.s32.totalorder %s221, %s235
    %p237 = scmp.eq.s32.totalorder %s22, 0
    %p238 = por %p236, %p237
    %s239 = ssub.s32 %s16, %s23
    %p240 = scmp.eq.s32.totalorder %s239, 0
    %s242 = sadd.s32 %s241, 1
    %s243 = scalar_select %p240, %s241, %s242
    %p246 = pneg %p240
    %p247 = scmp.eq.s32.totalorder %s16, 7
    %p248 = por %p246, %p247
    %p249 = scmp.ne.s32.totalorder %s241, %s244
    %p250 = scmp.eq.s32.totalorder %s16, 0
    %p251 = por %p249, %p250
    %p252 = scmp.ne.s32.totalorder %s241, %s244
    %p253 = scmp.eq.s32.totalorder %s21, 7
    %p254 = por %p252, %p253
    %p255 = scmp.ne.s32.totalorder %s244, %s245
    %p256 = scmp.eq.s32.totalorder %s21, 0
    %p257 = por %p255, %p256
    %p258 = scmp.ne.s32.totalorder %s244, %s245
    %p259 = scmp.eq.s32.totalorder %s22, 7
    %p260 = por %p258, %p259
    %p262 = scmp.ne.s32.totalorder %s245, %s261
    %p263 = scmp.eq.s32.totalorder %s22, 0
    %p264 = por %p262, %p263
    %p265 = scmp.le.s32.totalorder 1, %s16
    %p266 = scmp.lt.s32.totalorder %s16, 9
    %p267 = pnand %p265, %p266
    %p268 = pneg %p267
    // Predicated region
    $region9: #{model_forward.13} parent=5 // pred_check
      _
    $region10: #{model_forward.13} parent=5 // pred_check_branch
      %270 = sbr.rel (%p267) target = $region12
    $region11: #{model_forward.13} parent=5 // pred_region
      %s271 = ssub.s32 %s16, 1
      // Predicated region
      $region13: #{model_forward.13} parent=11 // pred_check
        %p272 = pneg %p63
      $region14: #{model_forward.13} parent=11 // pred_check_branch
        %274 = sbr.rel (%p272) target = $region16
      $region15: #{model_forward.13} parent=11 // pred_region
        _
      $region16: #{model_forward.13} parent=11 // pred_fallthru
        _
      // Predicated region
      $region17: #{model_forward.13} parent=11 // pred_check
        %p275 = pneg %p84
      $region18: #{model_forward.13} parent=11 // pred_check_branch
        %277 = sbr.rel (%p275) target = $region20
      $region19: #{model_forward.13} parent=11 // pred_region
        _
      $region20: #{model_forward.13} parent=11 // pred_fallthru
        _
      // Predicated region
      $region21: #{model_forward.13} parent=11 // pred_check
        %p278 = pneg %p105
      $region22: #{model_forward.13} parent=11 // pred_check_branch
        %280 = sbr.rel (%p278) target = $region24
      $region23: #{model_forward.13} parent=11 // pred_region
        _
      $region24: #{model_forward.13} parent=11 // pred_fallthru
        _
      // Predicated region
      $region25: #{model_forward.13} parent=11 // pred_check
        %p281 = pneg %p126
      $region26: #{model_forward.13} parent=11 // pred_check_branch
        %283 = sbr.rel (%p281) target = $region28
      $region27: #{model_forward.13} parent=11 // pred_region
        _
      $region28: #{model_forward.13} parent=11 // pred_fallthru
        _
      // Predicated region
      $region29: #{model_forward.13} parent=11 // pred_check
        %p284 = pneg %p147
      $region30: #{model_forward.13} parent=11 // pred_check_branch
        %286 = sbr.rel (%p284) target = $region32
      $region31: #{model_forward.13} parent=11 // pred_region
        _
      $region32: #{model_forward.13} parent=11 // pred_fallthru
        _
      // Predicated region
      $region33: #{model_forward.13} parent=11 // pred_check
        %p287 = pneg %p168
      $region34: #{model_forward.13} parent=11 // pred_check_branch
        %289 = sbr.rel (%p287) target = $region36
      $region35: #{model_forward.13} parent=11 // pred_region
        _
      $region36: #{model_forward.13} parent=11 // pred_fallthru
        _
      // Predicated region
      $region37: #{model_forward.13} parent=11 // pred_check
        %p290 = pneg %p189
      $region38: #{model_forward.13} parent=11 // pred_check_branch
        %292 = sbr.rel (%p290) target = $region40
      $region39: #{model_forward.13} parent=11 // pred_region
        _
      $region40: #{model_forward.13} parent=11 // pred_fallthru
        _
      // Predicated region
      $region41: #{model_forward.13} parent=11 // pred_check
        %p293 = pneg %p210
      $region42: #{model_forward.13} parent=11 // pred_check_branch
        %295 = sbr.rel (%p293) target = $region44
      $region43: #{model_forward.13} parent=11 // pred_region
        _
      $region44: #{model_forward.13} parent=11 // pred_fallthru
        _
      // Predicated region
      $region45: #{model_forward.13} parent=11 // pred_check
        %p296 = pneg %p231
      $region46: #{model_forward.13} parent=11 // pred_check_branch
        %298 = sbr.rel (%p296) target = $region48
      $region47: #{model_forward.13} parent=11 // pred_region
        _
      $region48: #{model_forward.13} parent=11 // pred_fallthru
        _
    $region12: #{model_forward.13} parent=5 // pred_fallthru
      _
    %p299 = scmp.lt.s32.totalorder %s16, 8
    // Predicated region
    $region49: #{model_forward.13} parent=5 // pred_check
      %p300 = pneg %p299
    $region50: #{model_forward.13} parent=5 // pred_check_branch
      %302 = sbr.rel (%p300) target = $region52
    $region51: #{model_forward.13} parent=5 // pred_region
      // Predicated region
      $region53: #{model_forward.13} parent=51 // pred_check
        %p303 = pneg %p36
      $region54: #{model_forward.13} parent=51 // pred_check_branch
        %305 = sbr.rel (%p303) target = $region56
      $region55: #{model_forward.13} parent=51 // pred_region
        %p306 = scmp.lt.s32.totalorder %s16, 7
        %s307 = scalar_select %p306, %s16, 7
        %s308 = smul.addr %s307, 20
        %s309 = smul.addr %s308, 8
        %s310 = scalar_lea.vmem %s0, %s309
      $region56: #{model_forward.13} parent=51 // pred_fallthru
        _
    $region52: #{model_forward.13} parent=5 // pred_fallthru
      _
    %p311 = scmp.le.s32.totalorder 1, %s16
    %p312 = scmp.lt.s32.totalorder %s16, 9
    %p313 = pnand %p311, %p312
    %p314 = pneg %p313
    // Predicated region
    $region57: #{model_forward.13} parent=5 // pred_check
      _
    $region58: #{model_forward.13} parent=5 // pred_check_branch
      %316 = sbr.rel (%p313) target = $region60
    $region59: #{model_forward.13} parent=5 // pred_region
      %s317 = ssub.s32 %s16, 1
      %p318 = scmp.lt.s32.totalorder %s21, 7
      %s319 = scalar_select %p318, %s21, 7
      %s320 = smul.addr %s319, 20
      %s321 = smul.addr %s320, 8
      %s322 = scalar_lea.vmem %s0, %s321
      %p323 = pneg %p42
      %p324 = pneg %p39
      %p325 = pneg %p63
      %p326 = pneg %p60
      %p327 = pneg %p84
      %p328 = pneg %p81
      %p329 = pneg %p105
      %p330 = pneg %p102
      %p331 = pneg %p126
      %p332 = pneg %p123
      %p333 = pneg %p147
      %p334 = pneg %p144
      %p335 = pneg %p168
      %p336 = pneg %p165
      %p337 = pneg %p189
      %p338 = pneg %p186
      %p339 = pneg %p210
      %p340 = pneg %p207
      %p341 = pneg %p231
      %p342 = pneg %p228
      %p343 = pneg %p257
      %p344 = pneg %p254
      %p345 = scmp.lt.s32.totalorder %s21, 7
      %s346 = scalar_select %p345, %s21, 7
      %s347 = smul.addr %s346, 4
      %s348 = smul.addr %s347, 4
      %s349 = scalar_lea.vmem %s10, %s348
      %p350 = scmp.lt.s32.totalorder %s21, 7
      %s351 = scalar_select %p350, %s21, 7
      %s352 = smul.addr %s351, 20
      %s353 = smul.addr %s352, 8
      %s354 = scalar_lea.vmem %s0, %s353
      %p355 = scmp.lt.s32.totalorder %s21, 7
      %s356 = scalar_select %p355, %s21, 7
      %s357 = smul.addr %s356, 4
      %s358 = smul.addr %s357, 4
      %s359 = scalar_lea.vmem %s10, %s358
      %v361 = vld [vmem:[%s354] sm:$0xff]
      %v362 = vld [vmem:[%s354 + $0x8] sm:$0x3]
      %v363 = vld [vmem:[%s354 + $0x10] sm:$0xff]
      %v364 = vld [vmem:[%s354 + $0x18] sm:$0x3]
      %v365 = vld [vmem:[%s354 + $0x20] sm:$0xff]
      %v366 = vld [vmem:[%s354 + $0x28] sm:$0x3]
      %v367 = vld [vmem:[%s354 + $0x30] sm:$0xff]
      %v368 = vld [vmem:[%s354 + $0x38] sm:$0x3]
      %v369 = vld [vmem:[%s354 + $0x40] sm:$0xff]
      %v370 = vld [vmem:[%s354 + $0x48] sm:$0x3]
      %v371 = vld [vmem:[%s354 + $0x50] sm:$0xff]
      %v372 = vld [vmem:[%s354 + $0x58] sm:$0x3]
      %v373 = vld [vmem:[%s354 + $0x60] sm:$0xff]
      %v374 = vld [vmem:[%s354 + $0x68] sm:$0x3]
      %v375 = vld [vmem:[%s354 + $0x70] sm:$0xff]
      %v376 = vld [vmem:[%s354 + $0x78] sm:$0x3]
      %v377 = vld [vmem:[%s354 + $0x80] sm:$0xff]
      %v378 = vld [vmem:[%s354 + $0x88] sm:$0x3]
      %v379 = vld [vmem:[%s354 + $0x90] sm:$0xff]
      %v380 = vld [vmem:[%s354 + $0x98] sm:$0x3]
      %v381 = vld [vmem:[%s1] sm:$0x7f]
      %v382 = vld [vmem:[%s1 + $0x8] sm:$0x7f]
      %v383 = vld [vmem:[%s1 + $0x10] sm:$0x7f]
      %v384 = vld [vmem:[%s1 + $0x18] sm:$0x7f]
      %v385 = vld [vmem:[%s1 + $0x20] sm:$0x7f]
      %v386 = vld [vmem:[%s1 + $0x28] sm:$0x7f]
      %v387 = vld [vmem:[%s1 + $0x30] sm:$0x7f]
      %v388 = vlaneseq
      %v389 = vshrl.u32 %v388, 7
      %v390 = vsub.s32 0, %v389
      %v391 = vrot.slane %v381, %v390
      %v392 = vmul.f32 %v361, %v391
      %v393 = vmul.f32 %v363, %v391
      %v394 = vmul.f32 %v365, %v391
      %v395 = vmul.f32 %v367, %v391
      %v396 = vadd.f32 %v392, 0.0
      %v397 = vadd.f32 %v393, 0.0
      %v398 = vadd.f32 %v394, 0.0
      %v399 = vadd.f32 %v395, 0.0
      %v400 = vlaneseq
      %v401 = vshrl.u32 %v400, 7
      %v402 = vsub.s32 1, %v401
      %v403 = vrot.slane %v381, %v402
      %v404 = vmul.f32 %v361, %v403
      %v405 = vmul.f32 %v363, %v403
      %v406 = vmul.f32 %v365, %v403
      %v407 = vmul.f32 %v367, %v403
      %v408 = vadd.f32 %v404, 0.0
      %v409 = vadd.f32 %v405, 0.0
      %v410 = vadd.f32 %v406, 0.0
      %v411 = vadd.f32 %v407, 0.0
      %v412 = vlaneseq
      %v413 = vshrl.u32 %v412, 7
      %v414 = vsub.s32 2, %v413
      %v415 = vrot.slane %v381, %v414
      %v416 = vmul.f32 %v361, %v415
      %v417 = vmul.f32 %v363, %v415
      %v418 = vmul.f32 %v365, %v415
      %v419 = vmul.f32 %v367, %v415
      %v420 = vadd.f32 %v416, 0.0
      %v421 = vadd.f32 %v417, 0.0
      %v422 = vadd.f32 %v418, 0.0
      %v423 = vadd.f32 %v419, 0.0
      %v424 = vlaneseq
      %v425 = vshrl.u32 %v424, 7
      %v426 = vsub.s32 3, %v425
      %v427 = vrot.slane %v381, %v426
      %v428 = vmul.f32 %v361, %v427
      %v429 = vmul.f32 %v363, %v427
      %v430 = vmul.f32 %v365, %v427
      %v431 = vmul.f32 %v367, %v427
      %v432 = vadd.f32 %v428, 0.0
      %v433 = vadd.f32 %v429, 0.0
      %v434 = vadd.f32 %v430, 0.0
      %v435 = vadd.f32 %v431, 0.0
      %v436 = vlaneseq
      %v437 = vshrl.u32 %v436, 7
      %v438 = vsub.s32 4, %v437
      %v439 = vrot.slane %v381, %v438
      %v440 = vmul.f32 %v361, %v439
      %v441 = vmul.f32 %v363, %v439
      %v442 = vmul.f32 %v365, %v439
      %v443 = vmul.f32 %v367, %v439
      %v448 = vrot.slane %v440, 4
      %v449 = vrot.slane %v441, 4
      %v450 = vrot.slane %v442, 4
      %v451 = vrot.slane %v443, 4
      %v456 = vadd.f32 %v396, %v448
      %v457 = vadd.f32 %v397, %v449
      %v458 = vadd.f32 %v398, %v450
      %v459 = vadd.f32 %v399, %v451
      %v460 = vlaneseq
      %v461 = vshrl.u32 %v460, 7
      %v462 = vsub.s32 5, %v461
      %v463 = vrot.slane %v381, %v462
      %v464 = vmul.f32 %v361, %v463
      %v465 = vmul.f32 %v362, %v463
      %v466 = vmul.f32 %v363, %v463
      %v467 = vmul.f32 %v364, %v463
      %v468 = vmul.f32 %v365, %v463
      %v469 = vmul.f32 %v366, %v463
      %v470 = vmul.f32 %v367, %v463
      %v471 = vmul.f32 %v368, %v463
      %vm480 = vcmask 1043456
      %v481 = vrot.slane %v464, 4
      %v482 = vrot.slane %v465, 4
      %v483 = vsel %vm480, %v481, %v482
      %v484 = vrot.slane %v466, 4
      %v485 = vrot.slane %v467, 4
      %v486 = vsel %vm480, %v484, %v485
      %v487 = vrot.slane %v468, 4
      %v488 = vrot.slane %v469, 4
      %v489 = vsel %vm480, %v487, %v488
      %v490 = vrot.slane %v470, 4
      %v491 = vrot.slane %v471, 4
      %v492 = vsel %vm480, %v490, %v491
      %v497 = vadd.f32 %v408, %v483
      %v498 = vadd.f32 %v409, %v486
      %v499 = vadd.f32 %v410, %v489
      %v500 = vadd.f32 %v411, %v492
      %v501 = vlaneseq
      %v502 = vshrl.u32 %v501, 7
      %v503 = vsub.s32 6, %v502
      %v504 = vrot.slane %v381, %v503
      %v505 = vmul.f32 %v361, %v504
      %v506 = vmul.f32 %v362, %v504
      %v507 = vmul.f32 %v363, %v504
      %v508 = vmul.f32 %v364, %v504
      %v509 = vmul.f32 %v365, %v504
      %v510 = vmul.f32 %v366, %v504
      %v511 = vmul.f32 %v367, %v504
      %v512 = vmul.f32 %v368, %v504
      %v521 = vrot.slane %v505, 4
      %v522 = vrot.slane %v506, 4
      %v523 = vsel %vm480, %v521, %v522
      %v524 = vrot.slane %v507, 4
      %v525 = vrot.slane %v508, 4
      %v526 = vsel %vm480, %v524, %v525
      %v527 = vrot.slane %v509, 4
      %v528 = vrot.slane %v510, 4
      %v529 = vsel %vm480, %v527, %v528
      %v530 = vrot.slane %v511, 4
      %v531 = vrot.slane %v512, 4
      %v532 = vsel %vm480, %v530, %v531
      %v537 = vadd.f32 %v420, %v523
      %v538 = vadd.f32 %v421, %v526
      %v539 = vadd.f32 %v422, %v529
      %v540 = vadd.f32 %v423, %v532
      %v541 = vlaneseq
      %v542 = vshrl.u32 %v541, 7
      %v543 = vsub.s32 0, %v542
      %v544 = vrot.slane %v382, %v543
      %v545 = vmul.f32 %v363, %v544
      %v546 = vmul.f32 %v365, %v544
      %v547 = vmul.f32 %v367, %v544
      %v548 = vmul.f32 %v369, %v544
      %v553 = vrot.slane %v545, 5
      %v554 = vrot.slane %v546, 5
      %v555 = vrot.slane %v547, 5
      %v556 = vrot.slane %v548, 5
      %v561 = vadd.f32 %v432, %v553
      %v562 = vadd.f32 %v433, %v554
      %v563 = vadd.f32 %v434, %v555
      %v564 = vadd.f32 %v435, %v556
      %v565 = vlaneseq
      %v566 = vshrl.u32 %v565, 7
      %v567 = vsub.s32 1, %v566
      %v568 = vrot.slane %v382, %v567
      %v569 = vmul.f32 %v363, %v568
      %v570 = vmul.f32 %v365, %v568
      %v571 = vmul.f32 %v367, %v568
      %v572 = vmul.f32 %v369, %v568
      %v577 = vrot.slane %v569, 1
      %v578 = vrot.slane %v570, 1
      %v579 = vrot.slane %v571, 1
      %v580 = vrot.slane %v572, 1
      %v585 = vadd.f32 %v456, %v577
      %v586 = vadd.f32 %v457, %v578
      %v587 = vadd.f32 %v458, %v579
      %v588 = vadd.f32 %v459, %v580
      %v589 = vlaneseq
      %v590 = vshrl.u32 %v589, 7
      %v591 = vsub.s32 2, %v590
      %v592 = vrot.slane %v382, %v591
      %v593 = vmul.f32 %v363, %v592
      %v594 = vmul.f32 %v365, %v592
      %v595 = vmul.f32 %v367, %v592
      %v596 = vmul.f32 %v369, %v592
      %v601 = vrot.slane %v593, 1
      %v602 = vrot.slane %v594, 1
      %v603 = vrot.slane %v595, 1
      %v604 = vrot.slane %v596, 1
      %v609 = vadd.f32 %v497, %v601
      %v610 = vadd.f32 %v498, %v602
      %v611 = vadd.f32 %v499, %v603
      %v612 = vadd.f32 %v500, %v604
      %v613 = vlaneseq
      %v614 = vshrl.u32 %v613, 7
      %v615 = vsub.s32 3, %v614
      %v616 = vrot.slane %v382, %v615
      %v617 = vmul.f32 %v363, %v616
      %v618 = vmul.f32 %v365, %v616
      %v619 = vmul.f32 %v367, %v616
      %v620 = vmul.f32 %v369, %v616
      %v625 = vrot.slane %v617, 1
      %v626 = vrot.slane %v618, 1
      %v627 = vrot.slane %v619, 1
      %v628 = vrot.slane %v620, 1
      %v633 = vadd.f32 %v537, %v625
      %v634 = vadd.f32 %v538, %v626
      %v635 = vadd.f32 %v539, %v627
      %v636 = vadd.f32 %v540, %v628
      %v637 = vlaneseq
      %v638 = vshrl.u32 %v637, 7
      %v639 = vsub.s32 4, %v638
      %v640 = vrot.slane %v382, %v639
      %v641 = vmul.f32 %v363, %v640
      %v642 = vmul.f32 %v365, %v640
      %v643 = vmul.f32 %v367, %v640
      %v644 = vmul.f32 %v369, %v640
      %v649 = vrot.slane %v641, 1
      %v650 = vrot.slane %v642, 1
      %v651 = vrot.slane %v643, 1
      %v652 = vrot.slane %v644, 1
      %v657 = vadd.f32 %v561, %v649
      %v658 = vadd.f32 %v562, %v650
      %v659 = vadd.f32 %v563, %v651
      %v660 = vadd.f32 %v564, %v652
      %v661 = vlaneseq
      %v662 = vshrl.u32 %v661, 7
      %v663 = vsub.s32 5, %v662
      %v664 = vrot.slane %v382, %v663
      %v665 = vmul.f32 %v363, %v664
      %v666 = vmul.f32 %v364, %v664
      %v667 = vmul.f32 %v365, %v664
      %v668 = vmul.f32 %v366, %v664
      %v669 = vmul.f32 %v367, %v664
      %v670 = vmul.f32 %v368, %v664
      %v671 = vmul.f32 %v369, %v664
      %v672 = vmul.f32 %v370, %v664
      %vm681 = vcmask 1042432
      %v682 = vrot.slane %v665, 5
      %v683 = vrot.slane %v666, 5
      %v684 = vsel %vm681, %v682, %v683
      %v685 = vrot.slane %v667, 5
      %v686 = vrot.slane %v668, 5
      %v687 = vsel %vm681, %v685, %v686
      %v688 = vrot.slane %v669, 5
      %v689 = vrot.slane %v670, 5
      %v690 = vsel %vm681, %v688, %v689
      %v691 = vrot.slane %v671, 5
      %v692 = vrot.slane %v672, 5
      %v693 = vsel %vm681, %v691, %v692
      %v698 = vadd.f32 %v585, %v684
      %v699 = vadd.f32 %v586, %v687
      %v700 = vadd.f32 %v587, %v690
      %v701 = vadd.f32 %v588, %v693
      %v702 = vlaneseq
      %v703 = vshrl.u32 %v702, 7
      %v704 = vsub.s32 6, %v703
      %v705 = vrot.slane %v382, %v704
      %v706 = vmul.f32 %v363, %v705
      %v707 = vmul.f32 %v364, %v705
      %v708 = vmul.f32 %v365, %v705
      %v709 = vmul.f32 %v366, %v705
      %v710 = vmul.f32 %v367, %v705
      %v711 = vmul.f32 %v368, %v705
      %v712 = vmul.f32 %v369, %v705
      %v713 = vmul.f32 %v370, %v705
      %v722 = vrot.slane %v706, 5
      %v723 = vrot.slane %v707, 5
      %v724 = vsel %vm681, %v722, %v723
      %v725 = vrot.slane %v708, 5
      %v726 = vrot.slane %v709, 5
      %v727 = vsel %vm681, %v725, %v726
      %v728 = vrot.slane %v710, 5
      %v729 = vrot.slane %v711, 5
      %v730 = vsel %vm681, %v728, %v729
      %v731 = vrot.slane %v712, 5
      %v732 = vrot.slane %v713, 5
      %v733 = vsel %vm681, %v731, %v732
      %v738 = vadd.f32 %v609, %v724
      %v739 = vadd.f32 %v610, %v727
      %v740 = vadd.f32 %v611, %v730
      %v741 = vadd.f32 %v612, %v733
      %v742 = vlaneseq
      %v743 = vshrl.u32 %v742, 7
      %v744 = vsub.s32 0, %v743
      %v745 = vrot.slane %v383, %v744
      %v746 = vmul.f32 %v365, %v745
      %v747 = vmul.f32 %v367, %v745
      %v748 = vmul.f32 %v369, %v745
      %v749 = vmul.f32 %v371, %v745
      %v754 = vrot.slane %v746, 6
      %v755 = vrot.slane %v747, 6
      %v756 = vrot.slane %v748, 6
      %v757 = vrot.slane %v749, 6
      %v762 = vadd.f32 %v633, %v754
      %v763 = vadd.f32 %v634, %v755
      %v764 = vadd.f32 %v635, %v756
      %v765 = vadd.f32 %v636, %v757
      %v766 = vlaneseq
      %v767 = vshrl.u32 %v766, 7
      %v768 = vsub.s32 1, %v767
      %v769 = vrot.slane %v383, %v768
      %v770 = vmul.f32 %v365, %v769
      %v771 = vmul.f32 %v367, %v769
      %v772 = vmul.f32 %v369, %v769
      %v773 = vmul.f32 %v371, %v769
      %v778 = vrot.slane %v770, 6
      %v779 = vrot.slane %v771, 6
      %v780 = vrot.slane %v772, 6
      %v781 = vrot.slane %v773, 6
      %v786 = vadd.f32 %v657, %v778
      %v787 = vadd.f32 %v658, %v779
      %v788 = vadd.f32 %v659, %v780
      %v789 = vadd.f32 %v660, %v781
      %v790 = vlaneseq
      %v791 = vshrl.u32 %v790, 7
      %v792 = vsub.s32 2, %v791
      %v793 = vrot.slane %v383, %v792
      %v794 = vmul.f32 %v365, %v793
      %v795 = vmul.f32 %v367, %v793
      %v796 = vmul.f32 %v369, %v793
      %v797 = vmul.f32 %v371, %v793
      %v802 = vrot.slane %v794, 2
      %v803 = vrot.slane %v795, 2
      %v804 = vrot.slane %v796, 2
      %v805 = vrot.slane %v797, 2
      %v810 = vadd.f32 %v698, %v802
      %v811 = vadd.f32 %v699, %v803
      %v812 = vadd.f32 %v700, %v804
      %v813 = vadd.f32 %v701, %v805
      %v814 = vlaneseq
      %v815 = vshrl.u32 %v814, 7
      %v816 = vsub.s32 3, %v815
      %v817 = vrot.slane %v383, %v816
      %v818 = vmul.f32 %v365, %v817
      %v819 = vmul.f32 %v367, %v817
      %v820 = vmul.f32 %v369, %v817
      %v821 = vmul.f32 %v371, %v817
      %v826 = vrot.slane %v818, 2
      %v827 = vrot.slane %v819, 2
      %v828 = vrot.slane %v820, 2
      %v829 = vrot.slane %v821, 2
      %v834 = vadd.f32 %v738, %v826
      %v835 = vadd.f32 %v739, %v827
      %v836 = vadd.f32 %v740, %v828
      %v837 = vadd.f32 %v741, %v829
      %v838 = vlaneseq
      %v839 = vshrl.u32 %v838, 7
      %v840 = vsub.s32 4, %v839
      %v841 = vrot.slane %v383, %v840
      %v842 = vmul.f32 %v365, %v841
      %v843 = vmul.f32 %v367, %v841
      %v844 = vmul.f32 %v369, %v841
      %v845 = vmul.f32 %v371, %v841
      %v850 = vrot.slane %v842, 2
      %v851 = vrot.slane %v843, 2
      %v852 = vrot.slane %v844, 2
      %v853 = vrot.slane %v845, 2
      %v858 = vadd.f32 %v762, %v850
      %v859 = vadd.f32 %v763, %v851
      %v860 = vadd.f32 %v764, %v852
      %v861 = vadd.f32 %v765, %v853
      %v862 = vlaneseq
      %v863 = vshrl.u32 %v862, 7
      %v864 = vsub.s32 5, %v863
      %v865 = vrot.slane %v383, %v864
      %v866 = vmul.f32 %v365, %v865
      %v867 = vmul.f32 %v366, %v865
      %v868 = vmul.f32 %v367, %v865
      %v869 = vmul.f32 %v368, %v865
      %v870 = vmul.f32 %v369, %v865
      %v871 = vmul.f32 %v370, %v865
      %v872 = vmul.f32 %v371, %v865
      %v873 = vmul.f32 %v372, %v865
      %vm882 = vcmask 1045504
      %v883 = vrot.slane %v866, 2
      %v884 = vrot.slane %v867, 2
      %v885 = vsel %vm882, %v883, %v884
      %v886 = vrot.slane %v868, 2
      %v887 = vrot.slane %v869, 2
      %v888 = vsel %vm882, %v886, %v887
      %v889 = vrot.slane %v870, 2
      %v890 = vrot.slane %v871, 2
      %v891 = vsel %vm882, %v889, %v890
      %v892 = vrot.slane %v872, 2
      %v893 = vrot.slane %v873, 2
      %v894 = vsel %vm882, %v892, %v893
      %v899 = vadd.f32 %v786, %v885
      %v900 = vadd.f32 %v787, %v888
      %v901 = vadd.f32 %v788, %v891
      %v902 = vadd.f32 %v789, %v894
      %v903 = vlaneseq
      %v904 = vshrl.u32 %v903, 7
      %v905 = vsub.s32 6, %v904
      %v906 = vrot.slane %v383, %v905
      %v907 = vmul.f32 %v365, %v906
      %v908 = vmul.f32 %v366, %v906
      %v909 = vmul.f32 %v367, %v906
      %v910 = vmul.f32 %v368, %v906
      %v911 = vmul.f32 %v369, %v906
      %v912 = vmul.f32 %v370, %v906
      %v913 = vmul.f32 %v371, %v906
      %v914 = vmul.f32 %v372, %v906
      %vm923 = vcmask 1041408
      %v924 = vrot.slane %v907, 6
      %v925 = vrot.slane %v908, 6
      %v926 = vsel %vm923, %v924, %v925
      %v927 = vrot.slane %v909, 6
      %v928 = vrot.slane %v910, 6
      %v929 = vsel %vm923, %v927, %v928
      %v930 = vrot.slane %v911, 6
      %v931 = vrot.slane %v912, 6
      %v932 = vsel %vm923, %v930, %v931
      %v933 = vrot.slane %v913, 6
      %v934 = vrot.slane %v914, 6
      %v935 = vsel %vm923, %v933, %v934
      %v940 = vadd.f32 %v810, %v926
      %v941 = vadd.f32 %v811, %v929
      %v942 = vadd.f32 %v812, %v932
      %v943 = vadd.f32 %v813, %v935
      %v944 = vlaneseq
      %v945 = vshrl.u32 %v944, 7
      %v946 = vsub.s32 0, %v945
      %v947 = vrot.slane %v384, %v946
      %v948 = vmul.f32 %v367, %v947
      %v949 = vmul.f32 %v369, %v947
      %v950 = vmul.f32 %v371, %v947
      %v951 = vmul.f32 %v373, %v947
      %v956 = vrot.slane %v948, 7
      %v957 = vrot.slane %v949, 7
      %v958 = vrot.slane %v950, 7
      %v959 = vrot.slane %v951, 7
      %v964 = vadd.f32 %v834, %v956
      %v965 = vadd.f32 %v835, %v957
      %v966 = vadd.f32 %v836, %v958
      %v967 = vadd.f32 %v837, %v959
      %v968 = vlaneseq
      %v969 = vshrl.u32 %v968, 7
      %v970 = vsub.s32 1, %v969
      %v971 = vrot.slane %v384, %v970
      %v972 = vmul.f32 %v367, %v971
      %v973 = vmul.f32 %v369, %v971
      %v974 = vmul.f32 %v371, %v971
      %v975 = vmul.f32 %v373, %v971
      %v980 = vrot.slane %v972, 7
      %v981 = vrot.slane %v973, 7
      %v982 = vrot.slane %v974, 7
      %v983 = vrot.slane %v975, 7
      %v988 = vadd.f32 %v858, %v980
      %v989 = vadd.f32 %v859, %v981
      %v990 = vadd.f32 %v860, %v982
      %v991 = vadd.f32 %v861, %v983
      %v992 = vlaneseq
      %v993 = vshrl.u32 %v992, 7
      %v994 = vsub.s32 2, %v993
      %v995 = vrot.slane %v384, %v994
      %v996 = vmul.f32 %v367, %v995
      %v997 = vmul.f32 %v369, %v995
      %v998 = vmul.f32 %v371, %v995
      %v999 = vmul.f32 %v373, %v995
      %v1004 = vrot.slane %v996, 7
      %v1005 = vrot.slane %v997, 7
      %v1006 = vrot.slane %v998, 7
      %v1007 = vrot.slane %v999, 7
      %v1012 = vadd.f32 %v899, %v1004
      %v1013 = vadd.f32 %v900, %v1005
      %v1014 = vadd.f32 %v901, %v1006
      %v1015 = vadd.f32 %v902, %v1007
      %v1016 = vlaneseq
      %v1017 = vshrl.u32 %v1016, 7
      %v1018 = vsub.s32 3, %v1017
      %v1019 = vrot.slane %v384, %v1018
      %v1020 = vmul.f32 %v367, %v1019
      %v1021 = vmul.f32 %v369, %v1019
      %v1022 = vmul.f32 %v371, %v1019
      %v1023 = vmul.f32 %v373, %v1019
      %v1028 = vrot.slane %v1020, 3
      %v1029 = vrot.slane %v1021, 3
      %v1030 = vrot.slane %v1022, 3
      %v1031 = vrot.slane %v1023, 3
      %v1036 = vadd.f32 %v940, %v1028
      %v1037 = vadd.f32 %v941, %v1029
      %v1038 = vadd.f32 %v942, %v1030
      %v1039 = vadd.f32 %v943, %v1031
      %v1040 = vlaneseq
      %v1041 = vshrl.u32 %v1040, 7
      %v1042 = vsub.s32 4, %v1041
      %v1043 = vrot.slane %v384, %v1042
      %v1044 = vmul.f32 %v367, %v1043
      %v1045 = vmul.f32 %v369, %v1043
      %v1046 = vmul.f32 %v371, %v1043
      %v1047 = vmul.f32 %v373, %v1043
      %v1052 = vrot.slane %v1044, 3
      %v1053 = vrot.slane %v1045, 3
      %v1054 = vrot.slane %v1046, 3
      %v1055 = vrot.slane %v1047, 3
      %v1060 = vadd.f32 %v964, %v1052
      %v1061 = vadd.f32 %v965, %v1053
      %v1062 = vadd.f32 %v966, %v1054
      %v1063 = vadd.f32 %v967, %v1055
      %v1064 = vlaneseq
      %v1065 = vshrl.u32 %v1064, 7
      %v1066 = vsub.s32 5, %v1065
      %v1067 = vrot.slane %v384, %v1066
      %v1068 = vmul.f32 %v367, %v1067
      %v1069 = vmul.f32 %v368, %v1067
      %v1070 = vmul.f32 %v369, %v1067
      %v1071 = vmul.f32 %v370, %v1067
      %v1072 = vmul.f32 %v371, %v1067
      %v1073 = vmul.f32 %v372, %v1067
      %v1074 = vmul.f32 %v373, %v1067
      %v1075 = vmul.f32 %v374, %v1067
      %vm1084 = vcmask 1044480
      %v1085 = vrot.slane %v1068, 3
      %v1086 = vrot.slane %v1069, 3
      %v1087 = vsel %vm1084, %v1085, %v1086
      %v1088 = vrot.slane %v1070, 3
      %v1089 = vrot.slane %v1071, 3
      %v1090 = vsel %vm1084, %v1088, %v1089
      %v1091 = vrot.slane %v1072, 3
      %v1092 = vrot.slane %v1073, 3
      %v1093 = vsel %vm1084, %v1091, %v1092
      %v1094 = vrot.slane %v1074, 3
      %v1095 = vrot.slane %v1075, 3
      %v1096 = vsel %vm1084, %v1094, %v1095
      %v1101 = vadd.f32 %v988, %v1087
      %v1102 = vadd.f32 %v989, %v1090
      %v1103 = vadd.f32 %v990, %v1093
      %v1104 = vadd.f32 %v991, %v1096
      %v1105 = vlaneseq
      %v1106 = vshrl.u32 %v1105, 7
      %v1107 = vsub.s32 6, %v1106
      %v1108 = vrot.slane %v384, %v1107
      %v1109 = vmul.f32 %v367, %v1108
      %v1110 = vmul.f32 %v368, %v1108
      %v1111 = vmul.f32 %v369, %v1108
      %v1112 = vmul.f32 %v370, %v1108
      %v1113 = vmul.f32 %v371, %v1108
      %v1114 = vmul.f32 %v372, %v1108
      %v1115 = vmul.f32 %v373, %v1108
      %v1116 = vmul.f32 %v374, %v1108
      %v1125 = vrot.slane %v1109, 3
      %v1126 = vrot.slane %v1110, 3
      %v1127 = vsel %vm1084, %v1125, %v1126
      %v1128 = vrot.slane %v1111, 3
      %v1129 = vrot.slane %v1112, 3
      %v1130 = vsel %vm1084, %v1128, %v1129
      %v1131 = vrot.slane %v1113, 3
      %v1132 = vrot.slane %v1114, 3
      %v1133 = vsel %vm1084, %v1131, %v1132
      %v1134 = vrot.slane %v1115, 3
      %v1135 = vrot.slane %v1116, 3
      %v1136 = vsel %vm1084, %v1134, %v1135
      %v1141 = vadd.f32 %v1012, %v1127
      %v1142 = vadd.f32 %v1013, %v1130
      %v1143 = vadd.f32 %v1014, %v1133
      %v1144 = vadd.f32 %v1015, %v1136
      %v1145 = vlaneseq
      %v1146 = vshrl.u32 %v1145, 7
      %v1147 = vsub.s32 0, %v1146
      %v1148 = vrot.slane %v385, %v1147
      %v1149 = vmul.f32 %v369, %v1148
      %v1150 = vmul.f32 %v371, %v1148
      %v1151 = vmul.f32 %v373, %v1148
      %v1152 = vmul.f32 %v375, %v1148
      %v1153 = vadd.f32 %v1036, %v1149
      %v1154 = vadd.f32 %v1037, %v1150
      %v1155 = vadd.f32 %v1038, %v1151
      %v1156 = vadd.f32 %v1039, %v1152
      %v1157 = vlaneseq
      %v1158 = vshrl.u32 %v1157, 7
      %v1159 = vsub.s32 1, %v1158
      %v1160 = vrot.slane %v385, %v1159
      %v1161 = vmul.f32 %v369, %v1160
      %v1162 = vmul.f32 %v371, %v1160
      %v1163 = vmul.f32 %v373, %v1160
      %v1164 = vmul.f32 %v375, %v1160
      %v1165 = vadd.f32 %v1060, %v1161
      %v1166 = vadd.f32 %v1061, %v1162
      %v1167 = vadd.f32 %v1062, %v1163
      %v1168 = vadd.f32 %v1063, %v1164
      %v1169 = vlaneseq
      %v1170 = vshrl.u32 %v1169, 7
      %v1171 = vsub.s32 2, %v1170
      %v1172 = vrot.slane %v385, %v1171
      %v1173 = vmul.f32 %v369, %v1172
      %v1174 = vmul.f32 %v371, %v1172
      %v1175 = vmul.f32 %v373, %v1172
      %v1176 = vmul.f32 %v375, %v1172
      %v1177 = vadd.f32 %v1101, %v1173
      %v1178 = vadd.f32 %v1102, %v1174
      %v1179 = vadd.f32 %v1103, %v1175
      %v1180 = vadd.f32 %v1104, %v1176
      %v1181 = vlaneseq
      %v1182 = vshrl.u32 %v1181, 7
      %v1183 = vsub.s32 3, %v1182
      %v1184 = vrot.slane %v385, %v1183
      %v1185 = vmul.f32 %v369, %v1184
      %v1186 = vmul.f32 %v371, %v1184
      %v1187 = vmul.f32 %v373, %v1184
      %v1188 = vmul.f32 %v375, %v1184
      %v1189 = vadd.f32 %v1141, %v1185
      %v1190 = vadd.f32 %v1142, %v1186
      %v1191 = vadd.f32 %v1143, %v1187
      %v1192 = vadd.f32 %v1144, %v1188
      %v1193 = vlaneseq
      %v1194 = vshrl.u32 %v1193, 7
      %v1195 = vsub.s32 4, %v1194
      %v1196 = vrot.slane %v385, %v1195
      %v1197 = vmul.f32 %v369, %v1196
      %v1198 = vmul.f32 %v371, %v1196
      %v1199 = vmul.f32 %v373, %v1196
      %v1200 = vmul.f32 %v375, %v1196
      %v1205 = vrot.slane %v1197, 4
      %v1206 = vrot.slane %v1198, 4
      %v1207 = vrot.slane %v1199, 4
      %v1208 = vrot.slane %v1200, 4
      %v1213 = vadd.f32 %v1153, %v1205
      %v1214 = vadd.f32 %v1154, %v1206
      %v1215 = vadd.f32 %v1155, %v1207
      %v1216 = vadd.f32 %v1156, %v1208
      %v1217 = vlaneseq
      %v1218 = vshrl.u32 %v1217, 7
      %v1219 = vsub.s32 5, %v1218
      %v1220 = vrot.slane %v385, %v1219
      %v1221 = vmul.f32 %v369, %v1220
      %v1222 = vmul.f32 %v370, %v1220
      %v1223 = vmul.f32 %v371, %v1220
      %v1224 = vmul.f32 %v372, %v1220
      %v1225 = vmul.f32 %v373, %v1220
      %v1226 = vmul.f32 %v374, %v1220
      %v1227 = vmul.f32 %v375, %v1220
      %v1228 = vmul.f32 %v376, %v1220
      %v1237 = vrot.slane %v1221, 4
      %v1238 = vrot.slane %v1222, 4
      %v1239 = vsel %vm480, %v1237, %v1238
      %v1240 = vrot.slane %v1223, 4
      %v1241 = vrot.slane %v1224, 4
      %v1242 = vsel %vm480, %v1240, %v1241
      %v1243 = vrot.slane %v1225, 4
      %v1244 = vrot.slane %v1226, 4
      %v1245 = vsel %vm480, %v1243, %v1244
      %v1246 = vrot.slane %v1227, 4
      %v1247 = vrot.slane %v1228, 4
      %v1248 = vsel %vm480, %v1246, %v1247
      %v1253 = vadd.f32 %v1165, %v1239
      %v1254 = vadd.f32 %v1166, %v1242
      %v1255 = vadd.f32 %v1167, %v1245
      %v1256 = vadd.f32 %v1168, %v1248
      %v1257 = vlaneseq
      %v1258 = vshrl.u32 %v1257, 7
      %v1259 = vsub.s32 6, %v1258
      %v1260 = vrot.slane %v385, %v1259
      %v1261 = vmul.f32 %v369, %v1260
      %v1262 = vmul.f32 %v370, %v1260
      %v1263 = vmul.f32 %v371, %v1260
      %v1264 = vmul.f32 %v372, %v1260
      %v1265 = vmul.f32 %v373, %v1260
      %v1266 = vmul.f32 %v374, %v1260
      %v1267 = vmul.f32 %v375, %v1260
      %v1268 = vmul.f32 %v376, %v1260
      %v1277 = vrot.slane %v1261, 4
      %v1278 = vrot.slane %v1262, 4
      %v1279 = vsel %vm480, %v1277, %v1278
      %v1280 = vrot.slane %v1263, 4
      %v1281 = vrot.slane %v1264, 4
      %v1282 = vsel %vm480, %v1280, %v1281
      %v1283 = vrot.slane %v1265, 4
      %v1284 = vrot.slane %v1266, 4
      %v1285 = vsel %vm480, %v1283, %v1284
      %v1286 = vrot.slane %v1267, 4
      %v1287 = vrot.slane %v1268, 4
      %v1288 = vsel %vm480, %v1286, %v1287
      %v1293 = vadd.f32 %v1177, %v1279
      %v1294 = vadd.f32 %v1178, %v1282
      %v1295 = vadd.f32 %v1179, %v1285
      %v1296 = vadd.f32 %v1180, %v1288
      %v1297 = vlaneseq
      %v1298 = vshrl.u32 %v1297, 7
      %v1299 = vsub.s32 0, %v1298
      %v1300 = vrot.slane %v386, %v1299
      %v1301 = vmul.f32 %v371, %v1300
      %v1302 = vmul.f32 %v373, %v1300
      %v1303 = vmul.f32 %v375, %v1300
      %v1304 = vmul.f32 %v377, %v1300
      %v1309 = vrot.slane %v1301, 5
      %v1310 = vrot.slane %v1302, 5
      %v1311 = vrot.slane %v1303, 5
      %v1312 = vrot.slane %v1304, 5
      %v1317 = vadd.f32 %v1189, %v1309
      %v1318 = vadd.f32 %v1190, %v1310
      %v1319 = vadd.f32 %v1191, %v1311
      %v1320 = vadd.f32 %v1192, %v1312
      %v1321 = vlaneseq
      %v1322 = vshrl.u32 %v1321, 7
      %v1323 = vsub.s32 1, %v1322
      %v1324 = vrot.slane %v386, %v1323
      %v1325 = vmul.f32 %v371, %v1324
      %v1326 = vmul.f32 %v373, %v1324
      %v1327 = vmul.f32 %v375, %v1324
      %v1328 = vmul.f32 %v377, %v1324
      %v1333 = vrot.slane %v1325, 1
      %v1334 = vrot.slane %v1326, 1
      %v1335 = vrot.slane %v1327, 1
      %v1336 = vrot.slane %v1328, 1
      %v1341 = vadd.f32 %v1213, %v1333
      %v1342 = vadd.f32 %v1214, %v1334
      %v1343 = vadd.f32 %v1215, %v1335
      %v1344 = vadd.f32 %v1216, %v1336
      %v1345 = vlaneseq
      %v1346 = vshrl.u32 %v1345, 7
      %v1347 = vsub.s32 2, %v1346
      %v1348 = vrot.slane %v386, %v1347
      %v1349 = vmul.f32 %v371, %v1348
      %v1350 = vmul.f32 %v373, %v1348
      %v1351 = vmul.f32 %v375, %v1348
      %v1352 = vmul.f32 %v377, %v1348
      %v1357 = vrot.slane %v1349, 1
      %v1358 = vrot.slane %v1350, 1
      %v1359 = vrot.slane %v1351, 1
      %v1360 = vrot.slane %v1352, 1
      %v1365 = vadd.f32 %v1253, %v1357
      %v1366 = vadd.f32 %v1254, %v1358
      %v1367 = vadd.f32 %v1255, %v1359
      %v1368 = vadd.f32 %v1256, %v1360
      %v1369 = vlaneseq
      %v1370 = vshrl.u32 %v1369, 7
      %v1371 = vsub.s32 3, %v1370
      %v1372 = vrot.slane %v386, %v1371
      %v1373 = vmul.f32 %v371, %v1372
      %v1374 = vmul.f32 %v373, %v1372
      %v1375 = vmul.f32 %v375, %v1372
      %v1376 = vmul.f32 %v377, %v1372
      %v1381 = vrot.slane %v1373, 1
      %v1382 = vrot.slane %v1374, 1
      %v1383 = vrot.slane %v1375, 1
      %v1384 = vrot.slane %v1376, 1
      %v1389 = vadd.f32 %v1293, %v1381
      %v1390 = vadd.f32 %v1294, %v1382
      %v1391 = vadd.f32 %v1295, %v1383
      %v1392 = vadd.f32 %v1296, %v1384
      %v1393 = vlaneseq
      %v1394 = vshrl.u32 %v1393, 7
      %v1395 = vsub.s32 4, %v1394
      %v1396 = vrot.slane %v386, %v1395
      %v1397 = vmul.f32 %v371, %v1396
      %v1398 = vmul.f32 %v373, %v1396
      %v1399 = vmul.f32 %v375, %v1396
      %v1400 = vmul.f32 %v377, %v1396
      %v1405 = vrot.slane %v1397, 1
      %v1406 = vrot.slane %v1398, 1
      %v1407 = vrot.slane %v1399, 1
      %v1408 = vrot.slane %v1400, 1
      %v1413 = vadd.f32 %v1317, %v1405
      %v1414 = vadd.f32 %v1318, %v1406
      %v1415 = vadd.f32 %v1319, %v1407
      %v1416 = vadd.f32 %v1320, %v1408
      %v1417 = vlaneseq
      %v1418 = vshrl.u32 %v1417, 7
      %v1419 = vsub.s32 5, %v1418
      %v1420 = vrot.slane %v386, %v1419
      %v1421 = vmul.f32 %v371, %v1420
      %v1422 = vmul.f32 %v372, %v1420
      %v1423 = vmul.f32 %v373, %v1420
      %v1424 = vmul.f32 %v374, %v1420
      %v1425 = vmul.f32 %v375, %v1420
      %v1426 = vmul.f32 %v376, %v1420
      %v1427 = vmul.f32 %v377, %v1420
      %v1428 = vmul.f32 %v378, %v1420
      %v1437 = vrot.slane %v1421, 5
      %v1438 = vrot.slane %v1422, 5
      %v1439 = vsel %vm681, %v1437, %v1438
      %v1440 = vrot.slane %v1423, 5
      %v1441 = vrot.slane %v1424, 5
      %v1442 = vsel %vm681, %v1440, %v1441
      %v1443 = vrot.slane %v1425, 5
      %v1444 = vrot.slane %v1426, 5
      %v1445 = vsel %vm681, %v1443, %v1444
      %v1446 = vrot.slane %v1427, 5
      %v1447 = vrot.slane %v1428, 5
      %v1448 = vsel %vm681, %v1446, %v1447
      %v1453 = vadd.f32 %v1341, %v1439
      %v1454 = vadd.f32 %v1342, %v1442
      %v1455 = vadd.f32 %v1343, %v1445
      %v1456 = vadd.f32 %v1344, %v1448
      %v1457 = vlaneseq
      %v1458 = vshrl.u32 %v1457, 7
      %v1459 = vsub.s32 6, %v1458
      %v1460 = vrot.slane %v386, %v1459
      %v1461 = vmul.f32 %v371, %v1460
      %v1462 = vmul.f32 %v372, %v1460
      %v1463 = vmul.f32 %v373, %v1460
      %v1464 = vmul.f32 %v374, %v1460
      %v1465 = vmul.f32 %v375, %v1460
      %v1466 = vmul.f32 %v376, %v1460
      %v1467 = vmul.f32 %v377, %v1460
      %v1468 = vmul.f32 %v378, %v1460
      %v1477 = vrot.slane %v1461, 5
      %v1478 = vrot.slane %v1462, 5
      %v1479 = vsel %vm681, %v1477, %v1478
      %v1480 = vrot.slane %v1463, 5
      %v1481 = vrot.slane %v1464, 5
      %v1482 = vsel %vm681, %v1480, %v1481
      %v1483 = vrot.slane %v1465, 5
      %v1484 = vrot.slane %v1466, 5
      %v1485 = vsel %vm681, %v1483, %v1484
      %v1486 = vrot.slane %v1467, 5
      %v1487 = vrot.slane %v1468, 5
      %v1488 = vsel %vm681, %v1486, %v1487
      %v1493 = vadd.f32 %v1365, %v1479
      %v1494 = vadd.f32 %v1366, %v1482
      %v1495 = vadd.f32 %v1367, %v1485
      %v1496 = vadd.f32 %v1368, %v1488
      %v1497 = vlaneseq
      %v1498 = vshrl.u32 %v1497, 7
      %v1499 = vsub.s32 0, %v1498
      %v1500 = vrot.slane %v387, %v1499
      %v1501 = vmul.f32 %v373, %v1500
      %v1502 = vmul.f32 %v375, %v1500
      %v1503 = vmul.f32 %v377, %v1500
      %v1504 = vmul.f32 %v379, %v1500
      %v1509 = vrot.slane %v1501, 6
      %v1510 = vrot.slane %v1502, 6
      %v1511 = vrot.slane %v1503, 6
      %v1512 = vrot.slane %v1504, 6
      %v1517 = vadd.f32 %v1389, %v1509
      %v1518 = vadd.f32 %v1390, %v1510
      %v1519 = vadd.f32 %v1391, %v1511
      %v1520 = vadd.f32 %v1392, %v1512
      %v1521 = vlaneseq
      %v1522 = vshrl.u32 %v1521, 7
      %v1523 = vsub.s32 1, %v1522
      %v1524 = vrot.slane %v387, %v1523
      %v1525 = vmul.f32 %v373, %v1524
      %v1526 = vmul.f32 %v375, %v1524
      %v1527 = vmul.f32 %v377, %v1524
      %v1528 = vmul.f32 %v379, %v1524
      %v1533 = vrot.slane %v1525, 6
      %v1534 = vrot.slane %v1526, 6
      %v1535 = vrot.slane %v1527, 6
      %v1536 = vrot.slane %v1528, 6
      %v1541 = vadd.f32 %v1413, %v1533
      %v1542 = vadd.f32 %v1414, %v1534
      %v1543 = vadd.f32 %v1415, %v1535
      %v1544 = vadd.f32 %v1416, %v1536
      %v1545 = vlaneseq
      %v1546 = vshrl.u32 %v1545, 7
      %v1547 = vsub.s32 2, %v1546
      %v1548 = vrot.slane %v387, %v1547
      %v1549 = vmul.f32 %v373, %v1548
      %v1550 = vmul.f32 %v375, %v1548
      %v1551 = vmul.f32 %v377, %v1548
      %v1552 = vmul.f32 %v379, %v1548
      %v1557 = vrot.slane %v1549, 2
      %v1558 = vrot.slane %v1550, 2
      %v1559 = vrot.slane %v1551, 2
      %v1560 = vrot.slane %v1552, 2
      %v1565 = vadd.f32 %v1453, %v1557
      %v1566 = vadd.f32 %v1454, %v1558
      %v1567 = vadd.f32 %v1455, %v1559
      %v1568 = vadd.f32 %v1456, %v1560
      %v1569 = vlaneseq
      %v1570 = vshrl.u32 %v1569, 7
      %v1571 = vsub.s32 3, %v1570
      %v1572 = vrot.slane %v387, %v1571
      %v1573 = vmul.f32 %v373, %v1572
      %v1574 = vmul.f32 %v375, %v1572
      %v1575 = vmul.f32 %v377, %v1572
      %v1576 = vmul.f32 %v379, %v1572
      %v1581 = vrot.slane %v1573, 2
      %v1582 = vrot.slane %v1574, 2
      %v1583 = vrot.slane %v1575, 2
      %v1584 = vrot.slane %v1576, 2
      %v1589 = vadd.f32 %v1493, %v1581
      %v1590 = vadd.f32 %v1494, %v1582
      %v1591 = vadd.f32 %v1495, %v1583
      %v1592 = vadd.f32 %v1496, %v1584
      %v1593 = vlaneseq
      %v1594 = vshrl.u32 %v1593, 7
      %v1595 = vsub.s32 4, %v1594
      %v1596 = vrot.slane %v387, %v1595
      %v1597 = vmul.f32 %v373, %v1596
      %v1598 = vmul.f32 %v375, %v1596
      %v1599 = vmul.f32 %v377, %v1596
      %v1600 = vmul.f32 %v379, %v1596
      %v1605 = vrot.slane %v1597, 2
      %v1606 = vrot.slane %v1598, 2
      %v1607 = vrot.slane %v1599, 2
      %v1608 = vrot.slane %v1600, 2
      %v1613 = vadd.f32 %v1517, %v1605
      %v1614 = vadd.f32 %v1518, %v1606
      %v1615 = vadd.f32 %v1519, %v1607
      %v1616 = vadd.f32 %v1520, %v1608
      %v1617 = vlaneseq
      %v1618 = vshrl.u32 %v1617, 7
      %v1619 = vsub.s32 5, %v1618
      %v1620 = vrot.slane %v387, %v1619
      %v1621 = vmul.f32 %v373, %v1620
      %v1622 = vmul.f32 %v374, %v1620
      %v1623 = vmul.f32 %v375, %v1620
      %v1624 = vmul.f32 %v376, %v1620
      %v1625 = vmul.f32 %v377, %v1620
      %v1626 = vmul.f32 %v378, %v1620
      %v1627 = vmul.f32 %v379, %v1620
      %v1628 = vmul.f32 %v380, %v1620
      %v1637 = vrot.slane %v1621, 2
      %v1638 = vrot.slane %v1622, 2
      %v1639 = vsel %vm882, %v1637, %v1638
      %v1640 = vrot.slane %v1623, 2
      %v1641 = vrot.slane %v1624, 2
      %v1642 = vsel %vm882, %v1640, %v1641
      %v1643 = vrot.slane %v1625, 2
      %v1644 = vrot.slane %v1626, 2
      %v1645 = vsel %vm882, %v1643, %v1644
      %v1646 = vrot.slane %v1627, 2
      %v1647 = vrot.slane %v1628, 2
      %v1648 = vsel %vm882, %v1646, %v1647
      %v1653 = vadd.f32 %v1541, %v1639
      %v1654 = vadd.f32 %v1542, %v1642
      %v1655 = vadd.f32 %v1543, %v1645
      %v1656 = vadd.f32 %v1544, %v1648
      %v1657 = vlaneseq
      %v1658 = vshrl.u32 %v1657, 7
      %v1659 = vsub.s32 6, %v1658
      %v1660 = vrot.slane %v387, %v1659
      %v1661 = vmul.f32 %v373, %v1660
      %v1662 = vmul.f32 %v374, %v1660
      %v1663 = vmul.f32 %v375, %v1660
      %v1664 = vmul.f32 %v376, %v1660
      %v1665 = vmul.f32 %v377, %v1660
      %v1666 = vmul.f32 %v378, %v1660
      %v1667 = vmul.f32 %v379, %v1660
      %v1668 = vmul.f32 %v380, %v1660
      %v1677 = vrot.slane %v1661, 6
      %v1678 = vrot.slane %v1662, 6
      %v1679 = vsel %vm923, %v1677, %v1678
      %v1680 = vrot.slane %v1663, 6
      %v1681 = vrot.slane %v1664, 6
      %v1682 = vsel %vm923, %v1680, %v1681
      %v1683 = vrot.slane %v1665, 6
      %v1684 = vrot.slane %v1666, 6
      %v1685 = vsel %vm923, %v1683, %v1684
      %v1686 = vrot.slane %v1667, 6
      %v1687 = vrot.slane %v1668, 6
      %v1688 = vsel %vm923, %v1686, %v1687
      %v1693 = vadd.f32 %v1565, %v1679
      %v1694 = vadd.f32 %v1566, %v1682
      %v1695 = vadd.f32 %v1567, %v1685
      %v1696 = vadd.f32 %v1568, %v1688
      %v1701 = vrot.slane %v1589, 1
      %v1702 = vrot.slane %v1590, 1
      %v1703 = vrot.slane %v1591, 1
      %v1704 = vrot.slane %v1592, 1
      %v1709 = vadd.f32 %v1693, %v1701
      %v1710 = vadd.f32 %v1694, %v1702
      %v1711 = vadd.f32 %v1695, %v1703
      %v1712 = vadd.f32 %v1696, %v1704
      %v1717 = vrot.slane %v1653, 1
      %v1718 = vrot.slane %v1654, 1
      %v1719 = vrot.slane %v1655, 1
      %v1720 = vrot.slane %v1656, 1
      %v1725 = vadd.f32 %v1613, %v1717
      %v1726 = vadd.f32 %v1614, %v1718
      %v1727 = vadd.f32 %v1615, %v1719
      %v1728 = vadd.f32 %v1616, %v1720
      %v1733 = vrot.slane %v1725, 2
      %v1734 = vrot.slane %v1726, 2
      %v1735 = vrot.slane %v1727, 2
      %v1736 = vrot.slane %v1728, 2
      %v1741 = vadd.f32 %v1709, %v1733
      %v1742 = vadd.f32 %v1710, %v1734
      %v1743 = vadd.f32 %v1711, %v1735
      %v1744 = vadd.f32 %v1712, %v1736
      %v1745 = vld [vmem:[%s2] sm:$0x1]
      %v1747 = vlaneseq
      %v1748 = vshrl.u32 %v1747, 7
      %v1749 = vsub.s32 0, %v1748
      %v1750 = vrot.slane %v1745, %v1749
      %v1752 = vcombine.high %v1750, %v1750
      %v1754 = vadd.f32 %v1741, %v1750
      %v1755 = vadd.f32 %v1742, %v1752
      %v1756 = vadd.f32 %v1743, %v1750
      %v1757 = vadd.f32 %v1744, %v1752
      %v1758 = vld [vmem:[%s3] sm:$0x1]
      %v1759 = vld [vmem:[%s4] sm:$0x1]
      %v1764 = vcombine.low %v1754, %v1755
      %v1765 = vcombine.low %v1756, %v1757
      %1768 = vadd.xlane.f32.xlu0 %v1764
      %v1769 = vpop.xlane.xlu0 %1768
      %1770 = vadd.xlane.f32.xlu0 %v1765
      %v1771 = vpop.xlane.xlu0 %1770
      %v1772 = vrcp.pop 128.0
      %v1773 = vmul.f32 %v1769, %v1772
      %v1774 = vmul.f32 %v1771, %v1772
      %v1778 = vunpack.c.l.s4 839922192
      %v1779 = vunpack.c.0.s8 %v1778
      %v1780 = vlaneseq
      %v1781 = vshrl.u32 %v1780, 7
      %v1782 = vsub.s32 %v1779, %v1781
      %v1783 = vrot.slane %v1773, %v1782
      %v1785 = vunpack.c.l.s4 1985246804
      %v1786 = vunpack.c.0.s8 %v1785
      %v1787 = vlaneseq
      %v1788 = vshrl.u32 %v1787, 7
      %v1789 = vsub.s32 %v1786, %v1788
      %v1790 = vrot.slane %v1773, %v1789
      %v1792 = vunpack.c.l.s4 839922192
      %v1793 = vunpack.c.0.s8 %v1792
      %v1794 = vlaneseq
      %v1795 = vshrl.u32 %v1794, 7
      %v1796 = vsub.s32 %v1793, %v1795
      %v1797 = vrot.slane %v1774, %v1796
      %v1799 = vunpack.c.l.s4 1985246804
      %v1800 = vunpack.c.0.s8 %v1799
      %v1801 = vlaneseq
      %v1802 = vshrl.u32 %v1801, 7
      %v1803 = vsub.s32 %v1800, %v1802
      %v1804 = vrot.slane %v1774, %v1803
      %v1809 = vsub.f32 %v1754, %v1783
      %v1810 = vsub.f32 %v1755, %v1790
      %v1811 = vsub.f32 %v1756, %v1797
      %v1812 = vsub.f32 %v1757, %v1804
      %v1813 = vmul.f32 %v1809, %v1809
      %v1814 = vmul.f32 %v1810, %v1810
      %v1815 = vmul.f32 %v1811, %v1811
      %v1816 = vmul.f32 %v1812, %v1812
      %v1821 = vcombine.low %v1813, %v1814
      %v1822 = vcombine.low %v1815, %v1816
      %1825 = vadd.xlane.f32.xlu0 %v1821
      %v1826 = vpop.xlane.xlu0 %1825
      %1827 = vadd.xlane.f32.xlu0 %v1822
      %v1828 = vpop.xlane.xlu0 %1827
      %v1829 = vmul.f32 %v1826, %v1772
      %v1830 = vmul.f32 %v1828, %v1772
      %v1831 = vadd.f32 %v1829, 1e-06
      %v1832 = vadd.f32 %v1830, 1e-06
      %v1833 = vrsqrt.pop %v1831
      %v1834 = vrsqrt.pop %v1832
      %v1838 = vunpack.c.l.s4 839922192
      %v1839 = vunpack.c.0.s8 %v1838
      %v1840 = vlaneseq
      %v1841 = vshrl.u32 %v1840, 7
      %v1842 = vsub.s32 %v1839, %v1841
      %v1843 = vrot.slane %v1833, %v1842
      %v1845 = vunpack.c.l.s4 1985246804
      %v1846 = vunpack.c.0.s8 %v1845
      %v1847 = vlaneseq
      %v1848 = vshrl.u32 %v1847, 7
      %v1849 = vsub.s32 %v1846, %v1848
      %v1850 = vrot.slane %v1833, %v1849
      %v1852 = vunpack.c.l.s4 839922192
      %v1853 = vunpack.c.0.s8 %v1852
      %v1854 = vlaneseq
      %v1855 = vshrl.u32 %v1854, 7
      %v1856 = vsub.s32 %v1853, %v1855
      %v1857 = vrot.slane %v1834, %v1856
      %v1859 = vunpack.c.l.s4 1985246804
      %v1860 = vunpack.c.0.s8 %v1859
      %v1861 = vlaneseq
      %v1862 = vshrl.u32 %v1861, 7
      %v1863 = vsub.s32 %v1860, %v1862
      %v1864 = vrot.slane %v1834, %v1863
      %v1869 = vmul.f32 %v1809, %v1843
      %v1870 = vmul.f32 %v1810, %v1850
      %v1871 = vmul.f32 %v1811, %v1857
      %v1872 = vmul.f32 %v1812, %v1864
      %v1874 = vlaneseq
      %v1875 = vshrl.u32 %v1874, 7
      %v1876 = vsub.s32 0, %v1875
      %v1877 = vrot.slane %v1758, %v1876
      %v1879 = vcombine.high %v1877, %v1877
      %v1881 = vmul.f32 %v1869, %v1877
      %v1882 = vmul.f32 %v1870, %v1879
      %v1883 = vmul.f32 %v1871, %v1877
      %v1884 = vmul.f32 %v1872, %v1879
      %v1886 = vlaneseq
      %v1887 = vshrl.u32 %v1886, 7
      %v1888 = vsub.s32 0, %v1887
      %v1889 = vrot.slane %v1759, %v1888
      %v1891 = vcombine.high %v1889, %v1889
      %v1893 = vadd.f32 %v1881, %v1889
      %v1894 = vadd.f32 %v1882, %v1891
      %v1895 = vadd.f32 %v1883, %v1889
      %v1896 = vadd.f32 %v1884, %v1891
      %v1901 = vcombine.low %v1893, %v1894
      %v1902 = vcombine.low %v1895, %v1896
      %v1905 = vpack.c.bf16 %v1902, %v1901
      %v1906 = vld [vmem:[%s5] sm:$0xff]
      %v1907 = vld [vmem:[%s5 + $0x8] sm:$0xff]
      %v1908 = vld [vmem:[%s5 + $0x10] sm:$0xff]
      %v1909 = vld [vmem:[%s5 + $0x18] sm:$0xff]
      %v1910 = vld [vmem:[%s5 + $0x20] sm:$0xff]
      %v1911 = vld [vmem:[%s5 + $0x28] sm:$0xff]
      %v1912 = vld [vmem:[%s5 + $0x30] sm:$0xff]
      %v1913 = vld [vmem:[%s5 + $0x38] sm:$0xff]
      %v1914 = vld [vmem:[%s5 + $0x40] sm:$0xff]
      %v1915 = vld [vmem:[%s5 + $0x48] sm:$0xff]
      %v1916 = vld [vmem:[%s5 + $0x50] sm:$0xff]
      %v1917 = vld [vmem:[%s5 + $0x58] sm:$0xff]
      %v1918 = vld [vmem:[%s5 + $0x60] sm:$0xff]
      %v1919 = vld [vmem:[%s5 + $0x68] sm:$0xff]
      %v1920 = vld [vmem:[%s5 + $0x70] sm:$0xff]
      %v1921 = vld [vmem:[%s5 + $0x78] sm:$0xff]
      %v1922 = vld [vmem:[%s5 + $0x80] sm:$0xff]
      %v1923 = vld [vmem:[%s5 + $0x88] sm:$0xff]
      %v1924 = vld [vmem:[%s5 + $0x90] sm:$0xff]
      %v1925 = vld [vmem:[%s5 + $0x98] sm:$0xff]
      %v1926 = vld [vmem:[%s5 + $0xa0] sm:$0xff]
      %v1927 = vld [vmem:[%s5 + $0xa8] sm:$0xff]
      %v1928 = vld [vmem:[%s5 + $0xb0] sm:$0xff]
      %v1929 = vld [vmem:[%s5 + $0xb8] sm:$0xff]
      %v1930 = vld [vmem:[%s5 + $0xc0] sm:$0xff]
      %v1931 = vld [vmem:[%s5 + $0xc8] sm:$0xff]
      %v1932 = vld [vmem:[%s5 + $0xd0] sm:$0xff]
      %v1933 = vld [vmem:[%s5 + $0xd8] sm:$0xff]
      %v1934 = vld [vmem:[%s5 + $0xe0] sm:$0xff]
      %v1935 = vld [vmem:[%s5 + $0xe8] sm:$0xff]
      %v1936 = vld [vmem:[%s5 + $0xf0] sm:$0xff]
      %v1937 = vld [vmem:[%s5 + $0xf8] sm:$0xff]
      %v1938 = vld [vmem:[%s6] sm:$0xf]
      %v1940 = vlaneseq
      %v1941 = vshrl.u32 %v1940, 7
      %v1942 = vsub.s32 0, %v1941
      %v1943 = vrot.slane %v1938, %v1942
      %v1944 = vlaneseq
      %v1945 = vshrl.u32 %v1944, 7
      %v1946 = vsub.s32 1, %v1945
      %v1947 = vrot.slane %v1938, %v1946
      %v1948 = vlaneseq
      %v1949 = vshrl.u32 %v1948, 7
      %v1950 = vsub.s32 2, %v1949
      %v1951 = vrot.slane %v1938, %v1950
      %v1952 = vlaneseq
      %v1953 = vshrl.u32 %v1952, 7
      %v1954 = vsub.s32 3, %v1953
      %v1955 = vrot.slane %v1938, %v1954
      %v1992 = vunpack.c.l.b16 %v1906
      %v1993 = vunpack.c.h.b16 %v1906
      %v1994 = vunpack.c.l.b16 %v1907
      %v1995 = vunpack.c.h.b16 %v1907
      %v1996 = vunpack.c.l.b16 %v1908
      %v1997 = vunpack.c.h.b16 %v1908
      %v1998 = vunpack.c.l.b16 %v1909
      %v1999 = vunpack.c.h.b16 %v1909
      %v2000 = vunpack.c.l.b16 %v1910
      %v2001 = vunpack.c.h.b16 %v1910
      %v2002 = vunpack.c.l.b16 %v1911
      %v2003 = vunpack.c.h.b16 %v1911
      %v2004 = vunpack.c.l.b16 %v1912
      %v2005 = vunpack.c.h.b16 %v1912
      %v2006 = vunpack.c.l.b16 %v1913
      %v2007 = vunpack.c.h.b16 %v1913
      %v2008 = vunpack.c.l.b16 %v1914
      %v2009 = vunpack.c.h.b16 %v1914
      %v2010 = vunpack.c.l.b16 %v1915
      %v2011 = vunpack.c.h.b16 %v1915
      %v2012 = vunpack.c.l.b16 %v1916
      %v2013 = vunpack.c.h.b16 %v1916
      %v2014 = vunpack.c.l.b16 %v1917
      %v2015 = vunpack.c.h.b16 %v1917
      %v2016 = vunpack.c.l.b16 %v1918
      %v2017 = vunpack.c.h.b16 %v1918
      %v2018 = vunpack.c.l.b16 %v1919
      %v2019 = vunpack.c.h.b16 %v1919
      %v2020 = vunpack.c.l.b16 %v1920
      %v2021 = vunpack.c.h.b16 %v1920
      %v2022 = vunpack.c.l.b16 %v1921
      %v2023 = vunpack.c.h.b16 %v1921
      %v2024 = vunpack.c.l.b16 %v1922
      %v2025 = vunpack.c.h.b16 %v1922
      %v2026 = vunpack.c.l.b16 %v1923
      %v2027 = vunpack.c.h.b16 %v1923
      %v2028 = vunpack.c.l.b16 %v1924
      %v2029 = vunpack.c.h.b16 %v1924
      %v2030 = vunpack.c.l.b16 %v1925
      %v2031 = vunpack.c.h.b16 %v1925
      %v2032 = vunpack.c.l.b16 %v1926
      %v2033 = vunpack.c.h.b16 %v1926
      %v2034 = vunpack.c.l.b16 %v1927
      %v2035 = vunpack.c.h.b16 %v1927
      %v2036 = vunpack.c.l.b16 %v1928
      %v2037 = vunpack.c.h.b16 %v1928
      %v2038 = vunpack.c.l.b16 %v1929
      %v2039 = vunpack.c.h.b16 %v1929
      %v2040 = vunpack.c.l.b16 %v1930
      %v2041 = vunpack.c.h.b16 %v1930
      %v2042 = vunpack.c.l.b16 %v1931
      %v2043 = vunpack.c.h.b16 %v1931
      %v2044 = vunpack.c.l.b16 %v1932
      %v2045 = vunpack.c.h.b16 %v1932
      %v2046 = vunpack.c.l.b16 %v1933
      %v2047 = vunpack.c.h.b16 %v1933
      %v2048 = vunpack.c.l.b16 %v1934
      %v2049 = vunpack.c.h.b16 %v1934
      %v2050 = vunpack.c.l.b16 %v1935
      %v2051 = vunpack.c.h.b16 %v1935
      %v2052 = vunpack.c.l.b16 %v1936
      %v2053 = vunpack.c.h.b16 %v1936
      %v2054 = vunpack.c.l.b16 %v1937
      %v2055 = vunpack.c.h.b16 %v1937
      %v2056 = vpack.c.b16 %v1996, %v1992
      %v2057 = vpack.c.b16 %v1997, %v1993
      %v2058 = vpack.c.b16 %v1998, %v1994
      %v2059 = vpack.c.b16 %v1999, %v1995
      %v2060 = vpack.c.b16 %v2004, %v2000
      %v2061 = vpack.c.b16 %v2005, %v2001
      %v2062 = vpack.c.b16 %v2006, %v2002
      %v2063 = vpack.c.b16 %v2007, %v2003
      %v2064 = vpack.c.b16 %v2012, %v2008
      %v2065 = vpack.c.b16 %v2013, %v2009
      %v2066 = vpack.c.b16 %v2014, %v2010
      %v2067 = vpack.c.b16 %v2015, %v2011
      %v2068 = vpack.c.b16 %v2020, %v2016
      %v2069 = vpack.c.b16 %v2021, %v2017
      %v2070 = vpack.c.b16 %v2022, %v2018
      %v2071 = vpack.c.b16 %v2023, %v2019
      %v2072 = vpack.c.b16 %v2028, %v2024
      %v2073 = vpack.c.b16 %v2029, %v2025
      %v2074 = vpack.c.b16 %v2030, %v2026
      %v2075 = vpack.c.b16 %v2031, %v2027
      %v2076 = vpack.c.b16 %v2036, %v2032
      %v2077 = vpack.c.b16 %v2037, %v2033
      %v2078 = vpack.c.b16 %v2038, %v2034
      %v2079 = vpack.c.b16 %v2039, %v2035
      %v2080 = vpack.c.b16 %v2044, %v2040
      %v2081 = vpack.c.b16 %v2045, %v2041
      %v2082 = vpack.c.b16 %v2046, %v2042
      %v2083 = vpack.c.b16 %v2047, %v2043
      %v2084 = vpack.c.b16 %v2052, %v2048
      %v2085 = vpack.c.b16 %v2053, %v2049
      %v2086 = vpack.c.b16 %v2054, %v2050
      %v2087 = vpack.c.b16 %v2055, %v2051
      %2120 = vmatprep.subr.bf16.mxu0 %v2057
      %2121 = vmatpush1.bf16.msra.mxu0 %v2056
      %2122 = vmatprep.subr.bf16.mxu0 %v2061
      %2123 = vmatpush1.bf16.msra.mxu0 %v2060
      %2124 = vmatprep.subr.bf16.mxu0 %v2065
      %2125 = vmatpush1.bf16.msra.mxu0 %v2064
      %2126 = vmatprep.subr.bf16.mxu0 %v2069
      %2127 = vmatpush1.bf16.msra.mxu0 %v2068
      %2128 = vmatprep.subr.bf16.mxu0 %v2073
      %2129 = vmatpush1.bf16.msra.mxu0 %v2072
      %2130 = vmatprep.subr.bf16.mxu0 %v2077
      %2131 = vmatpush1.bf16.msra.mxu0 %v2076
      %2132 = vmatprep.subr.bf16.mxu0 %v2081
      %2133 = vmatpush1.bf16.msra.mxu0 %v2080
      %2134 = vmatprep.subr.bf16.mxu0 %v2085
      %2135 = vmatpush1.bf16.msra.mxu0 %v2084
      %2136 = vmatprep.subr.bf16.mxu0 0
      %2137 = vmatpush1.bf16.msra.mxu0 0
      %2138 = vmatprep.subr.bf16.mxu0 0
      %2139 = vmatpush1.bf16.msra.mxu0 0
      %2140 = vmatprep.subr.bf16.mxu0 0
      %2141 = vmatpush1.bf16.msra.mxu0 0
      %2142 = vmatprep.subr.bf16.mxu0 0
      %2143 = vmatpush1.bf16.msra.mxu0 0
      %2144 = vmatprep.subr.bf16.mxu0 0
      %2145 = vmatpush1.bf16.msra.mxu0 0
      %2146 = vmatprep.subr.bf16.mxu0 0
      %2147 = vmatpush1.bf16.msra.mxu0 0
      %2148 = vmatprep.subr.bf16.mxu0 0
      %2149 = vmatpush1.bf16.msra.mxu0 0
      %2150 = vmatprep.subr.bf16.mxu0 0
      %2151 = vmatpush1.bf16.msra.mxu0 0
      %2152 = vmatprep.mubr.bf16.mxu0 0
      %2153 = vmatmul.mubr.bf16.gmra.mrb[0].mxu0 %v1905
      %v2154 = vpop.f32.mrb[0].mxu0
      %v2155 = vadd.f32 %v1943, %v2154
      %v2156 = vpop.f32.mrb[0].mxu0
      %v2157 = vadd.f32 %v1947, %v2156
      %v2158 = vpop.f32.mrb[0].mxu0
      %v2159 = vadd.f32 %v1943, %v2158
      %v2160 = vpop.f32.mrb[0].mxu0
      %v2161 = vadd.f32 %v1947, %v2160
      %2162 = vdwg.mxu0
      %2163 = vmatprep.subr.bf16.mxu0 %v2059
      %2164 = vmatpush1.bf16.msra.mxu0 %v2058
      %2165 = vmatprep.subr.bf16.mxu0 %v2063
      %2166 = vmatpush1.bf16.msra.mxu0 %v2062
      %2167 = vmatprep.subr.bf16.mxu0 %v2067
      %2168 = vmatpush1.bf16.msra.mxu0 %v2066
      %2169 = vmatprep.subr.bf16.mxu0 %v2071
      %2170 = vmatpush1.bf16.msra.mxu0 %v2070
      %2171 = vmatprep.subr.bf16.mxu0 %v2075
      %2172 = vmatpush1.bf16.msra.mxu0 %v2074
      %2173 = vmatprep.subr.bf16.mxu0 %v2079
      %2174 = vmatpush1.bf16.msra.mxu0 %v2078
      %2175 = vmatprep.subr.bf16.mxu0 %v2083
      %2176 = vmatpush1.bf16.msra.mxu0 %v2082
      %2177 = vmatprep.subr.bf16.mxu0 %v2087
      %2178 = vmatpush1.bf16.msra.mxu0 %v2086
      %2179 = vmatprep.subr.bf16.mxu0 0
      %2180 = vmatpush1.bf16.msra.mxu0 0
      %2181 = vmatprep.subr.bf16.mxu0 0
      %2182 = vmatpush1.bf16.msra.mxu0 0
      %2183 = vmatprep.subr.bf16.mxu0 0
      %2184 = vmatpush1.bf16.msra.mxu0 0
      %2185 = vmatprep.subr.bf16.mxu0 0
      %2186 = vmatpush1.bf16.msra.mxu0 0
      %2187 = vmatprep.subr.bf16.mxu0 0
      %2188 = vmatpush1.bf16.msra.mxu0 0
      %2189 = vmatprep.subr.bf16.mxu0 0
      %2190 = vmatpush1.bf16.msra.mxu0 0
      %2191 = vmatprep.subr.bf16.mxu0 0
      %2192 = vmatpush1.bf16.msra.mxu0 0
      %2193 = vmatprep.subr.bf16.mxu0 0
      %2194 = vmatpush1.bf16.msra.mxu0 0
      %2195 = vmatprep.mubr.bf16.mxu0 0
      %2196 = vmatmul.mubr.bf16.gmra.mrb[0].mxu0 %v1905
      %v2197 = vpop.f32.mrb[0].mxu0
      %v2198 = vadd.f32 %v1951, %v2197
      %v2199 = vpop.f32.mrb[0].mxu0
      %v2200 = vadd.f32 %v1955, %v2199
      %v2201 = vpop.f32.mrb[0].mxu0
      %v2202 = vadd.f32 %v1951, %v2201
      %v2203 = vpop.f32.mrb[0].mxu0
      %v2204 = vadd.f32 %v1955, %v2203
      %2205 = vdwg.mxu0
      %v2206 = vmul.f32 %v2155, %v2155
      %v2207 = vmul.f32 %v2157, %v2157
      %v2208 = vmul.f32 %v2198, %v2198
      %v2209 = vmul.f32 %v2200, %v2200
      %v2210 = vmul.f32 %v2159, %v2159
      %v2211 = vmul.f32 %v2161, %v2161
      %v2212 = vmul.f32 %v2202, %v2202
      %v2213 = vmul.f32 %v2204, %v2204
      %v2214 = vmul.f32 %v2155, %v2206
      %v2215 = vmul.f32 %v2157, %v2207
      %v2216 = vmul.f32 %v2198, %v2208
      %v2217 = vmul.f32 %v2200, %v2209
      %v2218 = vmul.f32 %v2159, %v2210
      %v2219 = vmul.f32 %v2161, %v2211
      %v2220 = vmul.f32 %v2202, %v2212
      %v2221 = vmul.f32 %v2204, %v2213
      %v2222 = vmul.f32 %v2214, 0.044715
      %v2223 = vmul.f32 %v2215, 0.044715
      %v2224 = vmul.f32 %v2216, 0.044715
      %v2225 = vmul.f32 %v2217, 0.044715
      %v2226 = vmul.f32 %v2218, 0.044715
      %v2227 = vmul.f32 %v2219, 0.044715
      %v2228 = vmul.f32 %v2220, 0.044715
      %v2229 = vmul.f32 %v2221, 0.044715
      %v2230 = vadd.f32 %v2155, %v2222
      %v2231 = vadd.f32 %v2157, %v2223
      %v2232 = vadd.f32 %v2198, %v2224
      %v2233 = vadd.f32 %v2200, %v2225
      %v2234 = vadd.f32 %v2159, %v2226
      %v2235 = vadd.f32 %v2161, %v2227
      %v2236 = vadd.f32 %v2202, %v2228
      %v2237 = vadd.f32 %v2204, %v2229
      %v2238 = vmul.f32 %v2230, 0.7978846
      %v2239 = vmul.f32 %v2231, 0.7978846
      %v2240 = vmul.f32 %v2232, 0.7978846
      %v2241 = vmul.f32 %v2233, 0.7978846
      %v2242 = vmul.f32 %v2234, 0.7978846
      %v2243 = vmul.f32 %v2235, 0.7978846
      %v2244 = vmul.f32 %v2236, 0.7978846
      %v2245 = vmul.f32 %v2237, 0.7978846
      %v2246 = vtanh.pop %v2238
      %v2247 = vtanh.pop %v2239
      %v2248 = vtanh.pop %v2240
      %v2249 = vtanh.pop %v2241
      %v2250 = vtanh.pop %v2242
      %v2251 = vtanh.pop %v2243
      %v2252 = vtanh.pop %v2244
      %v2253 = vtanh.pop %v2245
      %v2254 = vadd.f32 %v2246, 1.0
      %v2255 = vadd.f32 %v2247, 1.0
      %v2256 = vadd.f32 %v2248, 1.0
      %v2257 = vadd.f32 %v2249, 1.0
      %v2258 = vadd.f32 %v2250, 1.0
      %v2259 = vadd.f32 %v2251, 1.0
      %v2260 = vadd.f32 %v2252, 1.0
      %v2261 = vadd.f32 %v2253, 1.0
      %v2262 = vmul.f32 %v2254, 0.5
      %v2263 = vmul.f32 %v2255, 0.5
      %v2264 = vmul.f32 %v2256, 0.5
      %v2265 = vmul.f32 %v2257, 0.5
      %v2266 = vmul.f32 %v2258, 0.5
      %v2267 = vmul.f32 %v2259, 0.5
      %v2268 = vmul.f32 %v2260, 0.5
      %v2269 = vmul.f32 %v2261, 0.5
      %v2270 = vmul.f32 %v2155, %v2262
      %v2271 = vmul.f32 %v2157, %v2263
      %v2272 = vmul.f32 %v2198, %v2264
      %v2273 = vmul.f32 %v2200, %v2265
      %v2274 = vmul.f32 %v2159, %v2266
      %v2275 = vmul.f32 %v2161, %v2267
      %v2276 = vmul.f32 %v2202, %v2268
      %v2277 = vmul.f32 %v2204, %v2269
      %v2278 = vpack.c.bf16 %v2274, %v2270
      %v2279 = vpack.c.bf16 %v2275, %v2271
      %v2280 = vpack.c.bf16 %v2276, %v2272
      %v2281 = vpack.c.bf16 %v2277, %v2273
      %v2282 = vld [vmem:[%s7] sm:$0xf]
      %v2283 = vld [vmem:[%s7 + $0x4] sm:$0xf]
      %v2284 = vld [vmem:[%s7 + $0x8] sm:$0xf]
      %v2285 = vld [vmem:[%s7 + $0xc] sm:$0xf]
      %v2286 = vld [vmem:[%s7 + $0x10] sm:$0xf]
      %v2287 = vld [vmem:[%s7 + $0x14] sm:$0xf]
      %v2288 = vld [vmem:[%s7 + $0x18] sm:$0xf]
      %v2289 = vld [vmem:[%s7 + $0x1c] sm:$0xf]
      %v2290 = vld [vmem:[%s7 + $0x20] sm:$0xf]
      %v2291 = vld [vmem:[%s7 + $0x24] sm:$0xf]
      %v2292 = vld [vmem:[%s7 + $0x28] sm:$0xf]
      %v2293 = vld [vmem:[%s7 + $0x2c] sm:$0xf]
      %v2294 = vld [vmem:[%s7 + $0x30] sm:$0xf]
      %v2295 = vld [vmem:[%s7 + $0x34] sm:$0xf]
      %v2296 = vld [vmem:[%s7 + $0x38] sm:$0xf]
      %v2297 = vld [vmem:[%s7 + $0x3c] sm:$0xf]
      %v2298 = vld [vmem:[%s7 + $0x40] sm:$0xf]
      %v2299 = vld [vmem:[%s7 + $0x44] sm:$0xf]
      %v2300 = vld [vmem:[%s7 + $0x48] sm:$0xf]
      %v2301 = vld [vmem:[%s7 + $0x4c] sm:$0xf]
      %v2302 = vld [vmem:[%s7 + $0x50] sm:$0xf]
      %v2303 = vld [vmem:[%s7 + $0x54] sm:$0xf]
      %v2304 = vld [vmem:[%s7 + $0x58] sm:$0xf]
      %v2305 = vld [vmem:[%s7 + $0x5c] sm:$0xf]
      %v2306 = vld [vmem:[%s7 + $0x60] sm:$0xf]
      %v2307 = vld [vmem:[%s7 + $0x64] sm:$0xf]
      %v2308 = vld [vmem:[%s7 + $0x68] sm:$0xf]
      %v2309 = vld [vmem:[%s7 + $0x6c] sm:$0xf]
      %v2310 = vld [vmem:[%s7 + $0x70] sm:$0xf]
      %v2311 = vld [vmem:[%s7 + $0x74] sm:$0xf]
      %v2312 = vld [vmem:[%s7 + $0x78] sm:$0xf]
      %v2313 = vld [vmem:[%s7 + $0x7c] sm:$0xf]
      %v2314 = vld [vmem:[%s7 + $0x80] sm:$0xf]
      %v2315 = vld [vmem:[%s7 + $0x84] sm:$0xf]
      %v2316 = vld [vmem:[%s7 + $0x88] sm:$0xf]
      %v2317 = vld [vmem:[%s7 + $0x8c] sm:$0xf]
      %v2318 = vld [vmem:[%s7 + $0x90] sm:$0xf]
      %v2319 = vld [vmem:[%s7 + $0x94] sm:$0xf]
      %v2320 = vld [vmem:[%s7 + $0x98] sm:$0xf]
      %v2321 = vld [vmem:[%s7 + $0x9c] sm:$0xf]
      %v2322 = vld [vmem:[%s7 + $0xa0] sm:$0xf]
      %v2323 = vld [vmem:[%s7 + $0xa4] sm:$0xf]
      %v2324 = vld [vmem:[%s7 + $0xa8] sm:$0xf]
      %v2325 = vld [vmem:[%s7 + $0xac] sm:$0xf]
      %v2326 = vld [vmem:[%s7 + $0xb0] sm:$0xf]
      %v2327 = vld [vmem:[%s7 + $0xb4] sm:$0xf]
      %v2328 = vld [vmem:[%s7 + $0xb8] sm:$0xf]
      %v2329 = vld [vmem:[%s7 + $0xbc] sm:$0xf]
      %v2330 = vld [vmem:[%s7 + $0xc0] sm:$0xf]
      %v2331 = vld [vmem:[%s7 + $0xc4] sm:$0xf]
      %v2332 = vld [vmem:[%s7 + $0xc8] sm:$0xf]
      %v2333 = vld [vmem:[%s7 + $0xcc] sm:$0xf]
      %v2334 = vld [vmem:[%s7 + $0xd0] sm:$0xf]
      %v2335 = vld [vmem:[%s7 + $0xd4] sm:$0xf]
      %v2336 = vld [vmem:[%s7 + $0xd8] sm:$0xf]
      %v2337 = vld [vmem:[%s7 + $0xdc] sm:$0xf]
      %v2338 = vld [vmem:[%s7 + $0xe0] sm:$0xf]
      %v2339 = vld [vmem:[%s7 + $0xe4] sm:$0xf]
      %v2340 = vld [vmem:[%s7 + $0xe8] sm:$0xf]
      %v2341 = vld [vmem:[%s7 + $0xec] sm:$0xf]
      %v2342 = vld [vmem:[%s7 + $0xf0] sm:$0xf]
      %v2343 = vld [vmem:[%s7 + $0xf4] sm:$0xf]
      %v2344 = vld [vmem:[%s7 + $0xf8] sm:$0xf]
      %v2345 = vld [vmem:[%s7 + $0xfc] sm:$0xf]
      %v2346 = vld [vmem:[%s8] sm:$0x1]
      %v2348 = vlaneseq
      %v2349 = vshrl.u32 %v2348, 7
      %v2350 = vsub.s32 0, %v2349
      %v2351 = vrot.slane %v2346, %v2350
      %v2417 = vunpack.c.l.b16 %v2282
      %v2418 = vunpack.c.l.b16 %v2283
      %v2419 = vunpack.c.l.b16 %v2284
      %v2420 = vunpack.c.l.b16 %v2285
      %v2421 = vunpack.c.l.b16 %v2286
      %v2422 = vunpack.c.l.b16 %v2287
      %v2423 = vunpack.c.l.b16 %v2288
      %v2424 = vunpack.c.l.b16 %v2289
      %v2425 = vunpack.c.l.b16 %v2290
      %v2426 = vunpack.c.l.b16 %v2291
      %v2427 = vunpack.c.l.b16 %v2292
      %v2428 = vunpack.c.l.b16 %v2293
      %v2429 = vunpack.c.l.b16 %v2294
      %v2430 = vunpack.c.l.b16 %v2295
      %v2431 = vunpack.c.l.b16 %v2296
      %v2432 = vunpack.c.l.b16 %v2297
      %v2433 = vunpack.c.l.b16 %v2298
      %v2434 = vunpack.c.l.b16 %v2299
      %v2435 = vunpack.c.l.b16 %v2300
      %v2436 = vunpack.c.l.b16 %v2301
      %v2437 = vunpack.c.l.b16 %v2302
      %v2438 = vunpack.c.l.b16 %v2303
      %v2439 = vunpack.c.l.b16 %v2304
      %v2440 = vunpack.c.l.b16 %v2305
      %v2441 = vunpack.c.l.b16 %v2306
      %v2442 = vunpack.c.l.b16 %v2307
      %v2443 = vunpack.c.l.b16 %v2308
      %v2444 = vunpack.c.l.b16 %v2309
      %v2445 = vunpack.c.l.b16 %v2310
      %v2446 = vunpack.c.l.b16 %v2311
      %v2447 = vunpack.c.l.b16 %v2312
      %v2448 = vunpack.c.l.b16 %v2313
      %v2449 = vunpack.c.l.b16 %v2314
      %v2450 = vunpack.c.l.b16 %v2315
      %v2451 = vunpack.c.l.b16 %v2316
      %v2452 = vunpack.c.l.b16 %v2317
      %v2453 = vunpack.c.l.b16 %v2318
      %v2454 = vunpack.c.l.b16 %v2319
      %v2455 = vunpack.c.l.b16 %v2320
      %v2456 = vunpack.c.l.b16 %v2321
      %v2457 = vunpack.c.l.b16 %v2322
      %v2458 = vunpack.c.l.b16 %v2323
      %v2459 = vunpack.c.l.b16 %v2324
      %v2460 = vunpack.c.l.b16 %v2325
      %v2461 = vunpack.c.l.b16 %v2326
      %v2462 = vunpack.c.l.b16 %v2327
      %v2463 = vunpack.c.l.b16 %v2328
      %v2464 = vunpack.c.l.b16 %v2329
      %v2465 = vunpack.c.l.b16 %v2330
      %v2466 = vunpack.c.l.b16 %v2331
      %v2467 = vunpack.c.l.b16 %v2332
      %v2468 = vunpack.c.l.b16 %v2333
      %v2469 = vunpack.c.l.b16 %v2334
      %v2470 = vunpack.c.l.b16 %v2335
      %v2471 = vunpack.c.l.b16 %v2336
      %v2472 = vunpack.c.l.b16 %v2337
      %v2473 = vunpack.c.l.b16 %v2338
      %v2474 = vunpack.c.l.b16 %v2339
      %v2475 = vunpack.c.l.b16 %v2340
      %v2476 = vunpack.c.l.b16 %v2341
      %v2477 = vunpack.c.l.b16 %v2342
      %v2478 = vunpack.c.l.b16 %v2343
      %v2479 = vunpack.c.l.b16 %v2344
      %v2480 = vunpack.c.l.b16 %v2345
      %v2481 = vpack.c.b16 %v2418, %v2417
      %v2482 = vpack.c.b16 %v2420, %v2419
      %v2483 = vpack.c.b16 %v2422, %v2421
      %v2484 = vpack.c.b16 %v2424, %v2423
      %v2485 = vpack.c.b16 %v2426, %v2425
      %v2486 = vpack.c.b16 %v2428, %v2427
      %v2487 = vpack.c.b16 %v2430, %v2429
      %v2488 = vpack.c.b16 %v2432, %v2431
      %v2489 = vpack.c.b16 %v2434, %v2433
      %v2490 = vpack.c.b16 %v2436, %v2435
      %v2491 = vpack.c.b16 %v2438, %v2437
      %v2492 = vpack.c.b16 %v2440, %v2439
      %v2493 = vpack.c.b16 %v2442, %v2441
      %v2494 = vpack.c.b16 %v2444, %v2443
      %v2495 = vpack.c.b16 %v2446, %v2445
      %v2496 = vpack.c.b16 %v2448, %v2447
      %v2497 = vpack.c.b16 %v2450, %v2449
      %v2498 = vpack.c.b16 %v2452, %v2451
      %v2499 = vpack.c.b16 %v2454, %v2453
      %v2500 = vpack.c.b16 %v2456, %v2455
      %v2501 = vpack.c.b16 %v2458, %v2457
      %v2502 = vpack.c.b16 %v2460, %v2459
      %v2503 = vpack.c.b16 %v2462, %v2461
      %v2504 = vpack.c.b16 %v2464, %v2463
      %v2505 = vpack.c.b16 %v2466, %v2465
      %v2506 = vpack.c.b16 %v2468, %v2467
      %v2507 = vpack.c.b16 %v2470, %v2469
      %v2508 = vpack.c.b16 %v2472, %v2471
      %v2509 = vpack.c.b16 %v2474, %v2473
      %v2510 = vpack.c.b16 %v2476, %v2475
      %v2511 = vpack.c.b16 %v2478, %v2477
      %v2512 = vpack.c.b16 %v2480, %v2479
      %2545 = vmatprep.subr.bf16.mxu0 0
      %2546 = vmatpush1.bf16.msra.mxu0 %v2481
      %2547 = vmatprep.subr.bf16.mxu0 0
      %2548 = vmatpush1.bf16.msra.mxu0 %v2482
      %2549 = vmatprep.subr.bf16.mxu0 0
      %2550 = vmatpush1.bf16.msra.mxu0 %v2483
      %2551 = vmatprep.subr.bf16.mxu0 0
      %2552 = vmatpush1.bf16.msra.mxu0 %v2484
      %2553 = vmatprep.subr.bf16.mxu0 0
      %2554 = vmatpush1.bf16.msra.mxu0 %v2485
      %2555 = vmatprep.subr.bf16.mxu0 0
      %2556 = vmatpush1.bf16.msra.mxu0 %v2486
      %2557 = vmatprep.subr.bf16.mxu0 0
      %2558 = vmatpush1.bf16.msra.mxu0 %v2487
      %2559 = vmatprep.subr.bf16.mxu0 0
      %2560 = vmatpush1.bf16.msra.mxu0 %v2488
      %2561 = vmatprep.subr.bf16.mxu0 0
      %2562 = vmatpush1.bf16.msra.mxu0 %v2489
      %2563 = vmatprep.subr.bf16.mxu0 0
      %2564 = vmatpush1.bf16.msra.mxu0 %v2490
      %2565 = vmatprep.subr.bf16.mxu0 0
      %2566 = vmatpush1.bf16.msra.mxu0 %v2491
      %2567 = vmatprep.subr.bf16.mxu0 0
      %2568 = vmatpush1.bf16.msra.mxu0 %v2492
      %2569 = vmatprep.subr.bf16.mxu0 0
      %2570 = vmatpush1.bf16.msra.mxu0 %v2493
      %2571 = vmatprep.subr.bf16.mxu0 0
      %2572 = vmatpush1.bf16.msra.mxu0 %v2494
      %2573 = vmatprep.subr.bf16.mxu0 0
      %2574 = vmatpush1.bf16.msra.mxu0 %v2495
      %2575 = vmatprep.subr.bf16.mxu0 0
      %2576 = vmatpush1.bf16.msra.mxu0 %v2496
      %2577 = vmatprep.mubr.bf16.mxu0 %v2279
      %2578 = vmatmul.mubr.bf16.gmra.mrb[0].mxu0 %v2278
      %v2579 = vpop.f32.mrb[0].mxu0
      %v2580 = vadd.f32 %v2351, %v2579
      %v2581 = vpop.f32.mrb[0].mxu0
      %v2582 = vpop.f32.mrb[0].mxu0
      %v2583 = vadd.f32 %v2351, %v2582
      %v2584 = vpop.f32.mrb[0].mxu0
      %2585 = vdwg.mxu0
      %2586 = vmatprep.subr.bf16.mxu0 0
      %2587 = vmatpush1.bf16.msra.mxu0 %v2497
      %2588 = vmatprep.subr.bf16.mxu0 0
      %2589 = vmatpush1.bf16.msra.mxu0 %v2498
      %2590 = vmatprep.subr.bf16.mxu0 0
      %2591 = vmatpush1.bf16.msra.mxu0 %v2499
      %2592 = vmatprep.subr.bf16.mxu0 0
      %2593 = vmatpush1.bf16.msra.mxu0 %v2500
      %2594 = vmatprep.subr.bf16.mxu0 0
      %2595 = vmatpush1.bf16.msra.mxu0 %v2501
      %2596 = vmatprep.subr.bf16.mxu0 0
      %2597 = vmatpush1.bf16.msra.mxu0 %v2502
      %2598 = vmatprep.subr.bf16.mxu0 0
      %2599 = vmatpush1.bf16.msra.mxu0 %v2503
      %2600 = vmatprep.subr.bf16.mxu0 0
      %2601 = vmatpush1.bf16.msra.mxu0 %v2504
      %2602 = vmatprep.subr.bf16.mxu0 0
      %2603 = vmatpush1.bf16.msra.mxu0 %v2505
      %2604 = vmatprep.subr.bf16.mxu0 0
      %2605 = vmatpush1.bf16.msra.mxu0 %v2506
      %2606 = vmatprep.subr.bf16.mxu0 0
      %2607 = vmatpush1.bf16.msra.mxu0 %v2507
      %2608 = vmatprep.subr.bf16.mxu0 0
      %2609 = vmatpush1.bf16.msra.mxu0 %v2508
      %2610 = vmatprep.subr.bf16.mxu0 0
      %2611 = vmatpush1.bf16.msra.mxu0 %v2509
      %2612 = vmatprep.subr.bf16.mxu0 0
      %2613 = vmatpush1.bf16.msra.mxu0 %v2510
      %2614 = vmatprep.subr.bf16.mxu0 0
      %2615 = vmatpush1.bf16.msra.mxu0 %v2511
      %2616 = vmatprep.subr.bf16.mxu0 0
      %2617 = vmatpush1.bf16.msra.mxu0 %v2512
      %2618 = vmatprep.mubr.bf16.mxu0 %v2281
      %2619 = vmatmul.mubr.bf16.gmra.mrb[0].mxu0 %v2280
      %v2620 = vpop.f32.mrb[0].mxu0
      %v2621 = vadd.f32 %v2580, %v2620
      %v2622 = vpop.f32.mrb[0].mxu0
      %v2623 = vpop.f32.mrb[0].mxu0
      %v2624 = vadd.f32 %v2583, %v2623
      %v2625 = vpop.f32.mrb[0].mxu0
      %2626 = vdwg.mxu0
      %v2631 = vcombine.high %v367, %v367
      %v2632 = vcombine.high %v369, %v369
      %v2633 = vcombine.high %v371, %v371
      %v2634 = vcombine.high %v373, %v373
      %vm2635 = vcmask 1040384
      %vm2636 = vcmask 1044484
      %vm2637 = vmor %vm2635, %vm2636
      %v2638 = vrot.slane %v367, 7
      %v2639 = vrot.slane %v2638, 4
      %v2640 = vrot.slane %v2631, 7
      %v2641 = vsel %vm2637, %v2639, %v2640
      %v2642 = vrot.slane %v369, 7
      %v2643 = vrot.slane %v2642, 4
      %v2644 = vrot.slane %v2632, 7
      %v2645 = vsel %vm2637, %v2643, %v2644
      %v2646 = vrot.slane %v371, 7
      %v2647 = vrot.slane %v2646, 4
      %v2648 = vrot.slane %v2633, 7
      %v2649 = vsel %vm2637, %v2647, %v2648
      %v2650 = vrot.slane %v373, 7
      %v2651 = vrot.slane %v2650, 4
      %v2652 = vrot.slane %v2634, 7
      %v2653 = vsel %vm2637, %v2651, %v2652
      %v2658 = vld [vmem:[%s9] sm:$0x1]
      %v2660 = vlaneseq
      %v2661 = vshrl.u32 %v2660, 7
      %v2662 = vsub.s32 0, %v2661
      %v2663 = vrot.slane %v2658, %v2662
      %v2665 = vmul.f32 %v2663, %v2621
      %v2666 = vmul.f32 %v2663, %v2624
      %v2669 = vcombine.high %v2665, %v2665
      %v2670 = vcombine.high %v2666, %v2666
      %v2673 = vadd.f32 %v2641, %v2665
      %v2674 = vadd.f32 %v2645, %v2669
      %v2675 = vadd.f32 %v2649, %v2666
      %v2676 = vadd.f32 %v2653, %v2670
      %2677 = vst [vmem:[%s359] sm:$0xf] %v2673
      %2678 = vst [vmem:[%s359 + $0x4] sm:$0xf] %v2674
      %2679 = vst [vmem:[%s359 + $0x8] sm:$0xf] %v2675
      %2680 = vst [vmem:[%s359 + $0xc] sm:$0xf] %v2676
      %p2681 = scmp.lt.s32.totalorder %s21, 7
      %s2682 = scalar_select %p2681, %s21, 7
      %s2683 = smul.addr %s2682, 4
      %s2684 = smul.addr %s2683, 4
      %s2685 = scalar_lea.vmem %s10, %s2684
      // Predicated region
      $region61: #{model_forward.13} parent=59 // pred_check
        %p2686 = pneg %p254
      $region62: #{model_forward.13} parent=59 // pred_check_branch
        %2688 = sbr.rel (%p2686) target = $region64
      $region63: #{model_forward.13} parent=59 // pred_region
        _
      $region64: #{model_forward.13} parent=59 // pred_fallthru
        _
    $region60: #{model_forward.13} parent=5 // pred_fallthru
      _
    %p2689 = scmp.le.s32.totalorder 2, %s16
    // Predicated region
    $region65: #{model_forward.13} parent=5 // pred_check
      %p2690 = pneg %p2689
    $region66: #{model_forward.13} parent=5 // pred_check_branch
      %2692 = sbr.rel (%p2690) target = $region68
    $region67: #{model_forward.13} parent=5 // pred_region
      %s2693 = ssub.s32 %s16, 2
      // Predicated region
      $region69: #{model_forward.13} parent=67 // pred_check
        %p2694 = pneg %p260
      $region70: #{model_forward.13} parent=67 // pred_check_branch
        %2696 = sbr.rel (%p2694) target = $region72
      $region71: #{model_forward.13} parent=67 // pred_region
        %p2697 = scmp.lt.s32.totalorder %s22, 7
        %s2698 = scalar_select %p2697, %s22, 7
        %s2699 = smul.addr %s2698, 4
        %s2700 = smul.addr %s2699, 4
        %s2701 = scalar_lea.vmem %s10, %s2700
      $region72: #{model_forward.13} parent=67 // pred_fallthru
        _
    $region68: #{model_forward.13} parent=5 // pred_fallthru
      _
  $region6: #{model_forward.13} parent=0 // loop_footer
    %s20 = sadd.s32 1, %s16
  $region7: #{model_forward.13} parent=0 // loop_footer_branch
    %15 = sbr.rel target = $region3
  $region8: #{model_forward.13} parent=0 // loop_exit
    _

// kernel: model_forward.16
$region0: #{model_forward.16}
  #allocation0 [shape = 'u32[]', space=smem, size = 0x4, offset = 0x4, fixed_abs, tag = 'smem constant byte address 0x4 - core index']
  #allocation1 [shape = 'u32[144,128]{1,0:T(1,128)}', space=vmem, size = 0x12000, scoped, tag = 'internal scratch']
  %s0 = inlined_call_operand.vmem [shape: f32[8,384], index: 0, kind: input, shape index: {}]
  %s1 = inlined_call_operand.vmem [shape: f32[8,128], index: 1, kind: input, shape index: {}]
  %s2 = inlined_call_operand.vmem [shape: f32[8,128], index: 2, kind: input, shape index: {}]
  %s3 = inlined_call_operand.vmem [shape: bf16[384,128], index: 3, kind: input, shape index: {}]
  %s4 = inlined_call_operand.vmem [shape: bf16[128,128], index: 4, kind: input, shape index: {}]
  %s5 = inlined_call_operand.vmem [shape: f32[1,128], index: 5, kind: input, shape index: {}]
  %s6 = inlined_call_operand.vmem [shape: f32[8,128], index: 6, kind: output, shape index: {}]
  %s7 = sld [smem:[#allocation0]]
  $region34: #{model_forward.16} parent=0
    _
  %s9 = ssub.s32 1, %s7
  %s10 = scalar_select 0, %s9, %s7
  // Predicated region
  $region2: #{model_forward.16} parent=0 // pred_check
    _
  $region3: #{model_forward.16} parent=0 // pred_check_branch
    %12 = sbr.rel (0) target = $region5
  $region4: #{model_forward.16} parent=0 // pred_region
    _
  $region5: #{model_forward.16} parent=0 // pred_fallthru
    _
  // Predicated region
  $region6: #{model_forward.16} parent=0 // pred_check
    _
  $region7: #{model_forward.16} parent=0 // pred_check_branch
    %14 = sbr.rel (0) target = $region9
  $region8: #{model_forward.16} parent=0 // pred_region
    _
  $region9: #{model_forward.16} parent=0 // pred_fallthru
    _
  // Predicated region
  $region10: #{model_forward.16} parent=0 // pred_check
    _
  $region11: #{model_forward.16} parent=0 // pred_check_branch
    %16 = sbr.rel (0) target = $region13
  $region12: #{model_forward.16} parent=0 // pred_region
    _
  $region13: #{model_forward.16} parent=0 // pred_fallthru
    _
  // Predicated region
  $region14: #{model_forward.16} parent=0 // pred_check
    _
  $region15: #{model_forward.16} parent=0 // pred_check_branch
    %18 = sbr.rel (0) target = $region17
  $region16: #{model_forward.16} parent=0 // pred_region
    _
  $region17: #{model_forward.16} parent=0 // pred_fallthru
    _
  // Predicated region
  $region18: #{model_forward.16} parent=0 // pred_check
    _
  $region19: #{model_forward.16} parent=0 // pred_check_branch
    %20 = sbr.rel (0) target = $region21
  $region20: #{model_forward.16} parent=0 // pred_region
    _
  $region21: #{model_forward.16} parent=0 // pred_fallthru
    _
  // Predicated region
  $region22: #{model_forward.16} parent=0 // pred_check
    _
  $region23: #{model_forward.16} parent=0 // pred_check_branch
    %22 = sbr.rel (0) target = $region25
  $region24: #{model_forward.16} parent=0 // pred_region
    _
  $region25: #{model_forward.16} parent=0 // pred_fallthru
    _
  %v24 = vld [vmem:[%s0] sm:$0xff]
  %v25 = vld [vmem:[%s0 + $0x8] sm:$0xff]
  %v26 = vld [vmem:[%s0 + $0x10] sm:$0xff]
  %v27 = vpack.c.bf16 %v24, %v24
  %v28 = vpack.c.bf16 %v25, %v25
  %v29 = vpack.c.bf16 %v26, %v26
  %v30 = vld [vmem:[%s3] sm:$0xf]
  %v31 = vld [vmem:[%s3 + $0x4] sm:$0xf]
  %v32 = vld [vmem:[%s3 + $0x8] sm:$0xf]
  %v33 = vld [vmem:[%s3 + $0xc] sm:$0xf]
  %v34 = vld [vmem:[%s3 + $0x10] sm:$0xf]
  %v35 = vld [vmem:[%s3 + $0x14] sm:$0xf]
  %v36 = vld [vmem:[%s3 + $0x18] sm:$0xf]
  %v37 = vld [vmem:[%s3 + $0x1c] sm:$0xf]
  %v38 = vld [vmem:[%s3 + $0x20] sm:$0xf]
  %v39 = vld [vmem:[%s3 + $0x24] sm:$0xf]
  %v40 = vld [vmem:[%s3 + $0x28] sm:$0xf]
  %v41 = vld [vmem:[%s3 + $0x2c] sm:$0xf]
  %v42 = vld [vmem:[%s3 + $0x30] sm:$0xf]
  %v43 = vld [vmem:[%s3 + $0x34] sm:$0xf]
  %v44 = vld [vmem:[%s3 + $0x38] sm:$0xf]
  %v45 = vld [vmem:[%s3 + $0x3c] sm:$0xf]
  %v46 = vld [vmem:[%s3 + $0x40] sm:$0xf]
  %v47 = vld [vmem:[%s3 + $0x44] sm:$0xf]
  %v48 = vld [vmem:[%s3 + $0x48] sm:$0xf]
  %v49 = vld [vmem:[%s3 + $0x4c] sm:$0xf]
  %v50 = vld [vmem:[%s3 + $0x50] sm:$0xf]
  %v51 = vld [vmem:[%s3 + $0x54] sm:$0xf]
  %v52 = vld [vmem:[%s3 + $0x58] sm:$0xf]
  %v53 = vld [vmem:[%s3 + $0x5c] sm:$0xf]
  %v54 = vld [vmem:[%s3 + $0x60] sm:$0xf]
  %v55 = vld [vmem:[%s3 + $0x64] sm:$0xf]
  %v56 = vld [vmem:[%s3 + $0x68] sm:$0xf]
  %v57 = vld [vmem:[%s3 + $0x6c] sm:$0xf]
  %v58 = vld [vmem:[%s3 + $0x70] sm:$0xf]
  %v59 = vld [vmem:[%s3 + $0x74] sm:$0xf]
  %v60 = vld [vmem:[%s3 + $0x78] sm:$0xf]
  %v61 = vld [vmem:[%s3 + $0x7c] sm:$0xf]
  %v62 = vld [vmem:[%s3 + $0x80] sm:$0xf]
  %v63 = vld [vmem:[%s3 + $0x84] sm:$0xf]
  %v64 = vld [vmem:[%s3 + $0x88] sm:$0xf]
  %v65 = vld [vmem:[%s3 + $0x8c] sm:$0xf]
  %v66 = vld [vmem:[%s3 + $0x90] sm:$0xf]
  %v67 = vld [vmem:[%s3 + $0x94] sm:$0xf]
  %v68 = vld [vmem:[%s3 + $0x98] sm:$0xf]
  %v69 = vld [vmem:[%s3 + $0x9c] sm:$0xf]
  %v70 = vld [vmem:[%s3 + $0xa0] sm:$0xf]
  %v71 = vld [vmem:[%s3 + $0xa4] sm:$0xf]
  %v72 = vld [vmem:[%s3 + $0xa8] sm:$0xf]
  %v73 = vld [vmem:[%s3 + $0xac] sm:$0xf]
  %v74 = vld [vmem:[%s3 + $0xb0] sm:$0xf]
  %v75 = vld [vmem:[%s3 + $0xb4] sm:$0xf]
  %v76 = vld [vmem:[%s3 + $0xb8] sm:$0xf]
  %v77 = vld [vmem:[%s3 + $0xbc] sm:$0xf]
  %v78 = vld [vmem:[%s1] sm:$0xff]
  %v79 = vpack.c.bf16 %v78, %v78
  %v80 = vld [vmem:[%s4] sm:$0xf]
  %v81 = vld [vmem:[%s4 + $0x4] sm:$0xf]
  %v82 = vld [vmem:[%s4 + $0x8] sm:$0xf]
  %v83 = vld [vmem:[%s4 + $0xc] sm:$0xf]
  %v84 = vld [vmem:[%s4 + $0x10] sm:$0xf]
  %v85 = vld [vmem:[%s4 + $0x14] sm:$0xf]
  %v86 = vld [vmem:[%s4 + $0x18] sm:$0xf]
  %v87 = vld [vmem:[%s4 + $0x1c] sm:$0xf]
  %v88 = vld [vmem:[%s4 + $0x20] sm:$0xf]
  %v89 = vld [vmem:[%s4 + $0x24] sm:$0xf]
  %v90 = vld [vmem:[%s4 + $0x28] sm:$0xf]
  %v91 = vld [vmem:[%s4 + $0x2c] sm:$0xf]
  %v92 = vld [vmem:[%s4 + $0x30] sm:$0xf]
  %v93 = vld [vmem:[%s4 + $0x34] sm:$0xf]
  %v94 = vld [vmem:[%s4 + $0x38] sm:$0xf]
  %v95 = vld [vmem:[%s4 + $0x3c] sm:$0xf]
  %v96 = vld [vmem:[%s5] sm:$0x1]
  %v98 = vlaneseq
  %v99 = vshrl.u32 %v98, 7
  %v100 = vsub.s32 0, %v99
  %v101 = vrot.slane %v96, %v100
  %v119 = vunpack.c.l.b16 %v80
  %v120 = vunpack.c.l.b16 %v81
  %v121 = vunpack.c.l.b16 %v82
  %v122 = vunpack.c.l.b16 %v83
  %v123 = vunpack.c.l.b16 %v84
  %v124 = vunpack.c.l.b16 %v85
  %v125 = vunpack.c.l.b16 %v86
  %v126 = vunpack.c.l.b16 %v87
  %v127 = vunpack.c.l.b16 %v88
  %v128 = vunpack.c.l.b16 %v89
  %v129 = vunpack.c.l.b16 %v90
  %v130 = vunpack.c.l.b16 %v91
  %v131 = vunpack.c.l.b16 %v92
  %v132 = vunpack.c.l.b16 %v93
  %v133 = vunpack.c.l.b16 %v94
  %v134 = vunpack.c.l.b16 %v95
  %v135 = vpack.c.b16 %v120, %v119
  %v136 = vpack.c.b16 %v122, %v121
  %v137 = vpack.c.b16 %v124, %v123
  %v138 = vpack.c.b16 %v126, %v125
  %v139 = vpack.c.b16 %v128, %v127
  %v140 = vpack.c.b16 %v130, %v129
  %v141 = vpack.c.b16 %v132, %v131
  %v142 = vpack.c.b16 %v134, %v133
  %151 = vmatprep.subr.bf16.mxu0 0
  %152 = vmatpush1.bf16.msra.mxu0 %v135
  %153 = vmatprep.subr.bf16.mxu0 0
  %154 = vmatpush1.bf16.msra.mxu0 %v136
  %155 = vmatprep.subr.bf16.mxu0 0
  %156 = vmatpush1.bf16.msra.mxu0 %v137
  %157 = vmatprep.subr.bf16.mxu0 0
  %158 = vmatpush1.bf16.msra.mxu0 %v138
  %159 = vmatprep.subr.bf16.mxu0 0
  %160 = vmatpush1.bf16.msra.mxu0 %v139
  %161 = vmatprep.subr.bf16.mxu0 0
  %162 = vmatpush1.bf16.msra.mxu0 %v140
  %163 = vmatprep.subr.bf16.mxu0 0
  %164 = vmatpush1.bf16.msra.mxu0 %v141
  %165 = vmatprep.subr.bf16.mxu0 0
  %166 = vmatpush1.bf16.msra.mxu0 %v142
  %167 = vmatprep.subr.bf16.mxu0 0
  %168 = vmatpush1.bf16.msra.mxu0 0
  %169 = vmatprep.subr.bf16.mxu0 0
  %170 = vmatpush1.bf16.msra.mxu0 0
  %171 = vmatprep.subr.bf16.mxu0 0
  %172 = vmatpush1.bf16.msra.mxu0 0
  %173 = vmatprep.subr.bf16.mxu0 0
  %174 = vmatpush1.bf16.msra.mxu0 0
  %175 = vmatprep.subr.bf16.mxu0 0
  %176 = vmatpush1.bf16.msra.mxu0 0
  %177 = vmatprep.subr.bf16.mxu0 0
  %178 = vmatpush1.bf16.msra.mxu0 0
  %179 = vmatprep.subr.bf16.mxu0 0
  %180 = vmatpush1.bf16.msra.mxu0 0
  %181 = vmatprep.subr.bf16.mxu0 0
  %182 = vmatpush1.bf16.msra.mxu0 0
  %183 = vmatprep.mubr.bf16.mxu0 0
  %184 = vmatmul.mubr.bf16.gmra.mrb[0].mxu0 %v79
  %v185 = vpop.f32.mrb[0].mxu0
  %v186 = vadd.f32 %v101, %v185
  %v187 = vpop.f32.mrb[0].mxu0
  %v188 = vpop.f32.mrb[0].mxu0
  %v189 = vpop.f32.mrb[0].mxu0
  %190 = vdwg.mxu0
  %v239 = vunpack.c.l.b16 %v30
  %v240 = vunpack.c.l.b16 %v31
  %v241 = vunpack.c.l.b16 %v32
  %v242 = vunpack.c.l.b16 %v33
  %v243 = vunpack.c.l.b16 %v34
  %v244 = vunpack.c.l.b16 %v35
  %v245 = vunpack.c.l.b16 %v36
  %v246 = vunpack.c.l.b16 %v37
  %v247 = vunpack.c.l.b16 %v38
  %v248 = vunpack.c.l.b16 %v39
  %v249 = vunpack.c.l.b16 %v40
  %v250 = vunpack.c.l.b16 %v41
  %v251 = vunpack.c.l.b16 %v42
  %v252 = vunpack.c.l.b16 %v43
  %v253 = vunpack.c.l.b16 %v44
  %v254 = vunpack.c.l.b16 %v45
  %v255 = vunpack.c.l.b16 %v46
  %v256 = vunpack.c.l.b16 %v47
  %v257 = vunpack.c.l.b16 %v48
  %v258 = vunpack.c.l.b16 %v49
  %v259 = vunpack.c.l.b16 %v50
  %v260 = vunpack.c.l.b16 %v51
  %v261 = vunpack.c.l.b16 %v52
  %v262 = vunpack.c.l.b16 %v53
  %v263 = vunpack.c.l.b16 %v54
  %v264 = vunpack.c.l.b16 %v55
  %v265 = vunpack.c.l.b16 %v56
  %v266 = vunpack.c.l.b16 %v57
  %v267 = vunpack.c.l.b16 %v58
  %v268 = vunpack.c.l.b16 %v59
  %v269 = vunpack.c.l.b16 %v60
  %v270 = vunpack.c.l.b16 %v61
  %v271 = vunpack.c.l.b16 %v62
  %v272 = vunpack.c.l.b16 %v63
  %v273 = vunpack.c.l.b16 %v64
  %v274 = vunpack.c.l.b16 %v65
  %v275 = vunpack.c.l.b16 %v66
  %v276 = vunpack.c.l.b16 %v67
  %v277 = vunpack.c.l.b16 %v68
  %v278 = vunpack.c.l.b16 %v69
  %v279 = vunpack.c.l.b16 %v70
  %v280 = vunpack.c.l.b16 %v71
  %v281 = vunpack.c.l.b16 %v72
  %v282 = vunpack.c.l.b16 %v73
  %v283 = vunpack.c.l.b16 %v74
  %v284 = vunpack.c.l.b16 %v75
  %v285 = vunpack.c.l.b16 %v76
  %v286 = vunpack.c.l.b16 %v77
  %v287 = vpack.c.b16 %v240, %v239
  %v288 = vpack.c.b16 %v242, %v241
  %v289 = vpack.c.b16 %v244, %v243
  %v290 = vpack.c.b16 %v246, %v245
  %v291 = vpack.c.b16 %v248, %v247
  %v292 = vpack.c.b16 %v250, %v249
  %v293 = vpack.c.b16 %v252, %v251
  %v294 = vpack.c.b16 %v254, %v253
  %v295 = vpack.c.b16 %v256, %v255
  %v296 = vpack.c.b16 %v258, %v257
  %v297 = vpack.c.b16 %v260, %v259
  %v298 = vpack.c.b16 %v262, %v261
  %v299 = vpack.c.b16 %v264, %v263
  %v300 = vpack.c.b16 %v266, %v265
  %v301 = vpack.c.b16 %v268, %v267
  %v302 = vpack.c.b16 %v270, %v269
  %v303 = vpack.c.b16 %v272, %v271
  %v304 = vpack.c.b16 %v274, %v273
  %v305 = vpack.c.b16 %v276, %v275
  %v306 = vpack.c.b16 %v278, %v277
  %v307 = vpack.c.b16 %v280, %v279
  %v308 = vpack.c.b16 %v282, %v281
  %v309 = vpack.c.b16 %v284, %v283
  %v310 = vpack.c.b16 %v286, %v285
  %335 = vmatprep.subr.bf16.mxu0 0
  %336 = vmatpush1.bf16.msra.mxu0 %v287
  %337 = vmatprep.subr.bf16.mxu0 0
  %338 = vmatpush1.bf16.msra.mxu0 %v288
  %339 = vmatprep.subr.bf16.mxu0 0
  %340 = vmatpush1.bf16.msra.mxu0 %v289
  %341 = vmatprep.subr.bf16.mxu0 0
  %342 = vmatpush1.bf16.msra.mxu0 %v290
  %343 = vmatprep.subr.bf16.mxu0 0
  %344 = vmatpush1.bf16.msra.mxu0 %v291
  %345 = vmatprep.subr.bf16.mxu0 0
  %346 = vmatpush1.bf16.msra.mxu0 %v292
  %347 = vmatprep.subr.bf16.mxu0 0
  %348 = vmatpush1.bf16.msra.mxu0 %v293
  %349 = vmatprep.subr.bf16.mxu0 0
  %350 = vmatpush1.bf16.msra.mxu0 %v294
  %351 = vmatprep.subr.bf16.mxu0 0
  %352 = vmatpush1.bf16.msra.mxu0 %v295
  %353 = vmatprep.subr.bf16.mxu0 0
  %354 = vmatpush1.bf16.msra.mxu0 %v296
  %355 = vmatprep.subr.bf16.mxu0 0
  %356 = vmatpush1.bf16.msra.mxu0 %v297
  %357 = vmatprep.subr.bf16.mxu0 0
  %358 = vmatpush1.bf16.msra.mxu0 %v298
  %359 = vmatprep.subr.bf16.mxu0 0
  %360 = vmatpush1.bf16.msra.mxu0 %v299
  %361 = vmatprep.subr.bf16.mxu0 0
  %362 = vmatpush1.bf16.msra.mxu0 %v300
  %363 = vmatprep.subr.bf16.mxu0 0
  %364 = vmatpush1.bf16.msra.mxu0 %v301
  %365 = vmatprep.subr.bf16.mxu0 0
  %366 = vmatpush1.bf16.msra.mxu0 %v302
  %367 = vmatprep.mubr.bf16.mxu0 %v28
  %368 = vmatmul.mubr.bf16.gmra.mrb[0].mxu0 %v27
  %v369 = vpop.f32.mrb[0].mxu0
  %v370 = vadd.f32 %v186, %v369
  %v371 = vpop.f32.mrb[0].mxu0
  %v372 = vpop.f32.mrb[0].mxu0
  %v373 = vpop.f32.mrb[0].mxu0
  %374 = vdwg.mxu0
  %375 = vmatprep.subr.bf16.mxu0 0
  %376 = vmatpush1.bf16.msra.mxu0 %v303
  %377 = vmatprep.subr.bf16.mxu0 0
  %378 = vmatpush1.bf16.msra.mxu0 %v304
  %379 = vmatprep.subr.bf16.mxu0 0
  %380 = vmatpush1.bf16.msra.mxu0 %v305
  %381 = vmatprep.subr.bf16.mxu0 0
  %382 = vmatpush1.bf16.msra.mxu0 %v306
  %383 = vmatprep.subr.bf16.mxu0 0
  %384 = vmatpush1.bf16.msra.mxu0 %v307
  %385 = vmatprep.subr.bf16.mxu0 0
  %386 = vmatpush1.bf16.msra.mxu0 %v308
  %387 = vmatprep.subr.bf16.mxu0 0
  %388 = vmatpush1.bf16.msra.mxu0 %v309
  %389 = vmatprep.subr.bf16.mxu0 0
  %390 = vmatpush1.bf16.msra.mxu0 %v310
  %391 = vmatprep.subr.bf16.mxu0 0
  %392 = vmatpush1.bf16.msra.mxu0 0
  %393 = vmatprep.subr.bf16.mxu0 0
  %394 = vmatpush1.bf16.msra.mxu0 0
  %395 = vmatprep.subr.bf16.mxu0 0
  %396 = vmatpush1.bf16.msra.mxu0 0
  %397 = vmatprep.subr.bf16.mxu0 0
  %398 = vmatpush1.bf16.msra.mxu0 0
  %399 = vmatprep.subr.bf16.mxu0 0
  %400 = vmatpush1.bf16.msra.mxu0 0
  %401 = vmatprep.subr.bf16.mxu0 0
  %402 = vmatpush1.bf16.msra.mxu0 0
  %403 = vmatprep.subr.bf16.mxu0 0
  %404 = vmatpush1.bf16.msra.mxu0 0
  %405 = vmatprep.subr.bf16.mxu0 0
  %406 = vmatpush1.bf16.msra.mxu0 0
  %407 = vmatprep.mubr.bf16.mxu0 0
  %408 = vmatmul.mubr.bf16.gmra.mrb[0].mxu0 %v29
  %v409 = vpop.f32.mrb[0].mxu0
  %v410 = vadd.f32 %v370, %v409
  %v411 = vpop.f32.mrb[0].mxu0
  %v412 = vpop.f32.mrb[0].mxu0
  %v413 = vpop.f32.mrb[0].mxu0
  %414 = vdwg.mxu0
  %v415 = vld [vmem:[%s2] sm:$0xff]
  %v416 = vadd.f32 %v410, %v415
  %417 = vst [vmem:[%s6] sm:$0xff] %v416
  // Predicated region
  $region26: #{model_forward.16} parent=0 // pred_check
    _
  $region27: #{model_forward.16} parent=0 // pred_check_branch
    %419 = sbr.rel (0) target = $region29
  $region28: #{model_forward.16} parent=0 // pred_region
    _
  $region29: #{model_forward.16} parent=0 // pred_fallthru
    _
  // Predicated region
  $region30: #{model_forward.16} parent=0 // pred_check
    _
  $region31: #{model_forward.16} parent=0 // pred_check_branch
    %421 = sbr.rel (0) target = $region33
  $region32: #{model_forward.16} parent=0 // pred_region
    _
  $region33: #{model_forward.16} parent=0 // pred_fallthru
    _

// kernel: model_forward.17
$region0: #{model_forward.17}
  #allocation0 [shape = 'u32[]', space=smem, size = 0x4, offset = 0x4, fixed_abs, tag = 'smem constant byte address 0x4 - core index']
  #allocation1 [shape = 'u32[144,128]{1,0:T(1,128)}', space=vmem, size = 0x12000, scoped, tag = 'internal scratch']
  %s0 = inlined_call_operand.vmem [shape: f32[2,4,128], index: 0, kind: input, shape index: {}, may-alias: {0,1}]
  %s1 = inlined_call_operand.vmem [shape: f32[2,4,128], index: 1, kind: input, shape index: {}, may-alias: {0,1}]
  %s2 = inlined_call_operand.vmem [shape: f32[1,128], index: 2, kind: input, shape index: {}]
  %s3 = inlined_call_operand.vmem [shape: f32[1,128], index: 3, kind: input, shape index: {}]
  %s4 = inlined_call_operand.vmem [shape: bf16[128,128], index: 4, kind: input, shape index: {}]
  %s5 = inlined_call_operand.vmem [shape: f32[1,128], index: 5, kind: input, shape index: {}]
  %s6 = inlined_call_operand.vmem [shape: bf16[128,256], index: 6, kind: input, shape index: {}]
  %s7 = inlined_call_operand.vmem [shape: f32[1,256], index: 7, kind: input, shape index: {}]
  %s8 = inlined_call_operand.vmem [shape: f32[128,128], index: 8, kind: input, shape index: {}]
  %s9 = inlined_call_operand.vmem [shape: f32[1,128], index: 9, kind: input, shape index: {}]
  %s10 = inlined_call_operand.vmem [shape: f32[2,4,128], index: 10, kind: output, shape index: {}]
  %s11 = sld [smem:[#allocation0]]
  $region73: #{model_forward.17} parent=0
    _
  %s13 = ssub.s32 1, %s11
  %s14 = scalar_select 0, %s13, %s11
  loop: start=0, step=1, limit=4
  $region2: #{model_forward.17} parent=0 // loop_pre_header
    _
  $region3: #{model_forward.17} parent=0 // loop_header
    %s16 = sphi 0, %s20
    %p17 = scmp.ge.s32.totalorder %s16, 4
    %s26 = sphi 0, %s28
    %s29 = sphi 0, %s26
    %s30 = sphi 0, %s29
    %s46 = sphi 0, %s30
    %s52 = sphi 0, %s54
    %s55 = sphi 0, %s52
    %s56 = sphi 0, %s55
    %s72 = sphi 0, %s56
    %s76 = sphi 0, %s76
    %s78 = sphi 0, %s76
    %s79 = sphi 0, %s78
    %s93 = sphi 0, %s79
    %s97 = sphi 0, %s97
    %s99 = sphi 0, %s97
    %s100 = sphi 0, %s99
    %s114 = sphi 0, %s100
    %s118 = sphi 0, %s118
    %s120 = sphi 0, %s118
    %s121 = sphi 0, %s120
    %s135 = sphi 0, %s121
    %s139 = sphi 0, %s139
    %s141 = sphi 0, %s139
    %s142 = sphi 0, %s141
    %s156 = sphi 0, %s142
    %s160 = sphi 0, %s160
    %s162 = sphi 0, %s160
    %s163 = sphi 0, %s162
    %s177 = sphi 0, %s163
    %s181 = sphi 0, %s181
    %s183 = sphi 0, %s181
    %s184 = sphi 0, %s183
    %s198 = sphi 0, %s184
    %s202 = sphi 0, %s202
    %s204 = sphi 0, %s202
    %s205 = sphi 0, %s204
    %s219 = sphi 0, %s205
    %s223 = sphi 0, %s223
    %s225 = sphi 0, %s223
    %s226 = sphi 0, %s225
    %s240 = sphi 0, %s226
    %s246 = sphi 0, %s248
    %s249 = sphi 0, %s246
    %s250 = sphi 0, %s249
    %s266 = sphi 0, %s250
  $region4: #{model_forward.17} parent=0 // loop_header_branch
    %19 = sbr.rel (%p17) target = $region8
  $region5: #{model_forward.17} parent=0 // loop_body
    %s21 = ssub.s32 %s16, 1
    %s22 = ssub.s32 %s16, 2
    %s23 = sadd.s32 %s16, 1
    %s24 = ssub.s32 %s16, %s23
    %p25 = scmp.eq.s32.totalorder %s24, 0
    %s27 = sadd.s32 %s26, 1
    %s28 = scalar_select %p25, %s26, %s27
    %p31 = pneg %p25
    %p32 = scmp.eq.s32.totalorder %s16, 1
    %p33 = por %p31, %p32
    %p34 = scmp.ne.s32.totalorder %s26, %s29
    %p35 = scmp.eq.s32.totalorder %s16, 0
    %p36 = por %p34, %p35
    %p37 = scmp.ne.s32.totalorder %s26, %s29
    %p38 = scmp.eq.s32.totalorder %s21, 1
    %p39 = por %p37, %p38
    %p40 = scmp.ne.s32.totalorder %s29, %s30
    %p41 = scmp.eq.s32.totalorder %s21, 0
    %p42 = por %p40, %p41
    %p43 = scmp.ne.s32.totalorder %s29, %s30
    %p44 = scmp.eq.s32.totalorder %s22, 1
    %p45 = por %p43, %p44
    %p47 = scmp.ne.s32.totalorder %s30, %s46
    %p48 = scmp.eq.s32.totalorder %s22, 0
    %p49 = por %p47, %p48
    %s50 = ssub.s32 %s16, %s23
    %p51 = scmp.eq.s32.totalorder %s50, 0
    %s53 = sadd.s32 %s52, 1
    %s54 = scalar_select %p51, %s52, %s53
    %p57 = pneg %p51
    %p58 = scmp.eq.s32.totalorder %s16, 1
    %p59 = por %p57, %p58
    %p60 = scmp.ne.s32.totalorder %s52, %s55
    %p61 = scmp.eq.s32.totalorder %s16, 0
    %p62 = por %p60, %p61
    %p63 = scmp.ne.s32.totalorder %s52, %s55
    %p64 = scmp.eq.s32.totalorder %s21, 1
    %p65 = por %p63, %p64
    %p66 = scmp.ne.s32.totalorder %s55, %s56
    %p67 = scmp.eq.s32.totalorder %s21, 0
    %p68 = por %p66, %p67
    %p69 = scmp.ne.s32.totalorder %s55, %s56
    %p70 = scmp.eq.s32.totalorder %s22, 1
    %p71 = por %p69, %p70
    %p73 = scmp.ne.s32.totalorder %s56, %s72
    %p74 = scmp.eq.s32.totalorder %s22, 0
    %p75 = por %p73, %p74
    %s77 = sadd.s32 %s76, 1
    %p80 = scmp.eq.s32.totalorder %s16, 1
    %p81 = scmp.ne.s32.totalorder %s76, %s78
    %p82 = scmp.eq.s32.totalorder %s16, 0
    %p83 = por %p81, %p82
    %p84 = scmp.ne.s32.totalorder %s76, %s78
    %p85 = scmp.eq.s32.totalorder %s21, 1
    %p86 = por %p84, %p85
    %p87 = scmp.ne.s32.totalorder %s78, %s79
    %p88 = scmp.eq.s32.totalorder %s21, 0
    %p89 = por %p87, %p88
    %p90 = scmp.ne.s32.totalorder %s78, %s79
    %p91 = scmp.eq.s32.totalorder %s22, 1
    %p92 = por %p90, %p91
    %p94 = scmp.ne.s32.totalorder %s79, %s93
    %p95 = scmp.eq.s32.totalorder %s22, 0
    %p96 = por %p94, %p95
    %s98 = sadd.s32 %s97, 1
    %p101 = scmp.eq.s32.totalorder %s16, 1
    %p102 = scmp.ne.s32.totalorder %s97, %s99
    %p103 = scmp.eq.s32.totalorder %s16, 0
    %p104 = por %p102, %p103
    %p105 = scmp.ne.s32.totalorder %s97, %s99
    %p106 = scmp.eq.s32.totalorder %s21, 1
    %p107 = por %p105, %p106
    %p108 = scmp.ne.s32.totalorder %s99, %s100
    %p109 = scmp.eq.s32.totalorder %s21, 0
    %p110 = por %p108, %p109
    %p111 = scmp.ne.s32.totalorder %s99, %s100
    %p112 = scmp.eq.s32.totalorder %s22, 1
    %p113 = por %p111, %p112
    %p115 = scmp.ne.s32.totalorder %s100, %s114
    %p116 = scmp.eq.s32.totalorder %s22, 0
    %p117 = por %p115, %p116
    %s119 = sadd.s32 %s118, 1
    %p122 = scmp.eq.s32.totalorder %s16, 1
    %p123 = scmp.ne.s32.totalorder %s118, %s120
    %p124 = scmp.eq.s32.totalorder %s16, 0
    %p125 = por %p123, %p124
    %p126 = scmp.ne.s32.totalorder %s118, %s120
    %p127 = scmp.eq.s32.totalorder %s21, 1
    %p128 = por %p126, %p127
    %p129 = scmp.ne.s32.totalorder %s120, %s121
    %p130 = scmp.eq.s32.totalorder %s21, 0
    %p131 = por %p129, %p130
    %p132 = scmp.ne.s32.totalorder %s120, %s121
    %p133 = scmp.eq.s32.totalorder %s22, 1
    %p134 = por %p132, %p133
    %p136 = scmp.ne.s32.totalorder %s121, %s135
    %p137 = scmp.eq.s32.totalorder %s22, 0
    %p138 = por %p136, %p137
    %s140 = sadd.s32 %s139, 1
    %p143 = scmp.eq.s32.totalorder %s16, 1
    %p144 = scmp.ne.s32.totalorder %s139, %s141
    %p145 = scmp.eq.s32.totalorder %s16, 0
    %p146 = por %p144, %p145
    %p147 = scmp.ne.s32.totalorder %s139, %s141
    %p148 = scmp.eq.s32.totalorder %s21, 1
    %p149 = por %p147, %p148
    %p150 = scmp.ne.s32.totalorder %s141, %s142
    %p151 = scmp.eq.s32.totalorder %s21, 0
    %p152 = por %p150, %p151
    %p153 = scmp.ne.s32.totalorder %s141, %s142
    %p154 = scmp.eq.s32.totalorder %s22, 1
    %p155 = por %p153, %p154
    %p157 = scmp.ne.s32.totalorder %s142, %s156
    %p158 = scmp.eq.s32.totalorder %s22, 0
    %p159 = por %p157, %p158
    %s161 = sadd.s32 %s160, 1
    %p164 = scmp.eq.s32.totalorder %s16, 1
    %p165 = scmp.ne.s32.totalorder %s160, %s162
    %p166 = scmp.eq.s32.totalorder %s16, 0
    %p167 = por %p165, %p166
    %p168 = scmp.ne.s32.totalorder %s160, %s162
    %p169 = scmp.eq.s32.totalorder %s21, 1
    %p170 = por %p168, %p169
    %p171 = scmp.ne.s32.totalorder %s162, %s163
    %p172 = scmp.eq.s32.totalorder %s21, 0
    %p173 = por %p171, %p172
    %p174 = scmp.ne.s32.totalorder %s162, %s163
    %p175 = scmp.eq.s32.totalorder %s22, 1
    %p176 = por %p174, %p175
    %p178 = scmp.ne.s32.totalorder %s163, %s177
    %p179 = scmp.eq.s32.totalorder %s22, 0
    %p180 = por %p178, %p179
    %s182 = sadd.s32 %s181, 1
    %p185 = scmp.eq.s32.totalorder %s16, 1
    %p186 = scmp.ne.s32.totalorder %s181, %s183
    %p187 = scmp.eq.s32.totalorder %s16, 0
    %p188 = por %p186, %p187
    %p189 = scmp.ne.s32.totalorder %s181, %s183
    %p190 = scmp.eq.s32.totalorder %s21, 1
    %p191 = por %p189, %p190
    %p192 = scmp.ne.s32.totalorder %s183, %s184
    %p193 = scmp.eq.s32.totalorder %s21, 0
    %p194 = por %p192, %p193
    %p195 = scmp.ne.s32.totalorder %s183, %s184
    %p196 = scmp.eq.s32.totalorder %s22, 1
    %p197 = por %p195, %p196
    %p199 = scmp.ne.s32.totalorder %s184, %s198
    %p200 = scmp.eq.s32.totalorder %s22, 0
    %p201 = por %p199, %p200
    %s203 = sadd.s32 %s202, 1
    %p206 = scmp.eq.s32.totalorder %s16, 1
    %p207 = scmp.ne.s32.totalorder %s202, %s204
    %p208 = scmp.eq.s32.totalorder %s16, 0
    %p209 = por %p207, %p208
    %p210 = scmp.ne.s32.totalorder %s202, %s204
    %p211 = scmp.eq.s32.totalorder %s21, 1
    %p212 = por %p210, %p211
    %p213 = scmp.ne.s32.totalorder %s204, %s205
    %p214 = scmp.eq.s32.totalorder %s21, 0
    %p215 = por %p213, %p214
    %p216 = scmp.ne.s32.totalorder %s204, %s205
    %p217 = scmp.eq.s32.totalorder %s22, 1
    %p218 = por %p216, %p217
    %p220 = scmp.ne.s32.totalorder %s205, %s219
    %p221 = scmp.eq.s32.totalorder %s22, 0
    %p222 = por %p220, %p221
    %s224 = sadd.s32 %s223, 1
    %p227 = scmp.eq.s32.totalorder %s16, 1
    %p228 = scmp.ne.s32.totalorder %s223, %s225
    %p229 = scmp.eq.s32.totalorder %s16, 0
    %p230 = por %p228, %p229
    %p231 = scmp.ne.s32.totalorder %s223, %s225
    %p232 = scmp.eq.s32.totalorder %s21, 1
    %p233 = por %p231, %p232
    %p234 = scmp.ne.s32.totalorder %s225, %s226
    %p235 = scmp.eq.s32.totalorder %s21, 0
    %p236 = por %p234, %p235
    %p237 = scmp.ne.s32.totalorder %s225, %s226
    %p238 = scmp.eq.s32.totalorder %s22, 1
    %p239 = por %p237, %p238
    %p241 = scmp.ne.s32.totalorder %s226, %s240
    %p242 = scmp.eq.s32.totalorder %s22, 0
    %p243 = por %p241, %p242
    %s244 = ssub.s32 %s16, %s23
    %p245 = scmp.eq.s32.totalorder %s244, 0
    %s247 = sadd.s32 %s246, 1
    %s248 = scalar_select %p245, %s246, %s247
    %p251 = pneg %p245
    %p252 = scmp.eq.s32.totalorder %s16, 1
    %p253 = por %p251, %p252
    %p254 = scmp.ne.s32.totalorder %s246, %s249
    %p255 = scmp.eq.s32.totalorder %s16, 0
    %p256 = por %p254, %p255
    %p257 = scmp.ne.s32.totalorder %s246, %s249
    %p258 = scmp.eq.s32.totalorder %s21, 1
    %p259 = por %p257, %p258
    %p260 = scmp.ne.s32.totalorder %s249, %s250
    %p261 = scmp.eq.s32.totalorder %s21, 0
    %p262 = por %p260, %p261
    %p263 = scmp.ne.s32.totalorder %s249, %s250
    %p264 = scmp.eq.s32.totalorder %s22, 1
    %p265 = por %p263, %p264
    %p267 = scmp.ne.s32.totalorder %s250, %s266
    %p268 = scmp.eq.s32.totalorder %s22, 0
    %p269 = por %p267, %p268
    %p270 = scmp.le.s32.totalorder 1, %s16
    %p271 = scmp.lt.s32.totalorder %s16, 3
    %p272 = pnand %p270, %p271
    %p273 = pneg %p272
    // Predicated region
    $region9: #{model_forward.17} parent=5 // pred_check
      _
    $region10: #{model_forward.17} parent=5 // pred_check_branch
      %275 = sbr.rel (%p272) target = $region12
    $region11: #{model_forward.17} parent=5 // pred_region
      %s276 = ssub.s32 %s16, 1
      // Predicated region
      $region13: #{model_forward.17} parent=11 // pred_check
        %p277 = pneg %p89
      $region14: #{model_forward.17} parent=11 // pred_check_branch
        %279 = sbr.rel (%p277) target = $region16
      $region15: #{model_forward.17} parent=11 // pred_region
        _
      $region16: #{model_forward.17} parent=11 // pred_fallthru
        _
      // Predicated region
      $region17: #{model_forward.17} parent=11 // pred_check
        %p280 = pneg %p110
      $region18: #{model_forward.17} parent=11 // pred_check_branch
        %282 = sbr.rel (%p280) target = $region20
      $region19: #{model_forward.17} parent=11 // pred_region
        _
      $region20: #{model_forward.17} parent=11 // pred_fallthru
        _
      // Predicated region
      $region21: #{model_forward.17} parent=11 // pred_check
        %p283 = pneg %p131
      $region22: #{model_forward.17} parent=11 // pred_check_branch
        %285 = sbr.rel (%p283) target = $region24
      $region23: #{model_forward.17} parent=11 // pred_region
        _
      $region24: #{model_forward.17} parent=11 // pred_fallthru
        _
      // Predicated region
      $region25: #{model_forward.17} parent=11 // pred_check
        %p286 = pneg %p152
      $region26: #{model_forward.17} parent=11 // pred_check_branch
        %288 = sbr.rel (%p286) target = $region28
      $region27: #{model_forward.17} parent=11 // pred_region
        _
      $region28: #{model_forward.17} parent=11 // pred_fallthru
        _
      // Predicated region
      $region29: #{model_forward.17} parent=11 // pred_check
        %p289 = pneg %p173
      $region30: #{model_forward.17} parent=11 // pred_check_branch
        %291 = sbr.rel (%p289) target = $region32
      $region31: #{model_forward.17} parent=11 // pred_region
        _
      $region32: #{model_forward.17} parent=11 // pred_fallthru
        _
      // Predicated region
      $region33: #{model_forward.17} parent=11 // pred_check
        %p292 = pneg %p194
      $region34: #{model_forward.17} parent=11 // pred_check_branch
        %294 = sbr.rel (%p292) target = $region36
      $region35: #{model_forward.17} parent=11 // pred_region
        _
      $region36: #{model_forward.17} parent=11 // pred_fallthru
        _
      // Predicated region
      $region37: #{model_forward.17} parent=11 // pred_check
        %p295 = pneg %p215
      $region38: #{model_forward.17} parent=11 // pred_check_branch
        %297 = sbr.rel (%p295) target = $region40
      $region39: #{model_forward.17} parent=11 // pred_region
        _
      $region40: #{model_forward.17} parent=11 // pred_fallthru
        _
      // Predicated region
      $region41: #{model_forward.17} parent=11 // pred_check
        %p298 = pneg %p236
      $region42: #{model_forward.17} parent=11 // pred_check_branch
        %300 = sbr.rel (%p298) target = $region44
      $region43: #{model_forward.17} parent=11 // pred_region
        _
      $region44: #{model_forward.17} parent=11 // pred_fallthru
        _
    $region12: #{model_forward.17} parent=5 // pred_fallthru
      _
    %p301 = scmp.lt.s32.totalorder %s16, 2
    // Predicated region
    $region45: #{model_forward.17} parent=5 // pred_check
      %p302 = pneg %p301
    $region46: #{model_forward.17} parent=5 // pred_check_branch
      %304 = sbr.rel (%p302) target = $region48
    $region47: #{model_forward.17} parent=5 // pred_region
      // Predicated region
      $region49: #{model_forward.17} parent=47 // pred_check
        %p305 = pneg %p36
      $region50: #{model_forward.17} parent=47 // pred_check_branch
        %307 = sbr.rel (%p305) target = $region52
      $region51: #{model_forward.17} parent=47 // pred_region
        %p308 = scmp.lt.s32.totalorder %s16, 1
        %s309 = scalar_select %p308, %s16, 1
        %s310 = smul.addr %s309, 4
        %s311 = scalar_lea.vmem %s0, %s310
      $region52: #{model_forward.17} parent=47 // pred_fallthru
        _
      // Predicated region
      $region53: #{model_forward.17} parent=47 // pred_check
        %p312 = pneg %p62
      $region54: #{model_forward.17} parent=47 // pred_check_branch
        %314 = sbr.rel (%p312) target = $region56
      $region55: #{model_forward.17} parent=47 // pred_region
        %p315 = scmp.lt.s32.totalorder %s16, 1
        %s316 = scalar_select %p315, %s16, 1
        %s317 = smul.addr %s316, 4
        %s318 = scalar_lea.vmem %s1, %s317
      $region56: #{model_forward.17} parent=47 // pred_fallthru
        _
    $region48: #{model_forward.17} parent=5 // pred_fallthru
      _
    %p319 = scmp.le.s32.totalorder 1, %s16
    %p320 = scmp.lt.s32.totalorder %s16, 3
    %p321 = pnand %p319, %p320
    %p322 = pneg %p321
    // Predicated region
    $region57: #{model_forward.17} parent=5 // pred_check
      _
    $region58: #{model_forward.17} parent=5 // pred_check_branch
      %324 = sbr.rel (%p321) target = $region60
    $region59: #{model_forward.17} parent=5 // pred_region
      %s325 = ssub.s32 %s16, 1
      %p326 = scmp.lt.s32.totalorder %s21, 1
      %s327 = scalar_select %p326, %s21, 1
      %s328 = smul.addr %s327, 4
      %s329 = scalar_lea.vmem %s0, %s328
      %p330 = pneg %p42
      %p331 = pneg %p39
      %p332 = scmp.lt.s32.totalorder %s21, 1
      %s333 = scalar_select %p332, %s21, 1
      %s334 = smul.addr %s333, 4
      %s335 = scalar_lea.vmem %s1, %s334
      %p336 = pneg %p68
      %p337 = pneg %p65
      %p338 = pneg %p89
      %p339 = pneg %p86
      %p340 = pneg %p110
      %p341 = pneg %p107
      %p342 = pneg %p131
      %p343 = pneg %p128
      %p344 = pneg %p152
      %p345 = pneg %p149
      %p346 = pneg %p173
      %p347 = pneg %p170
      %p348 = pneg %p194
      %p349 = pneg %p191
      %p350 = pneg %p215
      %p351 = pneg %p212
      %p352 = pneg %p236
      %p353 = pneg %p233
      %p354 = pneg %p262
      %p355 = pneg %p259
      %p356 = scmp.lt.s32.totalorder %s21, 1
      %s357 = scalar_select %p356, %s21, 1
      %s358 = smul.addr %s357, 4
      %s359 = scalar_lea.vmem %s10, %s358
      %p360 = scmp.lt.s32.totalorder %s21, 1
      %s361 = scalar_select %p360, %s21, 1
      %s362 = smul.addr %s361, 4
      %s363 = scalar_lea.vmem %s0, %s362
      %p364 = scmp.lt.s32.totalorder %s21, 1
      %s365 = scalar_select %p364, %s21, 1
      %s366 = smul.addr %s365, 4
      %s367 = scalar_lea.vmem %s1, %s366
      %p368 = scmp.lt.s32.totalorder %s21, 1
      %s369 = scalar_select %p368, %s21, 1
      %s370 = smul.addr %s369, 4
      %s371 = scalar_lea.vmem %s10, %s370
      %v373 = vld [vmem:[%s363] sm:$0xf]
      %v374 = vld [vmem:[%s367] sm:$0xf]
      %v375 = vpack.c.bf16 %v373, %v373
      %v376 = vld [vmem:[%s4] sm:$0xf]
      %v377 = vld [vmem:[%s4 + $0x4] sm:$0xf]
      %v378 = vld [vmem:[%s4 + $0x8] sm:$0xf]
      %v379 = vld [vmem:[%s4 + $0xc] sm:$0xf]
      %v380 = vld [vmem:[%s4 + $0x10] sm:$0xf]
      %v381 = vld [vmem:[%s4 + $0x14] sm:$0xf]
      %v382 = vld [vmem:[%s4 + $0x18] sm:$0xf]
      %v383 = vld [vmem:[%s4 + $0x1c] sm:$0xf]
      %v384 = vld [vmem:[%s4 + $0x20] sm:$0xf]
      %v385 = vld [vmem:[%s4 + $0x24] sm:$0xf]
      %v386 = vld [vmem:[%s4 + $0x28] sm:$0xf]
      %v387 = vld [vmem:[%s4 + $0x2c] sm:$0xf]
      %v388 = vld [vmem:[%s4 + $0x30] sm:$0xf]
      %v389 = vld [vmem:[%s4 + $0x34] sm:$0xf]
      %v390 = vld [vmem:[%s4 + $0x38] sm:$0xf]
      %v391 = vld [vmem:[%s4 + $0x3c] sm:$0xf]
      %v392 = vld [vmem:[%s5] sm:$0x1]
      %v394 = vlaneseq
      %v395 = vshrl.u32 %v394, 7
      %v396 = vsub.s32 0, %v395
      %v397 = vrot.slane %v392, %v396
      %v415 = vunpack.c.l.b16 %v376
      %v416 = vunpack.c.l.b16 %v377
      %v417 = vunpack.c.l.b16 %v378
      %v418 = vunpack.c.l.b16 %v379
      %v419 = vunpack.c.l.b16 %v380
      %v420 = vunpack.c.l.b16 %v381
      %v421 = vunpack.c.l.b16 %v382
      %v422 = vunpack.c.l.b16 %v383
      %v423 = vunpack.c.l.b16 %v384
      %v424 = vunpack.c.l.b16 %v385
      %v425 = vunpack.c.l.b16 %v386
      %v426 = vunpack.c.l.b16 %v387
      %v427 = vunpack.c.l.b16 %v388
      %v428 = vunpack.c.l.b16 %v389
      %v429 = vunpack.c.l.b16 %v390
      %v430 = vunpack.c.l.b16 %v391
      %v431 = vpack.c.b16 %v416, %v415
      %v432 = vpack.c.b16 %v418, %v417
      %v433 = vpack.c.b16 %v420, %v419
      %v434 = vpack.c.b16 %v422, %v421
      %v435 = vpack.c.b16 %v424, %v423
      %v436 = vpack.c.b16 %v426, %v425
      %v437 = vpack.c.b16 %v428, %v427
      %v438 = vpack.c.b16 %v430, %v429
      %447 = vmatprep.subr.bf16.mxu0 0
      %448 = vmatpush1.bf16.msra.mxu0 %v431
      %449 = vmatprep.subr.bf16.mxu0 0
      %450 = vmatpush1.bf16.msra.mxu0 %v432
      %451 = vmatprep.subr.bf16.mxu0 0
      %452 = vmatpush1.bf16.msra.mxu0 %v433
      %453 = vmatprep.subr.bf16.mxu0 0
      %454 = vmatpush1.bf16.msra.mxu0 %v434
      %455 = vmatprep.subr.bf16.mxu0 0
      %456 = vmatpush1.bf16.msra.mxu0 %v435
      %457 = vmatprep.subr.bf16.mxu0 0
      %458 = vmatpush1.bf16.msra.mxu0 %v436
      %459 = vmatprep.subr.bf16.mxu0 0
      %460 = vmatpush1.bf16.msra.mxu0 %v437
      %461 = vmatprep.subr.bf16.mxu0 0
      %462 = vmatpush1.bf16.msra.mxu0 %v438
      %463 = vmatprep.subr.bf16.mxu0 0
      %464 = vmatpush1.bf16.msra.mxu0 0
      %465 = vmatprep.subr.bf16.mxu0 0
      %466 = vmatpush1.bf16.msra.mxu0 0
      %467 = vmatprep.subr.bf16.mxu0 0
      %468 = vmatpush1.bf16.msra.mxu0 0
      %469 = vmatprep.subr.bf16.mxu0 0
      %470 = vmatpush1.bf16.msra.mxu0 0
      %471 = vmatprep.subr.bf16.mxu0 0
      %472 = vmatpush1.bf16.msra.mxu0 0
      %473 = vmatprep.subr.bf16.mxu0 0
      %474 = vmatpush1.bf16.msra.mxu0 0
      %475 = vmatprep.subr.bf16.mxu0 0
      %476 = vmatpush1.bf16.msra.mxu0 0
      %477 = vmatprep.subr.bf16.mxu0 0
      %478 = vmatpush1.bf16.msra.mxu0 0
      %479 = vmatprep.mubr.bf16.mxu0 0
      %480 = vmatmul.mubr.bf16.gmra.mrb[0].mxu0 %v375
      %v481 = vpop.f32.mrb[0].mxu0
      %v482 = vadd.f32 %v397, %v481
      %v483 = vpop.f32.mrb[0].mxu0
      %v484 = vpop.f32.mrb[0].mxu0
      %v485 = vpop.f32.mrb[0].mxu0
      %486 = vdwg.mxu0
      %v487 = vpack.c.bf16 %v374, %v374
      %v488 = vld [vmem:[%s6] sm:$0xff]
      %v489 = vld [vmem:[%s6 + $0x8] sm:$0xff]
      %v490 = vld [vmem:[%s6 + $0x10] sm:$0xff]
      %v491 = vld [vmem:[%s6 + $0x18] sm:$0xff]
      %v492 = vld [vmem:[%s6 + $0x20] sm:$0xff]
      %v493 = vld [vmem:[%s6 + $0x28] sm:$0xff]
      %v494 = vld [vmem:[%s6 + $0x30] sm:$0xff]
      %v495 = vld [vmem:[%s6 + $0x38] sm:$0xff]
      %v496 = vld [vmem:[%s6 + $0x40] sm:$0xff]
      %v497 = vld [vmem:[%s6 + $0x48] sm:$0xff]
      %v498 = vld [vmem:[%s6 + $0x50] sm:$0xff]
      %v499 = vld [vmem:[%s6 + $0x58] sm:$0xff]
      %v500 = vld [vmem:[%s6 + $0x60] sm:$0xff]
      %v501 = vld [vmem:[%s6 + $0x68] sm:$0xff]
      %v502 = vld [vmem:[%s6 + $0x70] sm:$0xff]
      %v503 = vld [vmem:[%s6 + $0x78] sm:$0xff]
      %v504 = vld [vmem:[%s7] sm:$0x3]
      %v506 = vlaneseq
      %v507 = vshrl.u32 %v506, 7
      %v508 = vsub.s32 0, %v507
      %v509 = vrot.slane %v504, %v508
      %v510 = vlaneseq
      %v511 = vshrl.u32 %v510, 7
      %v512 = vsub.s32 1, %v511
      %v513 = vrot.slane %v504, %v512
      %v532 = vunpack.c.l.b16 %v488
      %v533 = vunpack.c.h.b16 %v488
      %v534 = vunpack.c.l.b16 %v489
      %v535 = vunpack.c.h.b16 %v489
      %v536 = vunpack.c.l.b16 %v490
      %v537 = vunpack.c.h.b16 %v490
      %v538 = vunpack.c.l.b16 %v491
      %v539 = vunpack.c.h.b16 %v491
      %v540 = vunpack.c.l.b16 %v492
      %v541 = vunpack.c.h.b16 %v492
      %v542 = vunpack.c.l.b16 %v493
      %v543 = vunpack.c.h.b16 %v493
      %v544 = vunpack.c.l.b16 %v494
      %v545 = vunpack.c.h.b16 %v494
      %v546 = vunpack.c.l.b16 %v495
      %v547 = vunpack.c.h.b16 %v495
      %v548 = vunpack.c.l.b16 %v496
      %v549 = vunpack.c.h.b16 %v496
      %v550 = vunpack.c.l.b16 %v497
      %v551 = vunpack.c.h.b16 %v497
      %v552 = vunpack.c.l.b16 %v498
      %v553 = vunpack.c.h.b16 %v498
      %v554 = vunpack.c.l.b16 %v499
      %v555 = vunpack.c.h.b16 %v499
      %v556 = vunpack.c.l.b16 %v500
      %v557 = vunpack.c.h.b16 %v500
      %v558 = vunpack.c.l.b16 %v501
      %v559 = vunpack.c.h.b16 %v501
      %v560 = vunpack.c.l.b16 %v502
      %v561 = vunpack.c.h.b16 %v502
      %v562 = vunpack.c.l.b16 %v503
      %v563 = vunpack.c.h.b16 %v503
      %v564 = vpack.c.b16 %v534, %v532
      %v565 = vpack.c.b16 %v535, %v533
      %v566 = vpack.c.b16 %v538, %v536
      %v567 = vpack.c.b16 %v539, %v537
      %v568 = vpack.c.b16 %v542, %v540
      %v569 = vpack.c.b16 %v543, %v541
      %v570 = vpack.c.b16 %v546, %v544
      %v571 = vpack.c.b16 %v547, %v545
      %v572 = vpack.c.b16 %v550, %v548
      %v573 = vpack.c.b16 %v551, %v549
      %v574 = vpack.c.b16 %v554, %v552
      %v575 = vpack.c.b16 %v555, %v553
      %v576 = vpack.c.b16 %v558, %v556
      %v577 = vpack.c.b16 %v559, %v557
      %v578 = vpack.c.b16 %v562, %v560
      %v579 = vpack.c.b16 %v563, %v561
      %596 = vmatprep.subr.bf16.mxu0 %v565
      %597 = vmatpush1.bf16.msra.mxu0 %v564
      %598 = vmatprep.subr.bf16.mxu0 %v567
      %599 = vmatpush1.bf16.msra.mxu0 %v566
      %600 = vmatprep.subr.bf16.mxu0 %v569
      %601 = vmatpush1.bf16.msra.mxu0 %v568
      %602 = vmatprep.subr.bf16.mxu0 %v571
      %603 = vmatpush1.bf16.msra.mxu0 %v570
      %604 = vmatprep.subr.bf16.mxu0 %v573
      %605 = vmatpush1.bf16.msra.mxu0 %v572
      %606 = vmatprep.subr.bf16.mxu0 %v575
      %607 = vmatpush1.bf16.msra.mxu0 %v574
      %608 = vmatprep.subr.bf16.mxu0 %v577
      %609 = vmatpush1.bf16.msra.mxu0 %v576
      %610 = vmatprep.subr.bf16.mxu0 %v579
      %611 = vmatpush1.bf16.msra.mxu0 %v578
      %612 = vmatprep.subr.bf16.mxu0 0
      %613 = vmatpush1.bf16.msra.mxu0 0
      %614 = vmatprep.subr.bf16.mxu0 0
      %615 = vmatpush1.bf16.msra.mxu0 0
      %616 = vmatprep.subr.bf16.mxu0 0
      %617 = vmatpush1.bf16.msra.mxu0 0
      %618 = vmatprep.subr.bf16.mxu0 0
      %619 = vmatpush1.bf16.msra.mxu0 0
      %620 = vmatprep.subr.bf16.mxu0 0
      %621 = vmatpush1.bf16.msra.mxu0 0
      %622 = vmatprep.subr.bf16.mxu0 0
      %623 = vmatpush1.bf16.msra.mxu0 0
      %624 = vmatprep.subr.bf16.mxu0 0
      %625 = vmatpush1.bf16.msra.mxu0 0
      %626 = vmatprep.subr.bf16.mxu0 0
      %627 = vmatpush1.bf16.msra.mxu0 0
      %628 = vmatprep.mubr.bf16.mxu0 0
      %629 = vmatmul.mubr.bf16.gmra.mrb[0].mxu0 %v487
      %v630 = vpop.f32.mrb[0].mxu0
      %v631 = vadd.f32 %v509, %v630
      %v632 = vpop.f32.mrb[0].mxu0
      %v633 = vadd.f32 %v513, %v632
      %v634 = vpop.f32.mrb[0].mxu0
      %v635 = vpop.f32.mrb[0].mxu0
      %636 = vdwg.mxu0
      %v637 = vld [vmem:[%s8] sm:$0xff]
      %v638 = vld [vmem:[%s8 + $0x8] sm:$0xff]
      %v639 = vld [vmem:[%s8 + $0x10] sm:$0xff]
      %v640 = vld [vmem:[%s8 + $0x18] sm:$0xff]
      %v641 = vld [vmem:[%s8 + $0x20] sm:$0xff]
      %v642 = vld [vmem:[%s8 + $0x28] sm:$0xff]
      %v643 = vld [vmem:[%s8 + $0x30] sm:$0xff]
      %v644 = vld [vmem:[%s8 + $0x38] sm:$0xff]
      %v645 = vld [vmem:[%s8 + $0x40] sm:$0xff]
      %v646 = vld [vmem:[%s8 + $0x48] sm:$0xff]
      %v647 = vld [vmem:[%s8 + $0x50] sm:$0xff]
      %v648 = vld [vmem:[%s8 + $0x58] sm:$0xff]
      %v649 = vld [vmem:[%s8 + $0x60] sm:$0xff]
      %v650 = vld [vmem:[%s8 + $0x68] sm:$0xff]
      %v651 = vld [vmem:[%s8 + $0x70] sm:$0xff]
      %v652 = vld [vmem:[%s8 + $0x78] sm:$0xff]
      %v653 = vpack.c.bf16 %v482, %v482
      %v654 = vpack.c.bf16 %v631, %v631
      %v655 = vpack.c.bf16 %v633, %v633
      %vm656 = vcmask 261120
      %v658 = vsel %vm656, %v653, 0
      %v661 = vsel %vm656, %v654, 0
      %663 = vmatprep.subr.bf16.mxu0 0
      %664 = vmatpush1.bf16.xpose.msra.mxu0 %v661
      %665 = vmatprep.subr.bf16.mxu0 0
      %666 = vmatpush1.bf16.xpose.msra.mxu0 0
      %667 = vmatprep.subr.bf16.mxu0 0
      %668 = vmatpush1.bf16.xpose.msra.mxu0 0
      %669 = vmatprep.subr.bf16.mxu0 0
      %670 = vmatpush1.bf16.xpose.msra.mxu0 0
      %671 = vmatprep.subr.bf16.mxu0 0
      %672 = vmatpush1.bf16.xpose.msra.mxu0 0
      %673 = vmatprep.subr.bf16.mxu0 0
      %674 = vmatpush1.bf16.xpose.msra.mxu0 0
      %675 = vmatprep.subr.bf16.mxu0 0
      %676 = vmatpush1.bf16.xpose.msra.mxu0 0
      %677 = vmatprep.subr.bf16.mxu0 0
      %678 = vmatpush1.bf16.xpose.msra.mxu0 0
      %679 = vmatprep.subr.bf16.mxu0 0
      %680 = vmatpush1.bf16.xpose.msra.mxu0 0
      %681 = vmatprep.subr.bf16.mxu0 0
      %682 = vmatpush1.bf16.xpose.msra.mxu0 0
      %683 = vmatprep.subr.bf16.mxu0 0
      %684 = vmatpush1.bf16.xpose.msra.mxu0 0
      %685 = vmatprep.subr.bf16.mxu0 0
      %686 = vmatpush1.bf16.xpose.msra.mxu0 0
      %687 = vmatprep.subr.bf16.mxu0 0
      %688 = vmatpush1.bf16.xpose.msra.mxu0 0
      %689 = vmatprep.subr.bf16.mxu0 0
      %690 = vmatpush1.bf16.xpose.msra.mxu0 0
      %691 = vmatprep.subr.bf16.mxu0 0
      %692 = vmatpush1.bf16.xpose.msra.mxu0 0
      %693 = vmatprep.subr.bf16.mxu0 0
      %694 = vmatpush1.bf16.xpose.msra.mxu0 0
      %695 = vmatprep.mubr.bf16.mxu0 0
      %696 = vmatmul.mubr.bf16.gmra.mrb[0].mxu0 %v658
      %v697 = vpop.f32.mrb[0].mxu0
      %v698 = vadd.f32 0.0, %v697
      %v699 = vpop.f32.mrb[0].mxu0
      %v700 = vpop.f32.mrb[0].mxu0
      %v701 = vpop.f32.mrb[0].mxu0
      %702 = vdwg.mxu0
      %v703 = vmul.f32 %v698, 0.17677669
      %vm704 = vcmask 27648
      %v705 = vsel %vm704, %v703, -inf
      %706 = vmax.xlane.f32.xlu0 %v705
      %v707 = vpop.xlane.xlu0 %706
      %v708 = vsub.f32 %v703, %v707
      %v709 = vmul.f32 %v708, 1.442695
      %v710 = vpow.pop %v709
      %v711 = vsel %vm704, %v710, 0.0
      %712 = vadd.xlane.f32.xlu0 %v711
      %v713 = vpop.xlane.xlu0 %712
      %v714 = vrcp.pop %v713
      %v715 = vmul.f32 %v710, %v714
      %v716 = vpack.c.bf16 %v715, %v715
      %vm717 = vcmask 31744
      %v719 = vsel %vm717, %v716, 0
      %vm721 = vcmask 1041408
      %v723 = vsel %vm721, %v655, 0
      %725 = vmatprep.subr.bf16.mxu0 0
      %726 = vmatpush1.bf16.msra.mxu0 %v723
      %727 = vmatprep.subr.bf16.mxu0 0
      %728 = vmatpush1.bf16.msra.mxu0 0
      %729 = vmatprep.subr.bf16.mxu0 0
      %730 = vmatpush1.bf16.msra.mxu0 0
      %731 = vmatprep.subr.bf16.mxu0 0
      %732 = vmatpush1.bf16.msra.mxu0 0
      %733 = vmatprep.subr.bf16.mxu0 0
      %734 = vmatpush1.bf16.msra.mxu0 0
      %735 = vmatprep.subr.bf16.mxu0 0
      %736 = vmatpush1.bf16.msra.mxu0 0
      %737 = vmatprep.subr.bf16.mxu0 0
      %738 = vmatpush1.bf16.msra.mxu0 0
      %739 = vmatprep.subr.bf16.mxu0 0
      %740 = vmatpush1.bf16.msra.mxu0 0
      %741 = vmatprep.subr.bf16.mxu0 0
      %742 = vmatpush1.bf16.msra.mxu0 0
      %743 = vmatprep.subr.bf16.mxu0 0
      %744 = vmatpush1.bf16.msra.mxu0 0
      %745 = vmatprep.subr.bf16.mxu0 0
      %746 = vmatpush1.bf16.msra.mxu0 0
      %747 = vmatprep.subr.bf16.mxu0 0
      %748 = vmatpush1.bf16.msra.mxu0 0
      %749 = vmatprep.subr.bf16.mxu0 0
      %750 = vmatpush1.bf16.msra.mxu0 0
      %751 = vmatprep.subr.bf16.mxu0 0
      %752 = vmatpush1.bf16.msra.mxu0 0
      %753 = vmatprep.subr.bf16.mxu0 0
      %754 = vmatpush1.bf16.msra.mxu0 0
      %755 = vmatprep.subr.bf16.mxu0 0
      %756 = vmatpush1.bf16.msra.mxu0 0
      %757 = vmatprep.mubr.bf16.mxu0 0
      %758 = vmatmul.mubr.bf16.gmra.mrb[0].mxu0 %v719
      %v759 = vpop.f32.mrb[0].mxu0
      %v760 = vadd.f32 0.0, %v759
      %v761 = vpop.f32.mrb[0].mxu0
      %v762 = vpop.f32.mrb[0].mxu0
      %v763 = vpop.f32.mrb[0].mxu0
      %764 = vdwg.mxu0
      %v765 = vpack.c.bf16 %v760, %v760
      %v766 = vpack.c.bf16 %v638, %v637
      %v767 = vpack.c.bf16 %v640, %v639
      %769 = vrot.lane.b32.xlu0 %v653, 96
      %v770 = vpop.permute.xlu0 %769
      %772 = vrot.lane.b32.xlu0 %v654, 96
      %v773 = vpop.permute.xlu0 %772
      %v775 = vsel %vm656, %v770, 0
      %v778 = vsel %vm656, %v773, 0
      %780 = vmatprep.subr.bf16.mxu0 0
      %781 = vmatpush1.bf16.xpose.msra.mxu0 %v778
      %782 = vmatprep.subr.bf16.mxu0 0
      %783 = vmatpush1.bf16.xpose.msra.mxu0 0
      %784 = vmatprep.subr.bf16.mxu0 0
      %785 = vmatpush1.bf16.xpose.msra.mxu0 0
      %786 = vmatprep.subr.bf16.mxu0 0
      %787 = vmatpush1.bf16.xpose.msra.mxu0 0
      %788 = vmatprep.subr.bf16.mxu0 0
      %789 = vmatpush1.bf16.xpose.msra.mxu0 0
      %790 = vmatprep.subr.bf16.mxu0 0
      %791 = vmatpush1.bf16.xpose.msra.mxu0 0
      %792 = vmatprep.subr.bf16.mxu0 0
      %793 = vmatpush1.bf16.xpose.msra.mxu0 0
      %794 = vmatprep.subr.bf16.mxu0 0
      %795 = vmatpush1.bf16.xpose.msra.mxu0 0
      %796 = vmatprep.subr.bf16.mxu0 0
      %797 = vmatpush1.bf16.xpose.msra.mxu0 0
      %798 = vmatprep.subr.bf16.mxu0 0
      %799 = vmatpush1.bf16.xpose.msra.mxu0 0
      %800 = vmatprep.subr.bf16.mxu0 0
      %801 = vmatpush1.bf16.xpose.msra.mxu0 0
      %802 = vmatprep.subr.bf16.mxu0 0
      %803 = vmatpush1.bf16.xpose.msra.mxu0 0
      %804 = vmatprep.subr.bf16.mxu0 0
      %805 = vmatpush1.bf16.xpose.msra.mxu0 0
      %806 = vmatprep.subr.bf16.mxu0 0
      %807 = vmatpush1.bf16.xpose.msra.mxu0 0
      %808 = vmatprep.subr.bf16.mxu0 0
      %809 = vmatpush1.bf16.xpose.msra.mxu0 0
      %810 = vmatprep.subr.bf16.mxu0 0
      %811 = vmatpush1.bf16.xpose.msra.mxu0 0
      %812 = vmatprep.mubr.bf16.mxu0 0
      %813 = vmatmul.mubr.bf16.gmra.mrb[0].mxu0 %v775
      %v814 = vpop.f32.mrb[0].mxu0
      %v815 = vadd.f32 0.0, %v814
      %v816 = vpop.f32.mrb[0].mxu0
      %v817 = vpop.f32.mrb[0].mxu0
      %v818 = vpop.f32.mrb[0].mxu0
      %819 = vdwg.mxu0
      %v820 = vmul.f32 %v815, 0.17677669
      %v821 = vsel %vm704, %v820, -inf
      %822 = vmax.xlane.f32.xlu0 %v821
      %v823 = vpop.xlane.xlu0 %822
      %v824 = vsub.f32 %v820, %v823
      %v825 = vmul.f32 %v824, 1.442695
      %v826 = vpow.pop %v825
      %v827 = vsel %vm704, %v826, 0.0
      %828 = vadd.xlane.f32.xlu0 %v827
      %v829 = vpop.xlane.xlu0 %828
      %v830 = vrcp.pop %v829
      %v831 = vmul.f32 %v826, %v830
      %v832 = vpack.c.bf16 %v831, %v831
      %834 = vrot.lane.b32.xlu0 %v655, 96
      %v835 = vpop.permute.xlu0 %834
      %v837 = vsel %vm717, %v832, 0
      %v840 = vsel %vm721, %v835, 0
      %842 = vmatprep.subr.bf16.mxu0 0
      %843 = vmatpush1.bf16.msra.mxu0 %v840
      %844 = vmatprep.subr.bf16.mxu0 0
      %845 = vmatpush1.bf16.msra.mxu0 0
      %846 = vmatprep.subr.bf16.mxu0 0
      %847 = vmatpush1.bf16.msra.mxu0 0
      %848 = vmatprep.subr.bf16.mxu0 0
      %849 = vmatpush1.bf16.msra.mxu0 0
      %850 = vmatprep.subr.bf16.mxu0 0
      %851 = vmatpush1.bf16.msra.mxu0 0
      %852 = vmatprep.subr.bf16.mxu0 0
      %853 = vmatpush1.bf16.msra.mxu0 0
      %854 = vmatprep.subr.bf16.mxu0 0
      %855 = vmatpush1.bf16.msra.mxu0 0
      %856 = vmatprep.subr.bf16.mxu0 0
      %857 = vmatpush1.bf16.msra.mxu0 0
      %858 = vmatprep.subr.bf16.mxu0 0
      %859 = vmatpush1.bf16.msra.mxu0 0
      %860 = vmatprep.subr.bf16.mxu0 0
      %861 = vmatpush1.bf16.msra.mxu0 0
      %862 = vmatprep.subr.bf16.mxu0 0
      %863 = vmatpush1.bf16.msra.mxu0 0
      %864 = vmatprep.subr.bf16.mxu0 0
      %865 = vmatpush1.bf16.msra.mxu0 0
      %866 = vmatprep.subr.bf16.mxu0 0
      %867 = vmatpush1.bf16.msra.mxu0 0
      %868 = vmatprep.subr.bf16.mxu0 0
      %869 = vmatpush1.bf16.msra.mxu0 0
      %870 = vmatprep.subr.bf16.mxu0 0
      %871 = vmatpush1.bf16.msra.mxu0 0
      %872 = vmatprep.subr.bf16.mxu0 0
      %873 = vmatpush1.bf16.msra.mxu0 0
      %874 = vmatprep.mubr.bf16.mxu0 0
      %875 = vmatmul.mubr.bf16.gmra.mrb[0].mxu0 %v837
      %v876 = vpop.f32.mrb[0].mxu0
      %v877 = vadd.f32 0.0, %v876
      %v878 = vpop.f32.mrb[0].mxu0
      %v879 = vpop.f32.mrb[0].mxu0
      %v880 = vpop.f32.mrb[0].mxu0
      %881 = vdwg.mxu0
      %v882 = vpack.c.bf16 %v877, %v877
      %v883 = vpack.c.bf16 %v642, %v641
      %v884 = vpack.c.bf16 %v644, %v643
      %v886 = vsel %vm656, %v882, 0
      %888 = vmatprep.subr.bf16.mxu0 0
      %889 = vmatpush1.bf16.msra.mxu0 %v883
      %890 = vmatprep.subr.bf16.mxu0 0
      %891 = vmatpush1.bf16.msra.mxu0 %v884
      %892 = vmatprep.subr.bf16.mxu0 0
      %893 = vmatpush1.bf16.msra.mxu0 0
      %894 = vmatprep.subr.bf16.mxu0 0
      %895 = vmatpush1.bf16.msra.mxu0 0
      %896 = vmatprep.subr.bf16.mxu0 0
      %897 = vmatpush1.bf16.msra.mxu0 0
      %898 = vmatprep.subr.bf16.mxu0 0
      %899 = vmatpush1.bf16.msra.mxu0 0
      %900 = vmatprep.subr.bf16.mxu0 0
      %901 = vmatpush1.bf16.msra.mxu0 0
      %902 = vmatprep.subr.bf16.mxu0 0
      %903 = vmatpush1.bf16.msra.mxu0 0
      %904 = vmatprep.subr.bf16.mxu0 0
      %905 = vmatpush1.bf16.msra.mxu0 0
      %906 = vmatprep.subr.bf16.mxu0 0
      %907 = vmatpush1.bf16.msra.mxu0 0
      %908 = vmatprep.subr.bf16.mxu0 0
      %909 = vmatpush1.bf16.msra.mxu0 0
      %910 = vmatprep.subr.bf16.mxu0 0
      %911 = vmatpush1.bf16.msra.mxu0 0
      %912 = vmatprep.subr.bf16.mxu0 0
      %913 = vmatpush1.bf16.msra.mxu0 0
      %914 = vmatprep.subr.bf16.mxu0 0
      %915 = vmatpush1.bf16.msra.mxu0 0
      %916 = vmatprep.subr.bf16.mxu0 0
      %917 = vmatpush1.bf16.msra.mxu0 0
      %918 = vmatprep.subr.bf16.mxu0 0
      %919 = vmatpush1.bf16.msra.mxu0 0
      %920 = vmatprep.mubr.bf16.mxu0 0
      %921 = vmatmul.mubr.bf16.gmra.mrb[0].mxu0 %v886
      %v922 = vpop.f32.mrb[0].mxu0
      %v923 = vadd.f32 0.0, %v922
      %v924 = vpop.f32.mrb[0].mxu0
      %v925 = vpop.f32.mrb[0].mxu0
      %v926 = vpop.f32.mrb[0].mxu0
      %927 = vdwg.mxu0
      %v929 = vsel %vm656, %v765, 0
      %931 = vmatprep.subr.bf16.mxu0 0
      %932 = vmatpush1.bf16.msra.mxu0 %v766
      %933 = vmatprep.subr.bf16.mxu0 0
      %934 = vmatpush1.bf16.msra.mxu0 %v767
      %935 = vmatprep.subr.bf16.mxu0 0
      %936 = vmatpush1.bf16.msra.mxu0 0
      %937 = vmatprep.subr.bf16.mxu0 0
      %938 = vmatpush1.bf16.msra.mxu0 0
      %939 = vmatprep.subr.bf16.mxu0 0
      %940 = vmatpush1.bf16.msra.mxu0 0
      %941 = vmatprep.subr.bf16.mxu0 0
      %942 = vmatpush1.bf16.msra.mxu0 0
      %943 = vmatprep.subr.bf16.mxu0 0
      %944 = vmatpush1.bf16.msra.mxu0 0
      %945 = vmatprep.subr.bf16.mxu0 0
      %946 = vmatpush1.bf16.msra.mxu0 0
      %947 = vmatprep.subr.bf16.mxu0 0
      %948 = vmatpush1.bf16.msra.mxu0 0
      %949 = vmatprep.subr.bf16.mxu0 0
      %950 = vmatpush1.bf16.msra.mxu0 0
      %951 = vmatprep.subr.bf16.mxu0 0
      %952 = vmatpush1.bf16.msra.mxu0 0
      %953 = vmatprep.subr.bf16.mxu0 0
      %954 = vmatpush1.bf16.msra.mxu0 0
      %955 = vmatprep.subr.bf16.mxu0 0
      %956 = vmatpush1.bf16.msra.mxu0 0
      %957 = vmatprep.subr.bf16.mxu0 0
      %958 = vmatpush1.bf16.msra.mxu0 0
      %959 = vmatprep.subr.bf16.mxu0 0
      %960 = vmatpush1.bf16.msra.mxu0 0
      %961 = vmatprep.subr.bf16.mxu0 0
      %962 = vmatpush1.bf16.msra.mxu0 0
      %963 = vmatprep.mubr.bf16.mxu0 0
      %964 = vmatmul.mubr.bf16.gmra.mrb[0].mxu0 %v929
      %v965 = vpop.f32.mrb[0].mxu0
      %v966 = vadd.f32 %v923, %v965
      %v967 = vpop.f32.mrb[0].mxu0
      %v968 = vpop.f32.mrb[0].mxu0
      %v969 = vpop.f32.mrb[0].mxu0
      %970 = vdwg.mxu0
      %971 = vrot.lane.b32.xlu0 %v653, 64
      %v972 = vpop.permute.xlu0 %971
      %973 = vrot.lane.b32.xlu0 %v654, 64
      %v974 = vpop.permute.xlu0 %973
      %v976 = vsel %vm656, %v972, 0
      %v979 = vsel %vm656, %v974, 0
      %981 = vmatprep.subr.bf16.mxu0 0
      %982 = vmatpush1.bf16.xpose.msra.mxu0 %v979
      %983 = vmatprep.subr.bf16.mxu0 0
      %984 = vmatpush1.bf16.xpose.msra.mxu0 0
      %985 = vmatprep.subr.bf16.mxu0 0
      %986 = vmatpush1.bf16.xpose.msra.mxu0 0
      %987 = vmatprep.subr.bf16.mxu0 0
      %988 = vmatpush1.bf16.xpose.msra.mxu0 0
      %989 = vmatprep.subr.bf16.mxu0 0
      %990 = vmatpush1.bf16.xpose.msra.mxu0 0
      %991 = vmatprep.subr.bf16.mxu0 0
      %992 = vmatpush1.bf16.xpose.msra.mxu0 0
      %993 = vmatprep.subr.bf16.mxu0 0
      %994 = vmatpush1.bf16.xpose.msra.mxu0 0
      %995 = vmatprep.subr.bf16.mxu0 0
      %996 = vmatpush1.bf16.xpose.msra.mxu0 0
      %997 = vmatprep.subr.bf16.mxu0 0
      %998 = vmatpush1.bf16.xpose.msra.mxu0 0
      %999 = vmatprep.subr.bf16.mxu0 0
      %1000 = vmatpush1.bf16.xpose.msra.mxu0 0
      %1001 = vmatprep.subr.bf16.mxu0 0
      %1002 = vmatpush1.bf16.xpose.msra.mxu0 0
      %1003 = vmatprep.subr.bf16.mxu0 0
      %1004 = vmatpush1.bf16.xpose.msra.mxu0 0
      %1005 = vmatprep.subr.bf16.mxu0 0
      %1006 = vmatpush1.bf16.xpose.msra.mxu0 0
      %1007 = vmatprep.subr.bf16.mxu0 0
      %1008 = vmatpush1.bf16.xpose.msra.mxu0 0
      %1009 = vmatprep.subr.bf16.mxu0 0
      %1010 = vmatpush1.bf16.xpose.msra.mxu0 0
      %1011 = vmatprep.subr.bf16.mxu0 0
      %1012 = vmatpush1.bf16.xpose.msra.mxu0 0
      %1013 = vmatprep.mubr.bf16.mxu0 0
      %1014 = vmatmul.mubr.bf16.gmra.mrb[0].mxu0 %v976
      %v1015 = vpop.f32.mrb[0].mxu0
      %v1016 = vadd.f32 0.0, %v1015
      %v1017 = vpop.f32.mrb[0].mxu0
      %v1018 = vpop.f32.mrb[0].mxu0
      %v1019 = vpop.f32.mrb[0].mxu0
      %1020 = vdwg.mxu0
      %v1021 = vmul.f32 %v1016, 0.17677669
      %v1022 = vsel %vm704, %v1021, -inf
      %1023 = vmax.xlane.f32.xlu0 %v1022
      %v1024 = vpop.xlane.xlu0 %1023
      %v1025 = vsub.f32 %v1021, %v1024
      %v1026 = vmul.f32 %v1025, 1.442695
      %v1027 = vpow.pop %v1026
      %v1028 = vsel %vm704, %v1027, 0.0
      %1029 = vadd.xlane.f32.xlu0 %v1028
      %v1030 = vpop.xlane.xlu0 %1029
      %v1031 = vrcp.pop %v1030
      %v1032 = vmul.f32 %v1027, %v1031
      %v1033 = vpack.c.bf16 %v1032, %v1032
      %1034 = vrot.lane.b32.xlu0 %v655, 64
      %v1035 = vpop.permute.xlu0 %1034
      %v1037 = vsel %vm717, %v1033, 0
      %v1040 = vsel %vm721, %v1035, 0
      %1042 = vmatprep.subr.bf16.mxu0 0
      %1043 = vmatpush1.bf16.msra.mxu0 %v1040
      %1044 = vmatprep.subr.bf16.mxu0 0
      %1045 = vmatpush1.bf16.msra.mxu0 0
      %1046 = vmatprep.subr.bf16.mxu0 0
      %1047 = vmatpush1.bf16.msra.mxu0 0
      %1048 = vmatprep.subr.bf16.mxu0 0
      %1049 = vmatpush1.bf16.msra.mxu0 0
      %1050 = vmatprep.subr.bf16.mxu0 0
      %1051 = vmatpush1.bf16.msra.mxu0 0
      %1052 = vmatprep.subr.bf16.mxu0 0
      %1053 = vmatpush1.bf16.msra.mxu0 0
      %1054 = vmatprep.subr.bf16.mxu0 0
      %1055 = vmatpush1.bf16.msra.mxu0 0
      %1056 = vmatprep.subr.bf16.mxu0 0
      %1057 = vmatpush1.bf16.msra.mxu0 0
      %1058 = vmatprep.subr.bf16.mxu0 0
      %1059 = vmatpush1.bf16.msra.mxu0 0
      %1060 = vmatprep.subr.bf16.mxu0 0
      %1061 = vmatpush1.bf16.msra.mxu0 0
      %1062 = vmatprep.subr.bf16.mxu0 0
      %1063 = vmatpush1.bf16.msra.mxu0 0
      %1064 = vmatprep.subr.bf16.mxu0 0
      %1065 = vmatpush1.bf16.msra.mxu0 0
      %1066 = vmatprep.subr.bf16.mxu0 0
      %1067 = vmatpush1.bf16.msra.mxu0 0
      %1068 = vmatprep.subr.bf16.mxu0 0
      %1069 = vmatpush1.bf16.msra.mxu0 0
      %1070 = vmatprep.subr.bf16.mxu0 0
      %1071 = vmatpush1.bf16.msra.mxu0 0
      %1072 = vmatprep.subr.bf16.mxu0 0
      %1073 = vmatpush1.bf16.msra.mxu0 0
      %1074 = vmatprep.mubr.bf16.mxu0 0
      %1075 = vmatmul.mubr.bf16.gmra.mrb[0].mxu0 %v1037
      %v1076 = vpop.f32.mrb[0].mxu0
      %v1077 = vadd.f32 0.0, %v1076
      %v1078 = vpop.f32.mrb[0].mxu0
      %v1079 = vpop.f32.mrb[0].mxu0
      %v1080 = vpop.f32.mrb[0].mxu0
      %1081 = vdwg.mxu0
      %v1082 = vpack.c.bf16 %v1077, %v1077
      %v1083 = vpack.c.bf16 %v646, %v645
      %v1084 = vpack.c.bf16 %v648, %v647
      %v1086 = vsel %vm656, %v1082, 0
      %1088 = vmatprep.subr.bf16.mxu0 0
      %1089 = vmatpush1.bf16.msra.mxu0 %v1083
      %1090 = vmatprep.subr.bf16.mxu0 0
      %1091 = vmatpush1.bf16.msra.mxu0 %v1084
      %1092 = vmatprep.subr.bf16.mxu0 0
      %1093 = vmatpush1.bf16.msra.mxu0 0
      %1094 = vmatprep.subr.bf16.mxu0 0
      %1095 = vmatpush1.bf16.msra.mxu0 0
      %1096 = vmatprep.subr.bf16.mxu0 0
      %1097 = vmatpush1.bf16.msra.mxu0 0
      %1098 = vmatprep.subr.bf16.mxu0 0
      %1099 = vmatpush1.bf16.msra.mxu0 0
      %1100 = vmatprep.subr.bf16.mxu0 0
      %1101 = vmatpush1.bf16.msra.mxu0 0
      %1102 = vmatprep.subr.bf16.mxu0 0
      %1103 = vmatpush1.bf16.msra.mxu0 0
      %1104 = vmatprep.subr.bf16.mxu0 0
      %1105 = vmatpush1.bf16.msra.mxu0 0
      %1106 = vmatprep.subr.bf16.mxu0 0
      %1107 = vmatpush1.bf16.msra.mxu0 0
      %1108 = vmatprep.subr.bf16.mxu0 0
      %1109 = vmatpush1.bf16.msra.mxu0 0
      %1110 = vmatprep.subr.bf16.mxu0 0
      %1111 = vmatpush1.bf16.msra.mxu0 0
      %1112 = vmatprep.subr.bf16.mxu0 0
      %1113 = vmatpush1.bf16.msra.mxu0 0
      %1114 = vmatprep.subr.bf16.mxu0 0
      %1115 = vmatpush1.bf16.msra.mxu0 0
      %1116 = vmatprep.subr.bf16.mxu0 0
      %1117 = vmatpush1.bf16.msra.mxu0 0
      %1118 = vmatprep.subr.bf16.mxu0 0
      %1119 = vmatpush1.bf16.msra.mxu0 0
      %1120 = vmatprep.mubr.bf16.mxu0 0
      %1121 = vmatmul.mubr.bf16.gmra.mrb[0].mxu0 %v1086
      %v1122 = vpop.f32.mrb[0].mxu0
      %v1123 = vadd.f32 0.0, %v1122
      %v1124 = vpop.f32.mrb[0].mxu0
      %v1125 = vpop.f32.mrb[0].mxu0
      %v1126 = vpop.f32.mrb[0].mxu0
      %1127 = vdwg.mxu0
      %v1128 = vadd.f32 %v966, %v1123
      %1129 = vrot.lane.b32.xlu0 %v653, 32
      %v1130 = vpop.permute.xlu0 %1129
      %1131 = vrot.lane.b32.xlu0 %v654, 32
      %v1132 = vpop.permute.xlu0 %1131
      %v1134 = vsel %vm656, %v1130, 0
      %v1137 = vsel %vm656, %v1132, 0
      %1139 = vmatprep.subr.bf16.mxu0 0
      %1140 = vmatpush1.bf16.xpose.msra.mxu0 %v1137
      %1141 = vmatprep.subr.bf16.mxu0 0
      %1142 = vmatpush1.bf16.xpose.msra.mxu0 0
      %1143 = vmatprep.subr.bf16.mxu0 0
      %1144 = vmatpush1.bf16.xpose.msra.mxu0 0
      %1145 = vmatprep.subr.bf16.mxu0 0
      %1146 = vmatpush1.bf16.xpose.msra.mxu0 0
      %1147 = vmatprep.subr.bf16.mxu0 0
      %1148 = vmatpush1.bf16.xpose.msra.mxu0 0
      %1149 = vmatprep.subr.bf16.mxu0 0
      %1150 = vmatpush1.bf16.xpose.msra.mxu0 0
      %1151 = vmatprep.subr.bf16.mxu0 0
      %1152 = vmatpush1.bf16.xpose.msra.mxu0 0
      %1153 = vmatprep.subr.bf16.mxu0 0
      %1154 = vmatpush1.bf16.xpose.msra.mxu0 0
      %1155 = vmatprep.subr.bf16.mxu0 0
      %1156 = vmatpush1.bf16.xpose.msra.mxu0 0
      %1157 = vmatprep.subr.bf16.mxu0 0
      %1158 = vmatpush1.bf16.xpose.msra.mxu0 0
      %1159 = vmatprep.subr.bf16.mxu0 0
      %1160 = vmatpush1.bf16.xpose.msra.mxu0 0
      %1161 = vmatprep.subr.bf16.mxu0 0
      %1162 = vmatpush1.bf16.xpose.msra.mxu0 0
      %1163 = vmatprep.subr.bf16.mxu0 0
      %1164 = vmatpush1.bf16.xpose.msra.mxu0 0
      %1165 = vmatprep.subr.bf16.mxu0 0
      %1166 = vmatpush1.bf16.xpose.msra.mxu0 0
      %1167 = vmatprep.subr.bf16.mxu0 0
      %1168 = vmatpush1.bf16.xpose.msra.mxu0 0
      %1169 = vmatprep.subr.bf16.mxu0 0
      %1170 = vmatpush1.bf16.xpose.msra.mxu0 0
      %1171 = vmatprep.mubr.bf16.mxu0 0
      %1172 = vmatmul.mubr.bf16.gmra.mrb[0].mxu0 %v1134
      %v1173 = vpop.f32.mrb[0].mxu0
      %v1174 = vadd.f32 0.0, %v1173
      %v1175 = vpop.f32.mrb[0].mxu0
      %v1176 = vpop.f32.mrb[0].mxu0
      %v1177 = vpop.f32.mrb[0].mxu0
      %1178 = vdwg.mxu0
      %v1179 = vmul.f32 %v1174, 0.17677669
      %v1180 = vsel %vm704, %v1179, -inf
      %1181 = vmax.xlane.f32.xlu0 %v1180
      %v1182 = vpop.xlane.xlu0 %1181
      %v1183 = vsub.f32 %v1179, %v1182
      %v1184 = vmul.f32 %v1183, 1.442695
      %v1185 = vpow.pop %v1184
      %v1186 = vsel %vm704, %v1185, 0.0
      %1187 = vadd.xlane.f32.xlu0 %v1186
      %v1188 = vpop.xlane.xlu0 %1187
      %v1189 = vrcp.pop %v1188
      %v1190 = vmul.f32 %v1185, %v1189
      %v1191 = vpack.c.bf16 %v1190, %v1190
      %1192 = vrot.lane.b32.xlu0 %v655, 32
      %v1193 = vpop.permute.xlu0 %1192
      %v1195 = vsel %vm717, %v1191, 0
      %v1198 = vsel %vm721, %v1193, 0
      %1200 = vmatprep.subr.bf16.mxu0 0
      %1201 = vmatpush1.bf16.msra.mxu0 %v1198
      %1202 = vmatprep.subr.bf16.mxu0 0
      %1203 = vmatpush1.bf16.msra.mxu0 0
      %1204 = vmatprep.subr.bf16.mxu0 0
      %1205 = vmatpush1.bf16.msra.mxu0 0
      %1206 = vmatprep.subr.bf16.mxu0 0
      %1207 = vmatpush1.bf16.msra.mxu0 0
      %1208 = vmatprep.subr.bf16.mxu0 0
      %1209 = vmatpush1.bf16.msra.mxu0 0
      %1210 = vmatprep.subr.bf16.mxu0 0
      %1211 = vmatpush1.bf16.msra.mxu0 0
      %1212 = vmatprep.subr.bf16.mxu0 0
      %1213 = vmatpush1.bf16.msra.mxu0 0
      %1214 = vmatprep.subr.bf16.mxu0 0
      %1215 = vmatpush1.bf16.msra.mxu0 0
      %1216 = vmatprep.subr.bf16.mxu0 0
      %1217 = vmatpush1.bf16.msra.mxu0 0
      %1218 = vmatprep.subr.bf16.mxu0 0
      %1219 = vmatpush1.bf16.msra.mxu0 0
      %1220 = vmatprep.subr.bf16.mxu0 0
      %1221 = vmatpush1.bf16.msra.mxu0 0
      %1222 = vmatprep.subr.bf16.mxu0 0
      %1223 = vmatpush1.bf16.msra.mxu0 0
      %1224 = vmatprep.subr.bf16.mxu0 0
      %1225 = vmatpush1.bf16.msra.mxu0 0
      %1226 = vmatprep.subr.bf16.mxu0 0
      %1227 = vmatpush1.bf16.msra.mxu0 0
      %1228 = vmatprep.subr.bf16.mxu0 0
      %1229 = vmatpush1.bf16.msra.mxu0 0
      %1230 = vmatprep.subr.bf16.mxu0 0
      %1231 = vmatpush1.bf16.msra.mxu0 0
      %1232 = vmatprep.mubr.bf16.mxu0 0
      %1233 = vmatmul.mubr.bf16.gmra.mrb[0].mxu0 %v1195
      %v1234 = vpop.f32.mrb[0].mxu0
      %v1235 = vadd.f32 0.0, %v1234
      %v1236 = vpop.f32.mrb[0].mxu0
      %v1237 = vpop.f32.mrb[0].mxu0
      %v1238 = vpop.f32.mrb[0].mxu0
      %1239 = vdwg.mxu0
      %v1240 = vpack.c.bf16 %v1235, %v1235
      %v1241 = vpack.c.bf16 %v650, %v649
      %v1242 = vpack.c.bf16 %v652, %v651
      %v1244 = vsel %vm656, %v1240, 0
      %1246 = vmatprep.subr.bf16.mxu0 0
      %1247 = vmatpush1.bf16.msra.mxu0 %v1241
      %1248 = vmatprep.subr.bf16.mxu0 0
      %1249 = vmatpush1.bf16.msra.mxu0 %v1242
      %1250 = vmatprep.subr.bf16.mxu0 0
      %1251 = vmatpush1.bf16.msra.mxu0 0
      %1252 = vmatprep.subr.bf16.mxu0 0
      %1253 = vmatpush1.bf16.msra.mxu0 0
      %1254 = vmatprep.subr.bf16.mxu0 0
      %1255 = vmatpush1.bf16.msra.mxu0 0
      %1256 = vmatprep.subr.bf16.mxu0 0
      %1257 = vmatpush1.bf16.msra.mxu0 0
      %1258 = vmatprep.subr.bf16.mxu0 0
      %1259 = vmatpush1.bf16.msra.mxu0 0
      %1260 = vmatprep.subr.bf16.mxu0 0
      %1261 = vmatpush1.bf16.msra.mxu0 0
      %1262 = vmatprep.subr.bf16.mxu0 0
      %1263 = vmatpush1.bf16.msra.mxu0 0
      %1264 = vmatprep.subr.bf16.mxu0 0
      %1265 = vmatpush1.bf16.msra.mxu0 0
      %1266 = vmatprep.subr.bf16.mxu0 0
      %1267 = vmatpush1.bf16.msra.mxu0 0
      %1268 = vmatprep.subr.bf16.mxu0 0
      %1269 = vmatpush1.bf16.msra.mxu0 0
      %1270 = vmatprep.subr.bf16.mxu0 0
      %1271 = vmatpush1.bf16.msra.mxu0 0
      %1272 = vmatprep.subr.bf16.mxu0 0
      %1273 = vmatpush1.bf16.msra.mxu0 0
      %1274 = vmatprep.subr.bf16.mxu0 0
      %1275 = vmatpush1.bf16.msra.mxu0 0
      %1276 = vmatprep.subr.bf16.mxu0 0
      %1277 = vmatpush1.bf16.msra.mxu0 0
      %1278 = vmatprep.mubr.bf16.mxu0 0
      %1279 = vmatmul.mubr.bf16.gmra.mrb[0].mxu0 %v1244
      %v1280 = vpop.f32.mrb[0].mxu0
      %v1281 = vadd.f32 0.0, %v1280
      %v1282 = vpop.f32.mrb[0].mxu0
      %v1283 = vpop.f32.mrb[0].mxu0
      %v1284 = vpop.f32.mrb[0].mxu0
      %1285 = vdwg.mxu0
      %v1286 = vadd.f32 %v1128, %v1281
      %v1287 = vadd.f32 %v373, %v1286
      %v1288 = vld [vmem:[%s9] sm:$0x1]
      %v1290 = vlaneseq
      %v1291 = vshrl.u32 %v1290, 7
      %v1292 = vsub.s32 0, %v1291
      %v1293 = vrot.slane %v1288, %v1292
      %v1295 = vadd.f32 %v1287, %v1293
      %1296 = vst [vmem:[%s371] sm:$0xf] %v1295
      %p1297 = scmp.lt.s32.totalorder %s21, 1
      %s1298 = scalar_select %p1297, %s21, 1
      %s1299 = smul.addr %s1298, 4
      %s1300 = scalar_lea.vmem %s10, %s1299
      // Predicated region
      $region61: #{model_forward.17} parent=59 // pred_check
        %p1301 = pneg %p259
      $region62: #{model_forward.17} parent=59 // pred_check_branch
        %1303 = sbr.rel (%p1301) target = $region64
      $region63: #{model_forward.17} parent=59 // pred_region
        _
      $region64: #{model_forward.17} parent=59 // pred_fallthru
        _
    $region60: #{model_forward.17} parent=5 // pred_fallthru
      _
    %p1304 = scmp.le.s32.totalorder 2, %s16
    // Predicated region
    $region65: #{model_forward.17} parent=5 // pred_check
      %p1305 = pneg %p1304
    $region66: #{model_forward.17} parent=5 // pred_check_branch
      %1307 = sbr.rel (%p1305) target = $region68
    $region67: #{model_forward.17} parent=5 // pred_region
      %s1308 = ssub.s32 %s16, 2
      // Predicated region
      $region69: #{model_forward.17} parent=67 // pred_check
        %p1309 = pneg %p265
      $region70: #{model_forward.17} parent=67 // pred_check_branch
        %1311 = sbr.rel (%p1309) target = $region72
      $region71: #{model_forward.17} parent=67 // pred_region
        %p1312 = scmp.lt.s32.totalorder %s22, 1
        %s1313 = scalar_select %p1312, %s22, 1
        %s1314 = smul.addr %s1313, 4
        %s1315 = scalar_lea.vmem %s10, %s1314
      $region72: #{model_forward.17} parent=67 // pred_fallthru
        _
    $region68: #{model_forward.17} parent=5 // pred_fallthru
      _
  $region6: #{model_forward.17} parent=0 // loop_footer
    %s20 = sadd.s32 1, %s16
  $region7: #{model_forward.17} parent=0 // loop_footer_branch
    %15 = sbr.rel target = $region3
  $region8: #{model_forward.17} parent=0 // loop_exit
    _

// kernel: model_forward.18
$region0: #{model_forward.18}
  #allocation0 [shape = 'u32[]', space=smem, size = 0x4, offset = 0x4, fixed_abs, tag = 'smem constant byte address 0x4 - core index']
  #allocation1 [shape = 'u32[144,128]{1,0:T(1,128)}', space=vmem, size = 0x12000, scoped, tag = 'internal scratch']
  %s0 = inlined_call_operand.vmem [shape: f32[8,128], index: 0, kind: input, shape index: {}]
  %s1 = inlined_call_operand.vmem [shape: f32[1,128], index: 1, kind: input, shape index: {}]
  %s2 = inlined_call_operand.vmem [shape: f32[1,128], index: 2, kind: input, shape index: {}]
  %s3 = inlined_call_operand.vmem [shape: bf16[128,256], index: 3, kind: input, shape index: {}]
  %s4 = inlined_call_operand.vmem [shape: f32[1,256], index: 4, kind: input, shape index: {}]
  %s5 = inlined_call_operand.vmem [shape: bf16[256,128], index: 5, kind: input, shape index: {}]
  %s6 = inlined_call_operand.vmem [shape: f32[1,128], index: 6, kind: input, shape index: {}]
  %s7 = inlined_call_operand.vmem [shape: f32[1,128], index: 7, kind: input, shape index: {}]
  %s8 = inlined_call_operand.vmem [shape: f32[1,128], index: 8, kind: input, shape index: {}]
  %s9 = inlined_call_operand.vmem [shape: f32[1,128], index: 9, kind: input, shape index: {}]
  %s10 = inlined_call_operand.vmem [shape: f32[1,128], index: 10, kind: input, shape index: {}]
  %s11 = inlined_call_operand.vmem [shape: f32[8,128], index: 11, kind: output, shape index: {}]
  %s12 = sld [smem:[#allocation0]]
  $region54: #{model_forward.18} parent=0
    _
  %s14 = ssub.s32 1, %s12
  %s15 = scalar_select 0, %s14, %s12
  // Predicated region
  $region2: #{model_forward.18} parent=0 // pred_check
    _
  $region3: #{model_forward.18} parent=0 // pred_check_branch
    %17 = sbr.rel (0) target = $region5
  $region4: #{model_forward.18} parent=0 // pred_region
    _
  $region5: #{model_forward.18} parent=0 // pred_fallthru
    _
  // Predicated region
  $region6: #{model_forward.18} parent=0 // pred_check
    _
  $region7: #{model_forward.18} parent=0 // pred_check_branch
    %19 = sbr.rel (0) target = $region9
  $region8: #{model_forward.18} parent=0 // pred_region
    _
  $region9: #{model_forward.18} parent=0 // pred_fallthru
    _
  // Predicated region
  $region10: #{model_forward.18} parent=0 // pred_check
    _
  $region11: #{model_forward.18} parent=0 // pred_check_branch
    %21 = sbr.rel (0) target = $region13
  $region12: #{model_forward.18} parent=0 // pred_region
    _
  $region13: #{model_forward.18} parent=0 // pred_fallthru
    _
  // Predicated region
  $region14: #{model_forward.18} parent=0 // pred_check
    _
  $region15: #{model_forward.18} parent=0 // pred_check_branch
    %23 = sbr.rel (0) target = $region17
  $region16: #{model_forward.18} parent=0 // pred_region
    _
  $region17: #{model_forward.18} parent=0 // pred_fallthru
    _
  // Predicated region
  $region18: #{model_forward.18} parent=0 // pred_check
    _
  $region19: #{model_forward.18} parent=0 // pred_check_branch
    %25 = sbr.rel (0) target = $region21
  $region20: #{model_forward.18} parent=0 // pred_region
    _
  $region21: #{model_forward.18} parent=0 // pred_fallthru
    _
  // Predicated region
  $region22: #{model_forward.18} parent=0 // pred_check
    _
  $region23: #{model_forward.18} parent=0 // pred_check_branch
    %27 = sbr.rel (0) target = $region25
  $region24: #{model_forward.18} parent=0 // pred_region
    _
  $region25: #{model_forward.18} parent=0 // pred_fallthru
    _
  // Predicated region
  $region26: #{model_forward.18} parent=0 // pred_check
    _
  $region27: #{model_forward.18} parent=0 // pred_check_branch
    %29 = sbr.rel (0) target = $region29
  $region28: #{model_forward.18} parent=0 // pred_region
    _
  $region29: #{model_forward.18} parent=0 // pred_fallthru
    _
  // Predicated region
  $region30: #{model_forward.18} parent=0 // pred_check
    _
  $region31: #{model_forward.18} parent=0 // pred_check_branch
    %31 = sbr.rel (0) target = $region33
  $region32: #{model_forward.18} parent=0 // pred_region
    _
  $region33: #{model_forward.18} parent=0 // pred_fallthru
    _
  // Predicated region
  $region34: #{model_forward.18} parent=0 // pred_check
    _
  $region35: #{model_forward.18} parent=0 // pred_check_branch
    %33 = sbr.rel (0) target = $region37
  $region36: #{model_forward.18} parent=0 // pred_region
    _
  $region37: #{model_forward.18} parent=0 // pred_fallthru
    _
  // Predicated region
  $region38: #{model_forward.18} parent=0 // pred_check
    _
  $region39: #{model_forward.18} parent=0 // pred_check_branch
    %35 = sbr.rel (0) target = $region41
  $region40: #{model_forward.18} parent=0 // pred_region
    _
  $region41: #{model_forward.18} parent=0 // pred_fallthru
    _
  // Predicated region
  $region42: #{model_forward.18} parent=0 // pred_check
    _
  $region43: #{model_forward.18} parent=0 // pred_check_branch
    %37 = sbr.rel (0) target = $region45
  $region44: #{model_forward.18} parent=0 // pred_region
    _
  $region45: #{model_forward.18} parent=0 // pred_fallthru
    _
  %v39 = vld [vmem:[%s0] sm:$0xff]
  %v40 = vld [vmem:[%s1] sm:$0x1]
  %v41 = vld [vmem:[%s2] sm:$0x1]
  %42 = vadd.xlane.f32.xlu0 %v39
  %v43 = vpop.xlane.xlu0 %42
  %v44 = vrcp.pop 128.0
  %v45 = vmul.f32 %v43, %v44
  %v46 = vsub.f32 %v39, %v45
  %v47 = vmul.f32 %v46, %v46
  %48 = vadd.xlane.f32.xlu0 %v47
  %v49 = vpop.xlane.xlu0 %48
  %v50 = vmul.f32 %v49, %v44
  %v51 = vadd.f32 %v50, 1e-05
  %v52 = vrsqrt.pop %v51
  %v53 = vmul.f32 %v46, %v52
  %v55 = vlaneseq
  %v56 = vshrl.u32 %v55, 7
  %v57 = vsub.s32 0, %v56
  %v58 = vrot.slane %v40, %v57
  %v60 = vmul.f32 %v53, %v58
  %v62 = vlaneseq
  %v63 = vshrl.u32 %v62, 7
  %v64 = vsub.s32 0, %v63
  %v65 = vrot.slane %v41, %v64
  %v67 = vadd.f32 %v60, %v65
  %v68 = vpack.c.bf16 %v67, %v67
  %v69 = vld [vmem:[%s3] sm:$0xff]
  %v70 = vld [vmem:[%s3 + $0x8] sm:$0xff]
  %v71 = vld [vmem:[%s3 + $0x10] sm:$0xff]
  %v72 = vld [vmem:[%s3 + $0x18] sm:$0xff]
  %v73 = vld [vmem:[%s3 + $0x20] sm:$0xff]
  %v74 = vld [vmem:[%s3 + $0x28] sm:$0xff]
  %v75 = vld [vmem:[%s3 + $0x30] sm:$0xff]
  %v76 = vld [vmem:[%s3 + $0x38] sm:$0xff]
  %v77 = vld [vmem:[%s3 + $0x40] sm:$0xff]
  %v78 = vld [vmem:[%s3 + $0x48] sm:$0xff]
  %v79 = vld [vmem:[%s3 + $0x50] sm:$0xff]
  %v80 = vld [vmem:[%s3 + $0x58] sm:$0xff]
  %v81 = vld [vmem:[%s3 + $0x60] sm:$0xff]
  %v82 = vld [vmem:[%s3 + $0x68] sm:$0xff]
  %v83 = vld [vmem:[%s3 + $0x70] sm:$0xff]
  %v84 = vld [vmem:[%s3 + $0x78] sm:$0xff]
  %v85 = vld [vmem:[%s4] sm:$0x3]
  %v87 = vlaneseq
  %v88 = vshrl.u32 %v87, 7
  %v89 = vsub.s32 0, %v88
  %v90 = vrot.slane %v85, %v89
  %v91 = vlaneseq
  %v92 = vshrl.u32 %v91, 7
  %v93 = vsub.s32 1, %v92
  %v94 = vrot.slane %v85, %v93
  %v113 = vunpack.c.l.b16 %v69
  %v114 = vunpack.c.h.b16 %v69
  %v115 = vunpack.c.l.b16 %v70
  %v116 = vunpack.c.h.b16 %v70
  %v117 = vunpack.c.l.b16 %v71
  %v118 = vunpack.c.h.b16 %v71
  %v119 = vunpack.c.l.b16 %v72
  %v120 = vunpack.c.h.b16 %v72
  %v121 = vunpack.c.l.b16 %v73
  %v122 = vunpack.c.h.b16 %v73
  %v123 = vunpack.c.l.b16 %v74
  %v124 = vunpack.c.h.b16 %v74
  %v125 = vunpack.c.l.b16 %v75
  %v126 = vunpack.c.h.b16 %v75
  %v127 = vunpack.c.l.b16 %v76
  %v128 = vunpack.c.h.b16 %v76
  %v129 = vunpack.c.l.b16 %v77
  %v130 = vunpack.c.h.b16 %v77
  %v131 = vunpack.c.l.b16 %v78
  %v132 = vunpack.c.h.b16 %v78
  %v133 = vunpack.c.l.b16 %v79
  %v134 = vunpack.c.h.b16 %v79
  %v135 = vunpack.c.l.b16 %v80
  %v136 = vunpack.c.h.b16 %v80
  %v137 = vunpack.c.l.b16 %v81
  %v138 = vunpack.c.h.b16 %v81
  %v139 = vunpack.c.l.b16 %v82
  %v140 = vunpack.c.h.b16 %v82
  %v141 = vunpack.c.l.b16 %v83
  %v142 = vunpack.c.h.b16 %v83
  %v143 = vunpack.c.l.b16 %v84
  %v144 = vunpack.c.h.b16 %v84
  %v145 = vpack.c.b16 %v115, %v113
  %v146 = vpack.c.b16 %v116, %v114
  %v147 = vpack.c.b16 %v119, %v117
  %v148 = vpack.c.b16 %v120, %v118
  %v149 = vpack.c.b16 %v123, %v121
  %v150 = vpack.c.b16 %v124, %v122
  %v151 = vpack.c.b16 %v127, %v125
  %v152 = vpack.c.b16 %v128, %v126
  %v153 = vpack.c.b16 %v131, %v129
  %v154 = vpack.c.b16 %v132, %v130
  %v155 = vpack.c.b16 %v135, %v133
  %v156 = vpack.c.b16 %v136, %v134
  %v157 = vpack.c.b16 %v139, %v137
  %v158 = vpack.c.b16 %v140, %v138
  %v159 = vpack.c.b16 %v143, %v141
  %v160 = vpack.c.b16 %v144, %v142
  %177 = vmatprep.subr.bf16.mxu0 %v146
  %178 = vmatpush1.bf16.msra.mxu0 %v145
  %179 = vmatprep.subr.bf16.mxu0 %v148
  %180 = vmatpush1.bf16.msra.mxu0 %v147
  %181 = vmatprep.subr.bf16.mxu0 %v150
  %182 = vmatpush1.bf16.msra.mxu0 %v149
  %183 = vmatprep.subr.bf16.mxu0 %v152
  %184 = vmatpush1.bf16.msra.mxu0 %v151
  %185 = vmatprep.subr.bf16.mxu0 %v154
  %186 = vmatpush1.bf16.msra.mxu0 %v153
  %187 = vmatprep.subr.bf16.mxu0 %v156
  %188 = vmatpush1.bf16.msra.mxu0 %v155
  %189 = vmatprep.subr.bf16.mxu0 %v158
  %190 = vmatpush1.bf16.msra.mxu0 %v157
  %191 = vmatprep.subr.bf16.mxu0 %v160
  %192 = vmatpush1.bf16.msra.mxu0 %v159
  %193 = vmatprep.subr.bf16.mxu0 0
  %194 = vmatpush1.bf16.msra.mxu0 0
  %195 = vmatprep.subr.bf16.mxu0 0
  %196 = vmatpush1.bf16.msra.mxu0 0
  %197 = vmatprep.subr.bf16.mxu0 0
  %198 = vmatpush1.bf16.msra.mxu0 0
  %199 = vmatprep.subr.bf16.mxu0 0
  %200 = vmatpush1.bf16.msra.mxu0 0
  %201 = vmatprep.subr.bf16.mxu0 0
  %202 = vmatpush1.bf16.msra.mxu0 0
  %203 = vmatprep.subr.bf16.mxu0 0
  %204 = vmatpush1.bf16.msra.mxu0 0
  %205 = vmatprep.subr.bf16.mxu0 0
  %206 = vmatpush1.bf16.msra.mxu0 0
  %207 = vmatprep.subr.bf16.mxu0 0
  %208 = vmatpush1.bf16.msra.mxu0 0
  %209 = vmatprep.mubr.bf16.mxu0 0
  %210 = vmatmul.mubr.bf16.gmra.mrb[0].mxu0 %v68
  %v211 = vpop.f32.mrb[0].mxu0
  %v212 = vadd.f32 %v90, %v211
  %v213 = vpop.f32.mrb[0].mxu0
  %v214 = vadd.f32 %v94, %v213
  %v215 = vpop.f32.mrb[0].mxu0
  %v216 = vpop.f32.mrb[0].mxu0
  %217 = vdwg.mxu0
  %v218 = vmul.f32 %v212, %v212
  %v219 = vmul.f32 %v214, %v214
  %v220 = vmul.f32 %v212, %v218
  %v221 = vmul.f32 %v214, %v219
  %v222 = vmul.f32 %v220, 0.044715
  %v223 = vmul.f32 %v221, 0.044715
  %v224 = vadd.f32 %v212, %v222
  %v225 = vadd.f32 %v214, %v223
  %v226 = vmul.f32 %v224, 0.7978846
  %v227 = vmul.f32 %v225, 0.7978846
  %v228 = vtanh.pop %v226
  %v229 = vtanh.pop %v227
  %v230 = vadd.f32 %v228, 1.0
  %v231 = vadd.f32 %v229, 1.0
  %v232 = vmul.f32 %v230, 0.5
  %v233 = vmul.f32 %v231, 0.5
  %v234 = vmul.f32 %v212, %v232
  %v235 = vmul.f32 %v214, %v233
  %v236 = vpack.c.bf16 %v234, %v234
  %v237 = vpack.c.bf16 %v235, %v235
  %v238 = vld [vmem:[%s5] sm:$0xf]
  %v239 = vld [vmem:[%s5 + $0x4] sm:$0xf]
  %v240 = vld [vmem:[%s5 + $0x8] sm:$0xf]
  %v241 = vld [vmem:[%s5 + $0xc] sm:$0xf]
  %v242 = vld [vmem:[%s5 + $0x10] sm:$0xf]
  %v243 = vld [vmem:[%s5 + $0x14] sm:$0xf]
  %v244 = vld [vmem:[%s5 + $0x18] sm:$0xf]
  %v245 = vld [vmem:[%s5 + $0x1c] sm:$0xf]
  %v246 = vld [vmem:[%s5 + $0x20] sm:$0xf]
  %v247 = vld [vmem:[%s5 + $0x24] sm:$0xf]
  %v248 = vld [vmem:[%s5 + $0x28] sm:$0xf]
  %v249 = vld [vmem:[%s5 + $0x2c] sm:$0xf]
  %v250 = vld [vmem:[%s5 + $0x30] sm:$0xf]
  %v251 = vld [vmem:[%s5 + $0x34] sm:$0xf]
  %v252 = vld [vmem:[%s5 + $0x38] sm:$0xf]
  %v253 = vld [vmem:[%s5 + $0x3c] sm:$0xf]
  %v254 = vld [vmem:[%s5 + $0x40] sm:$0xf]
  %v255 = vld [vmem:[%s5 + $0x44] sm:$0xf]
  %v256 = vld [vmem:[%s5 + $0x48] sm:$0xf]
  %v257 = vld [vmem:[%s5 + $0x4c] sm:$0xf]
  %v258 = vld [vmem:[%s5 + $0x50] sm:$0xf]
  %v259 = vld [vmem:[%s5 + $0x54] sm:$0xf]
  %v260 = vld [vmem:[%s5 + $0x58] sm:$0xf]
  %v261 = vld [vmem:[%s5 + $0x5c] sm:$0xf]
  %v262 = vld [vmem:[%s5 + $0x60] sm:$0xf]
  %v263 = vld [vmem:[%s5 + $0x64] sm:$0xf]
  %v264 = vld [vmem:[%s5 + $0x68] sm:$0xf]
  %v265 = vld [vmem:[%s5 + $0x6c] sm:$0xf]
  %v266 = vld [vmem:[%s5 + $0x70] sm:$0xf]
  %v267 = vld [vmem:[%s5 + $0x74] sm:$0xf]
  %v268 = vld [vmem:[%s5 + $0x78] sm:$0xf]
  %v269 = vld [vmem:[%s5 + $0x7c] sm:$0xf]
  %v270 = vld [vmem:[%s6] sm:$0x1]
  %v272 = vlaneseq
  %v273 = vshrl.u32 %v272, 7
  %v274 = vsub.s32 0, %v273
  %v275 = vrot.slane %v270, %v274
  %v309 = vunpack.c.l.b16 %v238
  %v310 = vunpack.c.l.b16 %v239
  %v311 = vunpack.c.l.b16 %v240
  %v312 = vunpack.c.l.b16 %v241
  %v313 = vunpack.c.l.b16 %v242
  %v314 = vunpack.c.l.b16 %v243
  %v315 = vunpack.c.l.b16 %v244
  %v316 = vunpack.c.l.b16 %v245
  %v317 = vunpack.c.l.b16 %v246
  %v318 = vunpack.c.l.b16 %v247
  %v319 = vunpack.c.l.b16 %v248
  %v320 = vunpack.c.l.b16 %v249
  %v321 = vunpack.c.l.b16 %v250
  %v322 = vunpack.c.l.b16 %v251
  %v323 = vunpack.c.l.b16 %v252
  %v324 = vunpack.c.l.b16 %v253
  %v325 = vunpack.c.l.b16 %v254
  %v326 = vunpack.c.l.b16 %v255
  %v327 = vunpack.c.l.b16 %v256
  %v328 = vunpack.c.l.b16 %v257
  %v329 = vunpack.c.l.b16 %v258
  %v330 = vunpack.c.l.b16 %v259
  %v331 = vunpack.c.l.b16 %v260
  %v332 = vunpack.c.l.b16 %v261
  %v333 = vunpack.c.l.b16 %v262
  %v334 = vunpack.c.l.b16 %v263
  %v335 = vunpack.c.l.b16 %v264
  %v336 = vunpack.c.l.b16 %v265
  %v337 = vunpack.c.l.b16 %v266
  %v338 = vunpack.c.l.b16 %v267
  %v339 = vunpack.c.l.b16 %v268
  %v340 = vunpack.c.l.b16 %v269
  %v341 = vpack.c.b16 %v310, %v309
  %v342 = vpack.c.b16 %v312, %v311
  %v343 = vpack.c.b16 %v314, %v313
  %v344 = vpack.c.b16 %v316, %v315
  %v345 = vpack.c.b16 %v318, %v317
  %v346 = vpack.c.b16 %v320, %v319
  %v347 = vpack.c.b16 %v322, %v321
  %v348 = vpack.c.b16 %v324, %v323
  %v349 = vpack.c.b16 %v326, %v325
  %v350 = vpack.c.b16 %v328, %v327
  %v351 = vpack.c.b16 %v330, %v329
  %v352 = vpack.c.b16 %v332, %v331
  %v353 = vpack.c.b16 %v334, %v333
  %v354 = vpack.c.b16 %v336, %v335
  %v355 = vpack.c.b16 %v338, %v337
  %v356 = vpack.c.b16 %v340, %v339
  %373 = vmatprep.subr.bf16.mxu0 0
  %374 = vmatpush1.bf16.msra.mxu0 %v341
  %375 = vmatprep.subr.bf16.mxu0 0
  %376 = vmatpush1.bf16.msra.mxu0 %v342
  %377 = vmatprep.subr.bf16.mxu0 0
  %378 = vmatpush1.bf16.msra.mxu0 %v343
  %379 = vmatprep.subr.bf16.mxu0 0
  %380 = vmatpush1.bf16.msra.mxu0 %v344
  %381 = vmatprep.subr.bf16.mxu0 0
  %382 = vmatpush1.bf16.msra.mxu0 %v345
  %383 = vmatprep.subr.bf16.mxu0 0
  %384 = vmatpush1.bf16.msra.mxu0 %v346
  %385 = vmatprep.subr.bf16.mxu0 0
  %386 = vmatpush1.bf16.msra.mxu0 %v347
  %387 = vmatprep.subr.bf16.mxu0 0
  %388 = vmatpush1.bf16.msra.mxu0 %v348
  %389 = vmatprep.subr.bf16.mxu0 0
  %390 = vmatpush1.bf16.msra.mxu0 %v349
  %391 = vmatprep.subr.bf16.mxu0 0
  %392 = vmatpush1.bf16.msra.mxu0 %v350
  %393 = vmatprep.subr.bf16.mxu0 0
  %394 = vmatpush1.bf16.msra.mxu0 %v351
  %395 = vmatprep.subr.bf16.mxu0 0
  %396 = vmatpush1.bf16.msra.mxu0 %v352
  %397 = vmatprep.subr.bf16.mxu0 0
  %398 = vmatpush1.bf16.msra.mxu0 %v353
  %399 = vmatprep.subr.bf16.mxu0 0
  %400 = vmatpush1.bf16.msra.mxu0 %v354
  %401 = vmatprep.subr.bf16.mxu0 0
  %402 = vmatpush1.bf16.msra.mxu0 %v355
  %403 = vmatprep.subr.bf16.mxu0 0
  %404 = vmatpush1.bf16.msra.mxu0 %v356
  %405 = vmatprep.mubr.bf16.mxu0 %v237
  %406 = vmatmul.mubr.bf16.gmra.mrb[0].mxu0 %v236
  %v407 = vpop.f32.mrb[0].mxu0
  %v408 = vadd.f32 %v275, %v407
  %v409 = vpop.f32.mrb[0].mxu0
  %v410 = vpop.f32.mrb[0].mxu0
  %v411 = vpop.f32.mrb[0].mxu0
  %412 = vdwg.mxu0
  %v413 = vadd.f32 %v67, %v408
  %v414 = vld [vmem:[%s7] sm:$0x1]
  %v415 = vld [vmem:[%s8] sm:$0x1]
  %416 = vadd.xlane.f32.xlu0 %v413
  %v417 = vpop.xlane.xlu0 %416
  %v418 = vmul.f32 %v417, %v44
  %v419 = vsub.f32 %v413, %v418
  %v420 = vmul.f32 %v419, %v419
  %421 = vadd.xlane.f32.xlu0 %v420
  %v422 = vpop.xlane.xlu0 %421
  %v423 = vmul.f32 %v422, %v44
  %v424 = vadd.f32 %v423, 1e-05
  %v425 = vrsqrt.pop %v424
  %v426 = vmul.f32 %v419, %v425
  %v428 = vlaneseq
  %v429 = vshrl.u32 %v428, 7
  %v430 = vsub.s32 0, %v429
  %v431 = vrot.slane %v414, %v430
  %v433 = vmul.f32 %v426, %v431
  %v435 = vlaneseq
  %v436 = vshrl.u32 %v435, 7
  %v437 = vsub.s32 0, %v436
  %v438 = vrot.slane %v415, %v437
  %v440 = vadd.f32 %v433, %v438
  %v441 = vld [vmem:[%s9] sm:$0x1]
  %v442 = vld [vmem:[%s10] sm:$0x1]
  %443 = vadd.xlane.f32.xlu0 %v440
  %v444 = vpop.xlane.xlu0 %443
  %v445 = vmul.f32 %v444, %v44
  %v446 = vsub.f32 %v440, %v445
  %v447 = vmul.f32 %v446, %v446
  %448 = vadd.xlane.f32.xlu0 %v447
  %v449 = vpop.xlane.xlu0 %448
  %v450 = vmul.f32 %v449, %v44
  %v451 = vadd.f32 %v450, 1e-05
  %v452 = vrsqrt.pop %v451
  %v453 = vmul.f32 %v446, %v452
  %v455 = vlaneseq
  %v456 = vshrl.u32 %v455, 7
  %v457 = vsub.s32 0, %v456
  %v458 = vrot.slane %v441, %v457
  %v460 = vmul.f32 %v453, %v458
  %v462 = vlaneseq
  %v463 = vshrl.u32 %v462, 7
  %v464 = vsub.s32 0, %v463
  %v465 = vrot.slane %v442, %v464
  %v467 = vadd.f32 %v460, %v465
  %468 = vst [vmem:[%s11] sm:$0xff] %v467
  // Predicated region
  $region46: #{model_forward.18} parent=0 // pred_check
    _
  $region47: #{model_forward.18} parent=0 // pred_check_branch
    %470 = sbr.rel (0) target = $region49
  $region48: #{model_forward.18} parent=0 // pred_region
    _
  $region49: #{model_forward.18} parent=0 // pred_fallthru
    _
  // Predicated region
  $region50: #{model_forward.18} parent=0 // pred_check
    _
  $region51: #{model_forward.18} parent=0 // pred_check_branch
    %472 = sbr.rel (0) target = $region53
  $region52: #{model_forward.18} parent=0 // pred_region
    _
  $region53: #{model_forward.18} parent=0 // pred_fallthru
    _

// kernel: model_forward.20
$region0: #{model_forward.20}
  #allocation0 [shape = 'u32[]', space=smem, size = 0x4, offset = 0x4, fixed_abs, tag = 'smem constant byte address 0x4 - core index']
  #allocation1 [shape = 'u32[144,128]{1,0:T(1,128)}', space=vmem, size = 0x12000, scoped, tag = 'internal scratch']
  %s0 = inlined_call_operand.vmem [shape: f32[2,4,128], index: 0, kind: input, shape index: {}, may-alias: {0,1}]
  %s1 = inlined_call_operand.vmem [shape: f32[2,4,128], index: 1, kind: input, shape index: {}, may-alias: {0,1}]
  %s2 = inlined_call_operand.vmem [shape: f32[1,128], index: 2, kind: input, shape index: {}]
  %s3 = inlined_call_operand.vmem [shape: f32[1,128], index: 3, kind: input, shape index: {}]
  %s4 = inlined_call_operand.vmem [shape: bf16[128,128], index: 4, kind: input, shape index: {}]
  %s5 = inlined_call_operand.vmem [shape: f32[1,128], index: 5, kind: input, shape index: {}]
  %s6 = inlined_call_operand.vmem [shape: bf16[128,256], index: 6, kind: input, shape index: {}]
  %s7 = inlined_call_operand.vmem [shape: f32[1,256], index: 7, kind: input, shape index: {}]
  %s8 = inlined_call_operand.vmem [shape: f32[128,128], index: 8, kind: input, shape index: {}]
  %s9 = inlined_call_operand.vmem [shape: f32[1,128], index: 9, kind: input, shape index: {}]
  %s10 = inlined_call_operand.vmem [shape: f32[2,4,128], index: 10, kind: output, shape index: {}]
  %s11 = sld [smem:[#allocation0]]
  $region73: #{model_forward.20} parent=0
    _
  %s13 = ssub.s32 1, %s11
  %s14 = scalar_select 0, %s13, %s11
  loop: start=0, step=1, limit=4
  $region2: #{model_forward.20} parent=0 // loop_pre_header
    _
  $region3: #{model_forward.20} parent=0 // loop_header
    %s16 = sphi 0, %s20
    %p17 = scmp.ge.s32.totalorder %s16, 4
    %s26 = sphi 0, %s28
    %s29 = sphi 0, %s26
    %s30 = sphi 0, %s29
    %s46 = sphi 0, %s30
    %s52 = sphi 0, %s54
    %s55 = sphi 0, %s52
    %s56 = sphi 0, %s55
    %s72 = sphi 0, %s56
    %s76 = sphi 0, %s76
    %s78 = sphi 0, %s76
    %s79 = sphi 0, %s78
    %s93 = sphi 0, %s79
    %s97 = sphi 0, %s97
    %s99 = sphi 0, %s97
    %s100 = sphi 0, %s99
    %s114 = sphi 0, %s100
    %s118 = sphi 0, %s118
    %s120 = sphi 0, %s118
    %s121 = sphi 0, %s120
    %s135 = sphi 0, %s121
    %s139 = sphi 0, %s139
    %s141 = sphi 0, %s139
    %s142 = sphi 0, %s141
    %s156 = sphi 0, %s142
    %s160 = sphi 0, %s160
    %s162 = sphi 0, %s160
    %s163 = sphi 0, %s162
    %s177 = sphi 0, %s163
    %s181 = sphi 0, %s181
    %s183 = sphi 0, %s181
    %s184 = sphi 0, %s183
    %s198 = sphi 0, %s184
    %s202 = sphi 0, %s202
    %s204 = sphi 0, %s202
    %s205 = sphi 0, %s204
    %s219 = sphi 0, %s205
    %s223 = sphi 0, %s223
    %s225 = sphi 0, %s223
    %s226 = sphi 0, %s225
    %s240 = sphi 0, %s226
    %s246 = sphi 0, %s248
    %s249 = sphi 0, %s246
    %s250 = sphi 0, %s249
    %s266 = sphi 0, %s250
  $region4: #{model_forward.20} parent=0 // loop_header_branch
    %19 = sbr.rel (%p17) target = $region8
  $region5: #{model_forward.20} parent=0 // loop_body
    %s21 = ssub.s32 %s16, 1
    %s22 = ssub.s32 %s16, 2
    %s23 = sadd.s32 %s16, 1
    %s24 = ssub.s32 %s16, %s23
    %p25 = scmp.eq.s32.totalorder %s24, 0
    %s27 = sadd.s32 %s26, 1
    %s28 = scalar_select %p25, %s26, %s27
    %p31 = pneg %p25
    %p32 = scmp.eq.s32.totalorder %s16, 1
    %p33 = por %p31, %p32
    %p34 = scmp.ne.s32.totalorder %s26, %s29
    %p35 = scmp.eq.s32.totalorder %s16, 0
    %p36 = por %p34, %p35
    %p37 = scmp.ne.s32.totalorder %s26, %s29
    %p38 = scmp.eq.s32.totalorder %s21, 1
    %p39 = por %p37, %p38
    %p40 = scmp.ne.s32.totalorder %s29, %s30
    %p41 = scmp.eq.s32.totalorder %s21, 0
    %p42 = por %p40, %p41
    %p43 = scmp.ne.s32.totalorder %s29, %s30
    %p44 = scmp.eq.s32.totalorder %s22, 1
    %p45 = por %p43, %p44
    %p47 = scmp.ne.s32.totalorder %s30, %s46
    %p48 = scmp.eq.s32.totalorder %s22, 0
    %p49 = por %p47, %p48
    %s50 = ssub.s32 %s16, %s23
    %p51 = scmp.eq.s32.totalorder %s50, 0
    %s53 = sadd.s32 %s52, 1
    %s54 = scalar_select %p51, %s52, %s53
    %p57 = pneg %p51
    %p58 = scmp.eq.s32.totalorder %s16, 1
    %p59 = por %p57, %p58
    %p60 = scmp.ne.s32.totalorder %s52, %s55
    %p61 = scmp.eq.s32.totalorder %s16, 0
    %p62 = por %p60, %p61
    %p63 = scmp.ne.s32.totalorder %s52, %s55
    %p64 = scmp.eq.s32.totalorder %s21, 1
    %p65 = por %p63, %p64
    %p66 = scmp.ne.s32.totalorder %s55, %s56
    %p67 = scmp.eq.s32.totalorder %s21, 0
    %p68 = por %p66, %p67
    %p69 = scmp.ne.s32.totalorder %s55, %s56
    %p70 = scmp.eq.s32.totalorder %s22, 1
    %p71 = por %p69, %p70
    %p73 = scmp.ne.s32.totalorder %s56, %s72
    %p74 = scmp.eq.s32.totalorder %s22, 0
    %p75 = por %p73, %p74
    %s77 = sadd.s32 %s76, 1
    %p80 = scmp.eq.s32.totalorder %s16, 1
    %p81 = scmp.ne.s32.totalorder %s76, %s78
    %p82 = scmp.eq.s32.totalorder %s16, 0
    %p83 = por %p81, %p82
    %p84 = scmp.ne.s32.totalorder %s76, %s78
    %p85 = scmp.eq.s32.totalorder %s21, 1
    %p86 = por %p84, %p85
    %p87 = scmp.ne.s32.totalorder %s78, %s79
    %p88 = scmp.eq.s32.totalorder %s21, 0
    %p89 = por %p87, %p88
    %p90 = scmp.ne.s32.totalorder %s78, %s79
    %p91 = scmp.eq.s32.totalorder %s22, 1
    %p92 = por %p90, %p91
    %p94 = scmp.ne.s32.totalorder %s79, %s93
    %p95 = scmp.eq.s32.totalorder %s22, 0
    %p96 = por %p94, %p95
    %s98 = sadd.s32 %s97, 1
    %p101 = scmp.eq.s32.totalorder %s16, 1
    %p102 = scmp.ne.s32.totalorder %s97, %s99
    %p103 = scmp.eq.s32.totalorder %s16, 0
    %p104 = por %p102, %p103
    %p105 = scmp.ne.s32.totalorder %s97, %s99
    %p106 = scmp.eq.s32.totalorder %s21, 1
    %p107 = por %p105, %p106
    %p108 = scmp.ne.s32.totalorder %s99, %s100
    %p109 = scmp.eq.s32.totalorder %s21, 0
    %p110 = por %p108, %p109
    %p111 = scmp.ne.s32.totalorder %s99, %s100
    %p112 = scmp.eq.s32.totalorder %s22, 1
    %p113 = por %p111, %p112
    %p115 = scmp.ne.s32.totalorder %s100, %s114
    %p116 = scmp.eq.s32.totalorder %s22, 0
    %p117 = por %p115, %p116
    %s119 = sadd.s32 %s118, 1
    %p122 = scmp.eq.s32.totalorder %s16, 1
    %p123 = scmp.ne.s32.totalorder %s118, %s120
    %p124 = scmp.eq.s32.totalorder %s16, 0
    %p125 = por %p123, %p124
    %p126 = scmp.ne.s32.totalorder %s118, %s120
    %p127 = scmp.eq.s32.totalorder %s21, 1
    %p128 = por %p126, %p127
    %p129 = scmp.ne.s32.totalorder %s120, %s121
    %p130 = scmp.eq.s32.totalorder %s21, 0
    %p131 = por %p129, %p130
    %p132 = scmp.ne.s32.totalorder %s120, %s121
    %p133 = scmp.eq.s32.totalorder %s22, 1
    %p134 = por %p132, %p133
    %p136 = scmp.ne.s32.totalorder %s121, %s135
    %p137 = scmp.eq.s32.totalorder %s22, 0
    %p138 = por %p136, %p137
    %s140 = sadd.s32 %s139, 1
    %p143 = scmp.eq.s32.totalorder %s16, 1
    %p144 = scmp.ne.s32.totalorder %s139, %s141
    %p145 = scmp.eq.s32.totalorder %s16, 0
    %p146 = por %p144, %p145
    %p147 = scmp.ne.s32.totalorder %s139, %s141
    %p148 = scmp.eq.s32.totalorder %s21, 1
    %p149 = por %p147, %p148
    %p150 = scmp.ne.s32.totalorder %s141, %s142
    %p151 = scmp.eq.s32.totalorder %s21, 0
    %p152 = por %p150, %p151
    %p153 = scmp.ne.s32.totalorder %s141, %s142
    %p154 = scmp.eq.s32.totalorder %s22, 1
    %p155 = por %p153, %p154
    %p157 = scmp.ne.s32.totalorder %s142, %s156
    %p158 = scmp.eq.s32.totalorder %s22, 0
    %p159 = por %p157, %p158
    %s161 = sadd.s32 %s160, 1
    %p164 = scmp.eq.s32.totalorder %s16, 1
    %p165 = scmp.ne.s32.totalorder %s160, %s162
    %p166 = scmp.eq.s32.totalorder %s16, 0
    %p167 = por %p165, %p166
    %p168 = scmp.ne.s32.totalorder %s160, %s162
    %p169 = scmp.eq.s32.totalorder %s21, 1
    %p170 = por %p168, %p169
    %p171 = scmp.ne.s32.totalorder %s162, %s163
    %p172 = scmp.eq.s32.totalorder %s21, 0
    %p173 = por %p171, %p172
    %p174 = scmp.ne.s32.totalorder %s162, %s163
    %p175 = scmp.eq.s32.totalorder %s22, 1
    %p176 = por %p174, %p175
    %p178 = scmp.ne.s32.totalorder %s163, %s177
    %p179 = scmp.eq.s32.totalorder %s22, 0
    %p180 = por %p178, %p179
    %s182 = sadd.s32 %s181, 1
    %p185 = scmp.eq.s32.totalorder %s16, 1
    %p186 = scmp.ne.s32.totalorder %s181, %s183
    %p187 = scmp.eq.s32.totalorder %s16, 0
    %p188 = por %p186, %p187
    %p189 = scmp.ne.s32.totalorder %s181, %s183
    %p190 = scmp.eq.s32.totalorder %s21, 1
    %p191 = por %p189, %p190
    %p192 = scmp.ne.s32.totalorder %s183, %s184
    %p193 = scmp.eq.s32.totalorder %s21, 0
    %p194 = por %p192, %p193
    %p195 = scmp.ne.s32.totalorder %s183, %s184
    %p196 = scmp.eq.s32.totalorder %s22, 1
    %p197 = por %p195, %p196
    %p199 = scmp.ne.s32.totalorder %s184, %s198
    %p200 = scmp.eq.s32.totalorder %s22, 0
    %p201 = por %p199, %p200
    %s203 = sadd.s32 %s202, 1
    %p206 = scmp.eq.s32.totalorder %s16, 1
    %p207 = scmp.ne.s32.totalorder %s202, %s204
    %p208 = scmp.eq.s32.totalorder %s16, 0
    %p209 = por %p207, %p208
    %p210 = scmp.ne.s32.totalorder %s202, %s204
    %p211 = scmp.eq.s32.totalorder %s21, 1
    %p212 = por %p210, %p211
    %p213 = scmp.ne.s32.totalorder %s204, %s205
    %p214 = scmp.eq.s32.totalorder %s21, 0
    %p215 = por %p213, %p214
    %p216 = scmp.ne.s32.totalorder %s204, %s205
    %p217 = scmp.eq.s32.totalorder %s22, 1
    %p218 = por %p216, %p217
    %p220 = scmp.ne.s32.totalorder %s205, %s219
    %p221 = scmp.eq.s32.totalorder %s22, 0
    %p222 = por %p220, %p221
    %s224 = sadd.s32 %s223, 1
    %p227 = scmp.eq.s32.totalorder %s16, 1
    %p228 = scmp.ne.s32.totalorder %s223, %s225
    %p229 = scmp.eq.s32.totalorder %s16, 0
    %p230 = por %p228, %p229
    %p231 = scmp.ne.s32.totalorder %s223, %s225
    %p232 = scmp.eq.s32.totalorder %s21, 1
    %p233 = por %p231, %p232
    %p234 = scmp.ne.s32.totalorder %s225, %s226
    %p235 = scmp.eq.s32.totalorder %s21, 0
    %p236 = por %p234, %p235
    %p237 = scmp.ne.s32.totalorder %s225, %s226
    %p238 = scmp.eq.s32.totalorder %s22, 1
    %p239 = por %p237, %p238
    %p241 = scmp.ne.s32.totalorder %s226, %s240
    %p242 = scmp.eq.s32.totalorder %s22, 0
    %p243 = por %p241, %p242
    %s244 = ssub.s32 %s16, %s23
    %p245 = scmp.eq.s32.totalorder %s244, 0
    %s247 = sadd.s32 %s246, 1
    %s248 = scalar_select %p245, %s246, %s247
    %p251 = pneg %p245
    %p252 = scmp.eq.s32.totalorder %s16, 1
    %p253 = por %p251, %p252
    %p254 = scmp.ne.s32.totalorder %s246, %s249
    %p255 = scmp.eq.s32.totalorder %s16, 0
    %p256 = por %p254, %p255
    %p257 = scmp.ne.s32.totalorder %s246, %s249
    %p258 = scmp.eq.s32.totalorder %s21, 1
    %p259 = por %p257, %p258
    %p260 = scmp.ne.s32.totalorder %s249, %s250
    %p261 = scmp.eq.s32.totalorder %s21, 0
    %p262 = por %p260, %p261
    %p263 = scmp.ne.s32.totalorder %s249, %s250
    %p264 = scmp.eq.s32.totalorder %s22, 1
    %p265 = por %p263, %p264
    %p267 = scmp.ne.s32.totalorder %s250, %s266
    %p268 = scmp.eq.s32.totalorder %s22, 0
    %p269 = por %p267, %p268
    %p270 = scmp.le.s32.totalorder 1, %s16
    %p271 = scmp.lt.s32.totalorder %s16, 3
    %p272 = pnand %p270, %p271
    %p273 = pneg %p272
    // Predicated region
    $region9: #{model_forward.20} parent=5 // pred_check
      _
    $region10: #{model_forward.20} parent=5 // pred_check_branch
      %275 = sbr.rel (%p272) target = $region12
    $region11: #{model_forward.20} parent=5 // pred_region
      %s276 = ssub.s32 %s16, 1
      // Predicated region
      $region13: #{model_forward.20} parent=11 // pred_check
        %p277 = pneg %p89
      $region14: #{model_forward.20} parent=11 // pred_check_branch
        %279 = sbr.rel (%p277) target = $region16
      $region15: #{model_forward.20} parent=11 // pred_region
        _
      $region16: #{model_forward.20} parent=11 // pred_fallthru
        _
      // Predicated region
      $region17: #{model_forward.20} parent=11 // pred_check
        %p280 = pneg %p110
      $region18: #{model_forward.20} parent=11 // pred_check_branch
        %282 = sbr.rel (%p280) target = $region20
      $region19: #{model_forward.20} parent=11 // pred_region
        _
      $region20: #{model_forward.20} parent=11 // pred_fallthru
        _
      // Predicated region
      $region21: #{model_forward.20} parent=11 // pred_check
        %p283 = pneg %p131
      $region22: #{model_forward.20} parent=11 // pred_check_branch
        %285 = sbr.rel (%p283) target = $region24
      $region23: #{model_forward.20} parent=11 // pred_region
        _
      $region24: #{model_forward.20} parent=11 // pred_fallthru
        _
      // Predicated region
      $region25: #{model_forward.20} parent=11 // pred_check
        %p286 = pneg %p152
      $region26: #{model_forward.20} parent=11 // pred_check_branch
        %288 = sbr.rel (%p286) target = $region28
      $region27: #{model_forward.20} parent=11 // pred_region
        _
      $region28: #{model_forward.20} parent=11 // pred_fallthru
        _
      // Predicated region
      $region29: #{model_forward.20} parent=11 // pred_check
        %p289 = pneg %p173
      $region30: #{model_forward.20} parent=11 // pred_check_branch
        %291 = sbr.rel (%p289) target = $region32
      $region31: #{model_forward.20} parent=11 // pred_region
        _
      $region32: #{model_forward.20} parent=11 // pred_fallthru
        _
      // Predicated region
      $region33: #{model_forward.20} parent=11 // pred_check
        %p292 = pneg %p194
      $region34: #{model_forward.20} parent=11 // pred_check_branch
        %294 = sbr.rel (%p292) target = $region36
      $region35: #{model_forward.20} parent=11 // pred_region
        _
      $region36: #{model_forward.20} parent=11 // pred_fallthru
        _
      // Predicated region
      $region37: #{model_forward.20} parent=11 // pred_check
        %p295 = pneg %p215
      $region38: #{model_forward.20} parent=11 // pred_check_branch
        %297 = sbr.rel (%p295) target = $region40
      $region39: #{model_forward.20} parent=11 // pred_region
        _
      $region40: #{model_forward.20} parent=11 // pred_fallthru
        _
      // Predicated region
      $region41: #{model_forward.20} parent=11 // pred_check
        %p298 = pneg %p236
      $region42: #{model_forward.20} parent=11 // pred_check_branch
        %300 = sbr.rel (%p298) target = $region44
      $region43: #{model_forward.20} parent=11 // pred_region
        _
      $region44: #{model_forward.20} parent=11 // pred_fallthru
        _
    $region12: #{model_forward.20} parent=5 // pred_fallthru
      _
    %p301 = scmp.lt.s32.totalorder %s16, 2
    // Predicated region
    $region45: #{model_forward.20} parent=5 // pred_check
      %p302 = pneg %p301
    $region46: #{model_forward.20} parent=5 // pred_check_branch
      %304 = sbr.rel (%p302) target = $region48
    $region47: #{model_forward.20} parent=5 // pred_region
      // Predicated region
      $region49: #{model_forward.20} parent=47 // pred_check
        %p305 = pneg %p36
      $region50: #{model_forward.20} parent=47 // pred_check_branch
        %307 = sbr.rel (%p305) target = $region52
      $region51: #{model_forward.20} parent=47 // pred_region
        %p308 = scmp.lt.s32.totalorder %s16, 1
        %s309 = scalar_select %p308, %s16, 1
        %s310 = smul.addr %s309, 4
        %s311 = scalar_lea.vmem %s0, %s310
      $region52: #{model_forward.20} parent=47 // pred_fallthru
        _
      // Predicated region
      $region53: #{model_forward.20} parent=47 // pred_check
        %p312 = pneg %p62
      $region54: #{model_forward.20} parent=47 // pred_check_branch
        %314 = sbr.rel (%p312) target = $region56
      $region55: #{model_forward.20} parent=47 // pred_region
        %p315 = scmp.lt.s32.totalorder %s16, 1
        %s316 = scalar_select %p315, %s16, 1
        %s317 = smul.addr %s316, 4
        %s318 = scalar_lea.vmem %s1, %s317
      $region56: #{model_forward.20} parent=47 // pred_fallthru
        _
    $region48: #{model_forward.20} parent=5 // pred_fallthru
      _
    %p319 = scmp.le.s32.totalorder 1, %s16
    %p320 = scmp.lt.s32.totalorder %s16, 3
    %p321 = pnand %p319, %p320
    %p322 = pneg %p321
    // Predicated region
    $region57: #{model_forward.20} parent=5 // pred_check
      _
    $region58: #{model_forward.20} parent=5 // pred_check_branch
      %324 = sbr.rel (%p321) target = $region60
    $region59: #{model_forward.20} parent=5 // pred_region
      %s325 = ssub.s32 %s16, 1
      %p326 = scmp.lt.s32.totalorder %s21, 1
      %s327 = scalar_select %p326, %s21, 1
      %s328 = smul.addr %s327, 4
      %s329 = scalar_lea.vmem %s0, %s328
      %p330 = pneg %p42
      %p331 = pneg %p39
      %p332 = scmp.lt.s32.totalorder %s21, 1
      %s333 = scalar_select %p332, %s21, 1
      %s334 = smul.addr %s333, 4
      %s335 = scalar_lea.vmem %s1, %s334
      %p336 = pneg %p68
      %p337 = pneg %p65
      %p338 = pneg %p89
      %p339 = pneg %p86
      %p340 = pneg %p110
      %p341 = pneg %p107
      %p342 = pneg %p131
      %p343 = pneg %p128
      %p344 = pneg %p152
      %p345 = pneg %p149
      %p346 = pneg %p173
      %p347 = pneg %p170
      %p348 = pneg %p194
      %p349 = pneg %p191
      %p350 = pneg %p215
      %p351 = pneg %p212
      %p352 = pneg %p236
      %p353 = pneg %p233
      %p354 = pneg %p262
      %p355 = pneg %p259
      %p356 = scmp.lt.s32.totalorder %s21, 1
      %s357 = scalar_select %p356, %s21, 1
      %s358 = smul.addr %s357, 4
      %s359 = scalar_lea.vmem %s10, %s358
      %p360 = scmp.lt.s32.totalorder %s21, 1
      %s361 = scalar_select %p360, %s21, 1
      %s362 = smul.addr %s361, 4
      %s363 = scalar_lea.vmem %s0, %s362
      %p364 = scmp.lt.s32.totalorder %s21, 1
      %s365 = scalar_select %p364, %s21, 1
      %s366 = smul.addr %s365, 4
      %s367 = scalar_lea.vmem %s1, %s366
      %p368 = scmp.lt.s32.totalorder %s21, 1
      %s369 = scalar_select %p368, %s21, 1
      %s370 = smul.addr %s369, 4
      %s371 = scalar_lea.vmem %s10, %s370
      %v373 = vld [vmem:[%s363] sm:$0xf]
      %v374 = vld [vmem:[%s367] sm:$0xf]
      %v375 = vpack.c.bf16 %v373, %v373
      %v376 = vld [vmem:[%s4] sm:$0xf]
      %v377 = vld [vmem:[%s4 + $0x4] sm:$0xf]
      %v378 = vld [vmem:[%s4 + $0x8] sm:$0xf]
      %v379 = vld [vmem:[%s4 + $0xc] sm:$0xf]
      %v380 = vld [vmem:[%s4 + $0x10] sm:$0xf]
      %v381 = vld [vmem:[%s4 + $0x14] sm:$0xf]
      %v382 = vld [vmem:[%s4 + $0x18] sm:$0xf]
      %v383 = vld [vmem:[%s4 + $0x1c] sm:$0xf]
      %v384 = vld [vmem:[%s4 + $0x20] sm:$0xf]
      %v385 = vld [vmem:[%s4 + $0x24] sm:$0xf]
      %v386 = vld [vmem:[%s4 + $0x28] sm:$0xf]
      %v387 = vld [vmem:[%s4 + $0x2c] sm:$0xf]
      %v388 = vld [vmem:[%s4 + $0x30] sm:$0xf]
      %v389 = vld [vmem:[%s4 + $0x34] sm:$0xf]
      %v390 = vld [vmem:[%s4 + $0x38] sm:$0xf]
      %v391 = vld [vmem:[%s4 + $0x3c] sm:$0xf]
      %v392 = vld [vmem:[%s5] sm:$0x1]
      %v394 = vlaneseq
      %v395 = vshrl.u32 %v394, 7
      %v396 = vsub.s32 0, %v395
      %v397 = vrot.slane %v392, %v396
      %v415 = vunpack.c.l.b16 %v376
      %v416 = vunpack.c.l.b16 %v377
      %v417 = vunpack.c.l.b16 %v378
      %v418 = vunpack.c.l.b16 %v379
      %v419 = vunpack.c.l.b16 %v380
      %v420 = vunpack.c.l.b16 %v381
      %v421 = vunpack.c.l.b16 %v382
      %v422 = vunpack.c.l.b16 %v383
      %v423 = vunpack.c.l.b16 %v384
      %v424 = vunpack.c.l.b16 %v385
      %v425 = vunpack.c.l.b16 %v386
      %v426 = vunpack.c.l.b16 %v387
      %v427 = vunpack.c.l.b16 %v388
      %v428 = vunpack.c.l.b16 %v389
      %v429 = vunpack.c.l.b16 %v390
      %v430 = vunpack.c.l.b16 %v391
      %v431 = vpack.c.b16 %v416, %v415
      %v432 = vpack.c.b16 %v418, %v417
      %v433 = vpack.c.b16 %v420, %v419
      %v434 = vpack.c.b16 %v422, %v421
      %v435 = vpack.c.b16 %v424, %v423
      %v436 = vpack.c.b16 %v426, %v425
      %v437 = vpack.c.b16 %v428, %v427
      %v438 = vpack.c.b16 %v430, %v429
      %447 = vmatprep.subr.bf16.mxu0 0
      %448 = vmatpush1.bf16.msra.mxu0 %v431
      %449 = vmatprep.subr.bf16.mxu0 0
      %450 = vmatpush1.bf16.msra.mxu0 %v432
      %451 = vmatprep.subr.bf16.mxu0 0
      %452 = vmatpush1.bf16.msra.mxu0 %v433
      %453 = vmatprep.subr.bf16.mxu0 0
      %454 = vmatpush1.bf16.msra.mxu0 %v434
      %455 = vmatprep.subr.bf16.mxu0 0
      %456 = vmatpush1.bf16.msra.mxu0 %v435
      %457 = vmatprep.subr.bf16.mxu0 0
      %458 = vmatpush1.bf16.msra.mxu0 %v436
      %459 = vmatprep.subr.bf16.mxu0 0
      %460 = vmatpush1.bf16.msra.mxu0 %v437
      %461 = vmatprep.subr.bf16.mxu0 0
      %462 = vmatpush1.bf16.msra.mxu0 %v438
      %463 = vmatprep.subr.bf16.mxu0 0
      %464 = vmatpush1.bf16.msra.mxu0 0
      %465 = vmatprep.subr.bf16.mxu0 0
      %466 = vmatpush1.bf16.msra.mxu0 0
      %467 = vmatprep.subr.bf16.mxu0 0
      %468 = vmatpush1.bf16.msra.mxu0 0
      %469 = vmatprep.subr.bf16.mxu0 0
      %470 = vmatpush1.bf16.msra.mxu0 0
      %471 = vmatprep.subr.bf16.mxu0 0
      %472 = vmatpush1.bf16.msra.mxu0 0
      %473 = vmatprep.subr.bf16.mxu0 0
      %474 = vmatpush1.bf16.msra.mxu0 0
      %475 = vmatprep.subr.bf16.mxu0 0
      %476 = vmatpush1.bf16.msra.mxu0 0
      %477 = vmatprep.subr.bf16.mxu0 0
      %478 = vmatpush1.bf16.msra.mxu0 0
      %479 = vmatprep.mubr.bf16.mxu0 0
      %480 = vmatmul.mubr.bf16.gmra.mrb[0].mxu0 %v375
      %v481 = vpop.f32.mrb[0].mxu0
      %v482 = vadd.f32 %v397, %v481
      %v483 = vpop.f32.mrb[0].mxu0
      %v484 = vpop.f32.mrb[0].mxu0
      %v485 = vpop.f32.mrb[0].mxu0
      %486 = vdwg.mxu0
      %v487 = vpack.c.bf16 %v374, %v374
      %v488 = vld [vmem:[%s6] sm:$0xff]
      %v489 = vld [vmem:[%s6 + $0x8] sm:$0xff]
      %v490 = vld [vmem:[%s6 + $0x10] sm:$0xff]
      %v491 = vld [vmem:[%s6 + $0x18] sm:$0xff]
      %v492 = vld [vmem:[%s6 + $0x20] sm:$0xff]
      %v493 = vld [vmem:[%s6 + $0x28] sm:$0xff]
      %v494 = vld [vmem:[%s6 + $0x30] sm:$0xff]
      %v495 = vld [vmem:[%s6 + $0x38] sm:$0xff]
      %v496 = vld [vmem:[%s6 + $0x40] sm:$0xff]
      %v497 = vld [vmem:[%s6 + $0x48] sm:$0xff]
      %v498 = vld [vmem:[%s6 + $0x50] sm:$0xff]
      %v499 = vld [vmem:[%s6 + $0x58] sm:$0xff]
      %v500 = vld [vmem:[%s6 + $0x60] sm:$0xff]
      %v501 = vld [vmem:[%s6 + $0x68] sm:$0xff]
      %v502 = vld [vmem:[%s6 + $0x70] sm:$0xff]
      %v503 = vld [vmem:[%s6 + $0x78] sm:$0xff]
      %v504 = vld [vmem:[%s7] sm:$0x3]
      %v506 = vlaneseq
      %v507 = vshrl.u32 %v506, 7
      %v508 = vsub.s32 0, %v507
      %v509 = vrot.slane %v504, %v508
      %v510 = vlaneseq
      %v511 = vshrl.u32 %v510, 7
      %v512 = vsub.s32 1, %v511
      %v513 = vrot.slane %v504, %v512
      %v532 = vunpack.c.l.b16 %v488
      %v533 = vunpack.c.h.b16 %v488
      %v534 = vunpack.c.l.b16 %v489
      %v535 = vunpack.c.h.b16 %v489
      %v536 = vunpack.c.l.b16 %v490
      %v537 = vunpack.c.h.b16 %v490
      %v538 = vunpack.c.l.b16 %v491
      %v539 = vunpack.c.h.b16 %v491
      %v540 = vunpack.c.l.b16 %v492
      %v541 = vunpack.c.h.b16 %v492
      %v542 = vunpack.c.l.b16 %v493
      %v543 = vunpack.c.h.b16 %v493
      %v544 = vunpack.c.l.b16 %v494
      %v545 = vunpack.c.h.b16 %v494
      %v546 = vunpack.c.l.b16 %v495
      %v547 = vunpack.c.h.b16 %v495
      %v548 = vunpack.c.l.b16 %v496
      %v549 = vunpack.c.h.b16 %v496
      %v550 = vunpack.c.l.b16 %v497
      %v551 = vunpack.c.h.b16 %v497
      %v552 = vunpack.c.l.b16 %v498
      %v553 = vunpack.c.h.b16 %v498
      %v554 = vunpack.c.l.b16 %v499
      %v555 = vunpack.c.h.b16 %v499
      %v556 = vunpack.c.l.b16 %v500
      %v557 = vunpack.c.h.b16 %v500
      %v558 = vunpack.c.l.b16 %v501
      %v559 = vunpack.c.h.b16 %v501
      %v560 = vunpack.c.l.b16 %v502
      %v561 = vunpack.c.h.b16 %v502
      %v562 = vunpack.c.l.b16 %v503
      %v563 = vunpack.c.h.b16 %v503
      %v564 = vpack.c.b16 %v534, %v532
      %v565 = vpack.c.b16 %v535, %v533
      %v566 = vpack.c.b16 %v538, %v536
      %v567 = vpack.c.b16 %v539, %v537
      %v568 = vpack.c.b16 %v542, %v540
      %v569 = vpack.c.b16 %v543, %v541
      %v570 = vpack.c.b16 %v546, %v544
      %v571 = vpack.c.b16 %v547, %v545
      %v572 = vpack.c.b16 %v550, %v548
      %v573 = vpack.c.b16 %v551, %v549
      %v574 = vpack.c.b16 %v554, %v552
      %v575 = vpack.c.b16 %v555, %v553
      %v576 = vpack.c.b16 %v558, %v556
      %v577 = vpack.c.b16 %v559, %v557
      %v578 = vpack.c.b16 %v562, %v560
      %v579 = vpack.c.b16 %v563, %v561
      %596 = vmatprep.subr.bf16.mxu0 %v565
      %597 = vmatpush1.bf16.msra.mxu0 %v564
      %598 = vmatprep.subr.bf16.mxu0 %v567
      %599 = vmatpush1.bf16.msra.mxu0 %v566
      %600 = vmatprep.subr.bf16.mxu0 %v569
      %601 = vmatpush1.bf16.msra.mxu0 %v568
      %602 = vmatprep.subr.bf16.mxu0 %v571
      %603 = vmatpush1.bf16.msra.mxu0 %v570
      %604 = vmatprep.subr.bf16.mxu0 %v573
      %605 = vmatpush1.bf16.msra.mxu0 %v572
      %606 = vmatprep.subr.bf16.mxu0 %v575
      %607 = vmatpush1.bf16.msra.mxu0 %v574
      %608 = vmatprep.subr.bf16.mxu0 %v577
      %609 = vmatpush1.bf16.msra.mxu0 %v576
      %610 = vmatprep.subr.bf16.mxu0 %v579
      %611 = vmatpush1.bf16.msra.mxu0 %v578
      %612 = vmatprep.subr.bf16.mxu0 0
      %613 = vmatpush1.bf16.msra.mxu0 0
      %614 = vmatprep.subr.bf16.mxu0 0
      %615 = vmatpush1.bf16.msra.mxu0 0
      %616 = vmatprep.subr.bf16.mxu0 0
      %617 = vmatpush1.bf16.msra.mxu0 0
      %618 = vmatprep.subr.bf16.mxu0 0
      %619 = vmatpush1.bf16.msra.mxu0 0
      %620 = vmatprep.subr.bf16.mxu0 0
      %621 = vmatpush1.bf16.msra.mxu0 0
      %622 = vmatprep.subr.bf16.mxu0 0
      %623 = vmatpush1.bf16.msra.mxu0 0
      %624 = vmatprep.subr.bf16.mxu0 0
      %625 = vmatpush1.bf16.msra.mxu0 0
      %626 = vmatprep.subr.bf16.mxu0 0
      %627 = vmatpush1.bf16.msra.mxu0 0
      %628 = vmatprep.mubr.bf16.mxu0 0
      %629 = vmatmul.mubr.bf16.gmra.mrb[0].mxu0 %v487
      %v630 = vpop.f32.mrb[0].mxu0
      %v631 = vadd.f32 %v509, %v630
      %v632 = vpop.f32.mrb[0].mxu0
      %v633 = vadd.f32 %v513, %v632
      %v634 = vpop.f32.mrb[0].mxu0
      %v635 = vpop.f32.mrb[0].mxu0
      %636 = vdwg.mxu0
      %v637 = vlaneseq
      %v638 = vshrl.u32 %v637, 7
      %v639 = vlaneseq
      %v640 = vand.u32 %v639, 127
      %vm641 = vcmp.gt.s32.totalorder %v640, %v638
      %v642 = vsel %vm641, -1e+30, 0.0
      %v643 = vld [vmem:[%s8] sm:$0xff]
      %v644 = vld [vmem:[%s8 + $0x8] sm:$0xff]
      %v645 = vld [vmem:[%s8 + $0x10] sm:$0xff]
      %v646 = vld [vmem:[%s8 + $0x18] sm:$0xff]
      %v647 = vld [vmem:[%s8 + $0x20] sm:$0xff]
      %v648 = vld [vmem:[%s8 + $0x28] sm:$0xff]
      %v649 = vld [vmem:[%s8 + $0x30] sm:$0xff]
      %v650 = vld [vmem:[%s8 + $0x38] sm:$0xff]
      %v651 = vld [vmem:[%s8 + $0x40] sm:$0xff]
      %v652 = vld [vmem:[%s8 + $0x48] sm:$0xff]
      %v653 = vld [vmem:[%s8 + $0x50] sm:$0xff]
      %v654 = vld [vmem:[%s8 + $0x58] sm:$0xff]
      %v655 = vld [vmem:[%s8 + $0x60] sm:$0xff]
      %v656 = vld [vmem:[%s8 + $0x68] sm:$0xff]
      %v657 = vld [vmem:[%s8 + $0x70] sm:$0xff]
      %v658 = vld [vmem:[%s8 + $0x78] sm:$0xff]
      %v659 = vpack.c.bf16 %v482, %v482
      %v660 = vpack.c.bf16 %v631, %v631
      %v661 = vpack.c.bf16 %v633, %v633
      %vm662 = vcmask 261120
      %v664 = vsel %vm662, %v659, 0
      %v667 = vsel %vm662, %v660, 0
      %669 = vmatprep.subr.bf16.mxu0 0
      %670 = vmatpush1.bf16.xpose.msra.mxu0 %v667
      %671 = vmatprep.subr.bf16.mxu0 0
      %672 = vmatpush1.bf16.xpose.msra.mxu0 0
      %673 = vmatprep.subr.bf16.mxu0 0
      %674 = vmatpush1.bf16.xpose.msra.mxu0 0
      %675 = vmatprep.subr.bf16.mxu0 0
      %676 = vmatpush1.bf16.xpose.msra.mxu0 0
      %677 = vmatprep.subr.bf16.mxu0 0
      %678 = vmatpush1.bf16.xpose.msra.mxu0 0
      %679 = vmatprep.subr.bf16.mxu0 0
      %680 = vmatpush1.bf16.xpose.msra.mxu0 0
      %681 = vmatprep.subr.bf16.mxu0 0
      %682 = vmatpush1.bf16.xpose.msra.mxu0 0
      %683 = vmatprep.subr.bf16.mxu0 0
      %684 = vmatpush1.bf16.xpose.msra.mxu0 0
      %685 = vmatprep.subr.bf16.mxu0 0
      %686 = vmatpush1.bf16.xpose.msra.mxu0 0
      %687 = vmatprep.subr.bf16.mxu0 0
      %688 = vmatpush1.bf16.xpose.msra.mxu0 0
      %689 = vmatprep.subr.bf16.mxu0 0
      %690 = vmatpush1.bf16.xpose.msra.mxu0 0
      %691 = vmatprep.subr.bf16.mxu0 0
      %692 = vmatpush1.bf16.xpose.msra.mxu0 0
      %693 = vmatprep.subr.bf16.mxu0 0
      %694 = vmatpush1.bf16.xpose.msra.mxu0 0
      %695 = vmatprep.subr.bf16.mxu0 0
      %696 = vmatpush1.bf16.xpose.msra.mxu0 0
      %697 = vmatprep.subr.bf16.mxu0 0
      %698 = vmatpush1.bf16.xpose.msra.mxu0 0
      %699 = vmatprep.subr.bf16.mxu0 0
      %700 = vmatpush1.bf16.xpose.msra.mxu0 0
      %701 = vmatprep.mubr.bf16.mxu0 0
      %702 = vmatmul.mubr.bf16.gmra.mrb[0].mxu0 %v664
      %v703 = vpop.f32.mrb[0].mxu0
      %v704 = vadd.f32 0.0, %v703
      %v705 = vpop.f32.mrb[0].mxu0
      %v706 = vpop.f32.mrb[0].mxu0
      %v707 = vpop.f32.mrb[0].mxu0
      %708 = vdwg.mxu0
      %v709 = vmul.f32 %v704, 0.17677669
      %v710 = vadd.f32 %v709, %v642
      %vm711 = vcmask 27648
      %v712 = vsel %vm711, %v710, -inf
      %713 = vmax.xlane.f32.xlu0 %v712
      %v714 = vpop.xlane.xlu0 %713
      %v715 = vsub.f32 %v710, %v714
      %v716 = vmul.f32 %v715, 1.442695
      %v717 = vpow.pop %v716
      %v718 = vsel %vm711, %v717, 0.0
      %719 = vadd.xlane.f32.xlu0 %v718
      %v720 = vpop.xlane.xlu0 %719
      %v721 = vrcp.pop %v720
      %v722 = vmul.f32 %v717, %v721
      %v723 = vpack.c.bf16 %v722, %v722
      %vm724 = vcmask 31744
      %v726 = vsel %vm724, %v723, 0
      %vm728 = vcmask 1041408
      %v730 = vsel %vm728, %v661, 0
      %732 = vmatprep.subr.bf16.mxu0 0
      %733 = vmatpush1.bf16.msra.mxu0 %v730
      %734 = vmatprep.subr.bf16.mxu0 0
      %735 = vmatpush1.bf16.msra.mxu0 0
      %736 = vmatprep.subr.bf16.mxu0 0
      %737 = vmatpush1.bf16.msra.mxu0 0
      %738 = vmatprep.subr.bf16.mxu0 0
      %739 = vmatpush1.bf16.msra.mxu0 0
      %740 = vmatprep.subr.bf16.mxu0 0
      %741 = vmatpush1.bf16.msra.mxu0 0
      %742 = vmatprep.subr.bf16.mxu0 0
      %743 = vmatpush1.bf16.msra.mxu0 0
      %744 = vmatprep.subr.bf16.mxu0 0
      %745 = vmatpush1.bf16.msra.mxu0 0
      %746 = vmatprep.subr.bf16.mxu0 0
      %747 = vmatpush1.bf16.msra.mxu0 0
      %748 = vmatprep.subr.bf16.mxu0 0
      %749 = vmatpush1.bf16.msra.mxu0 0
      %750 = vmatprep.subr.bf16.mxu0 0
      %751 = vmatpush1.bf16.msra.mxu0 0
      %752 = vmatprep.subr.bf16.mxu0 0
      %753 = vmatpush1.bf16.msra.mxu0 0
      %754 = vmatprep.subr.bf16.mxu0 0
      %755 = vmatpush1.bf16.msra.mxu0 0
      %756 = vmatprep.subr.bf16.mxu0 0
      %757 = vmatpush1.bf16.msra.mxu0 0
      %758 = vmatprep.subr.bf16.mxu0 0
      %759 = vmatpush1.bf16.msra.mxu0 0
      %760 = vmatprep.subr.bf16.mxu0 0
      %761 = vmatpush1.bf16.msra.mxu0 0
      %762 = vmatprep.subr.bf16.mxu0 0
      %763 = vmatpush1.bf16.msra.mxu0 0
      %764 = vmatprep.mubr.bf16.mxu0 0
      %765 = vmatmul.mubr.bf16.gmra.mrb[0].mxu0 %v726
      %v766 = vpop.f32.mrb[0].mxu0
      %v767 = vadd.f32 0.0, %v766
      %v768 = vpop.f32.mrb[0].mxu0
      %v769 = vpop.f32.mrb[0].mxu0
      %v770 = vpop.f32.mrb[0].mxu0
      %771 = vdwg.mxu0
      %v772 = vpack.c.bf16 %v767, %v767
      %v773 = vpack.c.bf16 %v644, %v643
      %v774 = vpack.c.bf16 %v646, %v645
      %776 = vrot.lane.b32.xlu0 %v659, 96
      %v777 = vpop.permute.xlu0 %776
      %779 = vrot.lane.b32.xlu0 %v660, 96
      %v780 = vpop.permute.xlu0 %779
      %v782 = vsel %vm662, %v777, 0
      %v785 = vsel %vm662, %v780, 0
      %787 = vmatprep.subr.bf16.mxu0 0
      %788 = vmatpush1.bf16.xpose.msra.mxu0 %v785
      %789 = vmatprep.subr.bf16.mxu0 0
      %790 = vmatpush1.bf16.xpose.msra.mxu0 0
      %791 = vmatprep.subr.bf16.mxu0 0
      %792 = vmatpush1.bf16.xpose.msra.mxu0 0
      %793 = vmatprep.subr.bf16.mxu0 0
      %794 = vmatpush1.bf16.xpose.msra.mxu0 0
      %795 = vmatprep.subr.bf16.mxu0 0
      %796 = vmatpush1.bf16.xpose.msra.mxu0 0
      %797 = vmatprep.subr.bf16.mxu0 0
      %798 = vmatpush1.bf16.xpose.msra.mxu0 0
      %799 = vmatprep.subr.bf16.mxu0 0
      %800 = vmatpush1.bf16.xpose.msra.mxu0 0
      %801 = vmatprep.subr.bf16.mxu0 0
      %802 = vmatpush1.bf16.xpose.msra.mxu0 0
      %803 = vmatprep.subr.bf16.mxu0 0
      %804 = vmatpush1.bf16.xpose.msra.mxu0 0
      %805 = vmatprep.subr.bf16.mxu0 0
      %806 = vmatpush1.bf16.xpose.msra.mxu0 0
      %807 = vmatprep.subr.bf16.mxu0 0
      %808 = vmatpush1.bf16.xpose.msra.mxu0 0
      %809 = vmatprep.subr.bf16.mxu0 0
      %810 = vmatpush1.bf16.xpose.msra.mxu0 0
      %811 = vmatprep.subr.bf16.mxu0 0
      %812 = vmatpush1.bf16.xpose.msra.mxu0 0
      %813 = vmatprep.subr.bf16.mxu0 0
      %814 = vmatpush1.bf16.xpose.msra.mxu0 0
      %815 = vmatprep.subr.bf16.mxu0 0
      %816 = vmatpush1.bf16.xpose.msra.mxu0 0
      %817 = vmatprep.subr.bf16.mxu0 0
      %818 = vmatpush1.bf16.xpose.msra.mxu0 0
      %819 = vmatprep.mubr.bf16.mxu0 0
      %820 = vmatmul.mubr.bf16.gmra.mrb[0].mxu0 %v782
      %v821 = vpop.f32.mrb[0].mxu0
      %v822 = vadd.f32 0.0, %v821
      %v823 = vpop.f32.mrb[0].mxu0
      %v824 = vpop.f32.mrb[0].mxu0
      %v825 = vpop.f32.mrb[0].mxu0
      %826 = vdwg.mxu0
      %v827 = vmul.f32 %v822, 0.17677669
      %v828 = vadd.f32 %v827, %v642
      %v829 = vsel %vm711, %v828, -inf
      %830 = vmax.xlane.f32.xlu0 %v829
      %v831 = vpop.xlane.xlu0 %830
      %v832 = vsub.f32 %v828, %v831
      %v833 = vmul.f32 %v832, 1.442695
      %v834 = vpow.pop %v833
      %v835 = vsel %vm711, %v834, 0.0
      %836 = vadd.xlane.f32.xlu0 %v835
      %v837 = vpop.xlane.xlu0 %836
      %v838 = vrcp.pop %v837
      %v839 = vmul.f32 %v834, %v838
      %v840 = vpack.c.bf16 %v839, %v839
      %842 = vrot.lane.b32.xlu0 %v661, 96
      %v843 = vpop.permute.xlu0 %842
      %v845 = vsel %vm724, %v840, 0
      %v848 = vsel %vm728, %v843, 0
      %850 = vmatprep.subr.bf16.mxu0 0
      %851 = vmatpush1.bf16.msra.mxu0 %v848
      %852 = vmatprep.subr.bf16.mxu0 0
      %853 = vmatpush1.bf16.msra.mxu0 0
      %854 = vmatprep.subr.bf16.mxu0 0
      %855 = vmatpush1.bf16.msra.mxu0 0
      %856 = vmatprep.subr.bf16.mxu0 0
      %857 = vmatpush1.bf16.msra.mxu0 0
      %858 = vmatprep.subr.bf16.mxu0 0
      %859 = vmatpush1.bf16.msra.mxu0 0
      %860 = vmatprep.subr.bf16.mxu0 0
      %861 = vmatpush1.bf16.msra.mxu0 0
      %862 = vmatprep.subr.bf16.mxu0 0
      %863 = vmatpush1.bf16.msra.mxu0 0
      %864 = vmatprep.subr.bf16.mxu0 0
      %865 = vmatpush1.bf16.msra.mxu0 0
      %866 = vmatprep.subr.bf16.mxu0 0
      %867 = vmatpush1.bf16.msra.mxu0 0
      %868 = vmatprep.subr.bf16.mxu0 0
      %869 = vmatpush1.bf16.msra.mxu0 0
      %870 = vmatprep.subr.bf16.mxu0 0
      %871 = vmatpush1.bf16.msra.mxu0 0
      %872 = vmatprep.subr.bf16.mxu0 0
      %873 = vmatpush1.bf16.msra.mxu0 0
      %874 = vmatprep.subr.bf16.mxu0 0
      %875 = vmatpush1.bf16.msra.mxu0 0
      %876 = vmatprep.subr.bf16.mxu0 0
      %877 = vmatpush1.bf16.msra.mxu0 0
      %878 = vmatprep.subr.bf16.mxu0 0
      %879 = vmatpush1.bf16.msra.mxu0 0
      %880 = vmatprep.subr.bf16.mxu0 0
      %881 = vmatpush1.bf16.msra.mxu0 0
      %882 = vmatprep.mubr.bf16.mxu0 0
      %883 = vmatmul.mubr.bf16.gmra.mrb[0].mxu0 %v845
      %v884 = vpop.f32.mrb[0].mxu0
      %v885 = vadd.f32 0.0, %v884
      %v886 = vpop.f32.mrb[0].mxu0
      %v887 = vpop.f32.mrb[0].mxu0
      %v888 = vpop.f32.mrb[0].mxu0
      %889 = vdwg.mxu0
      %v890 = vpack.c.bf16 %v885, %v885
      %v891 = vpack.c.bf16 %v648, %v647
      %v892 = vpack.c.bf16 %v650, %v649
      %v894 = vsel %vm662, %v890, 0
      %896 = vmatprep.subr.bf16.mxu0 0
      %897 = vmatpush1.bf16.msra.mxu0 %v891
      %898 = vmatprep.subr.bf16.mxu0 0
      %899 = vmatpush1.bf16.msra.mxu0 %v892
      %900 = vmatprep.subr.bf16.mxu0 0
      %901 = vmatpush1.bf16.msra.mxu0 0
      %902 = vmatprep.subr.bf16.mxu0 0
      %903 = vmatpush1.bf16.msra.mxu0 0
      %904 = vmatprep.subr.bf16.mxu0 0
      %905 = vmatpush1.bf16.msra.mxu0 0
      %906 = vmatprep.subr.bf16.mxu0 0
      %907 = vmatpush1.bf16.msra.mxu0 0
      %908 = vmatprep.subr.bf16.mxu0 0
      %909 = vmatpush1.bf16.msra.mxu0 0
      %910 = vmatprep.subr.bf16.mxu0 0
      %911 = vmatpush1.bf16.msra.mxu0 0
      %912 = vmatprep.subr.bf16.mxu0 0
      %913 = vmatpush1.bf16.msra.mxu0 0
      %914 = vmatprep.subr.bf16.mxu0 0
      %915 = vmatpush1.bf16.msra.mxu0 0
      %916 = vmatprep.subr.bf16.mxu0 0
      %917 = vmatpush1.bf16.msra.mxu0 0
      %918 = vmatprep.subr.bf16.mxu0 0
      %919 = vmatpush1.bf16.msra.mxu0 0
      %920 = vmatprep.subr.bf16.mxu0 0
      %921 = vmatpush1.bf16.msra.mxu0 0
      %922 = vmatprep.subr.bf16.mxu0 0
      %923 = vmatpush1.bf16.msra.mxu0 0
      %924 = vmatprep.subr.bf16.mxu0 0
      %925 = vmatpush1.bf16.msra.mxu0 0
      %926 = vmatprep.subr.bf16.mxu0 0
      %927 = vmatpush1.bf16.msra.mxu0 0
      %928 = vmatprep.mubr.bf16.mxu0 0
      %929 = vmatmul.mubr.bf16.gmra.mrb[0].mxu0 %v894
      %v930 = vpop.f32.mrb[0].mxu0
      %v931 = vadd.f32 0.0, %v930
      %v932 = vpop.f32.mrb[0].mxu0
      %v933 = vpop.f32.mrb[0].mxu0
      %v934 = vpop.f32.mrb[0].mxu0
      %935 = vdwg.mxu0
      %v937 = vsel %vm662, %v772, 0
      %939 = vmatprep.subr.bf16.mxu0 0
      %940 = vmatpush1.bf16.msra.mxu0 %v773
      %941 = vmatprep.subr.bf16.mxu0 0
      %942 = vmatpush1.bf16.msra.mxu0 %v774
      %943 = vmatprep.subr.bf16.mxu0 0
      %944 = vmatpush1.bf16.msra.mxu0 0
      %945 = vmatprep.subr.bf16.mxu0 0
      %946 = vmatpush1.bf16.msra.mxu0 0
      %947 = vmatprep.subr.bf16.mxu0 0
      %948 = vmatpush1.bf16.msra.mxu0 0
      %949 = vmatprep.subr.bf16.mxu0 0
      %950 = vmatpush1.bf16.msra.mxu0 0
      %951 = vmatprep.subr.bf16.mxu0 0
      %952 = vmatpush1.bf16.msra.mxu0 0
      %953 = vmatprep.subr.bf16.mxu0 0
      %954 = vmatpush1.bf16.msra.mxu0 0
      %955 = vmatprep.subr.bf16.mxu0 0
      %956 = vmatpush1.bf16.msra.mxu0 0
      %957 = vmatprep.subr.bf16.mxu0 0
      %958 = vmatpush1.bf16.msra.mxu0 0
      %959 = vmatprep.subr.bf16.mxu0 0
      %960 = vmatpush1.bf16.msra.mxu0 0
      %961 = vmatprep.subr.bf16.mxu0 0
      %962 = vmatpush1.bf16.msra.mxu0 0
      %963 = vmatprep.subr.bf16.mxu0 0
      %964 = vmatpush1.bf16.msra.mxu0 0
      %965 = vmatprep.subr.bf16.mxu0 0
      %966 = vmatpush1.bf16.msra.mxu0 0
      %967 = vmatprep.subr.bf16.mxu0 0
      %968 = vmatpush1.bf16.msra.mxu0 0
      %969 = vmatprep.subr.bf16.mxu0 0
      %970 = vmatpush1.bf16.msra.mxu0 0
      %971 = vmatprep.mubr.bf16.mxu0 0
      %972 = vmatmul.mubr.bf16.gmra.mrb[0].mxu0 %v937
      %v973 = vpop.f32.mrb[0].mxu0
      %v974 = vadd.f32 %v931, %v973
      %v975 = vpop.f32.mrb[0].mxu0
      %v976 = vpop.f32.mrb[0].mxu0
      %v977 = vpop.f32.mrb[0].mxu0
      %978 = vdwg.mxu0
      %979 = vrot.lane.b32.xlu0 %v659, 64
      %v980 = vpop.permute.xlu0 %979
      %981 = vrot.lane.b32.xlu0 %v660, 64
      %v982 = vpop.permute.xlu0 %981
      %v984 = vsel %vm662, %v980, 0
      %v987 = vsel %vm662, %v982, 0
      %989 = vmatprep.subr.bf16.mxu0 0
      %990 = vmatpush1.bf16.xpose.msra.mxu0 %v987
      %991 = vmatprep.subr.bf16.mxu0 0
      %992 = vmatpush1.bf16.xpose.msra.mxu0 0
      %993 = vmatprep.subr.bf16.mxu0 0
      %994 = vmatpush1.bf16.xpose.msra.mxu0 0
      %995 = vmatprep.subr.bf16.mxu0 0
      %996 = vmatpush1.bf16.xpose.msra.mxu0 0
      %997 = vmatprep.subr.bf16.mxu0 0
      %998 = vmatpush1.bf16.xpose.msra.mxu0 0
      %999 = vmatprep.subr.bf16.mxu0 0
      %1000 = vmatpush1.bf16.xpose.msra.mxu0 0
      %1001 = vmatprep.subr.bf16.mxu0 0
      %1002 = vmatpush1.bf16.xpose.msra.mxu0 0
      %1003 = vmatprep.subr.bf16.mxu0 0
      %1004 = vmatpush1.bf16.xpose.msra.mxu0 0
      %1005 = vmatprep.subr.bf16.mxu0 0
      %1006 = vmatpush1.bf16.xpose.msra.mxu0 0
      %1007 = vmatprep.subr.bf16.mxu0 0
      %1008 = vmatpush1.bf16.xpose.msra.mxu0 0
      %1009 = vmatprep.subr.bf16.mxu0 0
      %1010 = vmatpush1.bf16.xpose.msra.mxu0 0
      %1011 = vmatprep.subr.bf16.mxu0 0
      %1012 = vmatpush1.bf16.xpose.msra.mxu0 0
      %1013 = vmatprep.subr.bf16.mxu0 0
      %1014 = vmatpush1.bf16.xpose.msra.mxu0 0
      %1015 = vmatprep.subr.bf16.mxu0 0
      %1016 = vmatpush1.bf16.xpose.msra.mxu0 0
      %1017 = vmatprep.subr.bf16.mxu0 0
      %1018 = vmatpush1.bf16.xpose.msra.mxu0 0
      %1019 = vmatprep.subr.bf16.mxu0 0
      %1020 = vmatpush1.bf16.xpose.msra.mxu0 0
      %1021 = vmatprep.mubr.bf16.mxu0 0
      %1022 = vmatmul.mubr.bf16.gmra.mrb[0].mxu0 %v984
      %v1023 = vpop.f32.mrb[0].mxu0
      %v1024 = vadd.f32 0.0, %v1023
      %v1025 = vpop.f32.mrb[0].mxu0
      %v1026 = vpop.f32.mrb[0].mxu0
      %v1027 = vpop.f32.mrb[0].mxu0
      %1028 = vdwg.mxu0
      %v1029 = vmul.f32 %v1024, 0.17677669
      %v1030 = vadd.f32 %v1029, %v642
      %v1031 = vsel %vm711, %v1030, -inf
      %1032 = vmax.xlane.f32.xlu0 %v1031
      %v1033 = vpop.xlane.xlu0 %1032
      %v1034 = vsub.f32 %v1030, %v1033
      %v1035 = vmul.f32 %v1034, 1.442695
      %v1036 = vpow.pop %v1035
      %v1037 = vsel %vm711, %v1036, 0.0
      %1038 = vadd.xlane.f32.xlu0 %v1037
      %v1039 = vpop.xlane.xlu0 %1038
      %v1040 = vrcp.pop %v1039
      %v1041 = vmul.f32 %v1036, %v1040
      %v1042 = vpack.c.bf16 %v1041, %v1041
      %1043 = vrot.lane.b32.xlu0 %v661, 64
      %v1044 = vpop.permute.xlu0 %1043
      %v1046 = vsel %vm724, %v1042, 0
      %v1049 = vsel %vm728, %v1044, 0
      %1051 = vmatprep.subr.bf16.mxu0 0
      %1052 = vmatpush1.bf16.msra.mxu0 %v1049
      %1053 = vmatprep.subr.bf16.mxu0 0
      %1054 = vmatpush1.bf16.msra.mxu0 0
      %1055 = vmatprep.subr.bf16.mxu0 0
      %1056 = vmatpush1.bf16.msra.mxu0 0
      %1057 = vmatprep.subr.bf16.mxu0 0
      %1058 = vmatpush1.bf16.msra.mxu0 0
      %1059 = vmatprep.subr.bf16.mxu0 0
      %1060 = vmatpush1.bf16.msra.mxu0 0
      %1061 = vmatprep.subr.bf16.mxu0 0
      %1062 = vmatpush1.bf16.msra.mxu0 0
      %1063 = vmatprep.subr.bf16.mxu0 0
      %1064 = vmatpush1.bf16.msra.mxu0 0
      %1065 = vmatprep.subr.bf16.mxu0 0
      %1066 = vmatpush1.bf16.msra.mxu0 0
      %1067 = vmatprep.subr.bf16.mxu0 0
      %1068 = vmatpush1.bf16.msra.mxu0 0
      %1069 = vmatprep.subr.bf16.mxu0 0
      %1070 = vmatpush1.bf16.msra.mxu0 0
      %1071 = vmatprep.subr.bf16.mxu0 0
      %1072 = vmatpush1.bf16.msra.mxu0 0
      %1073 = vmatprep.subr.bf16.mxu0 0
      %1074 = vmatpush1.bf16.msra.mxu0 0
      %1075 = vmatprep.subr.bf16.mxu0 0
      %1076 = vmatpush1.bf16.msra.mxu0 0
      %1077 = vmatprep.subr.bf16.mxu0 0
      %1078 = vmatpush1.bf16.msra.mxu0 0
      %1079 = vmatprep.subr.bf16.mxu0 0
      %1080 = vmatpush1.bf16.msra.mxu0 0
      %1081 = vmatprep.subr.bf16.mxu0 0
      %1082 = vmatpush1.bf16.msra.mxu0 0
      %1083 = vmatprep.mubr.bf16.mxu0 0
      %1084 = vmatmul.mubr.bf16.gmra.mrb[0].mxu0 %v1046
      %v1085 = vpop.f32.mrb[0].mxu0
      %v1086 = vadd.f32 0.0, %v1085
      %v1087 = vpop.f32.mrb[0].mxu0
      %v1088 = vpop.f32.mrb[0].mxu0
      %v1089 = vpop.f32.mrb[0].mxu0
      %1090 = vdwg.mxu0
      %v1091 = vpack.c.bf16 %v1086, %v1086
      %v1092 = vpack.c.bf16 %v652, %v651
      %v1093 = vpack.c.bf16 %v654, %v653
      %v1095 = vsel %vm662, %v1091, 0
      %1097 = vmatprep.subr.bf16.mxu0 0
      %1098 = vmatpush1.bf16.msra.mxu0 %v1092
      %1099 = vmatprep.subr.bf16.mxu0 0
      %1100 = vmatpush1.bf16.msra.mxu0 %v1093
      %1101 = vmatprep.subr.bf16.mxu0 0
      %1102 = vmatpush1.bf16.msra.mxu0 0
      %1103 = vmatprep.subr.bf16.mxu0 0
      %1104 = vmatpush1.bf16.msra.mxu0 0
      %1105 = vmatprep.subr.bf16.mxu0 0
      %1106 = vmatpush1.bf16.msra.mxu0 0
      %1107 = vmatprep.subr.bf16.mxu0 0
      %1108 = vmatpush1.bf16.msra.mxu0 0
      %1109 = vmatprep.subr.bf16.mxu0 0
      %1110 = vmatpush1.bf16.msra.mxu0 0
      %1111 = vmatprep.subr.bf16.mxu0 0
      %1112 = vmatpush1.bf16.msra.mxu0 0
      %1113 = vmatprep.subr.bf16.mxu0 0
      %1114 = vmatpush1.bf16.msra.mxu0 0
      %1115 = vmatprep.subr.bf16.mxu0 0
      %1116 = vmatpush1.bf16.msra.mxu0 0
      %1117 = vmatprep.subr.bf16.mxu0 0
      %1118 = vmatpush1.bf16.msra.mxu0 0
      %1119 = vmatprep.subr.bf16.mxu0 0
      %1120 = vmatpush1.bf16.msra.mxu0 0
      %1121 = vmatprep.subr.bf16.mxu0 0
      %1122 = vmatpush1.bf16.msra.mxu0 0
      %1123 = vmatprep.subr.bf16.mxu0 0
      %1124 = vmatpush1.bf16.msra.mxu0 0
      %1125 = vmatprep.subr.bf16.mxu0 0
      %1126 = vmatpush1.bf16.msra.mxu0 0
      %1127 = vmatprep.subr.bf16.mxu0 0
      %1128 = vmatpush1.bf16.msra.mxu0 0
      %1129 = vmatprep.mubr.bf16.mxu0 0
      %1130 = vmatmul.mubr.bf16.gmra.mrb[0].mxu0 %v1095
      %v1131 = vpop.f32.mrb[0].mxu0
      %v1132 = vadd.f32 0.0, %v1131
      %v1133 = vpop.f32.mrb[0].mxu0
      %v1134 = vpop.f32.mrb[0].mxu0
      %v1135 = vpop.f32.mrb[0].mxu0
      %1136 = vdwg.mxu0
      %v1137 = vadd.f32 %v974, %v1132
      %1138 = vrot.lane.b32.xlu0 %v659, 32
      %v1139 = vpop.permute.xlu0 %1138
      %1140 = vrot.lane.b32.xlu0 %v660, 32
      %v1141 = vpop.permute.xlu0 %1140
      %v1143 = vsel %vm662, %v1139, 0
      %v1146 = vsel %vm662, %v1141, 0
      %1148 = vmatprep.subr.bf16.mxu0 0
      %1149 = vmatpush1.bf16.xpose.msra.mxu0 %v1146
      %1150 = vmatprep.subr.bf16.mxu0 0
      %1151 = vmatpush1.bf16.xpose.msra.mxu0 0
      %1152 = vmatprep.subr.bf16.mxu0 0
      %1153 = vmatpush1.bf16.xpose.msra.mxu0 0
      %1154 = vmatprep.subr.bf16.mxu0 0
      %1155 = vmatpush1.bf16.xpose.msra.mxu0 0
      %1156 = vmatprep.subr.bf16.mxu0 0
      %1157 = vmatpush1.bf16.xpose.msra.mxu0 0
      %1158 = vmatprep.subr.bf16.mxu0 0
      %1159 = vmatpush1.bf16.xpose.msra.mxu0 0
      %1160 = vmatprep.subr.bf16.mxu0 0
      %1161 = vmatpush1.bf16.xpose.msra.mxu0 0
      %1162 = vmatprep.subr.bf16.mxu0 0
      %1163 = vmatpush1.bf16.xpose.msra.mxu0 0
      %1164 = vmatprep.subr.bf16.mxu0 0
      %1165 = vmatpush1.bf16.xpose.msra.mxu0 0
      %1166 = vmatprep.subr.bf16.mxu0 0
      %1167 = vmatpush1.bf16.xpose.msra.mxu0 0
      %1168 = vmatprep.subr.bf16.mxu0 0
      %1169 = vmatpush1.bf16.xpose.msra.mxu0 0
      %1170 = vmatprep.subr.bf16.mxu0 0
      %1171 = vmatpush1.bf16.xpose.msra.mxu0 0
      %1172 = vmatprep.subr.bf16.mxu0 0
      %1173 = vmatpush1.bf16.xpose.msra.mxu0 0
      %1174 = vmatprep.subr.bf16.mxu0 0
      %1175 = vmatpush1.bf16.xpose.msra.mxu0 0
      %1176 = vmatprep.subr.bf16.mxu0 0
      %1177 = vmatpush1.bf16.xpose.msra.mxu0 0
      %1178 = vmatprep.subr.bf16.mxu0 0
      %1179 = vmatpush1.bf16.xpose.msra.mxu0 0
      %1180 = vmatprep.mubr.bf16.mxu0 0
      %1181 = vmatmul.mubr.bf16.gmra.mrb[0].mxu0 %v1143
      %v1182 = vpop.f32.mrb[0].mxu0
      %v1183 = vadd.f32 0.0, %v1182
      %v1184 = vpop.f32.mrb[0].mxu0
      %v1185 = vpop.f32.mrb[0].mxu0
      %v1186 = vpop.f32.mrb[0].mxu0
      %1187 = vdwg.mxu0
      %v1188 = vmul.f32 %v1183, 0.17677669
      %v1189 = vadd.f32 %v1188, %v642
      %v1190 = vsel %vm711, %v1189, -inf
      %1191 = vmax.xlane.f32.xlu0 %v1190
      %v1192 = vpop.xlane.xlu0 %1191
      %v1193 = vsub.f32 %v1189, %v1192
      %v1194 = vmul.f32 %v1193, 1.442695
      %v1195 = vpow.pop %v1194
      %v1196 = vsel %vm711, %v1195, 0.0
      %1197 = vadd.xlane.f32.xlu0 %v1196
      %v1198 = vpop.xlane.xlu0 %1197
      %v1199 = vrcp.pop %v1198
      %v1200 = vmul.f32 %v1195, %v1199
      %v1201 = vpack.c.bf16 %v1200, %v1200
      %1202 = vrot.lane.b32.xlu0 %v661, 32
      %v1203 = vpop.permute.xlu0 %1202
      %v1205 = vsel %vm724, %v1201, 0
      %v1208 = vsel %vm728, %v1203, 0
      %1210 = vmatprep.subr.bf16.mxu0 0
      %1211 = vmatpush1.bf16.msra.mxu0 %v1208
      %1212 = vmatprep.subr.bf16.mxu0 0
      %1213 = vmatpush1.bf16.msra.mxu0 0
      %1214 = vmatprep.subr.bf16.mxu0 0
      %1215 = vmatpush1.bf16.msra.mxu0 0
      %1216 = vmatprep.subr.bf16.mxu0 0
      %1217 = vmatpush1.bf16.msra.mxu0 0
      %1218 = vmatprep.subr.bf16.mxu0 0
      %1219 = vmatpush1.bf16.msra.mxu0 0
      %1220 = vmatprep.subr.bf16.mxu0 0
      %1221 = vmatpush1.bf16.msra.mxu0 0
      %1222 = vmatprep.subr.bf16.mxu0 0
      %1223 = vmatpush1.bf16.msra.mxu0 0
      %1224 = vmatprep.subr.bf16.mxu0 0
      %1225 = vmatpush1.bf16.msra.mxu0 0
      %1226 = vmatprep.subr.bf16.mxu0 0
      %1227 = vmatpush1.bf16.msra.mxu0 0
      %1228 = vmatprep.subr.bf16.mxu0 0
      %1229 = vmatpush1.bf16.msra.mxu0 0
      %1230 = vmatprep.subr.bf16.mxu0 0
      %1231 = vmatpush1.bf16.msra.mxu0 0
      %1232 = vmatprep.subr.bf16.mxu0 0
      %1233 = vmatpush1.bf16.msra.mxu0 0
      %1234 = vmatprep.subr.bf16.mxu0 0
      %1235 = vmatpush1.bf16.msra.mxu0 0
      %1236 = vmatprep.subr.bf16.mxu0 0
      %1237 = vmatpush1.bf16.msra.mxu0 0
      %1238 = vmatprep.subr.bf16.mxu0 0
      %1239 = vmatpush1.bf16.msra.mxu0 0
      %1240 = vmatprep.subr.bf16.mxu0 0
      %1241 = vmatpush1.bf16.msra.mxu0 0
      %1242 = vmatprep.mubr.bf16.mxu0 0
      %1243 = vmatmul.mubr.bf16.gmra.mrb[0].mxu0 %v1205
      %v1244 = vpop.f32.mrb[0].mxu0
      %v1245 = vadd.f32 0.0, %v1244
      %v1246 = vpop.f32.mrb[0].mxu0
      %v1247 = vpop.f32.mrb[0].mxu0
      %v1248 = vpop.f32.mrb[0].mxu0
      %1249 = vdwg.mxu0
      %v1250 = vpack.c.bf16 %v1245, %v1245
      %v1251 = vpack.c.bf16 %v656, %v655
      %v1252 = vpack.c.bf16 %v658, %v657
      %v1254 = vsel %vm662, %v1250, 0
      %1256 = vmatprep.subr.bf16.mxu0 0
      %1257 = vmatpush1.bf16.msra.mxu0 %v1251
      %1258 = vmatprep.subr.bf16.mxu0 0
      %1259 = vmatpush1.bf16.msra.mxu0 %v1252
      %1260 = vmatprep.subr.bf16.mxu0 0
      %1261 = vmatpush1.bf16.msra.mxu0 0
      %1262 = vmatprep.subr.bf16.mxu0 0
      %1263 = vmatpush1.bf16.msra.mxu0 0
      %1264 = vmatprep.subr.bf16.mxu0 0
      %1265 = vmatpush1.bf16.msra.mxu0 0
      %1266 = vmatprep.subr.bf16.mxu0 0
      %1267 = vmatpush1.bf16.msra.mxu0 0
      %1268 = vmatprep.subr.bf16.mxu0 0
      %1269 = vmatpush1.bf16.msra.mxu0 0
      %1270 = vmatprep.subr.bf16.mxu0 0
      %1271 = vmatpush1.bf16.msra.mxu0 0
      %1272 = vmatprep.subr.bf16.mxu0 0
      %1273 = vmatpush1.bf16.msra.mxu0 0
      %1274 = vmatprep.subr.bf16.mxu0 0
      %1275 = vmatpush1.bf16.msra.mxu0 0
      %1276 = vmatprep.subr.bf16.mxu0 0
      %1277 = vmatpush1.bf16.msra.mxu0 0
      %1278 = vmatprep.subr.bf16.mxu0 0
      %1279 = vmatpush1.bf16.msra.mxu0 0
      %1280 = vmatprep.subr.bf16.mxu0 0
      %1281 = vmatpush1.bf16.msra.mxu0 0
      %1282 = vmatprep.subr.bf16.mxu0 0
      %1283 = vmatpush1.bf16.msra.mxu0 0
      %1284 = vmatprep.subr.bf16.mxu0 0
      %1285 = vmatpush1.bf16.msra.mxu0 0
      %1286 = vmatprep.subr.bf16.mxu0 0
      %1287 = vmatpush1.bf16.msra.mxu0 0
      %1288 = vmatprep.mubr.bf16.mxu0 0
      %1289 = vmatmul.mubr.bf16.gmra.mrb[0].mxu0 %v1254
      %v1290 = vpop.f32.mrb[0].mxu0
      %v1291 = vadd.f32 0.0, %v1290
      %v1292 = vpop.f32.mrb[0].mxu0
      %v1293 = vpop.f32.mrb[0].mxu0
      %v1294 = vpop.f32.mrb[0].mxu0
      %1295 = vdwg.mxu0
      %v1296 = vadd.f32 %v1137, %v1291
      %v1297 = vadd.f32 %v373, %v1296
      %v1298 = vld [vmem:[%s9] sm:$0x1]
      %v1300 = vlaneseq
      %v1301 = vshrl.u32 %v1300, 7
      %v1302 = vsub.s32 0, %v1301
      %v1303 = vrot.slane %v1298, %v1302
      %v1305 = vadd.f32 %v1297, %v1303
      %1306 = vst [vmem:[%s371] sm:$0xf] %v1305
      %p1307 = scmp.lt.s32.totalorder %s21, 1
      %s1308 = scalar_select %p1307, %s21, 1
      %s1309 = smul.addr %s1308, 4
      %s1310 = scalar_lea.vmem %s10, %s1309
      // Predicated region
      $region61: #{model_forward.20} parent=59 // pred_check
        %p1311 = pneg %p259
      $region62: #{model_forward.20} parent=59 // pred_check_branch
        %1313 = sbr.rel (%p1311) target = $region64
      $region63: #{model_forward.20} parent=59 // pred_region
        _
      $region64: #{model_forward.20} parent=59 // pred_fallthru
        _
    $region60: #{model_forward.20} parent=5 // pred_fallthru
      _
    %p1314 = scmp.le.s32.totalorder 2, %s16
    // Predicated region
    $region65: #{model_forward.20} parent=5 // pred_check
      %p1315 = pneg %p1314
    $region66: #{model_forward.20} parent=5 // pred_check_branch
      %1317 = sbr.rel (%p1315) target = $region68
    $region67: #{model_forward.20} parent=5 // pred_region
      %s1318 = ssub.s32 %s16, 2
      // Predicated region
      $region69: #{model_forward.20} parent=67 // pred_check
        %p1319 = pneg %p265
      $region70: #{model_forward.20} parent=67 // pred_check_branch
        %1321 = sbr.rel (%p1319) target = $region72
      $region71: #{model_forward.20} parent=67 // pred_region
        %p1322 = scmp.lt.s32.totalorder %s22, 1
        %s1323 = scalar_select %p1322, %s22, 1
        %s1324 = smul.addr %s1323, 4
        %s1325 = scalar_lea.vmem %s10, %s1324
      $region72: #{model_forward.20} parent=67 // pred_fallthru
        _
    $region68: #{model_forward.20} parent=5 // pred_fallthru
      _
  $region6: #{model_forward.20} parent=0 // loop_footer
    %s20 = sadd.s32 1, %s16
  $region7: #{model_forward.20} parent=0 // loop_footer_branch
    %15 = sbr.rel target = $region3
  $region8: #{model_forward.20} parent=0 // loop_exit
    _

// kernel: model_forward.22
$region0: #{model_forward.22}
  #allocation0 [shape = 'u32[]', space=smem, size = 0x4, offset = 0x4, fixed_abs, tag = 'smem constant byte address 0x4 - core index']
  #allocation1 [shape = 'u32[144,128]{1,0:T(1,128)}', space=vmem, size = 0x12000, scoped, tag = 'internal scratch']
  %s0 = inlined_call_operand.vmem [shape: f32[8,128], index: 0, kind: input, shape index: {}]
  %s1 = inlined_call_operand.vmem [shape: f32[1,128], index: 1, kind: input, shape index: {}]
  %s2 = inlined_call_operand.vmem [shape: f32[1,128], index: 2, kind: input, shape index: {}]
  %s3 = inlined_call_operand.vmem [shape: bf16[128,256], index: 3, kind: input, shape index: {}]
  %s4 = inlined_call_operand.vmem [shape: f32[1,256], index: 4, kind: input, shape index: {}]
  %s5 = inlined_call_operand.vmem [shape: bf16[256,128], index: 5, kind: input, shape index: {}]
  %s6 = inlined_call_operand.vmem [shape: f32[1,128], index: 6, kind: input, shape index: {}]
  %s7 = inlined_call_operand.vmem [shape: f32[1,128], index: 7, kind: input, shape index: {}]
  %s8 = inlined_call_operand.vmem [shape: f32[1,128], index: 8, kind: input, shape index: {}]
  %s9 = inlined_call_operand.vmem [shape: f32[1,128], index: 9, kind: input, shape index: {}]
  %s10 = inlined_call_operand.vmem [shape: f32[1,128], index: 10, kind: input, shape index: {}]
  %s11 = inlined_call_operand.vmem [shape: f32[8,128], index: 11, kind: output, shape index: {}]
  %s12 = sld [smem:[#allocation0]]
  $region54: #{model_forward.22} parent=0
    _
  %s14 = ssub.s32 1, %s12
  %s15 = scalar_select 0, %s14, %s12
  // Predicated region
  $region2: #{model_forward.22} parent=0 // pred_check
    _
  $region3: #{model_forward.22} parent=0 // pred_check_branch
    %17 = sbr.rel (0) target = $region5
  $region4: #{model_forward.22} parent=0 // pred_region
    _
  $region5: #{model_forward.22} parent=0 // pred_fallthru
    _
  // Predicated region
  $region6: #{model_forward.22} parent=0 // pred_check
    _
  $region7: #{model_forward.22} parent=0 // pred_check_branch
    %19 = sbr.rel (0) target = $region9
  $region8: #{model_forward.22} parent=0 // pred_region
    _
  $region9: #{model_forward.22} parent=0 // pred_fallthru
    _
  // Predicated region
  $region10: #{model_forward.22} parent=0 // pred_check
    _
  $region11: #{model_forward.22} parent=0 // pred_check_branch
    %21 = sbr.rel (0) target = $region13
  $region12: #{model_forward.22} parent=0 // pred_region
    _
  $region13: #{model_forward.22} parent=0 // pred_fallthru
    _
  // Predicated region
  $region14: #{model_forward.22} parent=0 // pred_check
    _
  $region15: #{model_forward.22} parent=0 // pred_check_branch
    %23 = sbr.rel (0) target = $region17
  $region16: #{model_forward.22} parent=0 // pred_region
    _
  $region17: #{model_forward.22} parent=0 // pred_fallthru
    _
  // Predicated region
  $region18: #{model_forward.22} parent=0 // pred_check
    _
  $region19: #{model_forward.22} parent=0 // pred_check_branch
    %25 = sbr.rel (0) target = $region21
  $region20: #{model_forward.22} parent=0 // pred_region
    _
  $region21: #{model_forward.22} parent=0 // pred_fallthru
    _
  // Predicated region
  $region22: #{model_forward.22} parent=0 // pred_check
    _
  $region23: #{model_forward.22} parent=0 // pred_check_branch
    %27 = sbr.rel (0) target = $region25
  $region24: #{model_forward.22} parent=0 // pred_region
    _
  $region25: #{model_forward.22} parent=0 // pred_fallthru
    _
  // Predicated region
  $region26: #{model_forward.22} parent=0 // pred_check
    _
  $region27: #{model_forward.22} parent=0 // pred_check_branch
    %29 = sbr.rel (0) target = $region29
  $region28: #{model_forward.22} parent=0 // pred_region
    _
  $region29: #{model_forward.22} parent=0 // pred_fallthru
    _
  // Predicated region
  $region30: #{model_forward.22} parent=0 // pred_check
    _
  $region31: #{model_forward.22} parent=0 // pred_check_branch
    %31 = sbr.rel (0) target = $region33
  $region32: #{model_forward.22} parent=0 // pred_region
    _
  $region33: #{model_forward.22} parent=0 // pred_fallthru
    _
  // Predicated region
  $region34: #{model_forward.22} parent=0 // pred_check
    _
  $region35: #{model_forward.22} parent=0 // pred_check_branch
    %33 = sbr.rel (0) target = $region37
  $region36: #{model_forward.22} parent=0 // pred_region
    _
  $region37: #{model_forward.22} parent=0 // pred_fallthru
    _
  // Predicated region
  $region38: #{model_forward.22} parent=0 // pred_check
    _
  $region39: #{model_forward.22} parent=0 // pred_check_branch
    %35 = sbr.rel (0) target = $region41
  $region40: #{model_forward.22} parent=0 // pred_region
    _
  $region41: #{model_forward.22} parent=0 // pred_fallthru
    _
  // Predicated region
  $region42: #{model_forward.22} parent=0 // pred_check
    _
  $region43: #{model_forward.22} parent=0 // pred_check_branch
    %37 = sbr.rel (0) target = $region45
  $region44: #{model_forward.22} parent=0 // pred_region
    _
  $region45: #{model_forward.22} parent=0 // pred_fallthru
    _
  %v39 = vld [vmem:[%s0] sm:$0xff]
  %v40 = vld [vmem:[%s1] sm:$0x1]
  %v41 = vld [vmem:[%s2] sm:$0x1]
  %42 = vadd.xlane.f32.xlu0 %v39
  %v43 = vpop.xlane.xlu0 %42
  %v44 = vrcp.pop 128.0
  %v45 = vmul.f32 %v43, %v44
  %v46 = vsub.f32 %v39, %v45
  %v47 = vmul.f32 %v46, %v46
  %48 = vadd.xlane.f32.xlu0 %v47
  %v49 = vpop.xlane.xlu0 %48
  %v50 = vmul.f32 %v49, %v44
  %v51 = vadd.f32 %v50, 1e-05
  %v52 = vrsqrt.pop %v51
  %v53 = vmul.f32 %v46, %v52
  %v55 = vlaneseq
  %v56 = vshrl.u32 %v55, 7
  %v57 = vsub.s32 0, %v56
  %v58 = vrot.slane %v40, %v57
  %v60 = vmul.f32 %v53, %v58
  %v62 = vlaneseq
  %v63 = vshrl.u32 %v62, 7
  %v64 = vsub.s32 0, %v63
  %v65 = vrot.slane %v41, %v64
  %v67 = vadd.f32 %v60, %v65
  %v68 = vpack.c.bf16 %v67, %v67
  %v69 = vld [vmem:[%s3] sm:$0xff]
  %v70 = vld [vmem:[%s3 + $0x8] sm:$0xff]
  %v71 = vld [vmem:[%s3 + $0x10] sm:$0xff]
  %v72 = vld [vmem:[%s3 + $0x18] sm:$0xff]
  %v73 = vld [vmem:[%s3 + $0x20] sm:$0xff]
  %v74 = vld [vmem:[%s3 + $0x28] sm:$0xff]
  %v75 = vld [vmem:[%s3 + $0x30] sm:$0xff]
  %v76 = vld [vmem:[%s3 + $0x38] sm:$0xff]
  %v77 = vld [vmem:[%s3 + $0x40] sm:$0xff]
  %v78 = vld [vmem:[%s3 + $0x48] sm:$0xff]
  %v79 = vld [vmem:[%s3 + $0x50] sm:$0xff]
  %v80 = vld [vmem:[%s3 + $0x58] sm:$0xff]
  %v81 = vld [vmem:[%s3 + $0x60] sm:$0xff]
  %v82 = vld [vmem:[%s3 + $0x68] sm:$0xff]
  %v83 = vld [vmem:[%s3 + $0x70] sm:$0xff]
  %v84 = vld [vmem:[%s3 + $0x78] sm:$0xff]
  %v85 = vld [vmem:[%s4] sm:$0x3]
  %v87 = vlaneseq
  %v88 = vshrl.u32 %v87, 7
  %v89 = vsub.s32 0, %v88
  %v90 = vrot.slane %v85, %v89
  %v91 = vlaneseq
  %v92 = vshrl.u32 %v91, 7
  %v93 = vsub.s32 1, %v92
  %v94 = vrot.slane %v85, %v93
  %v113 = vunpack.c.l.b16 %v69
  %v114 = vunpack.c.h.b16 %v69
  %v115 = vunpack.c.l.b16 %v70
  %v116 = vunpack.c.h.b16 %v70
  %v117 = vunpack.c.l.b16 %v71
  %v118 = vunpack.c.h.b16 %v71
  %v119 = vunpack.c.l.b16 %v72
  %v120 = vunpack.c.h.b16 %v72
  %v121 = vunpack.c.l.b16 %v73
  %v122 = vunpack.c.h.b16 %v73
  %v123 = vunpack.c.l.b16 %v74
  %v124 = vunpack.c.h.b16 %v74
  %v125 = vunpack.c.l.b16 %v75
  %v126 = vunpack.c.h.b16 %v75
  %v127 = vunpack.c.l.b16 %v76
  %v128 = vunpack.c.h.b16 %v76
  %v129 = vunpack.c.l.b16 %v77
  %v130 = vunpack.c.h.b16 %v77
  %v131 = vunpack.c.l.b16 %v78
  %v132 = vunpack.c.h.b16 %v78
  %v133 = vunpack.c.l.b16 %v79
  %v134 = vunpack.c.h.b16 %v79
  %v135 = vunpack.c.l.b16 %v80
  %v136 = vunpack.c.h.b16 %v80
  %v137 = vunpack.c.l.b16 %v81
  %v138 = vunpack.c.h.b16 %v81
  %v139 = vunpack.c.l.b16 %v82
  %v140 = vunpack.c.h.b16 %v82
  %v141 = vunpack.c.l.b16 %v83
  %v142 = vunpack.c.h.b16 %v83
  %v143 = vunpack.c.l.b16 %v84
  %v144 = vunpack.c.h.b16 %v84
  %v145 = vpack.c.b16 %v115, %v113
  %v146 = vpack.c.b16 %v116, %v114
  %v147 = vpack.c.b16 %v119, %v117
  %v148 = vpack.c.b16 %v120, %v118
  %v149 = vpack.c.b16 %v123, %v121
  %v150 = vpack.c.b16 %v124, %v122
  %v151 = vpack.c.b16 %v127, %v125
  %v152 = vpack.c.b16 %v128, %v126
  %v153 = vpack.c.b16 %v131, %v129
  %v154 = vpack.c.b16 %v132, %v130
  %v155 = vpack.c.b16 %v135, %v133
  %v156 = vpack.c.b16 %v136, %v134
  %v157 = vpack.c.b16 %v139, %v137
  %v158 = vpack.c.b16 %v140, %v138
  %v159 = vpack.c.b16 %v143, %v141
  %v160 = vpack.c.b16 %v144, %v142
  %177 = vmatprep.subr.bf16.mxu0 %v146
  %178 = vmatpush1.bf16.msra.mxu0 %v145
  %179 = vmatprep.subr.bf16.mxu0 %v148
  %180 = vmatpush1.bf16.msra.mxu0 %v147
  %181 = vmatprep.subr.bf16.mxu0 %v150
  %182 = vmatpush1.bf16.msra.mxu0 %v149
  %183 = vmatprep.subr.bf16.mxu0 %v152
  %184 = vmatpush1.bf16.msra.mxu0 %v151
  %185 = vmatprep.subr.bf16.mxu0 %v154
  %186 = vmatpush1.bf16.msra.mxu0 %v153
  %187 = vmatprep.subr.bf16.mxu0 %v156
  %188 = vmatpush1.bf16.msra.mxu0 %v155
  %189 = vmatprep.subr.bf16.mxu0 %v158
  %190 = vmatpush1.bf16.msra.mxu0 %v157
  %191 = vmatprep.subr.bf16.mxu0 %v160
  %192 = vmatpush1.bf16.msra.mxu0 %v159
  %193 = vmatprep.subr.bf16.mxu0 0
  %194 = vmatpush1.bf16.msra.mxu0 0
  %195 = vmatprep.subr.bf16.mxu0 0
  %196 = vmatpush1.bf16.msra.mxu0 0
  %197 = vmatprep.subr.bf16.mxu0 0
  %198 = vmatpush1.bf16.msra.mxu0 0
  %199 = vmatprep.subr.bf16.mxu0 0
  %200 = vmatpush1.bf16.msra.mxu0 0
  %201 = vmatprep.subr.bf16.mxu0 0
  %202 = vmatpush1.bf16.msra.mxu0 0
  %203 = vmatprep.subr.bf16.mxu0 0
  %204 = vmatpush1.bf16.msra.mxu0 0
  %205 = vmatprep.subr.bf16.mxu0 0
  %206 = vmatpush1.bf16.msra.mxu0 0
  %207 = vmatprep.subr.bf16.mxu0 0
  %208 = vmatpush1.bf16.msra.mxu0 0
  %209 = vmatprep.mubr.bf16.mxu0 0
  %210 = vmatmul.mubr.bf16.gmra.mrb[0].mxu0 %v68
  %v211 = vpop.f32.mrb[0].mxu0
  %v212 = vadd.f32 %v90, %v211
  %v213 = vpop.f32.mrb[0].mxu0
  %v214 = vadd.f32 %v94, %v213
  %v215 = vpop.f32.mrb[0].mxu0
  %v216 = vpop.f32.mrb[0].mxu0
  %217 = vdwg.mxu0
  %v218 = vmul.f32 %v212, %v212
  %v219 = vmul.f32 %v214, %v214
  %v220 = vmul.f32 %v212, %v218
  %v221 = vmul.f32 %v214, %v219
  %v222 = vmul.f32 %v220, 0.044715
  %v223 = vmul.f32 %v221, 0.044715
  %v224 = vadd.f32 %v212, %v222
  %v225 = vadd.f32 %v214, %v223
  %v226 = vmul.f32 %v224, 0.7978846
  %v227 = vmul.f32 %v225, 0.7978846
  %v228 = vtanh.pop %v226
  %v229 = vtanh.pop %v227
  %v230 = vadd.f32 %v228, 1.0
  %v231 = vadd.f32 %v229, 1.0
  %v232 = vmul.f32 %v230, 0.5
  %v233 = vmul.f32 %v231, 0.5
  %v234 = vmul.f32 %v212, %v232
  %v235 = vmul.f32 %v214, %v233
  %v236 = vpack.c.bf16 %v234, %v234
  %v237 = vpack.c.bf16 %v235, %v235
  %v238 = vld [vmem:[%s5] sm:$0xf]
  %v239 = vld [vmem:[%s5 + $0x4] sm:$0xf]
  %v240 = vld [vmem:[%s5 + $0x8] sm:$0xf]
  %v241 = vld [vmem:[%s5 + $0xc] sm:$0xf]
  %v242 = vld [vmem:[%s5 + $0x10] sm:$0xf]
  %v243 = vld [vmem:[%s5 + $0x14] sm:$0xf]
  %v244 = vld [vmem:[%s5 + $0x18] sm:$0xf]
  %v245 = vld [vmem:[%s5 + $0x1c] sm:$0xf]
  %v246 = vld [vmem:[%s5 + $0x20] sm:$0xf]
  %v247 = vld [vmem:[%s5 + $0x24] sm:$0xf]
  %v248 = vld [vmem:[%s5 + $0x28] sm:$0xf]
  %v249 = vld [vmem:[%s5 + $0x2c] sm:$0xf]
  %v250 = vld [vmem:[%s5 + $0x30] sm:$0xf]
  %v251 = vld [vmem:[%s5 + $0x34] sm:$0xf]
  %v252 = vld [vmem:[%s5 + $0x38] sm:$0xf]
  %v253 = vld [vmem:[%s5 + $0x3c] sm:$0xf]
  %v254 = vld [vmem:[%s5 + $0x40] sm:$0xf]
  %v255 = vld [vmem:[%s5 + $0x44] sm:$0xf]
  %v256 = vld [vmem:[%s5 + $0x48] sm:$0xf]
  %v257 = vld [vmem:[%s5 + $0x4c] sm:$0xf]
  %v258 = vld [vmem:[%s5 + $0x50] sm:$0xf]
  %v259 = vld [vmem:[%s5 + $0x54] sm:$0xf]
  %v260 = vld [vmem:[%s5 + $0x58] sm:$0xf]
  %v261 = vld [vmem:[%s5 + $0x5c] sm:$0xf]
  %v262 = vld [vmem:[%s5 + $0x60] sm:$0xf]
  %v263 = vld [vmem:[%s5 + $0x64] sm:$0xf]
  %v264 = vld [vmem:[%s5 + $0x68] sm:$0xf]
  %v265 = vld [vmem:[%s5 + $0x6c] sm:$0xf]
  %v266 = vld [vmem:[%s5 + $0x70] sm:$0xf]
  %v267 = vld [vmem:[%s5 + $0x74] sm:$0xf]
  %v268 = vld [vmem:[%s5 + $0x78] sm:$0xf]
  %v269 = vld [vmem:[%s5 + $0x7c] sm:$0xf]
  %v270 = vld [vmem:[%s6] sm:$0x1]
  %v272 = vlaneseq
  %v273 = vshrl.u32 %v272, 7
  %v274 = vsub.s32 0, %v273
  %v275 = vrot.slane %v270, %v274
  %v309 = vunpack.c.l.b16 %v238
  %v310 = vunpack.c.l.b16 %v239
  %v311 = vunpack.c.l.b16 %v240
  %v312 = vunpack.c.l.b16 %v241
  %v313 = vunpack.c.l.b16 %v242
  %v314 = vunpack.c.l.b16 %v243
  %v315 = vunpack.c.l.b16 %v244
  %v316 = vunpack.c.l.b16 %v245
  %v317 = vunpack.c.l.b16 %v246
  %v318 = vunpack.c.l.b16 %v247
  %v319 = vunpack.c.l.b16 %v248
  %v320 = vunpack.c.l.b16 %v249
  %v321 = vunpack.c.l.b16 %v250
  %v322 = vunpack.c.l.b16 %v251
  %v323 = vunpack.c.l.b16 %v252
  %v324 = vunpack.c.l.b16 %v253
  %v325 = vunpack.c.l.b16 %v254
  %v326 = vunpack.c.l.b16 %v255
  %v327 = vunpack.c.l.b16 %v256
  %v328 = vunpack.c.l.b16 %v257
  %v329 = vunpack.c.l.b16 %v258
  %v330 = vunpack.c.l.b16 %v259
  %v331 = vunpack.c.l.b16 %v260
  %v332 = vunpack.c.l.b16 %v261
  %v333 = vunpack.c.l.b16 %v262
  %v334 = vunpack.c.l.b16 %v263
  %v335 = vunpack.c.l.b16 %v264
  %v336 = vunpack.c.l.b16 %v265
  %v337 = vunpack.c.l.b16 %v266
  %v338 = vunpack.c.l.b16 %v267
  %v339 = vunpack.c.l.b16 %v268
  %v340 = vunpack.c.l.b16 %v269
  %v341 = vpack.c.b16 %v310, %v309
  %v342 = vpack.c.b16 %v312, %v311
  %v343 = vpack.c.b16 %v314, %v313
  %v344 = vpack.c.b16 %v316, %v315
  %v345 = vpack.c.b16 %v318, %v317
  %v346 = vpack.c.b16 %v320, %v319
  %v347 = vpack.c.b16 %v322, %v321
  %v348 = vpack.c.b16 %v324, %v323
  %v349 = vpack.c.b16 %v326, %v325
  %v350 = vpack.c.b16 %v328, %v327
  %v351 = vpack.c.b16 %v330, %v329
  %v352 = vpack.c.b16 %v332, %v331
  %v353 = vpack.c.b16 %v334, %v333
  %v354 = vpack.c.b16 %v336, %v335
  %v355 = vpack.c.b16 %v338, %v337
  %v356 = vpack.c.b16 %v340, %v339
  %373 = vmatprep.subr.bf16.mxu0 0
  %374 = vmatpush1.bf16.msra.mxu0 %v341
  %375 = vmatprep.subr.bf16.mxu0 0
  %376 = vmatpush1.bf16.msra.mxu0 %v342
  %377 = vmatprep.subr.bf16.mxu0 0
  %378 = vmatpush1.bf16.msra.mxu0 %v343
  %379 = vmatprep.subr.bf16.mxu0 0
  %380 = vmatpush1.bf16.msra.mxu0 %v344
  %381 = vmatprep.subr.bf16.mxu0 0
  %382 = vmatpush1.bf16.msra.mxu0 %v345
  %383 = vmatprep.subr.bf16.mxu0 0
  %384 = vmatpush1.bf16.msra.mxu0 %v346
  %385 = vmatprep.subr.bf16.mxu0 0
  %386 = vmatpush1.bf16.msra.mxu0 %v347
  %387 = vmatprep.subr.bf16.mxu0 0
  %388 = vmatpush1.bf16.msra.mxu0 %v348
  %389 = vmatprep.subr.bf16.mxu0 0
  %390 = vmatpush1.bf16.msra.mxu0 %v349
  %391 = vmatprep.subr.bf16.mxu0 0
  %392 = vmatpush1.bf16.msra.mxu0 %v350
  %393 = vmatprep.subr.bf16.mxu0 0
  %394 = vmatpush1.bf16.msra.mxu0 %v351
  %395 = vmatprep.subr.bf16.mxu0 0
  %396 = vmatpush1.bf16.msra.mxu0 %v352
  %397 = vmatprep.subr.bf16.mxu0 0
  %398 = vmatpush1.bf16.msra.mxu0 %v353
  %399 = vmatprep.subr.bf16.mxu0 0
  %400 = vmatpush1.bf16.msra.mxu0 %v354
  %401 = vmatprep.subr.bf16.mxu0 0
  %402 = vmatpush1.bf16.msra.mxu0 %v355
  %403 = vmatprep.subr.bf16.mxu0 0
  %404 = vmatpush1.bf16.msra.mxu0 %v356
  %405 = vmatprep.mubr.bf16.mxu0 %v237
  %406 = vmatmul.mubr.bf16.gmra.mrb[0].mxu0 %v236
  %v407 = vpop.f32.mrb[0].mxu0
  %v408 = vadd.f32 %v275, %v407
  %v409 = vpop.f32.mrb[0].mxu0
  %v410 = vpop.f32.mrb[0].mxu0
  %v411 = vpop.f32.mrb[0].mxu0
  %412 = vdwg.mxu0
  %v413 = vadd.f32 %v67, %v408
  %v414 = vld [vmem:[%s7] sm:$0x1]
  %v415 = vld [vmem:[%s8] sm:$0x1]
  %416 = vadd.xlane.f32.xlu0 %v413
  %v417 = vpop.xlane.xlu0 %416
  %v418 = vmul.f32 %v417, %v44
  %v419 = vsub.f32 %v413, %v418
  %v420 = vmul.f32 %v419, %v419
  %421 = vadd.xlane.f32.xlu0 %v420
  %v422 = vpop.xlane.xlu0 %421
  %v423 = vmul.f32 %v422, %v44
  %v424 = vadd.f32 %v423, 1e-05
  %v425 = vrsqrt.pop %v424
  %v426 = vmul.f32 %v419, %v425
  %v428 = vlaneseq
  %v429 = vshrl.u32 %v428, 7
  %v430 = vsub.s32 0, %v429
  %v431 = vrot.slane %v414, %v430
  %v433 = vmul.f32 %v426, %v431
  %v435 = vlaneseq
  %v436 = vshrl.u32 %v435, 7
  %v437 = vsub.s32 0, %v436
  %v438 = vrot.slane %v415, %v437
  %v440 = vadd.f32 %v433, %v438
  %441 = vst [vmem:[%s11] sm:$0xff] %v440
  // Predicated region
  $region46: #{model_forward.22} parent=0 // pred_check
    _
  $region47: #{model_forward.22} parent=0 // pred_check_branch
    %443 = sbr.rel (0) target = $region49
  $region48: #{model_forward.22} parent=0 // pred_region
    _
  $region49: #{model_forward.22} parent=0 // pred_fallthru
    _
  // Predicated region
  $region50: #{model_forward.22} parent=0 // pred_check
    _
  $region51: #{model_forward.22} parent=0 // pred_check_branch
    %445 = sbr.rel (0) target = $region53
  $region52: #{model_forward.22} parent=0 // pred_region
    _
  $region53: #{model_forward.22} parent=0 // pred_fallthru
    _

// kernel: model_forward.23
$region0: #{model_forward.23}
  #allocation0 [shape = 'u32[]', space=smem, size = 0x4, offset = 0x4, fixed_abs, tag = 'smem constant byte address 0x4 - core index']
  #allocation1 [shape = 'u32[144,128]{1,0:T(1,128)}', space=vmem, size = 0x12000, scoped, tag = 'internal scratch']
  %s0 = inlined_call_operand.vmem [shape: f32[8,128], index: 0, kind: input, shape index: {}]
  %s1 = inlined_call_operand.vmem [shape: f32[1,128], index: 1, kind: input, shape index: {}]
  %s2 = inlined_call_operand.vmem [shape: f32[1,128], index: 2, kind: input, shape index: {}]
  %s3 = inlined_call_operand.vmem [shape: bf16[128,128], index: 3, kind: input, shape index: {}]
  %s4 = inlined_call_operand.vmem [shape: f32[1,128], index: 4, kind: input, shape index: {}]
  %s5 = inlined_call_operand.vmem [shape: f32[8,128], index: 5, kind: output, shape index: {}]
  %s6 = sld [smem:[#allocation0]]
  $region30: #{model_forward.23} parent=0
    _
  %s8 = ssub.s32 1, %s6
  %s9 = scalar_select 0, %s8, %s6
  // Predicated region
  $region2: #{model_forward.23} parent=0 // pred_check
    _
  $region3: #{model_forward.23} parent=0 // pred_check_branch
    %11 = sbr.rel (0) target = $region5
  $region4: #{model_forward.23} parent=0 // pred_region
    _
  $region5: #{model_forward.23} parent=0 // pred_fallthru
    _
  // Predicated region
  $region6: #{model_forward.23} parent=0 // pred_check
    _
  $region7: #{model_forward.23} parent=0 // pred_check_branch
    %13 = sbr.rel (0) target = $region9
  $region8: #{model_forward.23} parent=0 // pred_region
    _
  $region9: #{model_forward.23} parent=0 // pred_fallthru
    _
  // Predicated region
  $region10: #{model_forward.23} parent=0 // pred_check
    _
  $region11: #{model_forward.23} parent=0 // pred_check_branch
    %15 = sbr.rel (0) target = $region13
  $region12: #{model_forward.23} parent=0 // pred_region
    _
  $region13: #{model_forward.23} parent=0 // pred_fallthru
    _
  // Predicated region
  $region14: #{model_forward.23} parent=0 // pred_check
    _
  $region15: #{model_forward.23} parent=0 // pred_check_branch
    %17 = sbr.rel (0) target = $region17
  $region16: #{model_forward.23} parent=0 // pred_region
    _
  $region17: #{model_forward.23} parent=0 // pred_fallthru
    _
  // Predicated region
  $region18: #{model_forward.23} parent=0 // pred_check
    _
  $region19: #{model_forward.23} parent=0 // pred_check_branch
    %19 = sbr.rel (0) target = $region21
  $region20: #{model_forward.23} parent=0 // pred_region
    _
  $region21: #{model_forward.23} parent=0 // pred_fallthru
    _
  %v21 = vld [vmem:[%s0] sm:$0xff]
  %v22 = vld [vmem:[%s1] sm:$0x1]
  %v23 = vld [vmem:[%s2] sm:$0x1]
  %24 = vadd.xlane.f32.xlu0 %v21
  %v25 = vpop.xlane.xlu0 %24
  %v26 = vrcp.pop 128.0
  %v27 = vmul.f32 %v25, %v26
  %v28 = vsub.f32 %v21, %v27
  %v29 = vmul.f32 %v28, %v28
  %30 = vadd.xlane.f32.xlu0 %v29
  %v31 = vpop.xlane.xlu0 %30
  %v32 = vmul.f32 %v31, %v26
  %v33 = vadd.f32 %v32, 1e-05
  %v34 = vrsqrt.pop %v33
  %v35 = vmul.f32 %v28, %v34
  %v37 = vlaneseq
  %v38 = vshrl.u32 %v37, 7
  %v39 = vsub.s32 0, %v38
  %v40 = vrot.slane %v22, %v39
  %v42 = vmul.f32 %v35, %v40
  %v44 = vlaneseq
  %v45 = vshrl.u32 %v44, 7
  %v46 = vsub.s32 0, %v45
  %v47 = vrot.slane %v23, %v46
  %v49 = vadd.f32 %v42, %v47
  %v50 = vpack.c.bf16 %v49, %v49
  %v51 = vld [vmem:[%s3] sm:$0xf]
  %v52 = vld [vmem:[%s3 + $0x4] sm:$0xf]
  %v53 = vld [vmem:[%s3 + $0x8] sm:$0xf]
  %v54 = vld [vmem:[%s3 + $0xc] sm:$0xf]
  %v55 = vld [vmem:[%s3 + $0x10] sm:$0xf]
  %v56 = vld [vmem:[%s3 + $0x14] sm:$0xf]
  %v57 = vld [vmem:[%s3 + $0x18] sm:$0xf]
  %v58 = vld [vmem:[%s3 + $0x1c] sm:$0xf]
  %v59 = vld [vmem:[%s3 + $0x20] sm:$0xf]
  %v60 = vld [vmem:[%s3 + $0x24] sm:$0xf]
  %v61 = vld [vmem:[%s3 + $0x28] sm:$0xf]
  %v62 = vld [vmem:[%s3 + $0x2c] sm:$0xf]
  %v63 = vld [vmem:[%s3 + $0x30] sm:$0xf]
  %v64 = vld [vmem:[%s3 + $0x34] sm:$0xf]
  %v65 = vld [vmem:[%s3 + $0x38] sm:$0xf]
  %v66 = vld [vmem:[%s3 + $0x3c] sm:$0xf]
  %v67 = vld [vmem:[%s4] sm:$0x1]
  %v69 = vlaneseq
  %v70 = vshrl.u32 %v69, 7
  %v71 = vsub.s32 0, %v70
  %v72 = vrot.slane %v67, %v71
  %v90 = vunpack.c.l.b16 %v51
  %v91 = vunpack.c.l.b16 %v52
  %v92 = vunpack.c.l.b16 %v53
  %v93 = vunpack.c.l.b16 %v54
  %v94 = vunpack.c.l.b16 %v55
  %v95 = vunpack.c.l.b16 %v56
  %v96 = vunpack.c.l.b16 %v57
  %v97 = vunpack.c.l.b16 %v58
  %v98 = vunpack.c.l.b16 %v59
  %v99 = vunpack.c.l.b16 %v60
  %v100 = vunpack.c.l.b16 %v61
  %v101 = vunpack.c.l.b16 %v62
  %v102 = vunpack.c.l.b16 %v63
  %v103 = vunpack.c.l.b16 %v64
  %v104 = vunpack.c.l.b16 %v65
  %v105 = vunpack.c.l.b16 %v66
  %v106 = vpack.c.b16 %v91, %v90
  %v107 = vpack.c.b16 %v93, %v92
  %v108 = vpack.c.b16 %v95, %v94
  %v109 = vpack.c.b16 %v97, %v96
  %v110 = vpack.c.b16 %v99, %v98
  %v111 = vpack.c.b16 %v101, %v100
  %v112 = vpack.c.b16 %v103, %v102
  %v113 = vpack.c.b16 %v105, %v104
  %122 = vmatprep.subr.bf16.mxu0 0
  %123 = vmatpush1.bf16.msra.mxu0 %v106
  %124 = vmatprep.subr.bf16.mxu0 0
  %125 = vmatpush1.bf16.msra.mxu0 %v107
  %126 = vmatprep.subr.bf16.mxu0 0
  %127 = vmatpush1.bf16.msra.mxu0 %v108
  %128 = vmatprep.subr.bf16.mxu0 0
  %129 = vmatpush1.bf16.msra.mxu0 %v109
  %130 = vmatprep.subr.bf16.mxu0 0
  %131 = vmatpush1.bf16.msra.mxu0 %v110
  %132 = vmatprep.subr.bf16.mxu0 0
  %133 = vmatpush1.bf16.msra.mxu0 %v111
  %134 = vmatprep.subr.bf16.mxu0 0
  %135 = vmatpush1.bf16.msra.mxu0 %v112
  %136 = vmatprep.subr.bf16.mxu0 0
  %137 = vmatpush1.bf16.msra.mxu0 %v113
  %138 = vmatprep.subr.bf16.mxu0 0
  %139 = vmatpush1.bf16.msra.mxu0 0
  %140 = vmatprep.subr.bf16.mxu0 0
  %141 = vmatpush1.bf16.msra.mxu0 0
  %142 = vmatprep.subr.bf16.mxu0 0
  %143 = vmatpush1.bf16.msra.mxu0 0
  %144 = vmatprep.subr.bf16.mxu0 0
  %145 = vmatpush1.bf16.msra.mxu0 0
  %146 = vmatprep.subr.bf16.mxu0 0
  %147 = vmatpush1.bf16.msra.mxu0 0
  %148 = vmatprep.subr.bf16.mxu0 0
  %149 = vmatpush1.bf16.msra.mxu0 0
  %150 = vmatprep.subr.bf16.mxu0 0
  %151 = vmatpush1.bf16.msra.mxu0 0
  %152 = vmatprep.subr.bf16.mxu0 0
  %153 = vmatpush1.bf16.msra.mxu0 0
  %154 = vmatprep.mubr.bf16.mxu0 0
  %155 = vmatmul.mubr.bf16.gmra.mrb[0].mxu0 %v50
  %v156 = vpop.f32.mrb[0].mxu0
  %v157 = vadd.f32 %v72, %v156
  %v158 = vpop.f32.mrb[0].mxu0
  %v159 = vpop.f32.mrb[0].mxu0
  %v160 = vpop.f32.mrb[0].mxu0
  %161 = vdwg.mxu0
  %162 = vst [vmem:[%s5] sm:$0xff] %v157
  // Predicated region
  $region22: #{model_forward.23} parent=0 // pred_check
    _
  $region23: #{model_forward.23} parent=0 // pred_check_branch
    %164 = sbr.rel (0) target = $region25
  $region24: #{model_forward.23} parent=0 // pred_region
    _
  $region25: #{model_forward.23} parent=0 // pred_fallthru
    _
  // Predicated region
  $region26: #{model_forward.23} parent=0 // pred_check
    _
  $region27: #{model_forward.23} parent=0 // pred_check_branch
    %166 = sbr.rel (0) target = $region29
  $region28: #{model_forward.23} parent=0 // pred_region
    _
  $region29: #{model_forward.23} parent=0 // pred_fallthru
    _

// kernel: model_forward.21
$region0: #{model_forward.21}
  #allocation0 [shape = 'u32[]', space=smem, size = 0x4, offset = 0x4, fixed_abs, tag = 'smem constant byte address 0x4 - core index']
  #allocation1 [shape = 'u32[144,128]{1,0:T(1,128)}', space=vmem, size = 0x12000, scoped, tag = 'internal scratch']
  %s0 = inlined_call_operand.vmem [shape: f32[2,4,128], index: 0, kind: input, shape index: {}]
  %s1 = inlined_call_operand.vmem [shape: f32[2,4,128], index: 1, kind: input, shape index: {}]
  %s2 = inlined_call_operand.vmem [shape: f32[1,128], index: 2, kind: input, shape index: {}]
  %s3 = inlined_call_operand.vmem [shape: f32[1,128], index: 3, kind: input, shape index: {}]
  %s4 = inlined_call_operand.vmem [shape: bf16[128,128], index: 4, kind: input, shape index: {}]
  %s5 = inlined_call_operand.vmem [shape: f32[1,128], index: 5, kind: input, shape index: {}]
  %s6 = inlined_call_operand.vmem [shape: bf16[128,256], index: 6, kind: input, shape index: {}]
  %s7 = inlined_call_operand.vmem [shape: f32[1,256], index: 7, kind: input, shape index: {}]
  %s8 = inlined_call_operand.vmem [shape: f32[128,128], index: 8, kind: input, shape index: {}]
  %s9 = inlined_call_operand.vmem [shape: f32[1,128], index: 9, kind: input, shape index: {}]
  %s10 = inlined_call_operand.vmem [shape: f32[2,4,128], index: 10, kind: output, shape index: {}]
  %s11 = sld [smem:[#allocation0]]
  $region73: #{model_forward.21} parent=0
    _
  %s13 = ssub.s32 1, %s11
  %s14 = scalar_select 0, %s13, %s11
  loop: start=0, step=1, limit=4
  $region2: #{model_forward.21} parent=0 // loop_pre_header
    _
  $region3: #{model_forward.21} parent=0 // loop_header
    %s16 = sphi 0, %s20
    %p17 = scmp.ge.s32.totalorder %s16, 4
    %s26 = sphi 0, %s28
    %s29 = sphi 0, %s26
    %s30 = sphi 0, %s29
    %s46 = sphi 0, %s30
    %s52 = sphi 0, %s54
    %s55 = sphi 0, %s52
    %s56 = sphi 0, %s55
    %s72 = sphi 0, %s56
    %s76 = sphi 0, %s76
    %s78 = sphi 0, %s76
    %s79 = sphi 0, %s78
    %s93 = sphi 0, %s79
    %s97 = sphi 0, %s97
    %s99 = sphi 0, %s97
    %s100 = sphi 0, %s99
    %s114 = sphi 0, %s100
    %s118 = sphi 0, %s118
    %s120 = sphi 0, %s118
    %s121 = sphi 0, %s120
    %s135 = sphi 0, %s121
    %s139 = sphi 0, %s139
    %s141 = sphi 0, %s139
    %s142 = sphi 0, %s141
    %s156 = sphi 0, %s142
    %s160 = sphi 0, %s160
    %s162 = sphi 0, %s160
    %s163 = sphi 0, %s162
    %s177 = sphi 0, %s163
    %s181 = sphi 0, %s181
    %s183 = sphi 0, %s181
    %s184 = sphi 0, %s183
    %s198 = sphi 0, %s184
    %s202 = sphi 0, %s202
    %s204 = sphi 0, %s202
    %s205 = sphi 0, %s204
    %s219 = sphi 0, %s205
    %s223 = sphi 0, %s223
    %s225 = sphi 0, %s223
    %s226 = sphi 0, %s225
    %s240 = sphi 0, %s226
    %s246 = sphi 0, %s248
    %s249 = sphi 0, %s246
    %s250 = sphi 0, %s249
    %s266 = sphi 0, %s250
  $region4: #{model_forward.21} parent=0 // loop_header_branch
    %19 = sbr.rel (%p17) target = $region8
  $region5: #{model_forward.21} parent=0 // loop_body
    %s21 = ssub.s32 %s16, 1
    %s22 = ssub.s32 %s16, 2
    %s23 = sadd.s32 %s16, 1
    %s24 = ssub.s32 %s16, %s23
    %p25 = scmp.eq.s32.totalorder %s24, 0
    %s27 = sadd.s32 %s26, 1
    %s28 = scalar_select %p25, %s26, %s27
    %p31 = pneg %p25
    %p32 = scmp.eq.s32.totalorder %s16, 1
    %p33 = por %p31, %p32
    %p34 = scmp.ne.s32.totalorder %s26, %s29
    %p35 = scmp.eq.s32.totalorder %s16, 0
    %p36 = por %p34, %p35
    %p37 = scmp.ne.s32.totalorder %s26, %s29
    %p38 = scmp.eq.s32.totalorder %s21, 1
    %p39 = por %p37, %p38
    %p40 = scmp.ne.s32.totalorder %s29, %s30
    %p41 = scmp.eq.s32.totalorder %s21, 0
    %p42 = por %p40, %p41
    %p43 = scmp.ne.s32.totalorder %s29, %s30
    %p44 = scmp.eq.s32.totalorder %s22, 1
    %p45 = por %p43, %p44
    %p47 = scmp.ne.s32.totalorder %s30, %s46
    %p48 = scmp.eq.s32.totalorder %s22, 0
    %p49 = por %p47, %p48
    %s50 = ssub.s32 %s16, %s23
    %p51 = scmp.eq.s32.totalorder %s50, 0
    %s53 = sadd.s32 %s52, 1
    %s54 = scalar_select %p51, %s52, %s53
    %p57 = pneg %p51
    %p58 = scmp.eq.s32.totalorder %s16, 1
    %p59 = por %p57, %p58
    %p60 = scmp.ne.s32.totalorder %s52, %s55
    %p61 = scmp.eq.s32.totalorder %s16, 0
    %p62 = por %p60, %p61
    %p63 = scmp.ne.s32.totalorder %s52, %s55
    %p64 = scmp.eq.s32.totalorder %s21, 1
    %p65 = por %p63, %p64
    %p66 = scmp.ne.s32.totalorder %s55, %s56
    %p67 = scmp.eq.s32.totalorder %s21, 0
    %p68 = por %p66, %p67
    %p69 = scmp.ne.s32.totalorder %s55, %s56
    %p70 = scmp.eq.s32.totalorder %s22, 1
    %p71 = por %p69, %p70
    %p73 = scmp.ne.s32.totalorder %s56, %s72
    %p74 = scmp.eq.s32.totalorder %s22, 0
    %p75 = por %p73, %p74
    %s77 = sadd.s32 %s76, 1
    %p80 = scmp.eq.s32.totalorder %s16, 1
    %p81 = scmp.ne.s32.totalorder %s76, %s78
    %p82 = scmp.eq.s32.totalorder %s16, 0
    %p83 = por %p81, %p82
    %p84 = scmp.ne.s32.totalorder %s76, %s78
    %p85 = scmp.eq.s32.totalorder %s21, 1
    %p86 = por %p84, %p85
    %p87 = scmp.ne.s32.totalorder %s78, %s79
    %p88 = scmp.eq.s32.totalorder %s21, 0
    %p89 = por %p87, %p88
    %p90 = scmp.ne.s32.totalorder %s78, %s79
    %p91 = scmp.eq.s32.totalorder %s22, 1
    %p92 = por %p90, %p91
    %p94 = scmp.ne.s32.totalorder %s79, %s93
    %p95 = scmp.eq.s32.totalorder %s22, 0
    %p96 = por %p94, %p95
    %s98 = sadd.s32 %s97, 1
    %p101 = scmp.eq.s32.totalorder %s16, 1
    %p102 = scmp.ne.s32.totalorder %s97, %s99
    %p103 = scmp.eq.s32.totalorder %s16, 0
    %p104 = por %p102, %p103
    %p105 = scmp.ne.s32.totalorder %s97, %s99
    %p106 = scmp.eq.s32.totalorder %s21, 1
    %p107 = por %p105, %p106
    %p108 = scmp.ne.s32.totalorder %s99, %s100
    %p109 = scmp.eq.s32.totalorder %s21, 0
    %p110 = por %p108, %p109
    %p111 = scmp.ne.s32.totalorder %s99, %s100
    %p112 = scmp.eq.s32.totalorder %s22, 1
    %p113 = por %p111, %p112
    %p115 = scmp.ne.s32.totalorder %s100, %s114
    %p116 = scmp.eq.s32.totalorder %s22, 0
    %p117 = por %p115, %p116
    %s119 = sadd.s32 %s118, 1
    %p122 = scmp.eq.s32.totalorder %s16, 1
    %p123 = scmp.ne.s32.totalorder %s118, %s120
    %p124 = scmp.eq.s32.totalorder %s16, 0
    %p125 = por %p123, %p124
    %p126 = scmp.ne.s32.totalorder %s118, %s120
    %p127 = scmp.eq.s32.totalorder %s21, 1
    %p128 = por %p126, %p127
    %p129 = scmp.ne.s32.totalorder %s120, %s121
    %p130 = scmp.eq.s32.totalorder %s21, 0
    %p131 = por %p129, %p130
    %p132 = scmp.ne.s32.totalorder %s120, %s121
    %p133 = scmp.eq.s32.totalorder %s22, 1
    %p134 = por %p132, %p133
    %p136 = scmp.ne.s32.totalorder %s121, %s135
    %p137 = scmp.eq.s32.totalorder %s22, 0
    %p138 = por %p136, %p137
    %s140 = sadd.s32 %s139, 1
    %p143 = scmp.eq.s32.totalorder %s16, 1
    %p144 = scmp.ne.s32.totalorder %s139, %s141
    %p145 = scmp.eq.s32.totalorder %s16, 0
    %p146 = por %p144, %p145
    %p147 = scmp.ne.s32.totalorder %s139, %s141
    %p148 = scmp.eq.s32.totalorder %s21, 1
    %p149 = por %p147, %p148
    %p150 = scmp.ne.s32.totalorder %s141, %s142
    %p151 = scmp.eq.s32.totalorder %s21, 0
    %p152 = por %p150, %p151
    %p153 = scmp.ne.s32.totalorder %s141, %s142
    %p154 = scmp.eq.s32.totalorder %s22, 1
    %p155 = por %p153, %p154
    %p157 = scmp.ne.s32.totalorder %s142, %s156
    %p158 = scmp.eq.s32.totalorder %s22, 0
    %p159 = por %p157, %p158
    %s161 = sadd.s32 %s160, 1
    %p164 = scmp.eq.s32.totalorder %s16, 1
    %p165 = scmp.ne.s32.totalorder %s160, %s162
    %p166 = scmp.eq.s32.totalorder %s16, 0
    %p167 = por %p165, %p166
    %p168 = scmp.ne.s32.totalorder %s160, %s162
    %p169 = scmp.eq.s32.totalorder %s21, 1
    %p170 = por %p168, %p169
    %p171 = scmp.ne.s32.totalorder %s162, %s163
    %p172 = scmp.eq.s32.totalorder %s21, 0
    %p173 = por %p171, %p172
    %p174 = scmp.ne.s32.totalorder %s162, %s163
    %p175 = scmp.eq.s32.totalorder %s22, 1
    %p176 = por %p174, %p175
    %p178 = scmp.ne.s32.totalorder %s163, %s177
    %p179 = scmp.eq.s32.totalorder %s22, 0
    %p180 = por %p178, %p179
    %s182 = sadd.s32 %s181, 1
    %p185 = scmp.eq.s32.totalorder %s16, 1
    %p186 = scmp.ne.s32.totalorder %s181, %s183
    %p187 = scmp.eq.s32.totalorder %s16, 0
    %p188 = por %p186, %p187
    %p189 = scmp.ne.s32.totalorder %s181, %s183
    %p190 = scmp.eq.s32.totalorder %s21, 1
    %p191 = por %p189, %p190
    %p192 = scmp.ne.s32.totalorder %s183, %s184
    %p193 = scmp.eq.s32.totalorder %s21, 0
    %p194 = por %p192, %p193
    %p195 = scmp.ne.s32.totalorder %s183, %s184
    %p196 = scmp.eq.s32.totalorder %s22, 1
    %p197 = por %p195, %p196
    %p199 = scmp.ne.s32.totalorder %s184, %s198
    %p200 = scmp.eq.s32.totalorder %s22, 0
    %p201 = por %p199, %p200
    %s203 = sadd.s32 %s202, 1
    %p206 = scmp.eq.s32.totalorder %s16, 1
    %p207 = scmp.ne.s32.totalorder %s202, %s204
    %p208 = scmp.eq.s32.totalorder %s16, 0
    %p209 = por %p207, %p208
    %p210 = scmp.ne.s32.totalorder %s202, %s204
    %p211 = scmp.eq.s32.totalorder %s21, 1
    %p212 = por %p210, %p211
    %p213 = scmp.ne.s32.totalorder %s204, %s205
    %p214 = scmp.eq.s32.totalorder %s21, 0
    %p215 = por %p213, %p214
    %p216 = scmp.ne.s32.totalorder %s204, %s205
    %p217 = scmp.eq.s32.totalorder %s22, 1
    %p218 = por %p216, %p217
    %p220 = scmp.ne.s32.totalorder %s205, %s219
    %p221 = scmp.eq.s32.totalorder %s22, 0
    %p222 = por %p220, %p221
    %s224 = sadd.s32 %s223, 1
    %p227 = scmp.eq.s32.totalorder %s16, 1
    %p228 = scmp.ne.s32.totalorder %s223, %s225
    %p229 = scmp.eq.s32.totalorder %s16, 0
    %p230 = por %p228, %p229
    %p231 = scmp.ne.s32.totalorder %s223, %s225
    %p232 = scmp.eq.s32.totalorder %s21, 1
    %p233 = por %p231, %p232
    %p234 = scmp.ne.s32.totalorder %s225, %s226
    %p235 = scmp.eq.s32.totalorder %s21, 0
    %p236 = por %p234, %p235
    %p237 = scmp.ne.s32.totalorder %s225, %s226
    %p238 = scmp.eq.s32.totalorder %s22, 1
    %p239 = por %p237, %p238
    %p241 = scmp.ne.s32.totalorder %s226, %s240
    %p242 = scmp.eq.s32.totalorder %s22, 0
    %p243 = por %p241, %p242
    %s244 = ssub.s32 %s16, %s23
    %p245 = scmp.eq.s32.totalorder %s244, 0
    %s247 = sadd.s32 %s246, 1
    %s248 = scalar_select %p245, %s246, %s247
    %p251 = pneg %p245
    %p252 = scmp.eq.s32.totalorder %s16, 1
    %p253 = por %p251, %p252
    %p254 = scmp.ne.s32.totalorder %s246, %s249
    %p255 = scmp.eq.s32.totalorder %s16, 0
    %p256 = por %p254, %p255
    %p257 = scmp.ne.s32.totalorder %s246, %s249
    %p258 = scmp.eq.s32.totalorder %s21, 1
    %p259 = por %p257, %p258
    %p260 = scmp.ne.s32.totalorder %s249, %s250
    %p261 = scmp.eq.s32.totalorder %s21, 0
    %p262 = por %p260, %p261
    %p263 = scmp.ne.s32.totalorder %s249, %s250
    %p264 = scmp.eq.s32.totalorder %s22, 1
    %p265 = por %p263, %p264
    %p267 = scmp.ne.s32.totalorder %s250, %s266
    %p268 = scmp.eq.s32.totalorder %s22, 0
    %p269 = por %p267, %p268
    %p270 = scmp.le.s32.totalorder 1, %s16
    %p271 = scmp.lt.s32.totalorder %s16, 3
    %p272 = pnand %p270, %p271
    %p273 = pneg %p272
    // Predicated region
    $region9: #{model_forward.21} parent=5 // pred_check
      _
    $region10: #{model_forward.21} parent=5 // pred_check_branch
      %275 = sbr.rel (%p272) target = $region12
    $region11: #{model_forward.21} parent=5 // pred_region
      %s276 = ssub.s32 %s16, 1
      // Predicated region
      $region13: #{model_forward.21} parent=11 // pred_check
        %p277 = pneg %p89
      $region14: #{model_forward.21} parent=11 // pred_check_branch
        %279 = sbr.rel (%p277) target = $region16
      $region15: #{model_forward.21} parent=11 // pred_region
        _
      $region16: #{model_forward.21} parent=11 // pred_fallthru
        _
      // Predicated region
      $region17: #{model_forward.21} parent=11 // pred_check
        %p280 = pneg %p110
      $region18: #{model_forward.21} parent=11 // pred_check_branch
        %282 = sbr.rel (%p280) target = $region20
      $region19: #{model_forward.21} parent=11 // pred_region
        _
      $region20: #{model_forward.21} parent=11 // pred_fallthru
        _
      // Predicated region
      $region21: #{model_forward.21} parent=11 // pred_check
        %p283 = pneg %p131
      $region22: #{model_forward.21} parent=11 // pred_check_branch
        %285 = sbr.rel (%p283) target = $region24
      $region23: #{model_forward.21} parent=11 // pred_region
        _
      $region24: #{model_forward.21} parent=11 // pred_fallthru
        _
      // Predicated region
      $region25: #{model_forward.21} parent=11 // pred_check
        %p286 = pneg %p152
      $region26: #{model_forward.21} parent=11 // pred_check_branch
        %288 = sbr.rel (%p286) target = $region28
      $region27: #{model_forward.21} parent=11 // pred_region
        _
      $region28: #{model_forward.21} parent=11 // pred_fallthru
        _
      // Predicated region
      $region29: #{model_forward.21} parent=11 // pred_check
        %p289 = pneg %p173
      $region30: #{model_forward.21} parent=11 // pred_check_branch
        %291 = sbr.rel (%p289) target = $region32
      $region31: #{model_forward.21} parent=11 // pred_region
        _
      $region32: #{model_forward.21} parent=11 // pred_fallthru
        _
      // Predicated region
      $region33: #{model_forward.21} parent=11 // pred_check
        %p292 = pneg %p194
      $region34: #{model_forward.21} parent=11 // pred_check_branch
        %294 = sbr.rel (%p292) target = $region36
      $region35: #{model_forward.21} parent=11 // pred_region
        _
      $region36: #{model_forward.21} parent=11 // pred_fallthru
        _
      // Predicated region
      $region37: #{model_forward.21} parent=11 // pred_check
        %p295 = pneg %p215
      $region38: #{model_forward.21} parent=11 // pred_check_branch
        %297 = sbr.rel (%p295) target = $region40
      $region39: #{model_forward.21} parent=11 // pred_region
        _
      $region40: #{model_forward.21} parent=11 // pred_fallthru
        _
      // Predicated region
      $region41: #{model_forward.21} parent=11 // pred_check
        %p298 = pneg %p236
      $region42: #{model_forward.21} parent=11 // pred_check_branch
        %300 = sbr.rel (%p298) target = $region44
      $region43: #{model_forward.21} parent=11 // pred_region
        _
      $region44: #{model_forward.21} parent=11 // pred_fallthru
        _
    $region12: #{model_forward.21} parent=5 // pred_fallthru
      _
    %p301 = scmp.lt.s32.totalorder %s16, 2
    // Predicated region
    $region45: #{model_forward.21} parent=5 // pred_check
      %p302 = pneg %p301
    $region46: #{model_forward.21} parent=5 // pred_check_branch
      %304 = sbr.rel (%p302) target = $region48
    $region47: #{model_forward.21} parent=5 // pred_region
      // Predicated region
      $region49: #{model_forward.21} parent=47 // pred_check
        %p305 = pneg %p36
      $region50: #{model_forward.21} parent=47 // pred_check_branch
        %307 = sbr.rel (%p305) target = $region52
      $region51: #{model_forward.21} parent=47 // pred_region
        %p308 = scmp.lt.s32.totalorder %s16, 1
        %s309 = scalar_select %p308, %s16, 1
        %s310 = smul.addr %s309, 4
        %s311 = scalar_lea.vmem %s0, %s310
      $region52: #{model_forward.21} parent=47 // pred_fallthru
        _
      // Predicated region
      $region53: #{model_forward.21} parent=47 // pred_check
        %p312 = pneg %p62
      $region54: #{model_forward.21} parent=47 // pred_check_branch
        %314 = sbr.rel (%p312) target = $region56
      $region55: #{model_forward.21} parent=47 // pred_region
        %p315 = scmp.lt.s32.totalorder %s16, 1
        %s316 = scalar_select %p315, %s16, 1
        %s317 = smul.addr %s316, 4
        %s318 = scalar_lea.vmem %s1, %s317
      $region56: #{model_forward.21} parent=47 // pred_fallthru
        _
    $region48: #{model_forward.21} parent=5 // pred_fallthru
      _
    %p319 = scmp.le.s32.totalorder 1, %s16
    %p320 = scmp.lt.s32.totalorder %s16, 3
    %p321 = pnand %p319, %p320
    %p322 = pneg %p321
    // Predicated region
    $region57: #{model_forward.21} parent=5 // pred_check
      _
    $region58: #{model_forward.21} parent=5 // pred_check_branch
      %324 = sbr.rel (%p321) target = $region60
    $region59: #{model_forward.21} parent=5 // pred_region
      %s325 = ssub.s32 %s16, 1
      %p326 = scmp.lt.s32.totalorder %s21, 1
      %s327 = scalar_select %p326, %s21, 1
      %s328 = smul.addr %s327, 4
      %s329 = scalar_lea.vmem %s0, %s328
      %p330 = pneg %p42
      %p331 = pneg %p39
      %p332 = scmp.lt.s32.totalorder %s21, 1
      %s333 = scalar_select %p332, %s21, 1
      %s334 = smul.addr %s333, 4
      %s335 = scalar_lea.vmem %s1, %s334
      %p336 = pneg %p68
      %p337 = pneg %p65
      %p338 = pneg %p89
      %p339 = pneg %p86
      %p340 = pneg %p110
      %p341 = pneg %p107
      %p342 = pneg %p131
      %p343 = pneg %p128
      %p344 = pneg %p152
      %p345 = pneg %p149
      %p346 = pneg %p173
      %p347 = pneg %p170
      %p348 = pneg %p194
      %p349 = pneg %p191
      %p350 = pneg %p215
      %p351 = pneg %p212
      %p352 = pneg %p236
      %p353 = pneg %p233
      %p354 = pneg %p262
      %p355 = pneg %p259
      %p356 = scmp.lt.s32.totalorder %s21, 1
      %s357 = scalar_select %p356, %s21, 1
      %s358 = smul.addr %s357, 4
      %s359 = scalar_lea.vmem %s10, %s358
      %p360 = scmp.lt.s32.totalorder %s21, 1
      %s361 = scalar_select %p360, %s21, 1
      %s362 = smul.addr %s361, 4
      %s363 = scalar_lea.vmem %s0, %s362
      %p364 = scmp.lt.s32.totalorder %s21, 1
      %s365 = scalar_select %p364, %s21, 1
      %s366 = smul.addr %s365, 4
      %s367 = scalar_lea.vmem %s1, %s366
      %p368 = scmp.lt.s32.totalorder %s21, 1
      %s369 = scalar_select %p368, %s21, 1
      %s370 = smul.addr %s369, 4
      %s371 = scalar_lea.vmem %s10, %s370
      %v373 = vld [vmem:[%s363] sm:$0xf]
      %v374 = vld [vmem:[%s2] sm:$0x1]
      %v375 = vld [vmem:[%s3] sm:$0x1]
      %vm376 = vcmask 1043456
      %v377 = vsel %vm376, %v373, 0.0
      %378 = vadd.xlane.f32.xlu0 %v377
      %v379 = vpop.xlane.xlu0 %378
      %v380 = vrcp.pop 128.0
      %v381 = vmul.f32 %v379, %v380
      %v382 = vsub.f32 %v373, %v381
      %v383 = vmul.f32 %v382, %v382
      %v384 = vsel %vm376, %v383, 0.0
      %385 = vadd.xlane.f32.xlu0 %v384
      %v386 = vpop.xlane.xlu0 %385
      %v387 = vmul.f32 %v386, %v380
      %v388 = vadd.f32 %v387, 1e-05
      %v389 = vrsqrt.pop %v388
      %v390 = vmul.f32 %v382, %v389
      %v392 = vlaneseq
      %v393 = vshrl.u32 %v392, 7
      %v394 = vsub.s32 0, %v393
      %v395 = vrot.slane %v374, %v394
      %v397 = vmul.f32 %v390, %v395
      %v399 = vlaneseq
      %v400 = vshrl.u32 %v399, 7
      %v401 = vsub.s32 0, %v400
      %v402 = vrot.slane %v375, %v401
      %v404 = vadd.f32 %v397, %v402
      %v405 = vld [vmem:[%s367] sm:$0xf]
      %v406 = vpack.c.bf16 %v404, %v404
      %v407 = vld [vmem:[%s4] sm:$0xf]
      %v408 = vld [vmem:[%s4 + $0x4] sm:$0xf]
      %v409 = vld [vmem:[%s4 + $0x8] sm:$0xf]
      %v410 = vld [vmem:[%s4 + $0xc] sm:$0xf]
      %v411 = vld [vmem:[%s4 + $0x10] sm:$0xf]
      %v412 = vld [vmem:[%s4 + $0x14] sm:$0xf]
      %v413 = vld [vmem:[%s4 + $0x18] sm:$0xf]
      %v414 = vld [vmem:[%s4 + $0x1c] sm:$0xf]
      %v415 = vld [vmem:[%s4 + $0x20] sm:$0xf]
      %v416 = vld [vmem:[%s4 + $0x24] sm:$0xf]
      %v417 = vld [vmem:[%s4 + $0x28] sm:$0xf]
      %v418 = vld [vmem:[%s4 + $0x2c] sm:$0xf]
      %v419 = vld [vmem:[%s4 + $0x30] sm:$0xf]
      %v420 = vld [vmem:[%s4 + $0x34] sm:$0xf]
      %v421 = vld [vmem:[%s4 + $0x38] sm:$0xf]
      %v422 = vld [vmem:[%s4 + $0x3c] sm:$0xf]
      %v423 = vld [vmem:[%s5] sm:$0x1]
      %v425 = vlaneseq
      %v426 = vshrl.u32 %v425, 7
      %v427 = vsub.s32 0, %v426
      %v428 = vrot.slane %v423, %v427
      %v446 = vunpack.c.l.b16 %v407
      %v447 = vunpack.c.l.b16 %v408
      %v448 = vunpack.c.l.b16 %v409
      %v449 = vunpack.c.l.b16 %v410
      %v450 = vunpack.c.l.b16 %v411
      %v451 = vunpack.c.l.b16 %v412
      %v452 = vunpack.c.l.b16 %v413
      %v453 = vunpack.c.l.b16 %v414
      %v454 = vunpack.c.l.b16 %v415
      %v455 = vunpack.c.l.b16 %v416
      %v456 = vunpack.c.l.b16 %v417
      %v457 = vunpack.c.l.b16 %v418
      %v458 = vunpack.c.l.b16 %v419
      %v459 = vunpack.c.l.b16 %v420
      %v460 = vunpack.c.l.b16 %v421
      %v461 = vunpack.c.l.b16 %v422
      %v462 = vpack.c.b16 %v447, %v446
      %v463 = vpack.c.b16 %v449, %v448
      %v464 = vpack.c.b16 %v451, %v450
      %v465 = vpack.c.b16 %v453, %v452
      %v466 = vpack.c.b16 %v455, %v454
      %v467 = vpack.c.b16 %v457, %v456
      %v468 = vpack.c.b16 %v459, %v458
      %v469 = vpack.c.b16 %v461, %v460
      %478 = vmatprep.subr.bf16.mxu0 0
      %479 = vmatpush1.bf16.msra.mxu0 %v462
      %480 = vmatprep.subr.bf16.mxu0 0
      %481 = vmatpush1.bf16.msra.mxu0 %v463
      %482 = vmatprep.subr.bf16.mxu0 0
      %483 = vmatpush1.bf16.msra.mxu0 %v464
      %484 = vmatprep.subr.bf16.mxu0 0
      %485 = vmatpush1.bf16.msra.mxu0 %v465
      %486 = vmatprep.subr.bf16.mxu0 0
      %487 = vmatpush1.bf16.msra.mxu0 %v466
      %488 = vmatprep.subr.bf16.mxu0 0
      %489 = vmatpush1.bf16.msra.mxu0 %v467
      %490 = vmatprep.subr.bf16.mxu0 0
      %491 = vmatpush1.bf16.msra.mxu0 %v468
      %492 = vmatprep.subr.bf16.mxu0 0
      %493 = vmatpush1.bf16.msra.mxu0 %v469
      %494 = vmatprep.subr.bf16.mxu0 0
      %495 = vmatpush1.bf16.msra.mxu0 0
      %496 = vmatprep.subr.bf16.mxu0 0
      %497 = vmatpush1.bf16.msra.mxu0 0
      %498 = vmatprep.subr.bf16.mxu0 0
      %499 = vmatpush1.bf16.msra.mxu0 0
      %500 = vmatprep.subr.bf16.mxu0 0
      %501 = vmatpush1.bf16.msra.mxu0 0
      %502 = vmatprep.subr.bf16.mxu0 0
      %503 = vmatpush1.bf16.msra.mxu0 0
      %504 = vmatprep.subr.bf16.mxu0 0
      %505 = vmatpush1.bf16.msra.mxu0 0
      %506 = vmatprep.subr.bf16.mxu0 0
      %507 = vmatpush1.bf16.msra.mxu0 0
      %508 = vmatprep.subr.bf16.mxu0 0
      %509 = vmatpush1.bf16.msra.mxu0 0
      %510 = vmatprep.mubr.bf16.mxu0 0
      %511 = vmatmul.mubr.bf16.gmra.mrb[0].mxu0 %v406
      %v512 = vpop.f32.mrb[0].mxu0
      %v513 = vadd.f32 %v428, %v512
      %v514 = vpop.f32.mrb[0].mxu0
      %v515 = vpop.f32.mrb[0].mxu0
      %v516 = vpop.f32.mrb[0].mxu0
      %517 = vdwg.mxu0
      %v518 = vpack.c.bf16 %v405, %v405
      %v519 = vld [vmem:[%s6] sm:$0xff]
      %v520 = vld [vmem:[%s6 + $0x8] sm:$0xff]
      %v521 = vld [vmem:[%s6 + $0x10] sm:$0xff]
      %v522 = vld [vmem:[%s6 + $0x18] sm:$0xff]
      %v523 = vld [vmem:[%s6 + $0x20] sm:$0xff]
      %v524 = vld [vmem:[%s6 + $0x28] sm:$0xff]
      %v525 = vld [vmem:[%s6 + $0x30] sm:$0xff]
      %v526 = vld [vmem:[%s6 + $0x38] sm:$0xff]
      %v527 = vld [vmem:[%s6 + $0x40] sm:$0xff]
      %v528 = vld [vmem:[%s6 + $0x48] sm:$0xff]
      %v529 = vld [vmem:[%s6 + $0x50] sm:$0xff]
      %v530 = vld [vmem:[%s6 + $0x58] sm:$0xff]
      %v531 = vld [vmem:[%s6 + $0x60] sm:$0xff]
      %v532 = vld [vmem:[%s6 + $0x68] sm:$0xff]
      %v533 = vld [vmem:[%s6 + $0x70] sm:$0xff]
      %v534 = vld [vmem:[%s6 + $0x78] sm:$0xff]
      %v535 = vld [vmem:[%s7] sm:$0x3]
      %v537 = vlaneseq
      %v538 = vshrl.u32 %v537, 7
      %v539 = vsub.s32 0, %v538
      %v540 = vrot.slane %v535, %v539
      %v541 = vlaneseq
      %v542 = vshrl.u32 %v541, 7
      %v543 = vsub.s32 1, %v542
      %v544 = vrot.slane %v535, %v543
      %v563 = vunpack.c.l.b16 %v519
      %v564 = vunpack.c.h.b16 %v519
      %v565 = vunpack.c.l.b16 %v520
      %v566 = vunpack.c.h.b16 %v520
      %v567 = vunpack.c.l.b16 %v521
      %v568 = vunpack.c.h.b16 %v521
      %v569 = vunpack.c.l.b16 %v522
      %v570 = vunpack.c.h.b16 %v522
      %v571 = vunpack.c.l.b16 %v523
      %v572 = vunpack.c.h.b16 %v523
      %v573 = vunpack.c.l.b16 %v524
      %v574 = vunpack.c.h.b16 %v524
      %v575 = vunpack.c.l.b16 %v525
      %v576 = vunpack.c.h.b16 %v525
      %v577 = vunpack.c.l.b16 %v526
      %v578 = vunpack.c.h.b16 %v526
      %v579 = vunpack.c.l.b16 %v527
      %v580 = vunpack.c.h.b16 %v527
      %v581 = vunpack.c.l.b16 %v528
      %v582 = vunpack.c.h.b16 %v528
      %v583 = vunpack.c.l.b16 %v529
      %v584 = vunpack.c.h.b16 %v529
      %v585 = vunpack.c.l.b16 %v530
      %v586 = vunpack.c.h.b16 %v530
      %v587 = vunpack.c.l.b16 %v531
      %v588 = vunpack.c.h.b16 %v531
      %v589 = vunpack.c.l.b16 %v532
      %v590 = vunpack.c.h.b16 %v532
      %v591 = vunpack.c.l.b16 %v533
      %v592 = vunpack.c.h.b16 %v533
      %v593 = vunpack.c.l.b16 %v534
      %v594 = vunpack.c.h.b16 %v534
      %v595 = vpack.c.b16 %v565, %v563
      %v596 = vpack.c.b16 %v566, %v564
      %v597 = vpack.c.b16 %v569, %v567
      %v598 = vpack.c.b16 %v570, %v568
      %v599 = vpack.c.b16 %v573, %v571
      %v600 = vpack.c.b16 %v574, %v572
      %v601 = vpack.c.b16 %v577, %v575
      %v602 = vpack.c.b16 %v578, %v576
      %v603 = vpack.c.b16 %v581, %v579
      %v604 = vpack.c.b16 %v582, %v580
      %v605 = vpack.c.b16 %v585, %v583
      %v606 = vpack.c.b16 %v586, %v584
      %v607 = vpack.c.b16 %v589, %v587
      %v608 = vpack.c.b16 %v590, %v588
      %v609 = vpack.c.b16 %v593, %v591
      %v610 = vpack.c.b16 %v594, %v592
      %627 = vmatprep.subr.bf16.mxu0 %v596
      %628 = vmatpush1.bf16.msra.mxu0 %v595
      %629 = vmatprep.subr.bf16.mxu0 %v598
      %630 = vmatpush1.bf16.msra.mxu0 %v597
      %631 = vmatprep.subr.bf16.mxu0 %v600
      %632 = vmatpush1.bf16.msra.mxu0 %v599
      %633 = vmatprep.subr.bf16.mxu0 %v602
      %634 = vmatpush1.bf16.msra.mxu0 %v601
      %635 = vmatprep.subr.bf16.mxu0 %v604
      %636 = vmatpush1.bf16.msra.mxu0 %v603
      %637 = vmatprep.subr.bf16.mxu0 %v606
      %638 = vmatpush1.bf16.msra.mxu0 %v605
      %639 = vmatprep.subr.bf16.mxu0 %v608
      %640 = vmatpush1.bf16.msra.mxu0 %v607
      %641 = vmatprep.subr.bf16.mxu0 %v610
      %642 = vmatpush1.bf16.msra.mxu0 %v609
      %643 = vmatprep.subr.bf16.mxu0 0
      %644 = vmatpush1.bf16.msra.mxu0 0
      %645 = vmatprep.subr.bf16.mxu0 0
      %646 = vmatpush1.bf16.msra.mxu0 0
      %647 = vmatprep.subr.bf16.mxu0 0
      %648 = vmatpush1.bf16.msra.mxu0 0
      %649 = vmatprep.subr.bf16.mxu0 0
      %650 = vmatpush1.bf16.msra.mxu0 0
      %651 = vmatprep.subr.bf16.mxu0 0
      %652 = vmatpush1.bf16.msra.mxu0 0
      %653 = vmatprep.subr.bf16.mxu0 0
      %654 = vmatpush1.bf16.msra.mxu0 0
      %655 = vmatprep.subr.bf16.mxu0 0
      %656 = vmatpush1.bf16.msra.mxu0 0
      %657 = vmatprep.subr.bf16.mxu0 0
      %658 = vmatpush1.bf16.msra.mxu0 0
      %659 = vmatprep.mubr.bf16.mxu0 0
      %660 = vmatmul.mubr.bf16.gmra.mrb[0].mxu0 %v518
      %v661 = vpop.f32.mrb[0].mxu0
      %v662 = vadd.f32 %v540, %v661
      %v663 = vpop.f32.mrb[0].mxu0
      %v664 = vadd.f32 %v544, %v663
      %v665 = vpop.f32.mrb[0].mxu0
      %v666 = vpop.f32.mrb[0].mxu0
      %667 = vdwg.mxu0
      %v668 = vld [vmem:[%s8] sm:$0xff]
      %v669 = vld [vmem:[%s8 + $0x8] sm:$0xff]
      %v670 = vld [vmem:[%s8 + $0x10] sm:$0xff]
      %v671 = vld [vmem:[%s8 + $0x18] sm:$0xff]
      %v672 = vld [vmem:[%s8 + $0x20] sm:$0xff]
      %v673 = vld [vmem:[%s8 + $0x28] sm:$0xff]
      %v674 = vld [vmem:[%s8 + $0x30] sm:$0xff]
      %v675 = vld [vmem:[%s8 + $0x38] sm:$0xff]
      %v676 = vld [vmem:[%s8 + $0x40] sm:$0xff]
      %v677 = vld [vmem:[%s8 + $0x48] sm:$0xff]
      %v678 = vld [vmem:[%s8 + $0x50] sm:$0xff]
      %v679 = vld [vmem:[%s8 + $0x58] sm:$0xff]
      %v680 = vld [vmem:[%s8 + $0x60] sm:$0xff]
      %v681 = vld [vmem:[%s8 + $0x68] sm:$0xff]
      %v682 = vld [vmem:[%s8 + $0x70] sm:$0xff]
      %v683 = vld [vmem:[%s8 + $0x78] sm:$0xff]
      %v684 = vpack.c.bf16 %v513, %v513
      %v685 = vpack.c.bf16 %v662, %v662
      %v686 = vpack.c.bf16 %v664, %v664
      %vm687 = vcmask 261120
      %v689 = vsel %vm687, %v684, 0
      %v692 = vsel %vm687, %v685, 0
      %694 = vmatprep.subr.bf16.mxu0 0
      %695 = vmatpush1.bf16.xpose.msra.mxu0 %v692
      %696 = vmatprep.subr.bf16.mxu0 0
      %697 = vmatpush1.bf16.xpose.msra.mxu0 0
      %698 = vmatprep.subr.bf16.mxu0 0
      %699 = vmatpush1.bf16.xpose.msra.mxu0 0
      %700 = vmatprep.subr.bf16.mxu0 0
      %701 = vmatpush1.bf16.xpose.msra.mxu0 0
      %702 = vmatprep.subr.bf16.mxu0 0
      %703 = vmatpush1.bf16.xpose.msra.mxu0 0
      %704 = vmatprep.subr.bf16.mxu0 0
      %705 = vmatpush1.bf16.xpose.msra.mxu0 0
      %706 = vmatprep.subr.bf16.mxu0 0
      %707 = vmatpush1.bf16.xpose.msra.mxu0 0
      %708 = vmatprep.subr.bf16.mxu0 0
      %709 = vmatpush1.bf16.xpose.msra.mxu0 0
      %710 = vmatprep.subr.bf16.mxu0 0
      %711 = vmatpush1.bf16.xpose.msra.mxu0 0
      %712 = vmatprep.subr.bf16.mxu0 0
      %713 = vmatpush1.bf16.xpose.msra.mxu0 0
      %714 = vmatprep.subr.bf16.mxu0 0
      %715 = vmatpush1.bf16.xpose.msra.mxu0 0
      %716 = vmatprep.subr.bf16.mxu0 0
      %717 = vmatpush1.bf16.xpose.msra.mxu0 0
      %718 = vmatprep.subr.bf16.mxu0 0
      %719 = vmatpush1.bf16.xpose.msra.mxu0 0
      %720 = vmatprep.subr.bf16.mxu0 0
      %721 = vmatpush1.bf16.xpose.msra.mxu0 0
      %722 = vmatprep.subr.bf16.mxu0 0
      %723 = vmatpush1.bf16.xpose.msra.mxu0 0
      %724 = vmatprep.subr.bf16.mxu0 0
      %725 = vmatpush1.bf16.xpose.msra.mxu0 0
      %726 = vmatprep.mubr.bf16.mxu0 0
      %727 = vmatmul.mubr.bf16.gmra.mrb[0].mxu0 %v689
      %v728 = vpop.f32.mrb[0].mxu0
      %v729 = vadd.f32 0.0, %v728
      %v730 = vpop.f32.mrb[0].mxu0
      %v731 = vpop.f32.mrb[0].mxu0
      %v732 = vpop.f32.mrb[0].mxu0
      %733 = vdwg.mxu0
      %v734 = vmul.f32 %v729, 0.17677669
      %vm735 = vcmask 27648
      %v736 = vsel %vm735, %v734, -inf
      %737 = vmax.xlane.f32.xlu0 %v736
      %v738 = vpop.xlane.xlu0 %737
      %v739 = vsub.f32 %v734, %v738
      %v740 = vmul.f32 %v739, 1.442695
      %v741 = vpow.pop %v740
      %v742 = vsel %vm735, %v741, 0.0
      %743 = vadd.xlane.f32.xlu0 %v742
      %v744 = vpop.xlane.xlu0 %743
      %v745 = vrcp.pop %v744
      %v746 = vmul.f32 %v741, %v745
      %v747 = vpack.c.bf16 %v746, %v746
      %vm748 = vcmask 31744
      %v750 = vsel %vm748, %v747, 0
      %vm752 = vcmask 1041408
      %v754 = vsel %vm752, %v686, 0
      %756 = vmatprep.subr.bf16.mxu0 0
      %757 = vmatpush1.bf16.msra.mxu0 %v754
      %758 = vmatprep.subr.bf16.mxu0 0
      %759 = vmatpush1.bf16.msra.mxu0 0
      %760 = vmatprep.subr.bf16.mxu0 0
      %761 = vmatpush1.bf16.msra.mxu0 0
      %762 = vmatprep.subr.bf16.mxu0 0
      %763 = vmatpush1.bf16.msra.mxu0 0
      %764 = vmatprep.subr.bf16.mxu0 0
      %765 = vmatpush1.bf16.msra.mxu0 0
      %766 = vmatprep.subr.bf16.mxu0 0
      %767 = vmatpush1.bf16.msra.mxu0 0
      %768 = vmatprep.subr.bf16.mxu0 0
      %769 = vmatpush1.bf16.msra.mxu0 0
      %770 = vmatprep.subr.bf16.mxu0 0
      %771 = vmatpush1.bf16.msra.mxu0 0
      %772 = vmatprep.subr.bf16.mxu0 0
      %773 = vmatpush1.bf16.msra.mxu0 0
      %774 = vmatprep.subr.bf16.mxu0 0
      %775 = vmatpush1.bf16.msra.mxu0 0
      %776 = vmatprep.subr.bf16.mxu0 0
      %777 = vmatpush1.bf16.msra.mxu0 0
      %778 = vmatprep.subr.bf16.mxu0 0
      %779 = vmatpush1.bf16.msra.mxu0 0
      %780 = vmatprep.subr.bf16.mxu0 0
      %781 = vmatpush1.bf16.msra.mxu0 0
      %782 = vmatprep.subr.bf16.mxu0 0
      %783 = vmatpush1.bf16.msra.mxu0 0
      %784 = vmatprep.subr.bf16.mxu0 0
      %785 = vmatpush1.bf16.msra.mxu0 0
      %786 = vmatprep.subr.bf16.mxu0 0
      %787 = vmatpush1.bf16.msra.mxu0 0
      %788 = vmatprep.mubr.bf16.mxu0 0
      %789 = vmatmul.mubr.bf16.gmra.mrb[0].mxu0 %v750
      %v790 = vpop.f32.mrb[0].mxu0
      %v791 = vadd.f32 0.0, %v790
      %v792 = vpop.f32.mrb[0].mxu0
      %v793 = vpop.f32.mrb[0].mxu0
      %v794 = vpop.f32.mrb[0].mxu0
      %795 = vdwg.mxu0
      %v796 = vpack.c.bf16 %v791, %v791
      %v797 = vpack.c.bf16 %v669, %v668
      %v798 = vpack.c.bf16 %v671, %v670
      %800 = vrot.lane.b32.xlu0 %v684, 96
      %v801 = vpop.permute.xlu0 %800
      %803 = vrot.lane.b32.xlu0 %v685, 96
      %v804 = vpop.permute.xlu0 %803
      %v806 = vsel %vm687, %v801, 0
      %v809 = vsel %vm687, %v804, 0
      %811 = vmatprep.subr.bf16.mxu0 0
      %812 = vmatpush1.bf16.xpose.msra.mxu0 %v809
      %813 = vmatprep.subr.bf16.mxu0 0
      %814 = vmatpush1.bf16.xpose.msra.mxu0 0
      %815 = vmatprep.subr.bf16.mxu0 0
      %816 = vmatpush1.bf16.xpose.msra.mxu0 0
      %817 = vmatprep.subr.bf16.mxu0 0
      %818 = vmatpush1.bf16.xpose.msra.mxu0 0
      %819 = vmatprep.subr.bf16.mxu0 0
      %820 = vmatpush1.bf16.xpose.msra.mxu0 0
      %821 = vmatprep.subr.bf16.mxu0 0
      %822 = vmatpush1.bf16.xpose.msra.mxu0 0
      %823 = vmatprep.subr.bf16.mxu0 0
      %824 = vmatpush1.bf16.xpose.msra.mxu0 0
      %825 = vmatprep.subr.bf16.mxu0 0
      %826 = vmatpush1.bf16.xpose.msra.mxu0 0
      %827 = vmatprep.subr.bf16.mxu0 0
      %828 = vmatpush1.bf16.xpose.msra.mxu0 0
      %829 = vmatprep.subr.bf16.mxu0 0
      %830 = vmatpush1.bf16.xpose.msra.mxu0 0
      %831 = vmatprep.subr.bf16.mxu0 0
      %832 = vmatpush1.bf16.xpose.msra.mxu0 0
      %833 = vmatprep.subr.bf16.mxu0 0
      %834 = vmatpush1.bf16.xpose.msra.mxu0 0
      %835 = vmatprep.subr.bf16.mxu0 0
      %836 = vmatpush1.bf16.xpose.msra.mxu0 0
      %837 = vmatprep.subr.bf16.mxu0 0
      %838 = vmatpush1.bf16.xpose.msra.mxu0 0
      %839 = vmatprep.subr.bf16.mxu0 0
      %840 = vmatpush1.bf16.xpose.msra.mxu0 0
      %841 = vmatprep.subr.bf16.mxu0 0
      %842 = vmatpush1.bf16.xpose.msra.mxu0 0
      %843 = vmatprep.mubr.bf16.mxu0 0
      %844 = vmatmul.mubr.bf16.gmra.mrb[0].mxu0 %v806
      %v845 = vpop.f32.mrb[0].mxu0
      %v846 = vadd.f32 0.0, %v845
      %v847 = vpop.f32.mrb[0].mxu0
      %v848 = vpop.f32.mrb[0].mxu0
      %v849 = vpop.f32.mrb[0].mxu0
      %850 = vdwg.mxu0
      %v851 = vmul.f32 %v846, 0.17677669
      %v852 = vsel %vm735, %v851, -inf
      %853 = vmax.xlane.f32.xlu0 %v852
      %v854 = vpop.xlane.xlu0 %853
      %v855 = vsub.f32 %v851, %v854
      %v856 = vmul.f32 %v855, 1.442695
      %v857 = vpow.pop %v856
      %v858 = vsel %vm735, %v857, 0.0
      %859 = vadd.xlane.f32.xlu0 %v858
      %v860 = vpop.xlane.xlu0 %859
      %v861 = vrcp.pop %v860
      %v862 = vmul.f32 %v857, %v861
      %v863 = vpack.c.bf16 %v862, %v862
      %865 = vrot.lane.b32.xlu0 %v686, 96
      %v866 = vpop.permute.xlu0 %865
      %v868 = vsel %vm748, %v863, 0
      %v871 = vsel %vm752, %v866, 0
      %873 = vmatprep.subr.bf16.mxu0 0
      %874 = vmatpush1.bf16.msra.mxu0 %v871
      %875 = vmatprep.subr.bf16.mxu0 0
      %876 = vmatpush1.bf16.msra.mxu0 0
      %877 = vmatprep.subr.bf16.mxu0 0
      %878 = vmatpush1.bf16.msra.mxu0 0
      %879 = vmatprep.subr.bf16.mxu0 0
      %880 = vmatpush1.bf16.msra.mxu0 0
      %881 = vmatprep.subr.bf16.mxu0 0
      %882 = vmatpush1.bf16.msra.mxu0 0
      %883 = vmatprep.subr.bf16.mxu0 0
      %884 = vmatpush1.bf16.msra.mxu0 0
      %885 = vmatprep.subr.bf16.mxu0 0
      %886 = vmatpush1.bf16.msra.mxu0 0
      %887 = vmatprep.subr.bf16.mxu0 0
      %888 = vmatpush1.bf16.msra.mxu0 0
      %889 = vmatprep.subr.bf16.mxu0 0
      %890 = vmatpush1.bf16.msra.mxu0 0
      %891 = vmatprep.subr.bf16.mxu0 0
      %892 = vmatpush1.bf16.msra.mxu0 0
      %893 = vmatprep.subr.bf16.mxu0 0
      %894 = vmatpush1.bf16.msra.mxu0 0
      %895 = vmatprep.subr.bf16.mxu0 0
      %896 = vmatpush1.bf16.msra.mxu0 0
      %897 = vmatprep.subr.bf16.mxu0 0
      %898 = vmatpush1.bf16.msra.mxu0 0
      %899 = vmatprep.subr.bf16.mxu0 0
      %900 = vmatpush1.bf16.msra.mxu0 0
      %901 = vmatprep.subr.bf16.mxu0 0
      %902 = vmatpush1.bf16.msra.mxu0 0
      %903 = vmatprep.subr.bf16.mxu0 0
      %904 = vmatpush1.bf16.msra.mxu0 0
      %905 = vmatprep.mubr.bf16.mxu0 0
      %906 = vmatmul.mubr.bf16.gmra.mrb[0].mxu0 %v868
      %v907 = vpop.f32.mrb[0].mxu0
      %v908 = vadd.f32 0.0, %v907
      %v909 = vpop.f32.mrb[0].mxu0
      %v910 = vpop.f32.mrb[0].mxu0
      %v911 = vpop.f32.mrb[0].mxu0
      %912 = vdwg.mxu0
      %v913 = vpack.c.bf16 %v908, %v908
      %v914 = vpack.c.bf16 %v673, %v672
      %v915 = vpack.c.bf16 %v675, %v674
      %v917 = vsel %vm687, %v913, 0
      %919 = vmatprep.subr.bf16.mxu0 0
      %920 = vmatpush1.bf16.msra.mxu0 %v914
      %921 = vmatprep.subr.bf16.mxu0 0
      %922 = vmatpush1.bf16.msra.mxu0 %v915
      %923 = vmatprep.subr.bf16.mxu0 0
      %924 = vmatpush1.bf16.msra.mxu0 0
      %925 = vmatprep.subr.bf16.mxu0 0
      %926 = vmatpush1.bf16.msra.mxu0 0
      %927 = vmatprep.subr.bf16.mxu0 0
      %928 = vmatpush1.bf16.msra.mxu0 0
      %929 = vmatprep.subr.bf16.mxu0 0
      %930 = vmatpush1.bf16.msra.mxu0 0
      %931 = vmatprep.subr.bf16.mxu0 0
      %932 = vmatpush1.bf16.msra.mxu0 0
      %933 = vmatprep.subr.bf16.mxu0 0
      %934 = vmatpush1.bf16.msra.mxu0 0
      %935 = vmatprep.subr.bf16.mxu0 0
      %936 = vmatpush1.bf16.msra.mxu0 0
      %937 = vmatprep.subr.bf16.mxu0 0
      %938 = vmatpush1.bf16.msra.mxu0 0
      %939 = vmatprep.subr.bf16.mxu0 0
      %940 = vmatpush1.bf16.msra.mxu0 0
      %941 = vmatprep.subr.bf16.mxu0 0
      %942 = vmatpush1.bf16.msra.mxu0 0
      %943 = vmatprep.subr.bf16.mxu0 0
      %944 = vmatpush1.bf16.msra.mxu0 0
      %945 = vmatprep.subr.bf16.mxu0 0
      %946 = vmatpush1.bf16.msra.mxu0 0
      %947 = vmatprep.subr.bf16.mxu0 0
      %948 = vmatpush1.bf16.msra.mxu0 0
      %949 = vmatprep.subr.bf16.mxu0 0
      %950 = vmatpush1.bf16.msra.mxu0 0
      %951 = vmatprep.mubr.bf16.mxu0 0
      %952 = vmatmul.mubr.bf16.gmra.mrb[0].mxu0 %v917
      %v953 = vpop.f32.mrb[0].mxu0
      %v954 = vadd.f32 0.0, %v953
      %v955 = vpop.f32.mrb[0].mxu0
      %v956 = vpop.f32.mrb[0].mxu0
      %v957 = vpop.f32.mrb[0].mxu0
      %958 = vdwg.mxu0
      %v960 = vsel %vm687, %v796, 0
      %962 = vmatprep.subr.bf16.mxu0 0
      %963 = vmatpush1.bf16.msra.mxu0 %v797
      %964 = vmatprep.subr.bf16.mxu0 0
      %965 = vmatpush1.bf16.msra.mxu0 %v798
      %966 = vmatprep.subr.bf16.mxu0 0
      %967 = vmatpush1.bf16.msra.mxu0 0
      %968 = vmatprep.subr.bf16.mxu0 0
      %969 = vmatpush1.bf16.msra.mxu0 0
      %970 = vmatprep.subr.bf16.mxu0 0
      %971 = vmatpush1.bf16.msra.mxu0 0
      %972 = vmatprep.subr.bf16.mxu0 0
      %973 = vmatpush1.bf16.msra.mxu0 0
      %974 = vmatprep.subr.bf16.mxu0 0
      %975 = vmatpush1.bf16.msra.mxu0 0
      %976 = vmatprep.subr.bf16.mxu0 0
      %977 = vmatpush1.bf16.msra.mxu0 0
      %978 = vmatprep.subr.bf16.mxu0 0
      %979 = vmatpush1.bf16.msra.mxu0 0
      %980 = vmatprep.subr.bf16.mxu0 0
      %981 = vmatpush1.bf16.msra.mxu0 0
      %982 = vmatprep.subr.bf16.mxu0 0
      %983 = vmatpush1.bf16.msra.mxu0 0
      %984 = vmatprep.subr.bf16.mxu0 0
      %985 = vmatpush1.bf16.msra.mxu0 0
      %986 = vmatprep.subr.bf16.mxu0 0
      %987 = vmatpush1.bf16.msra.mxu0 0
      %988 = vmatprep.subr.bf16.mxu0 0
      %989 = vmatpush1.bf16.msra.mxu0 0
      %990 = vmatprep.subr.bf16.mxu0 0
      %991 = vmatpush1.bf16.msra.mxu0 0
      %992 = vmatprep.subr.bf16.mxu0 0
      %993 = vmatpush1.bf16.msra.mxu0 0
      %994 = vmatprep.mubr.bf16.mxu0 0
      %995 = vmatmul.mubr.bf16.gmra.mrb[0].mxu0 %v960
      %v996 = vpop.f32.mrb[0].mxu0
      %v997 = vadd.f32 %v954, %v996
      %v998 = vpop.f32.mrb[0].mxu0
      %v999 = vpop.f32.mrb[0].mxu0
      %v1000 = vpop.f32.mrb[0].mxu0
      %1001 = vdwg.mxu0
      %1002 = vrot.lane.b32.xlu0 %v684, 64
      %v1003 = vpop.permute.xlu0 %1002
      %1004 = vrot.lane.b32.xlu0 %v685, 64
      %v1005 = vpop.permute.xlu0 %1004
      %v1007 = vsel %vm687, %v1003, 0
      %v1010 = vsel %vm687, %v1005, 0
      %1012 = vmatprep.subr.bf16.mxu0 0
      %1013 = vmatpush1.bf16.xpose.msra.mxu0 %v1010
      %1014 = vmatprep.subr.bf16.mxu0 0
      %1015 = vmatpush1.bf16.xpose.msra.mxu0 0
      %1016 = vmatprep.subr.bf16.mxu0 0
      %1017 = vmatpush1.bf16.xpose.msra.mxu0 0
      %1018 = vmatprep.subr.bf16.mxu0 0
      %1019 = vmatpush1.bf16.xpose.msra.mxu0 0
      %1020 = vmatprep.subr.bf16.mxu0 0
      %1021 = vmatpush1.bf16.xpose.msra.mxu0 0
      %1022 = vmatprep.subr.bf16.mxu0 0
      %1023 = vmatpush1.bf16.xpose.msra.mxu0 0
      %1024 = vmatprep.subr.bf16.mxu0 0
      %1025 = vmatpush1.bf16.xpose.msra.mxu0 0
      %1026 = vmatprep.subr.bf16.mxu0 0
      %1027 = vmatpush1.bf16.xpose.msra.mxu0 0
      %1028 = vmatprep.subr.bf16.mxu0 0
      %1029 = vmatpush1.bf16.xpose.msra.mxu0 0
      %1030 = vmatprep.subr.bf16.mxu0 0
      %1031 = vmatpush1.bf16.xpose.msra.mxu0 0
      %1032 = vmatprep.subr.bf16.mxu0 0
      %1033 = vmatpush1.bf16.xpose.msra.mxu0 0
      %1034 = vmatprep.subr.bf16.mxu0 0
      %1035 = vmatpush1.bf16.xpose.msra.mxu0 0
      %1036 = vmatprep.subr.bf16.mxu0 0
      %1037 = vmatpush1.bf16.xpose.msra.mxu0 0
      %1038 = vmatprep.subr.bf16.mxu0 0
      %1039 = vmatpush1.bf16.xpose.msra.mxu0 0
      %1040 = vmatprep.subr.bf16.mxu0 0
      %1041 = vmatpush1.bf16.xpose.msra.mxu0 0
      %1042 = vmatprep.subr.bf16.mxu0 0
      %1043 = vmatpush1.bf16.xpose.msra.mxu0 0
      %1044 = vmatprep.mubr.bf16.mxu0 0
      %1045 = vmatmul.mubr.bf16.gmra.mrb[0].mxu0 %v1007
      %v1046 = vpop.f32.mrb[0].mxu0
      %v1047 = vadd.f32 0.0, %v1046
      %v1048 = vpop.f32.mrb[0].mxu0
      %v1049 = vpop.f32.mrb[0].mxu0
      %v1050 = vpop.f32.mrb[0].mxu0
      %1051 = vdwg.mxu0
      %v1052 = vmul.f32 %v1047, 0.17677669
      %v1053 = vsel %vm735, %v1052, -inf
      %1054 = vmax.xlane.f32.xlu0 %v1053
      %v1055 = vpop.xlane.xlu0 %1054
      %v1056 = vsub.f32 %v1052, %v1055
      %v1057 = vmul.f32 %v1056, 1.442695
      %v1058 = vpow.pop %v1057
      %v1059 = vsel %vm735, %v1058, 0.0
      %1060 = vadd.xlane.f32.xlu0 %v1059
      %v1061 = vpop.xlane.xlu0 %1060
      %v1062 = vrcp.pop %v1061
      %v1063 = vmul.f32 %v1058, %v1062
      %v1064 = vpack.c.bf16 %v1063, %v1063
      %1065 = vrot.lane.b32.xlu0 %v686, 64
      %v1066 = vpop.permute.xlu0 %1065
      %v1068 = vsel %vm748, %v1064, 0
      %v1071 = vsel %vm752, %v1066, 0
      %1073 = vmatprep.subr.bf16.mxu0 0
      %1074 = vmatpush1.bf16.msra.mxu0 %v1071
      %1075 = vmatprep.subr.bf16.mxu0 0
      %1076 = vmatpush1.bf16.msra.mxu0 0
      %1077 = vmatprep.subr.bf16.mxu0 0
      %1078 = vmatpush1.bf16.msra.mxu0 0
      %1079 = vmatprep.subr.bf16.mxu0 0
      %1080 = vmatpush1.bf16.msra.mxu0 0
      %1081 = vmatprep.subr.bf16.mxu0 0
      %1082 = vmatpush1.bf16.msra.mxu0 0
      %1083 = vmatprep.subr.bf16.mxu0 0
      %1084 = vmatpush1.bf16.msra.mxu0 0
      %1085 = vmatprep.subr.bf16.mxu0 0
      %1086 = vmatpush1.bf16.msra.mxu0 0
      %1087 = vmatprep.subr.bf16.mxu0 0
      %1088 = vmatpush1.bf16.msra.mxu0 0
      %1089 = vmatprep.subr.bf16.mxu0 0
      %1090 = vmatpush1.bf16.msra.mxu0 0
      %1091 = vmatprep.subr.bf16.mxu0 0
      %1092 = vmatpush1.bf16.msra.mxu0 0
      %1093 = vmatprep.subr.bf16.mxu0 0
      %1094 = vmatpush1.bf16.msra.mxu0 0
      %1095 = vmatprep.subr.bf16.mxu0 0
      %1096 = vmatpush1.bf16.msra.mxu0 0
      %1097 = vmatprep.subr.bf16.mxu0 0
      %1098 = vmatpush1.bf16.msra.mxu0 0
      %1099 = vmatprep.subr.bf16.mxu0 0
      %1100 = vmatpush1.bf16.msra.mxu0 0
      %1101 = vmatprep.subr.bf16.mxu0 0
      %1102 = vmatpush1.bf16.msra.mxu0 0
      %1103 = vmatprep.subr.bf16.mxu0 0
      %1104 = vmatpush1.bf16.msra.mxu0 0
      %1105 = vmatprep.mubr.bf16.mxu0 0
      %1106 = vmatmul.mubr.bf16.gmra.mrb[0].mxu0 %v1068
      %v1107 = vpop.f32.mrb[0].mxu0
      %v1108 = vadd.f32 0.0, %v1107
      %v1109 = vpop.f32.mrb[0].mxu0
      %v1110 = vpop.f32.mrb[0].mxu0
      %v1111 = vpop.f32.mrb[0].mxu0
      %1112 = vdwg.mxu0
      %v1113 = vpack.c.bf16 %v1108, %v1108
      %v1114 = vpack.c.bf16 %v677, %v676
      %v1115 = vpack.c.bf16 %v679, %v678
      %v1117 = vsel %vm687, %v1113, 0
      %1119 = vmatprep.subr.bf16.mxu0 0
      %1120 = vmatpush1.bf16.msra.mxu0 %v1114
      %1121 = vmatprep.subr.bf16.mxu0 0
      %1122 = vmatpush1.bf16.msra.mxu0 %v1115
      %1123 = vmatprep.subr.bf16.mxu0 0
      %1124 = vmatpush1.bf16.msra.mxu0 0
      %1125 = vmatprep.subr.bf16.mxu0 0
      %1126 = vmatpush1.bf16.msra.mxu0 0
      %1127 = vmatprep.subr.bf16.mxu0 0
      %1128 = vmatpush1.bf16.msra.mxu0 0
      %1129 = vmatprep.subr.bf16.mxu0 0
      %1130 = vmatpush1.bf16.msra.mxu0 0
      %1131 = vmatprep.subr.bf16.mxu0 0
      %1132 = vmatpush1.bf16.msra.mxu0 0
      %1133 = vmatprep.subr.bf16.mxu0 0
      %1134 = vmatpush1.bf16.msra.mxu0 0
      %1135 = vmatprep.subr.bf16.mxu0 0
      %1136 = vmatpush1.bf16.msra.mxu0 0
      %1137 = vmatprep.subr.bf16.mxu0 0
      %1138 = vmatpush1.bf16.msra.mxu0 0
      %1139 = vmatprep.subr.bf16.mxu0 0
      %1140 = vmatpush1.bf16.msra.mxu0 0
      %1141 = vmatprep.subr.bf16.mxu0 0
      %1142 = vmatpush1.bf16.msra.mxu0 0
      %1143 = vmatprep.subr.bf16.mxu0 0
      %1144 = vmatpush1.bf16.msra.mxu0 0
      %1145 = vmatprep.subr.bf16.mxu0 0
      %1146 = vmatpush1.bf16.msra.mxu0 0
      %1147 = vmatprep.subr.bf16.mxu0 0
      %1148 = vmatpush1.bf16.msra.mxu0 0
      %1149 = vmatprep.subr.bf16.mxu0 0
      %1150 = vmatpush1.bf16.msra.mxu0 0
      %1151 = vmatprep.mubr.bf16.mxu0 0
      %1152 = vmatmul.mubr.bf16.gmra.mrb[0].mxu0 %v1117
      %v1153 = vpop.f32.mrb[0].mxu0
      %v1154 = vadd.f32 0.0, %v1153
      %v1155 = vpop.f32.mrb[0].mxu0
      %v1156 = vpop.f32.mrb[0].mxu0
      %v1157 = vpop.f32.mrb[0].mxu0
      %1158 = vdwg.mxu0
      %v1159 = vadd.f32 %v997, %v1154
      %1160 = vrot.lane.b32.xlu0 %v684, 32
      %v1161 = vpop.permute.xlu0 %1160
      %1162 = vrot.lane.b32.xlu0 %v685, 32
      %v1163 = vpop.permute.xlu0 %1162
      %v1165 = vsel %vm687, %v1161, 0
      %v1168 = vsel %vm687, %v1163, 0
      %1170 = vmatprep.subr.bf16.mxu0 0
      %1171 = vmatpush1.bf16.xpose.msra.mxu0 %v1168
      %1172 = vmatprep.subr.bf16.mxu0 0
      %1173 = vmatpush1.bf16.xpose.msra.mxu0 0
      %1174 = vmatprep.subr.bf16.mxu0 0
      %1175 = vmatpush1.bf16.xpose.msra.mxu0 0
      %1176 = vmatprep.subr.bf16.mxu0 0
      %1177 = vmatpush1.bf16.xpose.msra.mxu0 0
      %1178 = vmatprep.subr.bf16.mxu0 0
      %1179 = vmatpush1.bf16.xpose.msra.mxu0 0
      %1180 = vmatprep.subr.bf16.mxu0 0
      %1181 = vmatpush1.bf16.xpose.msra.mxu0 0
      %1182 = vmatprep.subr.bf16.mxu0 0
      %1183 = vmatpush1.bf16.xpose.msra.mxu0 0
      %1184 = vmatprep.subr.bf16.mxu0 0
      %1185 = vmatpush1.bf16.xpose.msra.mxu0 0
      %1186 = vmatprep.subr.bf16.mxu0 0
      %1187 = vmatpush1.bf16.xpose.msra.mxu0 0
      %1188 = vmatprep.subr.bf16.mxu0 0
      %1189 = vmatpush1.bf16.xpose.msra.mxu0 0
      %1190 = vmatprep.subr.bf16.mxu0 0
      %1191 = vmatpush1.bf16.xpose.msra.mxu0 0
      %1192 = vmatprep.subr.bf16.mxu0 0
      %1193 = vmatpush1.bf16.xpose.msra.mxu0 0
      %1194 = vmatprep.subr.bf16.mxu0 0
      %1195 = vmatpush1.bf16.xpose.msra.mxu0 0
      %1196 = vmatprep.subr.bf16.mxu0 0
      %1197 = vmatpush1.bf16.xpose.msra.mxu0 0
      %1198 = vmatprep.subr.bf16.mxu0 0
      %1199 = vmatpush1.bf16.xpose.msra.mxu0 0
      %1200 = vmatprep.subr.bf16.mxu0 0
      %1201 = vmatpush1.bf16.xpose.msra.mxu0 0
      %1202 = vmatprep.mubr.bf16.mxu0 0
      %1203 = vmatmul.mubr.bf16.gmra.mrb[0].mxu0 %v1165
      %v1204 = vpop.f32.mrb[0].mxu0
      %v1205 = vadd.f32 0.0, %v1204
      %v1206 = vpop.f32.mrb[0].mxu0
      %v1207 = vpop.f32.mrb[0].mxu0
      %v1208 = vpop.f32.mrb[0].mxu0
      %1209 = vdwg.mxu0
      %v1210 = vmul.f32 %v1205, 0.17677669
      %v1211 = vsel %vm735, %v1210, -inf
      %1212 = vmax.xlane.f32.xlu0 %v1211
      %v1213 = vpop.xlane.xlu0 %1212
      %v1214 = vsub.f32 %v1210, %v1213
      %v1215 = vmul.f32 %v1214, 1.442695
      %v1216 = vpow.pop %v1215
      %v1217 = vsel %vm735, %v1216, 0.0
      %1218 = vadd.xlane.f32.xlu0 %v1217
      %v1219 = vpop.xlane.xlu0 %1218
      %v1220 = vrcp.pop %v1219
      %v1221 = vmul.f32 %v1216, %v1220
      %v1222 = vpack.c.bf16 %v1221, %v1221
      %1223 = vrot.lane.b32.xlu0 %v686, 32
      %v1224 = vpop.permute.xlu0 %1223
      %v1226 = vsel %vm748, %v1222, 0
      %v1229 = vsel %vm752, %v1224, 0
      %1231 = vmatprep.subr.bf16.mxu0 0
      %1232 = vmatpush1.bf16.msra.mxu0 %v1229
      %1233 = vmatprep.subr.bf16.mxu0 0
      %1234 = vmatpush1.bf16.msra.mxu0 0
      %1235 = vmatprep.subr.bf16.mxu0 0
      %1236 = vmatpush1.bf16.msra.mxu0 0
      %1237 = vmatprep.subr.bf16.mxu0 0
      %1238 = vmatpush1.bf16.msra.mxu0 0
      %1239 = vmatprep.subr.bf16.mxu0 0
      %1240 = vmatpush1.bf16.msra.mxu0 0
      %1241 = vmatprep.subr.bf16.mxu0 0
      %1242 = vmatpush1.bf16.msra.mxu0 0
      %1243 = vmatprep.subr.bf16.mxu0 0
      %1244 = vmatpush1.bf16.msra.mxu0 0
      %1245 = vmatprep.subr.bf16.mxu0 0
      %1246 = vmatpush1.bf16.msra.mxu0 0
      %1247 = vmatprep.subr.bf16.mxu0 0
      %1248 = vmatpush1.bf16.msra.mxu0 0
      %1249 = vmatprep.subr.bf16.mxu0 0
      %1250 = vmatpush1.bf16.msra.mxu0 0
      %1251 = vmatprep.subr.bf16.mxu0 0
      %1252 = vmatpush1.bf16.msra.mxu0 0
      %1253 = vmatprep.subr.bf16.mxu0 0
      %1254 = vmatpush1.bf16.msra.mxu0 0
      %1255 = vmatprep.subr.bf16.mxu0 0
      %1256 = vmatpush1.bf16.msra.mxu0 0
      %1257 = vmatprep.subr.bf16.mxu0 0
      %1258 = vmatpush1.bf16.msra.mxu0 0
      %1259 = vmatprep.subr.bf16.mxu0 0
      %1260 = vmatpush1.bf16.msra.mxu0 0
      %1261 = vmatprep.subr.bf16.mxu0 0
      %1262 = vmatpush1.bf16.msra.mxu0 0
      %1263 = vmatprep.mubr.bf16.mxu0 0
      %1264 = vmatmul.mubr.bf16.gmra.mrb[0].mxu0 %v1226
      %v1265 = vpop.f32.mrb[0].mxu0
      %v1266 = vadd.f32 0.0, %v1265
      %v1267 = vpop.f32.mrb[0].mxu0
      %v1268 = vpop.f32.mrb[0].mxu0
      %v1269 = vpop.f32.mrb[0].mxu0
      %1270 = vdwg.mxu0
      %v1271 = vpack.c.bf16 %v1266, %v1266
      %v1272 = vpack.c.bf16 %v681, %v680
      %v1273 = vpack.c.bf16 %v683, %v682
      %v1275 = vsel %vm687, %v1271, 0
      %1277 = vmatprep.subr.bf16.mxu0 0
      %1278 = vmatpush1.bf16.msra.mxu0 %v1272
      %1279 = vmatprep.subr.bf16.mxu0 0
      %1280 = vmatpush1.bf16.msra.mxu0 %v1273
      %1281 = vmatprep.subr.bf16.mxu0 0
      %1282 = vmatpush1.bf16.msra.mxu0 0
      %1283 = vmatprep.subr.bf16.mxu0 0
      %1284 = vmatpush1.bf16.msra.mxu0 0
      %1285 = vmatprep.subr.bf16.mxu0 0
      %1286 = vmatpush1.bf16.msra.mxu0 0
      %1287 = vmatprep.subr.bf16.mxu0 0
      %1288 = vmatpush1.bf16.msra.mxu0 0
      %1289 = vmatprep.subr.bf16.mxu0 0
      %1290 = vmatpush1.bf16.msra.mxu0 0
      %1291 = vmatprep.subr.bf16.mxu0 0
      %1292 = vmatpush1.bf16.msra.mxu0 0
      %1293 = vmatprep.subr.bf16.mxu0 0
      %1294 = vmatpush1.bf16.msra.mxu0 0
      %1295 = vmatprep.subr.bf16.mxu0 0
      %1296 = vmatpush1.bf16.msra.mxu0 0
      %1297 = vmatprep.subr.bf16.mxu0 0
      %1298 = vmatpush1.bf16.msra.mxu0 0
      %1299 = vmatprep.subr.bf16.mxu0 0
      %1300 = vmatpush1.bf16.msra.mxu0 0
      %1301 = vmatprep.subr.bf16.mxu0 0
      %1302 = vmatpush1.bf16.msra.mxu0 0
      %1303 = vmatprep.subr.bf16.mxu0 0
      %1304 = vmatpush1.bf16.msra.mxu0 0
      %1305 = vmatprep.subr.bf16.mxu0 0
      %1306 = vmatpush1.bf16.msra.mxu0 0
      %1307 = vmatprep.subr.bf16.mxu0 0
      %1308 = vmatpush1.bf16.msra.mxu0 0
      %1309 = vmatprep.mubr.bf16.mxu0 0
      %1310 = vmatmul.mubr.bf16.gmra.mrb[0].mxu0 %v1275
      %v1311 = vpop.f32.mrb[0].mxu0
      %v1312 = vadd.f32 0.0, %v1311
      %v1313 = vpop.f32.mrb[0].mxu0
      %v1314 = vpop.f32.mrb[0].mxu0
      %v1315 = vpop.f32.mrb[0].mxu0
      %1316 = vdwg.mxu0
      %v1317 = vadd.f32 %v1159, %v1312
      %v1318 = vadd.f32 %v404, %v1317
      %v1319 = vld [vmem:[%s9] sm:$0x1]
      %v1321 = vlaneseq
      %v1322 = vshrl.u32 %v1321, 7
      %v1323 = vsub.s32 0, %v1322
      %v1324 = vrot.slane %v1319, %v1323
      %v1326 = vadd.f32 %v1318, %v1324
      %1327 = vst [vmem:[%s371] sm:$0xf] %v1326
      %p1328 = scmp.lt.s32.totalorder %s21, 1
      %s1329 = scalar_select %p1328, %s21, 1
      %s1330 = smul.addr %s1329, 4
      %s1331 = scalar_lea.vmem %s10, %s1330
      // Predicated region
      $region61: #{model_forward.21} parent=59 // pred_check
        %p1332 = pneg %p259
      $region62: #{model_forward.21} parent=59 // pred_check_branch
        %1334 = sbr.rel (%p1332) target = $region64
      $region63: #{model_forward.21} parent=59 // pred_region
        _
      $region64: #{model_forward.21} parent=59 // pred_fallthru
        _
    $region60: #{model_forward.21} parent=5 // pred_fallthru
      _
    %p1335 = scmp.le.s32.totalorder 2, %s16
    // Predicated region
    $region65: #{model_forward.21} parent=5 // pred_check
      %p1336 = pneg %p1335
    $region66: #{model_forward.21} parent=5 // pred_check_branch
      %1338 = sbr.rel (%p1336) target = $region68
    $region67: #{model_forward.21} parent=5 // pred_region
      %s1339 = ssub.s32 %s16, 2
      // Predicated region
      $region69: #{model_forward.21} parent=67 // pred_check
        %p1340 = pneg %p265
      $region70: #{model_forward.21} parent=67 // pred_check_branch
        %1342 = sbr.rel (%p1340) target = $region72
      $region71: #{model_forward.21} parent=67 // pred_region
        %p1343 = scmp.lt.s32.totalorder %s22, 1
        %s1344 = scalar_select %p1343, %s22, 1
        %s1345 = smul.addr %s1344, 4
        %s1346 = scalar_lea.vmem %s10, %s1345
      $region72: #{model_forward.21} parent=67 // pred_fallthru
        _
    $region68: #{model_forward.21} parent=5 // pred_fallthru
      _
  $region6: #{model_forward.21} parent=0 // loop_footer
    %s20 = sadd.s32 1, %s16
  $region7: #{model_forward.21} parent=0 // loop_footer_branch
    %15 = sbr.rel target = $region3
  $region8: #{model_forward.21} parent=0 // loop_exit
    _

</llo_original>
